<compile_context>
chip_gen: v7x
topology: tpu7x:2x2x1
jax: 0.10.0
libtpu: 0.0.40
codegen_flags: <defaults>
</compile_context>

<pallas_src>
import jax
import jax.numpy as jnp
from jax.experimental import pallas as pl
from jax.experimental.pallas import tpu as pltpu


def _interp_kernel(wh_ref, ww_ref, x_ref, o_ref):
    x = x_ref[...].astype(jnp.float32)     # (nb, H, W)   compute in f32
    nb = x.shape[0]
    wh = wh_ref[...]                       # (Ho, H) f32  height weights
    ww = ww_ref[...]                       # (W, Wo) f32  width weights

    def bmm(a, b):
        return jax.lax.dot_general(
            a, b,
            dimension_numbers=(((2,), (1,)), ((0,), (0,))),
            preferred_element_type=jnp.float32,
            precision=jax.lax.Precision.HIGHEST)

    # Width interpolation:  (nb, H, W) @ (nb, W, Wo) -> (nb, H, Wo)
    t = bmm(x, jnp.broadcast_to(ww[None], (nb,) + ww.shape))
    # Height interpolation: (nb, Ho, H) @ (nb, H, Wo) -> (nb, Ho, Wo)
    o = bmm(jnp.broadcast_to(wh[None], (nb,) + wh.shape), t)
    o_ref[...] = o.astype(o_ref.dtype)


def interp_weight_matrix(in_size, out_size, mode, align_corners):
    """(out_size, in_size) f32 weights so that `out = W @ in` along one axis."""
    if mode == "nearest":
        # PyTorch F.interpolate(mode='nearest'): src = floor(dst * in / out)
        src = jnp.clip((jnp.arange(out_size) * in_size) // out_size, 0, in_size - 1)
        return jax.nn.one_hot(src, in_size, dtype=jnp.float32)
    if mode in ("linear", "bilinear"):
        if align_corners and out_size > 1:
            pos = jnp.arange(out_size, dtype=jnp.float32) * (
                (in_size - 1) / max(out_size - 1, 1))
        else:
            pos = (jnp.arange(out_size, dtype=jnp.float32) + 0.5) * (
                in_size / out_size) - 0.5
        pos = jnp.clip(pos, 0.0, in_size - 1)
        lo = jnp.floor(pos).astype(jnp.int32)
        hi = jnp.minimum(lo + 1, in_size - 1)
        frac = (pos - lo.astype(jnp.float32))[:, None]
        return (jax.nn.one_hot(lo, in_size, dtype=jnp.float32) * (1.0 - frac)
                + jax.nn.one_hot(hi, in_size, dtype=jnp.float32) * frac)
    # TODO(synk): 'bicubic' / 'area' modes are not two-tap separable; not implemented.
    raise NotImplementedError(f"Unsupported interpolation mode: {mode}")


def interpolate(x, size=None, scale_factor=None, mode="nearest",
                align_corners=True, *, vmem_budget_bytes=10 * 1024 * 1024):
    """Pallas TPU equivalent of Interpolate.forward for an NCHW input."""
    align_corners = align_corners if mode != "nearest" else None
    B, C, H, W = x.shape
    if scale_factor is not None:
        Ho, Wo = int(H * scale_factor), int(W * scale_factor)
    elif size is not None:
        Ho, Wo = int(size[0]), int(size[1])
    else:
        raise ValueError("Either size or scale_factor must be specified")

    wh = interp_weight_matrix(H, Ho, mode, align_corners)        # (Ho, H)
    ww = interp_weight_matrix(W, Wo, mode, align_corners).T      # (W, Wo)

    N = B * C
    xr = x.reshape(N, H, W)   # free, layout-compatible view — no extra HBM pass

    # Largest B*C block whose double-buffered IO + f32 intermediates fit the
    # VMEM budget (safe for v5e 16 MiB / v6e 32 MiB / v7x 32 MiB scoped VMEM).
    itemsize = x.dtype.itemsize
    per_n = (2 * (H * W + Ho * Wo) * itemsize                          # pipelined blocks
             + 4 * (H * W + W * Wo + H * Wo + Ho * H + 2 * Ho * Wo))   # f32 temps
    nb = max(1, min(N, vmem_budget_bytes // per_n))
    while N % nb:            # keep the grid exact (no ragged tail block)
        nb -= 1

    out = pl.pallas_call(
        _interp_kernel,
        out_shape=jax.ShapeDtypeStruct((N, Ho, Wo), x.dtype),
        grid=(N // nb,),
        in_specs=[
            pl.BlockSpec((Ho, H), lambda i: (0, 0)),        # weights stay resident
            pl.BlockSpec((W, Wo), lambda i: (0, 0)),
            pl.BlockSpec((nb, H, W), lambda i: (i, 0, 0)),
        ],
        out_specs=pl.BlockSpec((nb, Ho, Wo), lambda i: (i, 0, 0)),
        compiler_params=pltpu.CompilerParams(
            dimension_semantics=("parallel",)),   # sharded across v7x's 2 TCs
    )(wh, ww, xr)

    return out.reshape(B, C, Ho, Wo)


if __name__ == "__main__":
    key = jax.random.PRNGKey(0)
    x = jax.random.normal(key, (2, 4, 16, 16), dtype=jnp.float32)

    # 1) Flagship path: mode='nearest', scale_factor=2 (identical to the
    #    module's ConvTranspose2d identity-weight branch at eval time).
    y = interpolate(x, scale_factor=2.0, mode="nearest")
    jax.block_until_ready(y)
    assert y.shape == (2, 4, 32, 32) and y.dtype == x.dtype
    y_ref = jnp.repeat(jnp.repeat(x, 2, axis=2), 2, axis=3)
    assert jnp.allclose(y, y_ref, atol=1e-6, rtol=1e-6), "nearest x2 mismatch"

    # 2) size= path with a non-integer scale (nearest).
    Ho, Wo = 24, 40
    y2 = interpolate(x, size=(Ho, Wo), mode="nearest")
    jax.block_until_ready(y2)
    src_h = (jnp.arange(Ho) * 16) // Ho
    src_w = (jnp.arange(Wo) * 16) // Wo
    y2_ref = x[:, :, src_h, :][:, :, :, src_w]
    assert jnp.allclose(y2, y2_ref, atol=1e-6, rtol=1e-6), "nearest size= mismatch"

    # 3) bilinear, align_corners=True (module default) vs pure-JAX reference
    #    built from the same separable weight matrices.
    y3 = interpolate(x, scale_factor=2.0, mode="bilinear", align_corners=True)
    jax.block_until_ready(y3)
    wh_ref_mat = interp_weight_matrix(16, 32, "bilinear", True)   # (32, 16)
    ww_ref_mat = interp_weight_matrix(16, 32, "bilinear", True)   # (32, 16)
    y3_ref = jnp.einsum("ih,bchw,jw->bcij", wh_ref_mat, x, ww_ref_mat)
    assert jnp.allclose(y3, y3_ref, atol=1e-5, rtol=1e-5), "bilinear mismatch"

    print("KERNEL_OK")
</pallas_src>

<mosaic_0001>
module attributes {stable_mosaic.version = 11 : i64} {
  func.func @_interp_kernel(%arg0: i32, %arg1: memref<32x16xf32, #tpu.memory_space<vmem>>, %arg2: memref<16x32xf32, #tpu.memory_space<vmem>>, %arg3: memref<8x16x16xf32, #tpu.memory_space<vmem>>, %arg4: memref<8x32x32xf32, #tpu.memory_space<vmem>>) attributes {dimension_semantics = [#tpu.dimension_semantics<parallel>], iteration_bounds = array<i64: 1>, scalar_prefetch = 0 : i64, scratch_operands = 0 : i64, tpu.core_type = #tpu.core_type<tc>, window_params = [{pipeline_mode = #tpu.pipeline_mode<synchronous>, transform_indices = @transform_0, window_bounds = array<i64: 32, 16>}, {pipeline_mode = #tpu.pipeline_mode<synchronous>, transform_indices = @transform_1, window_bounds = array<i64: 16, 32>}, {transform_indices = @transform_2, window_bounds = array<i64: 8, 16, 16>}, {transform_indices = @transform_3, window_bounds = array<i64: 8, 32, 32>}]} {
    %c0 = arith.constant 0 : index
    %c0_0 = arith.constant 0 : index
    %c0_1 = arith.constant 0 : index
    %0 = vector.load %arg3[%c0, %c0_0, %c0_1] : memref<8x16x16xf32, #tpu.memory_space<vmem>>, vector<8x16x16xf32>
    %c0_2 = arith.constant 0 : index
    %c0_3 = arith.constant 0 : index
    %1 = vector.load %arg1[%c0_2, %c0_3] : memref<32x16xf32, #tpu.memory_space<vmem>>, vector<32x16xf32>
    %c0_4 = arith.constant 0 : index
    %c0_5 = arith.constant 0 : index
    %2 = vector.load %arg2[%c0_4, %c0_5] : memref<16x32xf32, #tpu.memory_space<vmem>>, vector<16x32xf32>
    %3 = vector.shape_cast %2 : vector<16x32xf32> to vector<1x16x32xf32>
    %4 = vector.shape_cast %3 : vector<1x16x32xf32> to vector<1x16x32xf32>
    %5 = vector.broadcast %4 : vector<1x16x32xf32> to vector<8x16x32xf32>
    %cst = arith.constant dense<0.000000e+00> : vector<8x16x32xf32>
    %6 = tpu.matmul %0, %5, %cst {dimension_numbers = #tpu.dot_dimension_numbers<[2], [1], [1], [2], [0, 0, 0, 1, 1, 2], [0], [0]>, precision = #tpu.contract_precision<fp32>} : vector<8x16x16xf32>, vector<8x16x32xf32>, vector<8x16x32xf32> -> vector<8x16x32xf32>
    %7 = vector.shape_cast %1 : vector<32x16xf32> to vector<1x32x16xf32>
    %8 = vector.shape_cast %7 : vector<1x32x16xf32> to vector<1x32x16xf32>
    %9 = vector.broadcast %8 : vector<1x32x16xf32> to vector<8x32x16xf32>
    %cst_6 = arith.constant dense<0.000000e+00> : vector<8x32x32xf32>
    %10 = tpu.matmul %9, %6, %cst_6 {dimension_numbers = #tpu.dot_dimension_numbers<[2], [1], [1], [2], [0, 0, 0, 1, 1, 2], [0], [0]>, precision = #tpu.contract_precision<fp32>} : vector<8x32x16xf32>, vector<8x16x32xf32>, vector<8x32x32xf32> -> vector<8x32x32xf32>
    %c0_7 = arith.constant 0 : index
    %c0_8 = arith.constant 0 : index
    %c0_9 = arith.constant 0 : index
    %11 = vector.load %arg4[%c0_7, %c0_8, %c0_9] : memref<8x32x32xf32, #tpu.memory_space<vmem>>, vector<8x32x32xf32>
    tpu.vector_store %arg4[%c0_7, %c0_8, %c0_9], %10 {strides = array<i32>} : memref<8x32x32xf32, #tpu.memory_space<vmem>>, vector<8x32x32xf32>,
    return
  }
  func.func @transform_0(%arg0: i32) -> (i32, i32) {
    %c0_i32 = arith.constant 0 : i32
    %c0_i32_0 = arith.constant 0 : i32
    %c0_i32_1 = arith.constant 0 : i32
    return %c0_i32, %c0_i32_0 : i32, i32
  }
  func.func @transform_1(%arg0: i32) -> (i32, i32) {
    %c0_i32 = arith.constant 0 : i32
    %c0_i32_0 = arith.constant 0 : i32
    %c0_i32_1 = arith.constant 0 : i32
    return %c0_i32, %c0_i32_0 : i32, i32
  }
  func.func @transform_2(%arg0: i32) -> (i32, i32, i32) {
    %c0_i32 = arith.constant 0 : i32
    %c0_i32_0 = arith.constant 0 : i32
    %c0_i32_1 = arith.constant 0 : i32
    return %arg0, %c0_i32, %c0_i32_0 : i32, i32, i32
  }
  func.func @transform_3(%arg0: i32) -> (i32, i32, i32) {
    %c0_i32 = arith.constant 0 : i32
    %c0_i32_0 = arith.constant 0 : i32
    %c0_i32_1 = arith.constant 0 : i32
    return %arg0, %c0_i32, %c0_i32_0 : i32, i32, i32
  }
}

</mosaic_0001>

<llo_original>
// kernel: tpu_custom_call.1
$region0: #{tpu_custom_call.1}
  #allocation0 [shape = 'u32[]', space=smem, size = 0x4, offset = 0x4, fixed_abs, tag = 'smem constant byte address 0x4 - core index']
  #allocation1 [shape = 'u32[144,128]{1,0:T(1,128)}', space=vmem, size = 0x12000, scoped, tag = 'internal scratch']
  %s0 = inlined_call_operand.vmem [shape: f32[32,16], index: 0, kind: input, shape index: {}]
  %s1 = inlined_call_operand.vmem [shape: f32[16,32], index: 1, kind: input, shape index: {}]
  %s2 = inlined_call_operand.hbm [shape: f32[8,16,16], index: 2, kind: input, shape index: {}]
  %s3 = inlined_call_operand.hbm [shape: f32[8,32,32], index: 3, kind: output, shape index: {}]
  %s4 = sld [smem:[#allocation0]]
  $region26: #{tpu_custom_call.1} parent=0
    _
  %s6 = ssub.s32 1, %s4
  %s7 = scalar_select 0, %s6, %s4
  $region1: #{tpu_custom_call.1} parent=0
    #allocation2 [shape = 'u8[65536]{0}', space=vmem, size = 0x10000, scoped, tag = 'input window, operand 2, single buffered']
    #allocation3 [shape = 's32[1]{0}', space=sflag, size = 0x4, scoped, tag = 'scoped memory for tpu_custom_call.1']
    #allocation4 [shape = 's32[1]{0}', space=sflag, size = 0x4, scoped, tag = 'scoped memory for tpu_custom_call.1']
    #allocation5 [shape = 'u8[131072]{0}', space=vmem, size = 0x20000, scoped, tag = 'output window, operand 0, single buffered']
    %8 = vsyncpa [#allocation3], 0
    %9 = vsyncpa [#allocation4], 0
    // Predicated region
    $region2: #{tpu_custom_call.1} parent=1 // pred_check
      _
    $region3: #{tpu_custom_call.1} parent=1 // pred_check_branch
      %11 = sbr.rel (0) target = $region5
    $region4: #{tpu_custom_call.1} parent=1 // pred_region
      _
    $region5: #{tpu_custom_call.1} parent=1 // pred_fallthru
      _
    // Predicated region
    $region6: #{tpu_custom_call.1} parent=1 // pred_check
      _
    $region7: #{tpu_custom_call.1} parent=1 // pred_check_branch
      %13 = sbr.rel (0) target = $region9
    $region8: #{tpu_custom_call.1} parent=1 // pred_region
      _
    $region9: #{tpu_custom_call.1} parent=1 // pred_fallthru
      _
    // Predicated region
    $region10: #{tpu_custom_call.1} parent=1 // pred_check
      _
    $region11: #{tpu_custom_call.1} parent=1 // pred_check_branch
      %15 = sbr.rel (0) target = $region13
    $region12: #{tpu_custom_call.1} parent=1 // pred_region
      %s17 = ssub.s32 2048, 2048
      %18 = vsyncadd [#allocation3], %s17
      %s19 = sshll.u32 [#allocation2], 4
      %s20 = int_to_ptr.vmem [resolvable:$true] %s19
      %25 = dma.hbm_to_vmem [thread:$0]  %s2, 2048, %s20, [#allocation3], 128, 128, 8
    $region13: #{tpu_custom_call.1} parent=1 // pred_fallthru
      _
    // Predicated region
    $region14: #{tpu_custom_call.1} parent=1 // pred_check
      _
    $region15: #{tpu_custom_call.1} parent=1 // pred_check_branch
      %27 = sbr.rel (0) target = $region17
    $region16: #{tpu_custom_call.1} parent=1 // pred_region
      %28 = dma.done [#allocation3], 2048
    $region17: #{tpu_custom_call.1} parent=1 // pred_fallthru
      _
    %v29 = vld [vmem:[#allocation2] sm:$0xff]
    %v30 = vld [vmem:[#allocation2 + $0x8] sm:$0xff]
    %v31 = vld [vmem:[#allocation2 + $0x10] sm:$0xff]
    %v32 = vld [vmem:[#allocation2 + $0x18] sm:$0xff]
    %v33 = vld [vmem:[#allocation2 + $0x20] sm:$0xff]
    %v34 = vld [vmem:[#allocation2 + $0x28] sm:$0xff]
    %v35 = vld [vmem:[#allocation2 + $0x30] sm:$0xff]
    %v36 = vld [vmem:[#allocation2 + $0x38] sm:$0xff]
    %v37 = vld [vmem:[#allocation2 + $0x40] sm:$0xff]
    %v38 = vld [vmem:[#allocation2 + $0x48] sm:$0xff]
    %v39 = vld [vmem:[#allocation2 + $0x50] sm:$0xff]
    %v40 = vld [vmem:[#allocation2 + $0x58] sm:$0xff]
    %v41 = vld [vmem:[#allocation2 + $0x60] sm:$0xff]
    %v42 = vld [vmem:[#allocation2 + $0x68] sm:$0xff]
    %v43 = vld [vmem:[#allocation2 + $0x70] sm:$0xff]
    %v44 = vld [vmem:[#allocation2 + $0x78] sm:$0xff]
    %v45 = vld [vmem:[%s0] sm:$0xff]
    %v46 = vld [vmem:[%s0 + $0x8] sm:$0xff]
    %v47 = vld [vmem:[%s0 + $0x10] sm:$0xff]
    %v48 = vld [vmem:[%s0 + $0x18] sm:$0xff]
    %v49 = vld [vmem:[%s1] sm:$0xff]
    %v50 = vld [vmem:[%s1 + $0x8] sm:$0xff]
    %vm51 = vcmask 130048
    %v53 = vsel %vm51, %v29, 0
    %v56 = vsel %vm51, %v30, 0
    %58 = vmatprep.subr.mxu0 0.0
    %v59 = vand.u32 %v49, 4294901760
    %60 = vmatpush1.msra.mxu0 %v59
    %61 = vmatprep.subr.mxu0 0.0
    %v62 = vand.u32 %v50, 4294901760
    %63 = vmatpush1.msra.mxu0 %v62
    %64 = vmatprep.subr.mxu0 0.0
    %65 = vmatpush1.msra.mxu0 0.0
    %66 = vmatprep.subr.mxu0 0.0
    %67 = vmatpush1.msra.mxu0 0.0
    %68 = vmatprep.subr.mxu0 0.0
    %69 = vmatpush1.msra.mxu0 0.0
    %70 = vmatprep.subr.mxu0 0.0
    %71 = vmatpush1.msra.mxu0 0.0
    %72 = vmatprep.subr.mxu0 0.0
    %73 = vmatpush1.msra.mxu0 0.0
    %74 = vmatprep.subr.mxu0 0.0
    %75 = vmatpush1.msra.mxu0 0.0
    %76 = vmatprep.subr.mxu0 0.0
    %77 = vmatpush1.msra.mxu0 0.0
    %78 = vmatprep.subr.mxu0 0.0
    %79 = vmatpush1.msra.mxu0 0.0
    %80 = vmatprep.subr.mxu0 0.0
    %81 = vmatpush1.msra.mxu0 0.0
    %82 = vmatprep.subr.mxu0 0.0
    %83 = vmatpush1.msra.mxu0 0.0
    %84 = vmatprep.subr.mxu0 0.0
    %85 = vmatpush1.msra.mxu0 0.0
    %86 = vmatprep.subr.mxu0 0.0
    %87 = vmatpush1.msra.mxu0 0.0
    %88 = vmatprep.subr.mxu0 0.0
    %89 = vmatpush1.msra.mxu0 0.0
    %90 = vmatprep.subr.mxu0 0.0
    %91 = vmatpush1.msra.mxu0 0.0
    %92 = vmatprep.subr.mxu0 0.0
    %93 = vmatpush1.msra.mxu0 0.0
    %94 = vmatprep.subr.mxu0 0.0
    %95 = vmatpush1.msra.mxu0 0.0
    %96 = vmatprep.subr.mxu0 0.0
    %97 = vmatpush1.msra.mxu0 0.0
    %98 = vmatprep.subr.mxu0 0.0
    %99 = vmatpush1.msra.mxu0 0.0
    %100 = vmatprep.subr.mxu0 0.0
    %101 = vmatpush1.msra.mxu0 0.0
    %102 = vmatprep.subr.mxu0 0.0
    %103 = vmatpush1.msra.mxu0 0.0
    %104 = vmatprep.subr.mxu0 0.0
    %105 = vmatpush1.msra.mxu0 0.0
    %106 = vmatprep.subr.mxu0 0.0
    %107 = vmatpush1.msra.mxu0 0.0
    %108 = vmatprep.subr.mxu0 0.0
    %109 = vmatpush1.msra.mxu0 0.0
    %110 = vmatprep.subr.mxu0 0.0
    %111 = vmatpush1.msra.mxu0 0.0
    %112 = vmatprep.subr.mxu0 0.0
    %113 = vmatpush1.msra.mxu0 0.0
    %114 = vmatprep.subr.mxu0 0.0
    %115 = vmatpush1.msra.mxu0 0.0
    %116 = vmatprep.subr.mxu0 0.0
    %117 = vmatpush1.msra.mxu0 0.0
    %118 = vmatprep.subr.mxu0 0.0
    %119 = vmatpush1.msra.mxu0 0.0
    %120 = vmatprep.subr.mxu0 0.0
    %121 = vmatpush1.msra.mxu0 0.0
    %122 = vmatprep.subr.mxu0 0.0
    %123 = vmatpush1.msra.mxu0 0.0
    %124 = vmatprep.mubr.f32.mxu0 0.0
    %v125 = vand.u32 %v53, 4294901760
    %v126 = vsub.f32 %v53, %v125
    %v127 = vand.u32 %v126, 4294901760
    %v128 = vsub.f32 %v126, %v127
    %v129 = vand.u32 %v128, 4294901760
    %130 = vmatmul.mubr.f32.gmra.mrb[0].mxu0 %v129
    %v131 = vpop.f32.mrb[0].mxu0
    %v132 = vadd.f32 0.0, %v131
    %v133 = vpop.f32.mrb[0].mxu0
    %134 = vmatprep.mubr.f32.mxu0 0.0
    %v135 = vand.u32 %v56, 4294901760
    %v136 = vsub.f32 %v56, %v135
    %v137 = vand.u32 %v136, 4294901760
    %v138 = vsub.f32 %v136, %v137
    %v139 = vand.u32 %v138, 4294901760
    %140 = vmatmul.mubr.f32.gmra.mrb[0].mxu0 %v139
    %v141 = vpop.f32.mrb[0].mxu0
    %v142 = vadd.f32 0.0, %v141
    %v143 = vpop.f32.mrb[0].mxu0
    %144 = vdwg.mxu0
    %145 = vmatprep.subr.mxu0 0.0
    %v146 = vand.u32 %v49, 4294901760
    %v147 = vsub.f32 %v49, %v146
    %v148 = vand.u32 %v147, 4294901760
    %v149 = vsub.f32 %v147, %v148
    %v150 = vand.u32 %v149, 4294901760
    %151 = vmatpush1.msra.mxu0 %v150
    %152 = vmatprep.subr.mxu0 0.0
    %v153 = vand.u32 %v50, 4294901760
    %v154 = vsub.f32 %v50, %v153
    %v155 = vand.u32 %v154, 4294901760
    %v156 = vsub.f32 %v154, %v155
    %v157 = vand.u32 %v156, 4294901760
    %158 = vmatpush1.msra.mxu0 %v157
    %159 = vmatprep.subr.mxu0 0.0
    %160 = vmatpush1.msra.mxu0 0.0
    %161 = vmatprep.subr.mxu0 0.0
    %162 = vmatpush1.msra.mxu0 0.0
    %163 = vmatprep.subr.mxu0 0.0
    %164 = vmatpush1.msra.mxu0 0.0
    %165 = vmatprep.subr.mxu0 0.0
    %166 = vmatpush1.msra.mxu0 0.0
    %167 = vmatprep.subr.mxu0 0.0
    %168 = vmatpush1.msra.mxu0 0.0
    %169 = vmatprep.subr.mxu0 0.0
    %170 = vmatpush1.msra.mxu0 0.0
    %171 = vmatprep.subr.mxu0 0.0
    %172 = vmatpush1.msra.mxu0 0.0
    %173 = vmatprep.subr.mxu0 0.0
    %174 = vmatpush1.msra.mxu0 0.0
    %175 = vmatprep.subr.mxu0 0.0
    %176 = vmatpush1.msra.mxu0 0.0
    %177 = vmatprep.subr.mxu0 0.0
    %178 = vmatpush1.msra.mxu0 0.0
    %179 = vmatprep.subr.mxu0 0.0
    %180 = vmatpush1.msra.mxu0 0.0
    %181 = vmatprep.subr.mxu0 0.0
    %182 = vmatpush1.msra.mxu0 0.0
    %183 = vmatprep.subr.mxu0 0.0
    %184 = vmatpush1.msra.mxu0 0.0
    %185 = vmatprep.subr.mxu0 0.0
    %186 = vmatpush1.msra.mxu0 0.0
    %187 = vmatprep.subr.mxu0 0.0
    %188 = vmatpush1.msra.mxu0 0.0
    %189 = vmatprep.subr.mxu0 0.0
    %190 = vmatpush1.msra.mxu0 0.0
    %191 = vmatprep.subr.mxu0 0.0
    %192 = vmatpush1.msra.mxu0 0.0
    %193 = vmatprep.subr.mxu0 0.0
    %194 = vmatpush1.msra.mxu0 0.0
    %195 = vmatprep.subr.mxu0 0.0
    %196 = vmatpush1.msra.mxu0 0.0
    %197 = vmatprep.subr.mxu0 0.0
    %198 = vmatpush1.msra.mxu0 0.0
    %199 = vmatprep.subr.mxu0 0.0
    %200 = vmatpush1.msra.mxu0 0.0
    %201 = vmatprep.subr.mxu0 0.0
    %202 = vmatpush1.msra.mxu0 0.0
    %203 = vmatprep.subr.mxu0 0.0
    %204 = vmatpush1.msra.mxu0 0.0
    %205 = vmatprep.subr.mxu0 0.0
    %206 = vmatpush1.msra.mxu0 0.0
    %207 = vmatprep.subr.mxu0 0.0
    %208 = vmatpush1.msra.mxu0 0.0
    %209 = vmatprep.subr.mxu0 0.0
    %210 = vmatpush1.msra.mxu0 0.0
    %211 = vmatprep.subr.mxu0 0.0
    %212 = vmatpush1.msra.mxu0 0.0
    %213 = vmatprep.subr.mxu0 0.0
    %214 = vmatpush1.msra.mxu0 0.0
    %215 = vmatprep.subr.mxu0 0.0
    %216 = vmatpush1.msra.mxu0 0.0
    %217 = vmatprep.subr.mxu0 0.0
    %218 = vmatpush1.msra.mxu0 0.0
    %219 = vmatprep.mubr.f32.mxu0 0.0
    %v220 = vand.u32 %v53, 4294901760
    %221 = vmatmul.mubr.f32.gmra.mrb[0].mxu0 %v220
    %v222 = vpop.f32.mrb[0].mxu0
    %v223 = vadd.f32 %v132, %v222
    %v224 = vpop.f32.mrb[0].mxu0
    %225 = vmatprep.mubr.f32.mxu0 0.0
    %v226 = vand.u32 %v56, 4294901760
    %227 = vmatmul.mubr.f32.gmra.mrb[0].mxu0 %v226
    %v228 = vpop.f32.mrb[0].mxu0
    %v229 = vadd.f32 %v142, %v228
    %v230 = vpop.f32.mrb[0].mxu0
    %231 = vdwg.mxu0
    %232 = vmatprep.subr.mxu0 0.0
    %v233 = vand.u32 %v49, 4294901760
    %v234 = vsub.f32 %v49, %v233
    %235 = vmatpush1.msra.mxu0 %v234
    %236 = vmatprep.subr.mxu0 0.0
    %v237 = vand.u32 %v50, 4294901760
    %v238 = vsub.f32 %v50, %v237
    %239 = vmatpush1.msra.mxu0 %v238
    %240 = vmatprep.subr.mxu0 0.0
    %241 = vmatpush1.msra.mxu0 0.0
    %242 = vmatprep.subr.mxu0 0.0
    %243 = vmatpush1.msra.mxu0 0.0
    %244 = vmatprep.subr.mxu0 0.0
    %245 = vmatpush1.msra.mxu0 0.0
    %246 = vmatprep.subr.mxu0 0.0
    %247 = vmatpush1.msra.mxu0 0.0
    %248 = vmatprep.subr.mxu0 0.0
    %249 = vmatpush1.msra.mxu0 0.0
    %250 = vmatprep.subr.mxu0 0.0
    %251 = vmatpush1.msra.mxu0 0.0
    %252 = vmatprep.subr.mxu0 0.0
    %253 = vmatpush1.msra.mxu0 0.0
    %254 = vmatprep.subr.mxu0 0.0
    %255 = vmatpush1.msra.mxu0 0.0
    %256 = vmatprep.subr.mxu0 0.0
    %257 = vmatpush1.msra.mxu0 0.0
    %258 = vmatprep.subr.mxu0 0.0
    %259 = vmatpush1.msra.mxu0 0.0
    %260 = vmatprep.subr.mxu0 0.0
    %261 = vmatpush1.msra.mxu0 0.0
    %262 = vmatprep.subr.mxu0 0.0
    %263 = vmatpush1.msra.mxu0 0.0
    %264 = vmatprep.subr.mxu0 0.0
    %265 = vmatpush1.msra.mxu0 0.0
    %266 = vmatprep.subr.mxu0 0.0
    %267 = vmatpush1.msra.mxu0 0.0
    %268 = vmatprep.subr.mxu0 0.0
    %269 = vmatpush1.msra.mxu0 0.0
    %270 = vmatprep.subr.mxu0 0.0
    %271 = vmatpush1.msra.mxu0 0.0
    %272 = vmatprep.subr.mxu0 0.0
    %273 = vmatpush1.msra.mxu0 0.0
    %274 = vmatprep.subr.mxu0 0.0
    %275 = vmatpush1.msra.mxu0 0.0
    %276 = vmatprep.subr.mxu0 0.0
    %277 = vmatpush1.msra.mxu0 0.0
    %278 = vmatprep.subr.mxu0 0.0
    %279 = vmatpush1.msra.mxu0 0.0
    %280 = vmatprep.subr.mxu0 0.0
    %281 = vmatpush1.msra.mxu0 0.0
    %282 = vmatprep.subr.mxu0 0.0
    %283 = vmatpush1.msra.mxu0 0.0
    %284 = vmatprep.subr.mxu0 0.0
    %285 = vmatpush1.msra.mxu0 0.0
    %286 = vmatprep.subr.mxu0 0.0
    %287 = vmatpush1.msra.mxu0 0.0
    %288 = vmatprep.subr.mxu0 0.0
    %289 = vmatpush1.msra.mxu0 0.0
    %290 = vmatprep.subr.mxu0 0.0
    %291 = vmatpush1.msra.mxu0 0.0
    %292 = vmatprep.subr.mxu0 0.0
    %293 = vmatpush1.msra.mxu0 0.0
    %294 = vmatprep.subr.mxu0 0.0
    %295 = vmatpush1.msra.mxu0 0.0
    %296 = vmatprep.subr.mxu0 0.0
    %297 = vmatpush1.msra.mxu0 0.0
    %298 = vmatprep.subr.mxu0 0.0
    %299 = vmatpush1.msra.mxu0 0.0
    %300 = vmatprep.mubr.f32.mxu0 0.0
    %v301 = vand.u32 %v53, 4294901760
    %v302 = vsub.f32 %v53, %v301
    %303 = vmatmul.mubr.f32.gmra.mrb[0].mxu0 %v302
    %v304 = vpop.f32.mrb[0].mxu0
    %v305 = vadd.f32 %v223, %v304
    %v306 = vpop.f32.mrb[0].mxu0
    %307 = vmatprep.mubr.f32.mxu0 0.0
    %v308 = vand.u32 %v56, 4294901760
    %v309 = vsub.f32 %v56, %v308
    %310 = vmatmul.mubr.f32.gmra.mrb[0].mxu0 %v309
    %v311 = vpop.f32.mrb[0].mxu0
    %v312 = vadd.f32 %v229, %v311
    %v313 = vpop.f32.mrb[0].mxu0
    %314 = vdwg.mxu0
    %315 = vmatprep.subr.mxu0 0.0
    %v316 = vand.u32 %v49, 4294901760
    %317 = vmatpush1.msra.mxu0 %v316
    %318 = vmatprep.subr.mxu0 0.0
    %v319 = vand.u32 %v50, 4294901760
    %320 = vmatpush1.msra.mxu0 %v319
    %321 = vmatprep.subr.mxu0 0.0
    %322 = vmatpush1.msra.mxu0 0.0
    %323 = vmatprep.subr.mxu0 0.0
    %324 = vmatpush1.msra.mxu0 0.0
    %325 = vmatprep.subr.mxu0 0.0
    %326 = vmatpush1.msra.mxu0 0.0
    %327 = vmatprep.subr.mxu0 0.0
    %328 = vmatpush1.msra.mxu0 0.0
    %329 = vmatprep.subr.mxu0 0.0
    %330 = vmatpush1.msra.mxu0 0.0
    %331 = vmatprep.subr.mxu0 0.0
    %332 = vmatpush1.msra.mxu0 0.0
    %333 = vmatprep.subr.mxu0 0.0
    %334 = vmatpush1.msra.mxu0 0.0
    %335 = vmatprep.subr.mxu0 0.0
    %336 = vmatpush1.msra.mxu0 0.0
    %337 = vmatprep.subr.mxu0 0.0
    %338 = vmatpush1.msra.mxu0 0.0
    %339 = vmatprep.subr.mxu0 0.0
    %340 = vmatpush1.msra.mxu0 0.0
    %341 = vmatprep.subr.mxu0 0.0
    %342 = vmatpush1.msra.mxu0 0.0
    %343 = vmatprep.subr.mxu0 0.0
    %344 = vmatpush1.msra.mxu0 0.0
    %345 = vmatprep.subr.mxu0 0.0
    %346 = vmatpush1.msra.mxu0 0.0
    %347 = vmatprep.subr.mxu0 0.0
    %348 = vmatpush1.msra.mxu0 0.0
    %349 = vmatprep.subr.mxu0 0.0
    %350 = vmatpush1.msra.mxu0 0.0
    %351 = vmatprep.subr.mxu0 0.0
    %352 = vmatpush1.msra.mxu0 0.0
    %353 = vmatprep.subr.mxu0 0.0
    %354 = vmatpush1.msra.mxu0 0.0
    %355 = vmatprep.subr.mxu0 0.0
    %356 = vmatpush1.msra.mxu0 0.0
    %357 = vmatprep.subr.mxu0 0.0
    %358 = vmatpush1.msra.mxu0 0.0
    %359 = vmatprep.subr.mxu0 0.0
    %360 = vmatpush1.msra.mxu0 0.0
    %361 = vmatprep.subr.mxu0 0.0
    %362 = vmatpush1.msra.mxu0 0.0
    %363 = vmatprep.subr.mxu0 0.0
    %364 = vmatpush1.msra.mxu0 0.0
    %365 = vmatprep.subr.mxu0 0.0
    %366 = vmatpush1.msra.mxu0 0.0
    %367 = vmatprep.subr.mxu0 0.0
    %368 = vmatpush1.msra.mxu0 0.0
    %369 = vmatprep.subr.mxu0 0.0
    %370 = vmatpush1.msra.mxu0 0.0
    %371 = vmatprep.subr.mxu0 0.0
    %372 = vmatpush1.msra.mxu0 0.0
    %373 = vmatprep.subr.mxu0 0.0
    %374 = vmatpush1.msra.mxu0 0.0
    %375 = vmatprep.subr.mxu0 0.0
    %376 = vmatpush1.msra.mxu0 0.0
    %377 = vmatprep.subr.mxu0 0.0
    %378 = vmatpush1.msra.mxu0 0.0
    %379 = vmatprep.subr.mxu0 0.0
    %380 = vmatpush1.msra.mxu0 0.0
    %381 = vmatprep.mubr.f32.mxu0 0.0
    %v382 = vand.u32 %v53, 4294901760
    %v383 = vsub.f32 %v53, %v382
    %v384 = vand.u32 %v383, 4294901760
    %385 = vmatmul.mubr.f32.gmra.mrb[0].mxu0 %v384
    %v386 = vpop.f32.mrb[0].mxu0
    %v387 = vadd.f32 %v305, %v386
    %v388 = vpop.f32.mrb[0].mxu0
    %389 = vmatprep.mubr.f32.mxu0 0.0
    %v390 = vand.u32 %v56, 4294901760
    %v391 = vsub.f32 %v56, %v390
    %v392 = vand.u32 %v391, 4294901760
    %393 = vmatmul.mubr.f32.gmra.mrb[0].mxu0 %v392
    %v394 = vpop.f32.mrb[0].mxu0
    %v395 = vadd.f32 %v312, %v394
    %v396 = vpop.f32.mrb[0].mxu0
    %397 = vdwg.mxu0
    %398 = vmatprep.subr.mxu0 0.0
    %v399 = vand.u32 %v49, 4294901760
    %v400 = vsub.f32 %v49, %v399
    %v401 = vand.u32 %v400, 4294901760
    %402 = vmatpush1.msra.mxu0 %v401
    %403 = vmatprep.subr.mxu0 0.0
    %v404 = vand.u32 %v50, 4294901760
    %v405 = vsub.f32 %v50, %v404
    %v406 = vand.u32 %v405, 4294901760
    %407 = vmatpush1.msra.mxu0 %v406
    %408 = vmatprep.subr.mxu0 0.0
    %409 = vmatpush1.msra.mxu0 0.0
    %410 = vmatprep.subr.mxu0 0.0
    %411 = vmatpush1.msra.mxu0 0.0
    %412 = vmatprep.subr.mxu0 0.0
    %413 = vmatpush1.msra.mxu0 0.0
    %414 = vmatprep.subr.mxu0 0.0
    %415 = vmatpush1.msra.mxu0 0.0
    %416 = vmatprep.subr.mxu0 0.0
    %417 = vmatpush1.msra.mxu0 0.0
    %418 = vmatprep.subr.mxu0 0.0
    %419 = vmatpush1.msra.mxu0 0.0
    %420 = vmatprep.subr.mxu0 0.0
    %421 = vmatpush1.msra.mxu0 0.0
    %422 = vmatprep.subr.mxu0 0.0
    %423 = vmatpush1.msra.mxu0 0.0
    %424 = vmatprep.subr.mxu0 0.0
    %425 = vmatpush1.msra.mxu0 0.0
    %426 = vmatprep.subr.mxu0 0.0
    %427 = vmatpush1.msra.mxu0 0.0
    %428 = vmatprep.subr.mxu0 0.0
    %429 = vmatpush1.msra.mxu0 0.0
    %430 = vmatprep.subr.mxu0 0.0
    %431 = vmatpush1.msra.mxu0 0.0
    %432 = vmatprep.subr.mxu0 0.0
    %433 = vmatpush1.msra.mxu0 0.0
    %434 = vmatprep.subr.mxu0 0.0
    %435 = vmatpush1.msra.mxu0 0.0
    %436 = vmatprep.subr.mxu0 0.0
    %437 = vmatpush1.msra.mxu0 0.0
    %438 = vmatprep.subr.mxu0 0.0
    %439 = vmatpush1.msra.mxu0 0.0
    %440 = vmatprep.subr.mxu0 0.0
    %441 = vmatpush1.msra.mxu0 0.0
    %442 = vmatprep.subr.mxu0 0.0
    %443 = vmatpush1.msra.mxu0 0.0
    %444 = vmatprep.subr.mxu0 0.0
    %445 = vmatpush1.msra.mxu0 0.0
    %446 = vmatprep.subr.mxu0 0.0
    %447 = vmatpush1.msra.mxu0 0.0
    %448 = vmatprep.subr.mxu0 0.0
    %449 = vmatpush1.msra.mxu0 0.0
    %450 = vmatprep.subr.mxu0 0.0
    %451 = vmatpush1.msra.mxu0 0.0
    %452 = vmatprep.subr.mxu0 0.0
    %453 = vmatpush1.msra.mxu0 0.0
    %454 = vmatprep.subr.mxu0 0.0
    %455 = vmatpush1.msra.mxu0 0.0
    %456 = vmatprep.subr.mxu0 0.0
    %457 = vmatpush1.msra.mxu0 0.0
    %458 = vmatprep.subr.mxu0 0.0
    %459 = vmatpush1.msra.mxu0 0.0
    %460 = vmatprep.subr.mxu0 0.0
    %461 = vmatpush1.msra.mxu0 0.0
    %462 = vmatprep.subr.mxu0 0.0
    %463 = vmatpush1.msra.mxu0 0.0
    %464 = vmatprep.subr.mxu0 0.0
    %465 = vmatpush1.msra.mxu0 0.0
    %466 = vmatprep.subr.mxu0 0.0
    %467 = vmatpush1.msra.mxu0 0.0
    %468 = vmatprep.mubr.f32.mxu0 0.0
    %v469 = vand.u32 %v53, 4294901760
    %470 = vmatmul.mubr.f32.gmra.mrb[0].mxu0 %v469
    %v471 = vpop.f32.mrb[0].mxu0
    %v472 = vadd.f32 %v387, %v471
    %v473 = vpop.f32.mrb[0].mxu0
    %474 = vmatprep.mubr.f32.mxu0 0.0
    %v475 = vand.u32 %v56, 4294901760
    %476 = vmatmul.mubr.f32.gmra.mrb[0].mxu0 %v475
    %v477 = vpop.f32.mrb[0].mxu0
    %v478 = vadd.f32 %v395, %v477
    %v479 = vpop.f32.mrb[0].mxu0
    %480 = vdwg.mxu0
    %481 = vmatprep.subr.mxu0 0.0
    %v482 = vand.u32 %v49, 4294901760
    %483 = vmatpush1.msra.mxu0 %v482
    %484 = vmatprep.subr.mxu0 0.0
    %v485 = vand.u32 %v50, 4294901760
    %486 = vmatpush1.msra.mxu0 %v485
    %487 = vmatprep.subr.mxu0 0.0
    %488 = vmatpush1.msra.mxu0 0.0
    %489 = vmatprep.subr.mxu0 0.0
    %490 = vmatpush1.msra.mxu0 0.0
    %491 = vmatprep.subr.mxu0 0.0
    %492 = vmatpush1.msra.mxu0 0.0
    %493 = vmatprep.subr.mxu0 0.0
    %494 = vmatpush1.msra.mxu0 0.0
    %495 = vmatprep.subr.mxu0 0.0
    %496 = vmatpush1.msra.mxu0 0.0
    %497 = vmatprep.subr.mxu0 0.0
    %498 = vmatpush1.msra.mxu0 0.0
    %499 = vmatprep.subr.mxu0 0.0
    %500 = vmatpush1.msra.mxu0 0.0
    %501 = vmatprep.subr.mxu0 0.0
    %502 = vmatpush1.msra.mxu0 0.0
    %503 = vmatprep.subr.mxu0 0.0
    %504 = vmatpush1.msra.mxu0 0.0
    %505 = vmatprep.subr.mxu0 0.0
    %506 = vmatpush1.msra.mxu0 0.0
    %507 = vmatprep.subr.mxu0 0.0
    %508 = vmatpush1.msra.mxu0 0.0
    %509 = vmatprep.subr.mxu0 0.0
    %510 = vmatpush1.msra.mxu0 0.0
    %511 = vmatprep.subr.mxu0 0.0
    %512 = vmatpush1.msra.mxu0 0.0
    %513 = vmatprep.subr.mxu0 0.0
    %514 = vmatpush1.msra.mxu0 0.0
    %515 = vmatprep.subr.mxu0 0.0
    %516 = vmatpush1.msra.mxu0 0.0
    %517 = vmatprep.subr.mxu0 0.0
    %518 = vmatpush1.msra.mxu0 0.0
    %519 = vmatprep.subr.mxu0 0.0
    %520 = vmatpush1.msra.mxu0 0.0
    %521 = vmatprep.subr.mxu0 0.0
    %522 = vmatpush1.msra.mxu0 0.0
    %523 = vmatprep.subr.mxu0 0.0
    %524 = vmatpush1.msra.mxu0 0.0
    %525 = vmatprep.subr.mxu0 0.0
    %526 = vmatpush1.msra.mxu0 0.0
    %527 = vmatprep.subr.mxu0 0.0
    %528 = vmatpush1.msra.mxu0 0.0
    %529 = vmatprep.subr.mxu0 0.0
    %530 = vmatpush1.msra.mxu0 0.0
    %531 = vmatprep.subr.mxu0 0.0
    %532 = vmatpush1.msra.mxu0 0.0
    %533 = vmatprep.subr.mxu0 0.0
    %534 = vmatpush1.msra.mxu0 0.0
    %535 = vmatprep.subr.mxu0 0.0
    %536 = vmatpush1.msra.mxu0 0.0
    %537 = vmatprep.subr.mxu0 0.0
    %538 = vmatpush1.msra.mxu0 0.0
    %539 = vmatprep.subr.mxu0 0.0
    %540 = vmatpush1.msra.mxu0 0.0
    %541 = vmatprep.subr.mxu0 0.0
    %542 = vmatpush1.msra.mxu0 0.0
    %543 = vmatprep.subr.mxu0 0.0
    %544 = vmatpush1.msra.mxu0 0.0
    %545 = vmatprep.subr.mxu0 0.0
    %546 = vmatpush1.msra.mxu0 0.0
    %547 = vmatprep.mubr.f32.mxu0 0.0
    %v548 = vand.u32 %v53, 4294901760
    %549 = vmatmul.mubr.f32.gmra.mrb[0].mxu0 %v548
    %v550 = vpop.f32.mrb[0].mxu0
    %v551 = vadd.f32 %v472, %v550
    %v552 = vpop.f32.mrb[0].mxu0
    %553 = vmatprep.mubr.f32.mxu0 0.0
    %v554 = vand.u32 %v56, 4294901760
    %555 = vmatmul.mubr.f32.gmra.mrb[0].mxu0 %v554
    %v556 = vpop.f32.mrb[0].mxu0
    %v557 = vadd.f32 %v478, %v556
    %v558 = vpop.f32.mrb[0].mxu0
    %559 = vdwg.mxu0
    %v561 = vsel %vm51, %v31, 0
    %v564 = vsel %vm51, %v32, 0
    %566 = vmatprep.subr.mxu0 0.0
    %v567 = vand.u32 %v49, 4294901760
    %568 = vmatpush1.msra.mxu0 %v567
    %569 = vmatprep.subr.mxu0 0.0
    %v570 = vand.u32 %v50, 4294901760
    %571 = vmatpush1.msra.mxu0 %v570
    %572 = vmatprep.subr.mxu0 0.0
    %573 = vmatpush1.msra.mxu0 0.0
    %574 = vmatprep.subr.mxu0 0.0
    %575 = vmatpush1.msra.mxu0 0.0
    %576 = vmatprep.subr.mxu0 0.0
    %577 = vmatpush1.msra.mxu0 0.0
    %578 = vmatprep.subr.mxu0 0.0
    %579 = vmatpush1.msra.mxu0 0.0
    %580 = vmatprep.subr.mxu0 0.0
    %581 = vmatpush1.msra.mxu0 0.0
    %582 = vmatprep.subr.mxu0 0.0
    %583 = vmatpush1.msra.mxu0 0.0
    %584 = vmatprep.subr.mxu0 0.0
    %585 = vmatpush1.msra.mxu0 0.0
    %586 = vmatprep.subr.mxu0 0.0
    %587 = vmatpush1.msra.mxu0 0.0
    %588 = vmatprep.subr.mxu0 0.0
    %589 = vmatpush1.msra.mxu0 0.0
    %590 = vmatprep.subr.mxu0 0.0
    %591 = vmatpush1.msra.mxu0 0.0
    %592 = vmatprep.subr.mxu0 0.0
    %593 = vmatpush1.msra.mxu0 0.0
    %594 = vmatprep.subr.mxu0 0.0
    %595 = vmatpush1.msra.mxu0 0.0
    %596 = vmatprep.subr.mxu0 0.0
    %597 = vmatpush1.msra.mxu0 0.0
    %598 = vmatprep.subr.mxu0 0.0
    %599 = vmatpush1.msra.mxu0 0.0
    %600 = vmatprep.subr.mxu0 0.0
    %601 = vmatpush1.msra.mxu0 0.0
    %602 = vmatprep.subr.mxu0 0.0
    %603 = vmatpush1.msra.mxu0 0.0
    %604 = vmatprep.subr.mxu0 0.0
    %605 = vmatpush1.msra.mxu0 0.0
    %606 = vmatprep.subr.mxu0 0.0
    %607 = vmatpush1.msra.mxu0 0.0
    %608 = vmatprep.subr.mxu0 0.0
    %609 = vmatpush1.msra.mxu0 0.0
    %610 = vmatprep.subr.mxu0 0.0
    %611 = vmatpush1.msra.mxu0 0.0
    %612 = vmatprep.subr.mxu0 0.0
    %613 = vmatpush1.msra.mxu0 0.0
    %614 = vmatprep.subr.mxu0 0.0
    %615 = vmatpush1.msra.mxu0 0.0
    %616 = vmatprep.subr.mxu0 0.0
    %617 = vmatpush1.msra.mxu0 0.0
    %618 = vmatprep.subr.mxu0 0.0
    %619 = vmatpush1.msra.mxu0 0.0
    %620 = vmatprep.subr.mxu0 0.0
    %621 = vmatpush1.msra.mxu0 0.0
    %622 = vmatprep.subr.mxu0 0.0
    %623 = vmatpush1.msra.mxu0 0.0
    %624 = vmatprep.subr.mxu0 0.0
    %625 = vmatpush1.msra.mxu0 0.0
    %626 = vmatprep.subr.mxu0 0.0
    %627 = vmatpush1.msra.mxu0 0.0
    %628 = vmatprep.subr.mxu0 0.0
    %629 = vmatpush1.msra.mxu0 0.0
    %630 = vmatprep.subr.mxu0 0.0
    %631 = vmatpush1.msra.mxu0 0.0
    %632 = vmatprep.mubr.f32.mxu0 0.0
    %v633 = vand.u32 %v561, 4294901760
    %v634 = vsub.f32 %v561, %v633
    %v635 = vand.u32 %v634, 4294901760
    %v636 = vsub.f32 %v634, %v635
    %v637 = vand.u32 %v636, 4294901760
    %638 = vmatmul.mubr.f32.gmra.mrb[0].mxu0 %v637
    %v639 = vpop.f32.mrb[0].mxu0
    %v640 = vadd.f32 0.0, %v639
    %v641 = vpop.f32.mrb[0].mxu0
    %642 = vmatprep.mubr.f32.mxu0 0.0
    %v643 = vand.u32 %v564, 4294901760
    %v644 = vsub.f32 %v564, %v643
    %v645 = vand.u32 %v644, 4294901760
    %v646 = vsub.f32 %v644, %v645
    %v647 = vand.u32 %v646, 4294901760
    %648 = vmatmul.mubr.f32.gmra.mrb[0].mxu0 %v647
    %v649 = vpop.f32.mrb[0].mxu0
    %v650 = vadd.f32 0.0, %v649
    %v651 = vpop.f32.mrb[0].mxu0
    %652 = vdwg.mxu0
    %653 = vmatprep.subr.mxu0 0.0
    %v654 = vand.u32 %v49, 4294901760
    %v655 = vsub.f32 %v49, %v654
    %v656 = vand.u32 %v655, 4294901760
    %v657 = vsub.f32 %v655, %v656
    %v658 = vand.u32 %v657, 4294901760
    %659 = vmatpush1.msra.mxu0 %v658
    %660 = vmatprep.subr.mxu0 0.0
    %v661 = vand.u32 %v50, 4294901760
    %v662 = vsub.f32 %v50, %v661
    %v663 = vand.u32 %v662, 4294901760
    %v664 = vsub.f32 %v662, %v663
    %v665 = vand.u32 %v664, 4294901760
    %666 = vmatpush1.msra.mxu0 %v665
    %667 = vmatprep.subr.mxu0 0.0
    %668 = vmatpush1.msra.mxu0 0.0
    %669 = vmatprep.subr.mxu0 0.0
    %670 = vmatpush1.msra.mxu0 0.0
    %671 = vmatprep.subr.mxu0 0.0
    %672 = vmatpush1.msra.mxu0 0.0
    %673 = vmatprep.subr.mxu0 0.0
    %674 = vmatpush1.msra.mxu0 0.0
    %675 = vmatprep.subr.mxu0 0.0
    %676 = vmatpush1.msra.mxu0 0.0
    %677 = vmatprep.subr.mxu0 0.0
    %678 = vmatpush1.msra.mxu0 0.0
    %679 = vmatprep.subr.mxu0 0.0
    %680 = vmatpush1.msra.mxu0 0.0
    %681 = vmatprep.subr.mxu0 0.0
    %682 = vmatpush1.msra.mxu0 0.0
    %683 = vmatprep.subr.mxu0 0.0
    %684 = vmatpush1.msra.mxu0 0.0
    %685 = vmatprep.subr.mxu0 0.0
    %686 = vmatpush1.msra.mxu0 0.0
    %687 = vmatprep.subr.mxu0 0.0
    %688 = vmatpush1.msra.mxu0 0.0
    %689 = vmatprep.subr.mxu0 0.0
    %690 = vmatpush1.msra.mxu0 0.0
    %691 = vmatprep.subr.mxu0 0.0
    %692 = vmatpush1.msra.mxu0 0.0
    %693 = vmatprep.subr.mxu0 0.0
    %694 = vmatpush1.msra.mxu0 0.0
    %695 = vmatprep.subr.mxu0 0.0
    %696 = vmatpush1.msra.mxu0 0.0
    %697 = vmatprep.subr.mxu0 0.0
    %698 = vmatpush1.msra.mxu0 0.0
    %699 = vmatprep.subr.mxu0 0.0
    %700 = vmatpush1.msra.mxu0 0.0
    %701 = vmatprep.subr.mxu0 0.0
    %702 = vmatpush1.msra.mxu0 0.0
    %703 = vmatprep.subr.mxu0 0.0
    %704 = vmatpush1.msra.mxu0 0.0
    %705 = vmatprep.subr.mxu0 0.0
    %706 = vmatpush1.msra.mxu0 0.0
    %707 = vmatprep.subr.mxu0 0.0
    %708 = vmatpush1.msra.mxu0 0.0
    %709 = vmatprep.subr.mxu0 0.0
    %710 = vmatpush1.msra.mxu0 0.0
    %711 = vmatprep.subr.mxu0 0.0
    %712 = vmatpush1.msra.mxu0 0.0
    %713 = vmatprep.subr.mxu0 0.0
    %714 = vmatpush1.msra.mxu0 0.0
    %715 = vmatprep.subr.mxu0 0.0
    %716 = vmatpush1.msra.mxu0 0.0
    %717 = vmatprep.subr.mxu0 0.0
    %718 = vmatpush1.msra.mxu0 0.0
    %719 = vmatprep.subr.mxu0 0.0
    %720 = vmatpush1.msra.mxu0 0.0
    %721 = vmatprep.subr.mxu0 0.0
    %722 = vmatpush1.msra.mxu0 0.0
    %723 = vmatprep.subr.mxu0 0.0
    %724 = vmatpush1.msra.mxu0 0.0
    %725 = vmatprep.subr.mxu0 0.0
    %726 = vmatpush1.msra.mxu0 0.0
    %727 = vmatprep.mubr.f32.mxu0 0.0
    %v728 = vand.u32 %v561, 4294901760
    %729 = vmatmul.mubr.f32.gmra.mrb[0].mxu0 %v728
    %v730 = vpop.f32.mrb[0].mxu0
    %v731 = vadd.f32 %v640, %v730
    %v732 = vpop.f32.mrb[0].mxu0
    %733 = vmatprep.mubr.f32.mxu0 0.0
    %v734 = vand.u32 %v564, 4294901760
    %735 = vmatmul.mubr.f32.gmra.mrb[0].mxu0 %v734
    %v736 = vpop.f32.mrb[0].mxu0
    %v737 = vadd.f32 %v650, %v736
    %v738 = vpop.f32.mrb[0].mxu0
    %739 = vdwg.mxu0
    %740 = vmatprep.subr.mxu0 0.0
    %v741 = vand.u32 %v49, 4294901760
    %v742 = vsub.f32 %v49, %v741
    %743 = vmatpush1.msra.mxu0 %v742
    %744 = vmatprep.subr.mxu0 0.0
    %v745 = vand.u32 %v50, 4294901760
    %v746 = vsub.f32 %v50, %v745
    %747 = vmatpush1.msra.mxu0 %v746
    %748 = vmatprep.subr.mxu0 0.0
    %749 = vmatpush1.msra.mxu0 0.0
    %750 = vmatprep.subr.mxu0 0.0
    %751 = vmatpush1.msra.mxu0 0.0
    %752 = vmatprep.subr.mxu0 0.0
    %753 = vmatpush1.msra.mxu0 0.0
    %754 = vmatprep.subr.mxu0 0.0
    %755 = vmatpush1.msra.mxu0 0.0
    %756 = vmatprep.subr.mxu0 0.0
    %757 = vmatpush1.msra.mxu0 0.0
    %758 = vmatprep.subr.mxu0 0.0
    %759 = vmatpush1.msra.mxu0 0.0
    %760 = vmatprep.subr.mxu0 0.0
    %761 = vmatpush1.msra.mxu0 0.0
    %762 = vmatprep.subr.mxu0 0.0
    %763 = vmatpush1.msra.mxu0 0.0
    %764 = vmatprep.subr.mxu0 0.0
    %765 = vmatpush1.msra.mxu0 0.0
    %766 = vmatprep.subr.mxu0 0.0
    %767 = vmatpush1.msra.mxu0 0.0
    %768 = vmatprep.subr.mxu0 0.0
    %769 = vmatpush1.msra.mxu0 0.0
    %770 = vmatprep.subr.mxu0 0.0
    %771 = vmatpush1.msra.mxu0 0.0
    %772 = vmatprep.subr.mxu0 0.0
    %773 = vmatpush1.msra.mxu0 0.0
    %774 = vmatprep.subr.mxu0 0.0
    %775 = vmatpush1.msra.mxu0 0.0
    %776 = vmatprep.subr.mxu0 0.0
    %777 = vmatpush1.msra.mxu0 0.0
    %778 = vmatprep.subr.mxu0 0.0
    %779 = vmatpush1.msra.mxu0 0.0
    %780 = vmatprep.subr.mxu0 0.0
    %781 = vmatpush1.msra.mxu0 0.0
    %782 = vmatprep.subr.mxu0 0.0
    %783 = vmatpush1.msra.mxu0 0.0
    %784 = vmatprep.subr.mxu0 0.0
    %785 = vmatpush1.msra.mxu0 0.0
    %786 = vmatprep.subr.mxu0 0.0
    %787 = vmatpush1.msra.mxu0 0.0
    %788 = vmatprep.subr.mxu0 0.0
    %789 = vmatpush1.msra.mxu0 0.0
    %790 = vmatprep.subr.mxu0 0.0
    %791 = vmatpush1.msra.mxu0 0.0
    %792 = vmatprep.subr.mxu0 0.0
    %793 = vmatpush1.msra.mxu0 0.0
    %794 = vmatprep.subr.mxu0 0.0
    %795 = vmatpush1.msra.mxu0 0.0
    %796 = vmatprep.subr.mxu0 0.0
    %797 = vmatpush1.msra.mxu0 0.0
    %798 = vmatprep.subr.mxu0 0.0
    %799 = vmatpush1.msra.mxu0 0.0
    %800 = vmatprep.subr.mxu0 0.0
    %801 = vmatpush1.msra.mxu0 0.0
    %802 = vmatprep.subr.mxu0 0.0
    %803 = vmatpush1.msra.mxu0 0.0
    %804 = vmatprep.subr.mxu0 0.0
    %805 = vmatpush1.msra.mxu0 0.0
    %806 = vmatprep.subr.mxu0 0.0
    %807 = vmatpush1.msra.mxu0 0.0
    %808 = vmatprep.mubr.f32.mxu0 0.0
    %v809 = vand.u32 %v561, 4294901760
    %v810 = vsub.f32 %v561, %v809
    %811 = vmatmul.mubr.f32.gmra.mrb[0].mxu0 %v810
    %v812 = vpop.f32.mrb[0].mxu0
    %v813 = vadd.f32 %v731, %v812
    %v814 = vpop.f32.mrb[0].mxu0
    %815 = vmatprep.mubr.f32.mxu0 0.0
    %v816 = vand.u32 %v564, 4294901760
    %v817 = vsub.f32 %v564, %v816
    %818 = vmatmul.mubr.f32.gmra.mrb[0].mxu0 %v817
    %v819 = vpop.f32.mrb[0].mxu0
    %v820 = vadd.f32 %v737, %v819
    %v821 = vpop.f32.mrb[0].mxu0
    %822 = vdwg.mxu0
    %823 = vmatprep.subr.mxu0 0.0
    %v824 = vand.u32 %v49, 4294901760
    %825 = vmatpush1.msra.mxu0 %v824
    %826 = vmatprep.subr.mxu0 0.0
    %v827 = vand.u32 %v50, 4294901760
    %828 = vmatpush1.msra.mxu0 %v827
    %829 = vmatprep.subr.mxu0 0.0
    %830 = vmatpush1.msra.mxu0 0.0
    %831 = vmatprep.subr.mxu0 0.0
    %832 = vmatpush1.msra.mxu0 0.0
    %833 = vmatprep.subr.mxu0 0.0
    %834 = vmatpush1.msra.mxu0 0.0
    %835 = vmatprep.subr.mxu0 0.0
    %836 = vmatpush1.msra.mxu0 0.0
    %837 = vmatprep.subr.mxu0 0.0
    %838 = vmatpush1.msra.mxu0 0.0
    %839 = vmatprep.subr.mxu0 0.0
    %840 = vmatpush1.msra.mxu0 0.0
    %841 = vmatprep.subr.mxu0 0.0
    %842 = vmatpush1.msra.mxu0 0.0
    %843 = vmatprep.subr.mxu0 0.0
    %844 = vmatpush1.msra.mxu0 0.0
    %845 = vmatprep.subr.mxu0 0.0
    %846 = vmatpush1.msra.mxu0 0.0
    %847 = vmatprep.subr.mxu0 0.0
    %848 = vmatpush1.msra.mxu0 0.0
    %849 = vmatprep.subr.mxu0 0.0
    %850 = vmatpush1.msra.mxu0 0.0
    %851 = vmatprep.subr.mxu0 0.0
    %852 = vmatpush1.msra.mxu0 0.0
    %853 = vmatprep.subr.mxu0 0.0
    %854 = vmatpush1.msra.mxu0 0.0
    %855 = vmatprep.subr.mxu0 0.0
    %856 = vmatpush1.msra.mxu0 0.0
    %857 = vmatprep.subr.mxu0 0.0
    %858 = vmatpush1.msra.mxu0 0.0
    %859 = vmatprep.subr.mxu0 0.0
    %860 = vmatpush1.msra.mxu0 0.0
    %861 = vmatprep.subr.mxu0 0.0
    %862 = vmatpush1.msra.mxu0 0.0
    %863 = vmatprep.subr.mxu0 0.0
    %864 = vmatpush1.msra.mxu0 0.0
    %865 = vmatprep.subr.mxu0 0.0
    %866 = vmatpush1.msra.mxu0 0.0
    %867 = vmatprep.subr.mxu0 0.0
    %868 = vmatpush1.msra.mxu0 0.0
    %869 = vmatprep.subr.mxu0 0.0
    %870 = vmatpush1.msra.mxu0 0.0
    %871 = vmatprep.subr.mxu0 0.0
    %872 = vmatpush1.msra.mxu0 0.0
    %873 = vmatprep.subr.mxu0 0.0
    %874 = vmatpush1.msra.mxu0 0.0
    %875 = vmatprep.subr.mxu0 0.0
    %876 = vmatpush1.msra.mxu0 0.0
    %877 = vmatprep.subr.mxu0 0.0
    %878 = vmatpush1.msra.mxu0 0.0
    %879 = vmatprep.subr.mxu0 0.0
    %880 = vmatpush1.msra.mxu0 0.0
    %881 = vmatprep.subr.mxu0 0.0
    %882 = vmatpush1.msra.mxu0 0.0
    %883 = vmatprep.subr.mxu0 0.0
    %884 = vmatpush1.msra.mxu0 0.0
    %885 = vmatprep.subr.mxu0 0.0
    %886 = vmatpush1.msra.mxu0 0.0
    %887 = vmatprep.subr.mxu0 0.0
    %888 = vmatpush1.msra.mxu0 0.0
    %889 = vmatprep.mubr.f32.mxu0 0.0
    %v890 = vand.u32 %v561, 4294901760
    %v891 = vsub.f32 %v561, %v890
    %v892 = vand.u32 %v891, 4294901760
    %893 = vmatmul.mubr.f32.gmra.mrb[0].mxu0 %v892
    %v894 = vpop.f32.mrb[0].mxu0
    %v895 = vadd.f32 %v813, %v894
    %v896 = vpop.f32.mrb[0].mxu0
    %897 = vmatprep.mubr.f32.mxu0 0.0
    %v898 = vand.u32 %v564, 4294901760
    %v899 = vsub.f32 %v564, %v898
    %v900 = vand.u32 %v899, 4294901760
    %901 = vmatmul.mubr.f32.gmra.mrb[0].mxu0 %v900
    %v902 = vpop.f32.mrb[0].mxu0
    %v903 = vadd.f32 %v820, %v902
    %v904 = vpop.f32.mrb[0].mxu0
    %905 = vdwg.mxu0
    %906 = vmatprep.subr.mxu0 0.0
    %v907 = vand.u32 %v49, 4294901760
    %v908 = vsub.f32 %v49, %v907
    %v909 = vand.u32 %v908, 4294901760
    %910 = vmatpush1.msra.mxu0 %v909
    %911 = vmatprep.subr.mxu0 0.0
    %v912 = vand.u32 %v50, 4294901760
    %v913 = vsub.f32 %v50, %v912
    %v914 = vand.u32 %v913, 4294901760
    %915 = vmatpush1.msra.mxu0 %v914
    %916 = vmatprep.subr.mxu0 0.0
    %917 = vmatpush1.msra.mxu0 0.0
    %918 = vmatprep.subr.mxu0 0.0
    %919 = vmatpush1.msra.mxu0 0.0
    %920 = vmatprep.subr.mxu0 0.0
    %921 = vmatpush1.msra.mxu0 0.0
    %922 = vmatprep.subr.mxu0 0.0
    %923 = vmatpush1.msra.mxu0 0.0
    %924 = vmatprep.subr.mxu0 0.0
    %925 = vmatpush1.msra.mxu0 0.0
    %926 = vmatprep.subr.mxu0 0.0
    %927 = vmatpush1.msra.mxu0 0.0
    %928 = vmatprep.subr.mxu0 0.0
    %929 = vmatpush1.msra.mxu0 0.0
    %930 = vmatprep.subr.mxu0 0.0
    %931 = vmatpush1.msra.mxu0 0.0
    %932 = vmatprep.subr.mxu0 0.0
    %933 = vmatpush1.msra.mxu0 0.0
    %934 = vmatprep.subr.mxu0 0.0
    %935 = vmatpush1.msra.mxu0 0.0
    %936 = vmatprep.subr.mxu0 0.0
    %937 = vmatpush1.msra.mxu0 0.0
    %938 = vmatprep.subr.mxu0 0.0
    %939 = vmatpush1.msra.mxu0 0.0
    %940 = vmatprep.subr.mxu0 0.0
    %941 = vmatpush1.msra.mxu0 0.0
    %942 = vmatprep.subr.mxu0 0.0
    %943 = vmatpush1.msra.mxu0 0.0
    %944 = vmatprep.subr.mxu0 0.0
    %945 = vmatpush1.msra.mxu0 0.0
    %946 = vmatprep.subr.mxu0 0.0
    %947 = vmatpush1.msra.mxu0 0.0
    %948 = vmatprep.subr.mxu0 0.0
    %949 = vmatpush1.msra.mxu0 0.0
    %950 = vmatprep.subr.mxu0 0.0
    %951 = vmatpush1.msra.mxu0 0.0
    %952 = vmatprep.subr.mxu0 0.0
    %953 = vmatpush1.msra.mxu0 0.0
    %954 = vmatprep.subr.mxu0 0.0
    %955 = vmatpush1.msra.mxu0 0.0
    %956 = vmatprep.subr.mxu0 0.0
    %957 = vmatpush1.msra.mxu0 0.0
    %958 = vmatprep.subr.mxu0 0.0
    %959 = vmatpush1.msra.mxu0 0.0
    %960 = vmatprep.subr.mxu0 0.0
    %961 = vmatpush1.msra.mxu0 0.0
    %962 = vmatprep.subr.mxu0 0.0
    %963 = vmatpush1.msra.mxu0 0.0
    %964 = vmatprep.subr.mxu0 0.0
    %965 = vmatpush1.msra.mxu0 0.0
    %966 = vmatprep.subr.mxu0 0.0
    %967 = vmatpush1.msra.mxu0 0.0
    %968 = vmatprep.subr.mxu0 0.0
    %969 = vmatpush1.msra.mxu0 0.0
    %970 = vmatprep.subr.mxu0 0.0
    %971 = vmatpush1.msra.mxu0 0.0
    %972 = vmatprep.subr.mxu0 0.0
    %973 = vmatpush1.msra.mxu0 0.0
    %974 = vmatprep.subr.mxu0 0.0
    %975 = vmatpush1.msra.mxu0 0.0
    %976 = vmatprep.mubr.f32.mxu0 0.0
    %v977 = vand.u32 %v561, 4294901760
    %978 = vmatmul.mubr.f32.gmra.mrb[0].mxu0 %v977
    %v979 = vpop.f32.mrb[0].mxu0
    %v980 = vadd.f32 %v895, %v979
    %v981 = vpop.f32.mrb[0].mxu0
    %982 = vmatprep.mubr.f32.mxu0 0.0
    %v983 = vand.u32 %v564, 4294901760
    %984 = vmatmul.mubr.f32.gmra.mrb[0].mxu0 %v983
    %v985 = vpop.f32.mrb[0].mxu0
    %v986 = vadd.f32 %v903, %v985
    %v987 = vpop.f32.mrb[0].mxu0
    %988 = vdwg.mxu0
    %989 = vmatprep.subr.mxu0 0.0
    %v990 = vand.u32 %v49, 4294901760
    %991 = vmatpush1.msra.mxu0 %v990
    %992 = vmatprep.subr.mxu0 0.0
    %v993 = vand.u32 %v50, 4294901760
    %994 = vmatpush1.msra.mxu0 %v993
    %995 = vmatprep.subr.mxu0 0.0
    %996 = vmatpush1.msra.mxu0 0.0
    %997 = vmatprep.subr.mxu0 0.0
    %998 = vmatpush1.msra.mxu0 0.0
    %999 = vmatprep.subr.mxu0 0.0
    %1000 = vmatpush1.msra.mxu0 0.0
    %1001 = vmatprep.subr.mxu0 0.0
    %1002 = vmatpush1.msra.mxu0 0.0
    %1003 = vmatprep.subr.mxu0 0.0
    %1004 = vmatpush1.msra.mxu0 0.0
    %1005 = vmatprep.subr.mxu0 0.0
    %1006 = vmatpush1.msra.mxu0 0.0
    %1007 = vmatprep.subr.mxu0 0.0
    %1008 = vmatpush1.msra.mxu0 0.0
    %1009 = vmatprep.subr.mxu0 0.0
    %1010 = vmatpush1.msra.mxu0 0.0
    %1011 = vmatprep.subr.mxu0 0.0
    %1012 = vmatpush1.msra.mxu0 0.0
    %1013 = vmatprep.subr.mxu0 0.0
    %1014 = vmatpush1.msra.mxu0 0.0
    %1015 = vmatprep.subr.mxu0 0.0
    %1016 = vmatpush1.msra.mxu0 0.0
    %1017 = vmatprep.subr.mxu0 0.0
    %1018 = vmatpush1.msra.mxu0 0.0
    %1019 = vmatprep.subr.mxu0 0.0
    %1020 = vmatpush1.msra.mxu0 0.0
    %1021 = vmatprep.subr.mxu0 0.0
    %1022 = vmatpush1.msra.mxu0 0.0
    %1023 = vmatprep.subr.mxu0 0.0
    %1024 = vmatpush1.msra.mxu0 0.0
    %1025 = vmatprep.subr.mxu0 0.0
    %1026 = vmatpush1.msra.mxu0 0.0
    %1027 = vmatprep.subr.mxu0 0.0
    %1028 = vmatpush1.msra.mxu0 0.0
    %1029 = vmatprep.subr.mxu0 0.0
    %1030 = vmatpush1.msra.mxu0 0.0
    %1031 = vmatprep.subr.mxu0 0.0
    %1032 = vmatpush1.msra.mxu0 0.0
    %1033 = vmatprep.subr.mxu0 0.0
    %1034 = vmatpush1.msra.mxu0 0.0
    %1035 = vmatprep.subr.mxu0 0.0
    %1036 = vmatpush1.msra.mxu0 0.0
    %1037 = vmatprep.subr.mxu0 0.0
    %1038 = vmatpush1.msra.mxu0 0.0
    %1039 = vmatprep.subr.mxu0 0.0
    %1040 = vmatpush1.msra.mxu0 0.0
    %1041 = vmatprep.subr.mxu0 0.0
    %1042 = vmatpush1.msra.mxu0 0.0
    %1043 = vmatprep.subr.mxu0 0.0
    %1044 = vmatpush1.msra.mxu0 0.0
    %1045 = vmatprep.subr.mxu0 0.0
    %1046 = vmatpush1.msra.mxu0 0.0
    %1047 = vmatprep.subr.mxu0 0.0
    %1048 = vmatpush1.msra.mxu0 0.0
    %1049 = vmatprep.subr.mxu0 0.0
    %1050 = vmatpush1.msra.mxu0 0.0
    %1051 = vmatprep.subr.mxu0 0.0
    %1052 = vmatpush1.msra.mxu0 0.0
    %1053 = vmatprep.subr.mxu0 0.0
    %1054 = vmatpush1.msra.mxu0 0.0
    %1055 = vmatprep.mubr.f32.mxu0 0.0
    %v1056 = vand.u32 %v561, 4294901760
    %1057 = vmatmul.mubr.f32.gmra.mrb[0].mxu0 %v1056
    %v1058 = vpop.f32.mrb[0].mxu0
    %v1059 = vadd.f32 %v980, %v1058
    %v1060 = vpop.f32.mrb[0].mxu0
    %1061 = vmatprep.mubr.f32.mxu0 0.0
    %v1062 = vand.u32 %v564, 4294901760
    %1063 = vmatmul.mubr.f32.gmra.mrb[0].mxu0 %v1062
    %v1064 = vpop.f32.mrb[0].mxu0
    %v1065 = vadd.f32 %v986, %v1064
    %v1066 = vpop.f32.mrb[0].mxu0
    %1067 = vdwg.mxu0
    %v1069 = vsel %vm51, %v33, 0
    %v1072 = vsel %vm51, %v34, 0
    %1074 = vmatprep.subr.mxu0 0.0
    %v1075 = vand.u32 %v49, 4294901760
    %1076 = vmatpush1.msra.mxu0 %v1075
    %1077 = vmatprep.subr.mxu0 0.0
    %v1078 = vand.u32 %v50, 4294901760
    %1079 = vmatpush1.msra.mxu0 %v1078
    %1080 = vmatprep.subr.mxu0 0.0
    %1081 = vmatpush1.msra.mxu0 0.0
    %1082 = vmatprep.subr.mxu0 0.0
    %1083 = vmatpush1.msra.mxu0 0.0
    %1084 = vmatprep.subr.mxu0 0.0
    %1085 = vmatpush1.msra.mxu0 0.0
    %1086 = vmatprep.subr.mxu0 0.0
    %1087 = vmatpush1.msra.mxu0 0.0
    %1088 = vmatprep.subr.mxu0 0.0
    %1089 = vmatpush1.msra.mxu0 0.0
    %1090 = vmatprep.subr.mxu0 0.0
    %1091 = vmatpush1.msra.mxu0 0.0
    %1092 = vmatprep.subr.mxu0 0.0
    %1093 = vmatpush1.msra.mxu0 0.0
    %1094 = vmatprep.subr.mxu0 0.0
    %1095 = vmatpush1.msra.mxu0 0.0
    %1096 = vmatprep.subr.mxu0 0.0
    %1097 = vmatpush1.msra.mxu0 0.0
    %1098 = vmatprep.subr.mxu0 0.0
    %1099 = vmatpush1.msra.mxu0 0.0
    %1100 = vmatprep.subr.mxu0 0.0
    %1101 = vmatpush1.msra.mxu0 0.0
    %1102 = vmatprep.subr.mxu0 0.0
    %1103 = vmatpush1.msra.mxu0 0.0
    %1104 = vmatprep.subr.mxu0 0.0
    %1105 = vmatpush1.msra.mxu0 0.0
    %1106 = vmatprep.subr.mxu0 0.0
    %1107 = vmatpush1.msra.mxu0 0.0
    %1108 = vmatprep.subr.mxu0 0.0
    %1109 = vmatpush1.msra.mxu0 0.0
    %1110 = vmatprep.subr.mxu0 0.0
    %1111 = vmatpush1.msra.mxu0 0.0
    %1112 = vmatprep.subr.mxu0 0.0
    %1113 = vmatpush1.msra.mxu0 0.0
    %1114 = vmatprep.subr.mxu0 0.0
    %1115 = vmatpush1.msra.mxu0 0.0
    %1116 = vmatprep.subr.mxu0 0.0
    %1117 = vmatpush1.msra.mxu0 0.0
    %1118 = vmatprep.subr.mxu0 0.0
    %1119 = vmatpush1.msra.mxu0 0.0
    %1120 = vmatprep.subr.mxu0 0.0
    %1121 = vmatpush1.msra.mxu0 0.0
    %1122 = vmatprep.subr.mxu0 0.0
    %1123 = vmatpush1.msra.mxu0 0.0
    %1124 = vmatprep.subr.mxu0 0.0
    %1125 = vmatpush1.msra.mxu0 0.0
    %1126 = vmatprep.subr.mxu0 0.0
    %1127 = vmatpush1.msra.mxu0 0.0
    %1128 = vmatprep.subr.mxu0 0.0
    %1129 = vmatpush1.msra.mxu0 0.0
    %1130 = vmatprep.subr.mxu0 0.0
    %1131 = vmatpush1.msra.mxu0 0.0
    %1132 = vmatprep.subr.mxu0 0.0
    %1133 = vmatpush1.msra.mxu0 0.0
    %1134 = vmatprep.subr.mxu0 0.0
    %1135 = vmatpush1.msra.mxu0 0.0
    %1136 = vmatprep.subr.mxu0 0.0
    %1137 = vmatpush1.msra.mxu0 0.0
    %1138 = vmatprep.subr.mxu0 0.0
    %1139 = vmatpush1.msra.mxu0 0.0
    %1140 = vmatprep.mubr.f32.mxu0 0.0
    %v1141 = vand.u32 %v1069, 4294901760
    %v1142 = vsub.f32 %v1069, %v1141
    %v1143 = vand.u32 %v1142, 4294901760
    %v1144 = vsub.f32 %v1142, %v1143
    %v1145 = vand.u32 %v1144, 4294901760
    %1146 = vmatmul.mubr.f32.gmra.mrb[0].mxu0 %v1145
    %v1147 = vpop.f32.mrb[0].mxu0
    %v1148 = vadd.f32 0.0, %v1147
    %v1149 = vpop.f32.mrb[0].mxu0
    %1150 = vmatprep.mubr.f32.mxu0 0.0
    %v1151 = vand.u32 %v1072, 4294901760
    %v1152 = vsub.f32 %v1072, %v1151
    %v1153 = vand.u32 %v1152, 4294901760
    %v1154 = vsub.f32 %v1152, %v1153
    %v1155 = vand.u32 %v1154, 4294901760
    %1156 = vmatmul.mubr.f32.gmra.mrb[0].mxu0 %v1155
    %v1157 = vpop.f32.mrb[0].mxu0
    %v1158 = vadd.f32 0.0, %v1157
    %v1159 = vpop.f32.mrb[0].mxu0
    %1160 = vdwg.mxu0
    %1161 = vmatprep.subr.mxu0 0.0
    %v1162 = vand.u32 %v49, 4294901760
    %v1163 = vsub.f32 %v49, %v1162
    %v1164 = vand.u32 %v1163, 4294901760
    %v1165 = vsub.f32 %v1163, %v1164
    %v1166 = vand.u32 %v1165, 4294901760
    %1167 = vmatpush1.msra.mxu0 %v1166
    %1168 = vmatprep.subr.mxu0 0.0
    %v1169 = vand.u32 %v50, 4294901760
    %v1170 = vsub.f32 %v50, %v1169
    %v1171 = vand.u32 %v1170, 4294901760
    %v1172 = vsub.f32 %v1170, %v1171
    %v1173 = vand.u32 %v1172, 4294901760
    %1174 = vmatpush1.msra.mxu0 %v1173
    %1175 = vmatprep.subr.mxu0 0.0
    %1176 = vmatpush1.msra.mxu0 0.0
    %1177 = vmatprep.subr.mxu0 0.0
    %1178 = vmatpush1.msra.mxu0 0.0
    %1179 = vmatprep.subr.mxu0 0.0
    %1180 = vmatpush1.msra.mxu0 0.0
    %1181 = vmatprep.subr.mxu0 0.0
    %1182 = vmatpush1.msra.mxu0 0.0
    %1183 = vmatprep.subr.mxu0 0.0
    %1184 = vmatpush1.msra.mxu0 0.0
    %1185 = vmatprep.subr.mxu0 0.0
    %1186 = vmatpush1.msra.mxu0 0.0
    %1187 = vmatprep.subr.mxu0 0.0
    %1188 = vmatpush1.msra.mxu0 0.0
    %1189 = vmatprep.subr.mxu0 0.0
    %1190 = vmatpush1.msra.mxu0 0.0
    %1191 = vmatprep.subr.mxu0 0.0
    %1192 = vmatpush1.msra.mxu0 0.0
    %1193 = vmatprep.subr.mxu0 0.0
    %1194 = vmatpush1.msra.mxu0 0.0
    %1195 = vmatprep.subr.mxu0 0.0
    %1196 = vmatpush1.msra.mxu0 0.0
    %1197 = vmatprep.subr.mxu0 0.0
    %1198 = vmatpush1.msra.mxu0 0.0
    %1199 = vmatprep.subr.mxu0 0.0
    %1200 = vmatpush1.msra.mxu0 0.0
    %1201 = vmatprep.subr.mxu0 0.0
    %1202 = vmatpush1.msra.mxu0 0.0
    %1203 = vmatprep.subr.mxu0 0.0
    %1204 = vmatpush1.msra.mxu0 0.0
    %1205 = vmatprep.subr.mxu0 0.0
    %1206 = vmatpush1.msra.mxu0 0.0
    %1207 = vmatprep.subr.mxu0 0.0
    %1208 = vmatpush1.msra.mxu0 0.0
    %1209 = vmatprep.subr.mxu0 0.0
    %1210 = vmatpush1.msra.mxu0 0.0
    %1211 = vmatprep.subr.mxu0 0.0
    %1212 = vmatpush1.msra.mxu0 0.0
    %1213 = vmatprep.subr.mxu0 0.0
    %1214 = vmatpush1.msra.mxu0 0.0
    %1215 = vmatprep.subr.mxu0 0.0
    %1216 = vmatpush1.msra.mxu0 0.0
    %1217 = vmatprep.subr.mxu0 0.0
    %1218 = vmatpush1.msra.mxu0 0.0
    %1219 = vmatprep.subr.mxu0 0.0
    %1220 = vmatpush1.msra.mxu0 0.0
    %1221 = vmatprep.subr.mxu0 0.0
    %1222 = vmatpush1.msra.mxu0 0.0
    %1223 = vmatprep.subr.mxu0 0.0
    %1224 = vmatpush1.msra.mxu0 0.0
    %1225 = vmatprep.subr.mxu0 0.0
    %1226 = vmatpush1.msra.mxu0 0.0
    %1227 = vmatprep.subr.mxu0 0.0
    %1228 = vmatpush1.msra.mxu0 0.0
    %1229 = vmatprep.subr.mxu0 0.0
    %1230 = vmatpush1.msra.mxu0 0.0
    %1231 = vmatprep.subr.mxu0 0.0
    %1232 = vmatpush1.msra.mxu0 0.0
    %1233 = vmatprep.subr.mxu0 0.0
    %1234 = vmatpush1.msra.mxu0 0.0
    %1235 = vmatprep.mubr.f32.mxu0 0.0
    %v1236 = vand.u32 %v1069, 4294901760
    %1237 = vmatmul.mubr.f32.gmra.mrb[0].mxu0 %v1236
    %v1238 = vpop.f32.mrb[0].mxu0
    %v1239 = vadd.f32 %v1148, %v1238
    %v1240 = vpop.f32.mrb[0].mxu0
    %1241 = vmatprep.mubr.f32.mxu0 0.0
    %v1242 = vand.u32 %v1072, 4294901760
    %1243 = vmatmul.mubr.f32.gmra.mrb[0].mxu0 %v1242
    %v1244 = vpop.f32.mrb[0].mxu0
    %v1245 = vadd.f32 %v1158, %v1244
    %v1246 = vpop.f32.mrb[0].mxu0
    %1247 = vdwg.mxu0
    %1248 = vmatprep.subr.mxu0 0.0
    %v1249 = vand.u32 %v49, 4294901760
    %v1250 = vsub.f32 %v49, %v1249
    %1251 = vmatpush1.msra.mxu0 %v1250
    %1252 = vmatprep.subr.mxu0 0.0
    %v1253 = vand.u32 %v50, 4294901760
    %v1254 = vsub.f32 %v50, %v1253
    %1255 = vmatpush1.msra.mxu0 %v1254
    %1256 = vmatprep.subr.mxu0 0.0
    %1257 = vmatpush1.msra.mxu0 0.0
    %1258 = vmatprep.subr.mxu0 0.0
    %1259 = vmatpush1.msra.mxu0 0.0
    %1260 = vmatprep.subr.mxu0 0.0
    %1261 = vmatpush1.msra.mxu0 0.0
    %1262 = vmatprep.subr.mxu0 0.0
    %1263 = vmatpush1.msra.mxu0 0.0
    %1264 = vmatprep.subr.mxu0 0.0
    %1265 = vmatpush1.msra.mxu0 0.0
    %1266 = vmatprep.subr.mxu0 0.0
    %1267 = vmatpush1.msra.mxu0 0.0
    %1268 = vmatprep.subr.mxu0 0.0
    %1269 = vmatpush1.msra.mxu0 0.0
    %1270 = vmatprep.subr.mxu0 0.0
    %1271 = vmatpush1.msra.mxu0 0.0
    %1272 = vmatprep.subr.mxu0 0.0
    %1273 = vmatpush1.msra.mxu0 0.0
    %1274 = vmatprep.subr.mxu0 0.0
    %1275 = vmatpush1.msra.mxu0 0.0
    %1276 = vmatprep.subr.mxu0 0.0
    %1277 = vmatpush1.msra.mxu0 0.0
    %1278 = vmatprep.subr.mxu0 0.0
    %1279 = vmatpush1.msra.mxu0 0.0
    %1280 = vmatprep.subr.mxu0 0.0
    %1281 = vmatpush1.msra.mxu0 0.0
    %1282 = vmatprep.subr.mxu0 0.0
    %1283 = vmatpush1.msra.mxu0 0.0
    %1284 = vmatprep.subr.mxu0 0.0
    %1285 = vmatpush1.msra.mxu0 0.0
    %1286 = vmatprep.subr.mxu0 0.0
    %1287 = vmatpush1.msra.mxu0 0.0
    %1288 = vmatprep.subr.mxu0 0.0
    %1289 = vmatpush1.msra.mxu0 0.0
    %1290 = vmatprep.subr.mxu0 0.0
    %1291 = vmatpush1.msra.mxu0 0.0
    %1292 = vmatprep.subr.mxu0 0.0
    %1293 = vmatpush1.msra.mxu0 0.0
    %1294 = vmatprep.subr.mxu0 0.0
    %1295 = vmatpush1.msra.mxu0 0.0
    %1296 = vmatprep.subr.mxu0 0.0
    %1297 = vmatpush1.msra.mxu0 0.0
    %1298 = vmatprep.subr.mxu0 0.0
    %1299 = vmatpush1.msra.mxu0 0.0
    %1300 = vmatprep.subr.mxu0 0.0
    %1301 = vmatpush1.msra.mxu0 0.0
    %1302 = vmatprep.subr.mxu0 0.0
    %1303 = vmatpush1.msra.mxu0 0.0
    %1304 = vmatprep.subr.mxu0 0.0
    %1305 = vmatpush1.msra.mxu0 0.0
    %1306 = vmatprep.subr.mxu0 0.0
    %1307 = vmatpush1.msra.mxu0 0.0
    %1308 = vmatprep.subr.mxu0 0.0
    %1309 = vmatpush1.msra.mxu0 0.0
    %1310 = vmatprep.subr.mxu0 0.0
    %1311 = vmatpush1.msra.mxu0 0.0
    %1312 = vmatprep.subr.mxu0 0.0
    %1313 = vmatpush1.msra.mxu0 0.0
    %1314 = vmatprep.subr.mxu0 0.0
    %1315 = vmatpush1.msra.mxu0 0.0
    %1316 = vmatprep.mubr.f32.mxu0 0.0
    %v1317 = vand.u32 %v1069, 4294901760
    %v1318 = vsub.f32 %v1069, %v1317
    %1319 = vmatmul.mubr.f32.gmra.mrb[0].mxu0 %v1318
    %v1320 = vpop.f32.mrb[0].mxu0
    %v1321 = vadd.f32 %v1239, %v1320
    %v1322 = vpop.f32.mrb[0].mxu0
    %1323 = vmatprep.mubr.f32.mxu0 0.0
    %v1324 = vand.u32 %v1072, 4294901760
    %v1325 = vsub.f32 %v1072, %v1324
    %1326 = vmatmul.mubr.f32.gmra.mrb[0].mxu0 %v1325
    %v1327 = vpop.f32.mrb[0].mxu0
    %v1328 = vadd.f32 %v1245, %v1327
    %v1329 = vpop.f32.mrb[0].mxu0
    %1330 = vdwg.mxu0
    %1331 = vmatprep.subr.mxu0 0.0
    %v1332 = vand.u32 %v49, 4294901760
    %1333 = vmatpush1.msra.mxu0 %v1332
    %1334 = vmatprep.subr.mxu0 0.0
    %v1335 = vand.u32 %v50, 4294901760
    %1336 = vmatpush1.msra.mxu0 %v1335
    %1337 = vmatprep.subr.mxu0 0.0
    %1338 = vmatpush1.msra.mxu0 0.0
    %1339 = vmatprep.subr.mxu0 0.0
    %1340 = vmatpush1.msra.mxu0 0.0
    %1341 = vmatprep.subr.mxu0 0.0
    %1342 = vmatpush1.msra.mxu0 0.0
    %1343 = vmatprep.subr.mxu0 0.0
    %1344 = vmatpush1.msra.mxu0 0.0
    %1345 = vmatprep.subr.mxu0 0.0
    %1346 = vmatpush1.msra.mxu0 0.0
    %1347 = vmatprep.subr.mxu0 0.0
    %1348 = vmatpush1.msra.mxu0 0.0
    %1349 = vmatprep.subr.mxu0 0.0
    %1350 = vmatpush1.msra.mxu0 0.0
    %1351 = vmatprep.subr.mxu0 0.0
    %1352 = vmatpush1.msra.mxu0 0.0
    %1353 = vmatprep.subr.mxu0 0.0
    %1354 = vmatpush1.msra.mxu0 0.0
    %1355 = vmatprep.subr.mxu0 0.0
    %1356 = vmatpush1.msra.mxu0 0.0
    %1357 = vmatprep.subr.mxu0 0.0
    %1358 = vmatpush1.msra.mxu0 0.0
    %1359 = vmatprep.subr.mxu0 0.0
    %1360 = vmatpush1.msra.mxu0 0.0
    %1361 = vmatprep.subr.mxu0 0.0
    %1362 = vmatpush1.msra.mxu0 0.0
    %1363 = vmatprep.subr.mxu0 0.0
    %1364 = vmatpush1.msra.mxu0 0.0
    %1365 = vmatprep.subr.mxu0 0.0
    %1366 = vmatpush1.msra.mxu0 0.0
    %1367 = vmatprep.subr.mxu0 0.0
    %1368 = vmatpush1.msra.mxu0 0.0
    %1369 = vmatprep.subr.mxu0 0.0
    %1370 = vmatpush1.msra.mxu0 0.0
    %1371 = vmatprep.subr.mxu0 0.0
    %1372 = vmatpush1.msra.mxu0 0.0
    %1373 = vmatprep.subr.mxu0 0.0
    %1374 = vmatpush1.msra.mxu0 0.0
    %1375 = vmatprep.subr.mxu0 0.0
    %1376 = vmatpush1.msra.mxu0 0.0
    %1377 = vmatprep.subr.mxu0 0.0
    %1378 = vmatpush1.msra.mxu0 0.0
    %1379 = vmatprep.subr.mxu0 0.0
    %1380 = vmatpush1.msra.mxu0 0.0
    %1381 = vmatprep.subr.mxu0 0.0
    %1382 = vmatpush1.msra.mxu0 0.0
    %1383 = vmatprep.subr.mxu0 0.0
    %1384 = vmatpush1.msra.mxu0 0.0
    %1385 = vmatprep.subr.mxu0 0.0
    %1386 = vmatpush1.msra.mxu0 0.0
    %1387 = vmatprep.subr.mxu0 0.0
    %1388 = vmatpush1.msra.mxu0 0.0
    %1389 = vmatprep.subr.mxu0 0.0
    %1390 = vmatpush1.msra.mxu0 0.0
    %1391 = vmatprep.subr.mxu0 0.0
    %1392 = vmatpush1.msra.mxu0 0.0
    %1393 = vmatprep.subr.mxu0 0.0
    %1394 = vmatpush1.msra.mxu0 0.0
    %1395 = vmatprep.subr.mxu0 0.0
    %1396 = vmatpush1.msra.mxu0 0.0
    %1397 = vmatprep.mubr.f32.mxu0 0.0
    %v1398 = vand.u32 %v1069, 4294901760
    %v1399 = vsub.f32 %v1069, %v1398
    %v1400 = vand.u32 %v1399, 4294901760
    %1401 = vmatmul.mubr.f32.gmra.mrb[0].mxu0 %v1400
    %v1402 = vpop.f32.mrb[0].mxu0
    %v1403 = vadd.f32 %v1321, %v1402
    %v1404 = vpop.f32.mrb[0].mxu0
    %1405 = vmatprep.mubr.f32.mxu0 0.0
    %v1406 = vand.u32 %v1072, 4294901760
    %v1407 = vsub.f32 %v1072, %v1406
    %v1408 = vand.u32 %v1407, 4294901760
    %1409 = vmatmul.mubr.f32.gmra.mrb[0].mxu0 %v1408
    %v1410 = vpop.f32.mrb[0].mxu0
    %v1411 = vadd.f32 %v1328, %v1410
    %v1412 = vpop.f32.mrb[0].mxu0
    %1413 = vdwg.mxu0
    %1414 = vmatprep.subr.mxu0 0.0
    %v1415 = vand.u32 %v49, 4294901760
    %v1416 = vsub.f32 %v49, %v1415
    %v1417 = vand.u32 %v1416, 4294901760
    %1418 = vmatpush1.msra.mxu0 %v1417
    %1419 = vmatprep.subr.mxu0 0.0
    %v1420 = vand.u32 %v50, 4294901760
    %v1421 = vsub.f32 %v50, %v1420
    %v1422 = vand.u32 %v1421, 4294901760
    %1423 = vmatpush1.msra.mxu0 %v1422
    %1424 = vmatprep.subr.mxu0 0.0
    %1425 = vmatpush1.msra.mxu0 0.0
    %1426 = vmatprep.subr.mxu0 0.0
    %1427 = vmatpush1.msra.mxu0 0.0
    %1428 = vmatprep.subr.mxu0 0.0
    %1429 = vmatpush1.msra.mxu0 0.0
    %1430 = vmatprep.subr.mxu0 0.0
    %1431 = vmatpush1.msra.mxu0 0.0
    %1432 = vmatprep.subr.mxu0 0.0
    %1433 = vmatpush1.msra.mxu0 0.0
    %1434 = vmatprep.subr.mxu0 0.0
    %1435 = vmatpush1.msra.mxu0 0.0
    %1436 = vmatprep.subr.mxu0 0.0
    %1437 = vmatpush1.msra.mxu0 0.0
    %1438 = vmatprep.subr.mxu0 0.0
    %1439 = vmatpush1.msra.mxu0 0.0
    %1440 = vmatprep.subr.mxu0 0.0
    %1441 = vmatpush1.msra.mxu0 0.0
    %1442 = vmatprep.subr.mxu0 0.0
    %1443 = vmatpush1.msra.mxu0 0.0
    %1444 = vmatprep.subr.mxu0 0.0
    %1445 = vmatpush1.msra.mxu0 0.0
    %1446 = vmatprep.subr.mxu0 0.0
    %1447 = vmatpush1.msra.mxu0 0.0
    %1448 = vmatprep.subr.mxu0 0.0
    %1449 = vmatpush1.msra.mxu0 0.0
    %1450 = vmatprep.subr.mxu0 0.0
    %1451 = vmatpush1.msra.mxu0 0.0
    %1452 = vmatprep.subr.mxu0 0.0
    %1453 = vmatpush1.msra.mxu0 0.0
    %1454 = vmatprep.subr.mxu0 0.0
    %1455 = vmatpush1.msra.mxu0 0.0
    %1456 = vmatprep.subr.mxu0 0.0
    %1457 = vmatpush1.msra.mxu0 0.0
    %1458 = vmatprep.subr.mxu0 0.0
    %1459 = vmatpush1.msra.mxu0 0.0
    %1460 = vmatprep.subr.mxu0 0.0
    %1461 = vmatpush1.msra.mxu0 0.0
    %1462 = vmatprep.subr.mxu0 0.0
    %1463 = vmatpush1.msra.mxu0 0.0
    %1464 = vmatprep.subr.mxu0 0.0
    %1465 = vmatpush1.msra.mxu0 0.0
    %1466 = vmatprep.subr.mxu0 0.0
    %1467 = vmatpush1.msra.mxu0 0.0
    %1468 = vmatprep.subr.mxu0 0.0
    %1469 = vmatpush1.msra.mxu0 0.0
    %1470 = vmatprep.subr.mxu0 0.0
    %1471 = vmatpush1.msra.mxu0 0.0
    %1472 = vmatprep.subr.mxu0 0.0
    %1473 = vmatpush1.msra.mxu0 0.0
    %1474 = vmatprep.subr.mxu0 0.0
    %1475 = vmatpush1.msra.mxu0 0.0
    %1476 = vmatprep.subr.mxu0 0.0
    %1477 = vmatpush1.msra.mxu0 0.0
    %1478 = vmatprep.subr.mxu0 0.0
    %1479 = vmatpush1.msra.mxu0 0.0
    %1480 = vmatprep.subr.mxu0 0.0
    %1481 = vmatpush1.msra.mxu0 0.0
    %1482 = vmatprep.subr.mxu0 0.0
    %1483 = vmatpush1.msra.mxu0 0.0
    %1484 = vmatprep.mubr.f32.mxu0 0.0
    %v1485 = vand.u32 %v1069, 4294901760
    %1486 = vmatmul.mubr.f32.gmra.mrb[0].mxu0 %v1485
    %v1487 = vpop.f32.mrb[0].mxu0
    %v1488 = vadd.f32 %v1403, %v1487
    %v1489 = vpop.f32.mrb[0].mxu0
    %1490 = vmatprep.mubr.f32.mxu0 0.0
    %v1491 = vand.u32 %v1072, 4294901760
    %1492 = vmatmul.mubr.f32.gmra.mrb[0].mxu0 %v1491
    %v1493 = vpop.f32.mrb[0].mxu0
    %v1494 = vadd.f32 %v1411, %v1493
    %v1495 = vpop.f32.mrb[0].mxu0
    %1496 = vdwg.mxu0
    %1497 = vmatprep.subr.mxu0 0.0
    %v1498 = vand.u32 %v49, 4294901760
    %1499 = vmatpush1.msra.mxu0 %v1498
    %1500 = vmatprep.subr.mxu0 0.0
    %v1501 = vand.u32 %v50, 4294901760
    %1502 = vmatpush1.msra.mxu0 %v1501
    %1503 = vmatprep.subr.mxu0 0.0
    %1504 = vmatpush1.msra.mxu0 0.0
    %1505 = vmatprep.subr.mxu0 0.0
    %1506 = vmatpush1.msra.mxu0 0.0
    %1507 = vmatprep.subr.mxu0 0.0
    %1508 = vmatpush1.msra.mxu0 0.0
    %1509 = vmatprep.subr.mxu0 0.0
    %1510 = vmatpush1.msra.mxu0 0.0
    %1511 = vmatprep.subr.mxu0 0.0
    %1512 = vmatpush1.msra.mxu0 0.0
    %1513 = vmatprep.subr.mxu0 0.0
    %1514 = vmatpush1.msra.mxu0 0.0
    %1515 = vmatprep.subr.mxu0 0.0
    %1516 = vmatpush1.msra.mxu0 0.0
    %1517 = vmatprep.subr.mxu0 0.0
    %1518 = vmatpush1.msra.mxu0 0.0
    %1519 = vmatprep.subr.mxu0 0.0
    %1520 = vmatpush1.msra.mxu0 0.0
    %1521 = vmatprep.subr.mxu0 0.0
    %1522 = vmatpush1.msra.mxu0 0.0
    %1523 = vmatprep.subr.mxu0 0.0
    %1524 = vmatpush1.msra.mxu0 0.0
    %1525 = vmatprep.subr.mxu0 0.0
    %1526 = vmatpush1.msra.mxu0 0.0
    %1527 = vmatprep.subr.mxu0 0.0
    %1528 = vmatpush1.msra.mxu0 0.0
    %1529 = vmatprep.subr.mxu0 0.0
    %1530 = vmatpush1.msra.mxu0 0.0
    %1531 = vmatprep.subr.mxu0 0.0
    %1532 = vmatpush1.msra.mxu0 0.0
    %1533 = vmatprep.subr.mxu0 0.0
    %1534 = vmatpush1.msra.mxu0 0.0
    %1535 = vmatprep.subr.mxu0 0.0
    %1536 = vmatpush1.msra.mxu0 0.0
    %1537 = vmatprep.subr.mxu0 0.0
    %1538 = vmatpush1.msra.mxu0 0.0
    %1539 = vmatprep.subr.mxu0 0.0
    %1540 = vmatpush1.msra.mxu0 0.0
    %1541 = vmatprep.subr.mxu0 0.0
    %1542 = vmatpush1.msra.mxu0 0.0
    %1543 = vmatprep.subr.mxu0 0.0
    %1544 = vmatpush1.msra.mxu0 0.0
    %1545 = vmatprep.subr.mxu0 0.0
    %1546 = vmatpush1.msra.mxu0 0.0
    %1547 = vmatprep.subr.mxu0 0.0
    %1548 = vmatpush1.msra.mxu0 0.0
    %1549 = vmatprep.subr.mxu0 0.0
    %1550 = vmatpush1.msra.mxu0 0.0
    %1551 = vmatprep.subr.mxu0 0.0
    %1552 = vmatpush1.msra.mxu0 0.0
    %1553 = vmatprep.subr.mxu0 0.0
    %1554 = vmatpush1.msra.mxu0 0.0
    %1555 = vmatprep.subr.mxu0 0.0
    %1556 = vmatpush1.msra.mxu0 0.0
    %1557 = vmatprep.subr.mxu0 0.0
    %1558 = vmatpush1.msra.mxu0 0.0
    %1559 = vmatprep.subr.mxu0 0.0
    %1560 = vmatpush1.msra.mxu0 0.0
    %1561 = vmatprep.subr.mxu0 0.0
    %1562 = vmatpush1.msra.mxu0 0.0
    %1563 = vmatprep.mubr.f32.mxu0 0.0
    %v1564 = vand.u32 %v1069, 4294901760
    %1565 = vmatmul.mubr.f32.gmra.mrb[0].mxu0 %v1564
    %v1566 = vpop.f32.mrb[0].mxu0
    %v1567 = vadd.f32 %v1488, %v1566
    %v1568 = vpop.f32.mrb[0].mxu0
    %1569 = vmatprep.mubr.f32.mxu0 0.0
    %v1570 = vand.u32 %v1072, 4294901760
    %1571 = vmatmul.mubr.f32.gmra.mrb[0].mxu0 %v1570
    %v1572 = vpop.f32.mrb[0].mxu0
    %v1573 = vadd.f32 %v1494, %v1572
    %v1574 = vpop.f32.mrb[0].mxu0
    %1575 = vdwg.mxu0
    %v1577 = vsel %vm51, %v35, 0
    %v1580 = vsel %vm51, %v36, 0
    %1582 = vmatprep.subr.mxu0 0.0
    %v1583 = vand.u32 %v49, 4294901760
    %1584 = vmatpush1.msra.mxu0 %v1583
    %1585 = vmatprep.subr.mxu0 0.0
    %v1586 = vand.u32 %v50, 4294901760
    %1587 = vmatpush1.msra.mxu0 %v1586
    %1588 = vmatprep.subr.mxu0 0.0
    %1589 = vmatpush1.msra.mxu0 0.0
    %1590 = vmatprep.subr.mxu0 0.0
    %1591 = vmatpush1.msra.mxu0 0.0
    %1592 = vmatprep.subr.mxu0 0.0
    %1593 = vmatpush1.msra.mxu0 0.0
    %1594 = vmatprep.subr.mxu0 0.0
    %1595 = vmatpush1.msra.mxu0 0.0
    %1596 = vmatprep.subr.mxu0 0.0
    %1597 = vmatpush1.msra.mxu0 0.0
    %1598 = vmatprep.subr.mxu0 0.0
    %1599 = vmatpush1.msra.mxu0 0.0
    %1600 = vmatprep.subr.mxu0 0.0
    %1601 = vmatpush1.msra.mxu0 0.0
    %1602 = vmatprep.subr.mxu0 0.0
    %1603 = vmatpush1.msra.mxu0 0.0
    %1604 = vmatprep.subr.mxu0 0.0
    %1605 = vmatpush1.msra.mxu0 0.0
    %1606 = vmatprep.subr.mxu0 0.0
    %1607 = vmatpush1.msra.mxu0 0.0
    %1608 = vmatprep.subr.mxu0 0.0
    %1609 = vmatpush1.msra.mxu0 0.0
    %1610 = vmatprep.subr.mxu0 0.0
    %1611 = vmatpush1.msra.mxu0 0.0
    %1612 = vmatprep.subr.mxu0 0.0
    %1613 = vmatpush1.msra.mxu0 0.0
    %1614 = vmatprep.subr.mxu0 0.0
    %1615 = vmatpush1.msra.mxu0 0.0
    %1616 = vmatprep.subr.mxu0 0.0
    %1617 = vmatpush1.msra.mxu0 0.0
    %1618 = vmatprep.subr.mxu0 0.0
    %1619 = vmatpush1.msra.mxu0 0.0
    %1620 = vmatprep.subr.mxu0 0.0
    %1621 = vmatpush1.msra.mxu0 0.0
    %1622 = vmatprep.subr.mxu0 0.0
    %1623 = vmatpush1.msra.mxu0 0.0
    %1624 = vmatprep.subr.mxu0 0.0
    %1625 = vmatpush1.msra.mxu0 0.0
    %1626 = vmatprep.subr.mxu0 0.0
    %1627 = vmatpush1.msra.mxu0 0.0
    %1628 = vmatprep.subr.mxu0 0.0
    %1629 = vmatpush1.msra.mxu0 0.0
    %1630 = vmatprep.subr.mxu0 0.0
    %1631 = vmatpush1.msra.mxu0 0.0
    %1632 = vmatprep.subr.mxu0 0.0
    %1633 = vmatpush1.msra.mxu0 0.0
    %1634 = vmatprep.subr.mxu0 0.0
    %1635 = vmatpush1.msra.mxu0 0.0
    %1636 = vmatprep.subr.mxu0 0.0
    %1637 = vmatpush1.msra.mxu0 0.0
    %1638 = vmatprep.subr.mxu0 0.0
    %1639 = vmatpush1.msra.mxu0 0.0
    %1640 = vmatprep.subr.mxu0 0.0
    %1641 = vmatpush1.msra.mxu0 0.0
    %1642 = vmatprep.subr.mxu0 0.0
    %1643 = vmatpush1.msra.mxu0 0.0
    %1644 = vmatprep.subr.mxu0 0.0
    %1645 = vmatpush1.msra.mxu0 0.0
    %1646 = vmatprep.subr.mxu0 0.0
    %1647 = vmatpush1.msra.mxu0 0.0
    %1648 = vmatprep.mubr.f32.mxu0 0.0
    %v1649 = vand.u32 %v1577, 4294901760
    %v1650 = vsub.f32 %v1577, %v1649
    %v1651 = vand.u32 %v1650, 4294901760
    %v1652 = vsub.f32 %v1650, %v1651
    %v1653 = vand.u32 %v1652, 4294901760
    %1654 = vmatmul.mubr.f32.gmra.mrb[0].mxu0 %v1653
    %v1655 = vpop.f32.mrb[0].mxu0
    %v1656 = vadd.f32 0.0, %v1655
    %v1657 = vpop.f32.mrb[0].mxu0
    %1658 = vmatprep.mubr.f32.mxu0 0.0
    %v1659 = vand.u32 %v1580, 4294901760
    %v1660 = vsub.f32 %v1580, %v1659
    %v1661 = vand.u32 %v1660, 4294901760
    %v1662 = vsub.f32 %v1660, %v1661
    %v1663 = vand.u32 %v1662, 4294901760
    %1664 = vmatmul.mubr.f32.gmra.mrb[0].mxu0 %v1663
    %v1665 = vpop.f32.mrb[0].mxu0
    %v1666 = vadd.f32 0.0, %v1665
    %v1667 = vpop.f32.mrb[0].mxu0
    %1668 = vdwg.mxu0
    %1669 = vmatprep.subr.mxu0 0.0
    %v1670 = vand.u32 %v49, 4294901760
    %v1671 = vsub.f32 %v49, %v1670
    %v1672 = vand.u32 %v1671, 4294901760
    %v1673 = vsub.f32 %v1671, %v1672
    %v1674 = vand.u32 %v1673, 4294901760
    %1675 = vmatpush1.msra.mxu0 %v1674
    %1676 = vmatprep.subr.mxu0 0.0
    %v1677 = vand.u32 %v50, 4294901760
    %v1678 = vsub.f32 %v50, %v1677
    %v1679 = vand.u32 %v1678, 4294901760
    %v1680 = vsub.f32 %v1678, %v1679
    %v1681 = vand.u32 %v1680, 4294901760
    %1682 = vmatpush1.msra.mxu0 %v1681
    %1683 = vmatprep.subr.mxu0 0.0
    %1684 = vmatpush1.msra.mxu0 0.0
    %1685 = vmatprep.subr.mxu0 0.0
    %1686 = vmatpush1.msra.mxu0 0.0
    %1687 = vmatprep.subr.mxu0 0.0
    %1688 = vmatpush1.msra.mxu0 0.0
    %1689 = vmatprep.subr.mxu0 0.0
    %1690 = vmatpush1.msra.mxu0 0.0
    %1691 = vmatprep.subr.mxu0 0.0
    %1692 = vmatpush1.msra.mxu0 0.0
    %1693 = vmatprep.subr.mxu0 0.0
    %1694 = vmatpush1.msra.mxu0 0.0
    %1695 = vmatprep.subr.mxu0 0.0
    %1696 = vmatpush1.msra.mxu0 0.0
    %1697 = vmatprep.subr.mxu0 0.0
    %1698 = vmatpush1.msra.mxu0 0.0
    %1699 = vmatprep.subr.mxu0 0.0
    %1700 = vmatpush1.msra.mxu0 0.0
    %1701 = vmatprep.subr.mxu0 0.0
    %1702 = vmatpush1.msra.mxu0 0.0
    %1703 = vmatprep.subr.mxu0 0.0
    %1704 = vmatpush1.msra.mxu0 0.0
    %1705 = vmatprep.subr.mxu0 0.0
    %1706 = vmatpush1.msra.mxu0 0.0
    %1707 = vmatprep.subr.mxu0 0.0
    %1708 = vmatpush1.msra.mxu0 0.0
    %1709 = vmatprep.subr.mxu0 0.0
    %1710 = vmatpush1.msra.mxu0 0.0
    %1711 = vmatprep.subr.mxu0 0.0
    %1712 = vmatpush1.msra.mxu0 0.0
    %1713 = vmatprep.subr.mxu0 0.0
    %1714 = vmatpush1.msra.mxu0 0.0
    %1715 = vmatprep.subr.mxu0 0.0
    %1716 = vmatpush1.msra.mxu0 0.0
    %1717 = vmatprep.subr.mxu0 0.0
    %1718 = vmatpush1.msra.mxu0 0.0
    %1719 = vmatprep.subr.mxu0 0.0
    %1720 = vmatpush1.msra.mxu0 0.0
    %1721 = vmatprep.subr.mxu0 0.0
    %1722 = vmatpush1.msra.mxu0 0.0
    %1723 = vmatprep.subr.mxu0 0.0
    %1724 = vmatpush1.msra.mxu0 0.0
    %1725 = vmatprep.subr.mxu0 0.0
    %1726 = vmatpush1.msra.mxu0 0.0
    %1727 = vmatprep.subr.mxu0 0.0
    %1728 = vmatpush1.msra.mxu0 0.0
    %1729 = vmatprep.subr.mxu0 0.0
    %1730 = vmatpush1.msra.mxu0 0.0
    %1731 = vmatprep.subr.mxu0 0.0
    %1732 = vmatpush1.msra.mxu0 0.0
    %1733 = vmatprep.subr.mxu0 0.0
    %1734 = vmatpush1.msra.mxu0 0.0
    %1735 = vmatprep.subr.mxu0 0.0
    %1736 = vmatpush1.msra.mxu0 0.0
    %1737 = vmatprep.subr.mxu0 0.0
    %1738 = vmatpush1.msra.mxu0 0.0
    %1739 = vmatprep.subr.mxu0 0.0
    %1740 = vmatpush1.msra.mxu0 0.0
    %1741 = vmatprep.subr.mxu0 0.0
    %1742 = vmatpush1.msra.mxu0 0.0
    %1743 = vmatprep.mubr.f32.mxu0 0.0
    %v1744 = vand.u32 %v1577, 4294901760
    %1745 = vmatmul.mubr.f32.gmra.mrb[0].mxu0 %v1744
    %v1746 = vpop.f32.mrb[0].mxu0
    %v1747 = vadd.f32 %v1656, %v1746
    %v1748 = vpop.f32.mrb[0].mxu0
    %1749 = vmatprep.mubr.f32.mxu0 0.0
    %v1750 = vand.u32 %v1580, 4294901760
    %1751 = vmatmul.mubr.f32.gmra.mrb[0].mxu0 %v1750
    %v1752 = vpop.f32.mrb[0].mxu0
    %v1753 = vadd.f32 %v1666, %v1752
    %v1754 = vpop.f32.mrb[0].mxu0
    %1755 = vdwg.mxu0
    %1756 = vmatprep.subr.mxu0 0.0
    %v1757 = vand.u32 %v49, 4294901760
    %v1758 = vsub.f32 %v49, %v1757
    %1759 = vmatpush1.msra.mxu0 %v1758
    %1760 = vmatprep.subr.mxu0 0.0
    %v1761 = vand.u32 %v50, 4294901760
    %v1762 = vsub.f32 %v50, %v1761
    %1763 = vmatpush1.msra.mxu0 %v1762
    %1764 = vmatprep.subr.mxu0 0.0
    %1765 = vmatpush1.msra.mxu0 0.0
    %1766 = vmatprep.subr.mxu0 0.0
    %1767 = vmatpush1.msra.mxu0 0.0
    %1768 = vmatprep.subr.mxu0 0.0
    %1769 = vmatpush1.msra.mxu0 0.0
    %1770 = vmatprep.subr.mxu0 0.0
    %1771 = vmatpush1.msra.mxu0 0.0
    %1772 = vmatprep.subr.mxu0 0.0
    %1773 = vmatpush1.msra.mxu0 0.0
    %1774 = vmatprep.subr.mxu0 0.0
    %1775 = vmatpush1.msra.mxu0 0.0
    %1776 = vmatprep.subr.mxu0 0.0
    %1777 = vmatpush1.msra.mxu0 0.0
    %1778 = vmatprep.subr.mxu0 0.0
    %1779 = vmatpush1.msra.mxu0 0.0
    %1780 = vmatprep.subr.mxu0 0.0
    %1781 = vmatpush1.msra.mxu0 0.0
    %1782 = vmatprep.subr.mxu0 0.0
    %1783 = vmatpush1.msra.mxu0 0.0
    %1784 = vmatprep.subr.mxu0 0.0
    %1785 = vmatpush1.msra.mxu0 0.0
    %1786 = vmatprep.subr.mxu0 0.0
    %1787 = vmatpush1.msra.mxu0 0.0
    %1788 = vmatprep.subr.mxu0 0.0
    %1789 = vmatpush1.msra.mxu0 0.0
    %1790 = vmatprep.subr.mxu0 0.0
    %1791 = vmatpush1.msra.mxu0 0.0
    %1792 = vmatprep.subr.mxu0 0.0
    %1793 = vmatpush1.msra.mxu0 0.0
    %1794 = vmatprep.subr.mxu0 0.0
    %1795 = vmatpush1.msra.mxu0 0.0
    %1796 = vmatprep.subr.mxu0 0.0
    %1797 = vmatpush1.msra.mxu0 0.0
    %1798 = vmatprep.subr.mxu0 0.0
    %1799 = vmatpush1.msra.mxu0 0.0
    %1800 = vmatprep.subr.mxu0 0.0
    %1801 = vmatpush1.msra.mxu0 0.0
    %1802 = vmatprep.subr.mxu0 0.0
    %1803 = vmatpush1.msra.mxu0 0.0
    %1804 = vmatprep.subr.mxu0 0.0
    %1805 = vmatpush1.msra.mxu0 0.0
    %1806 = vmatprep.subr.mxu0 0.0
    %1807 = vmatpush1.msra.mxu0 0.0
    %1808 = vmatprep.subr.mxu0 0.0
    %1809 = vmatpush1.msra.mxu0 0.0
    %1810 = vmatprep.subr.mxu0 0.0
    %1811 = vmatpush1.msra.mxu0 0.0
    %1812 = vmatprep.subr.mxu0 0.0
    %1813 = vmatpush1.msra.mxu0 0.0
    %1814 = vmatprep.subr.mxu0 0.0
    %1815 = vmatpush1.msra.mxu0 0.0
    %1816 = vmatprep.subr.mxu0 0.0
    %1817 = vmatpush1.msra.mxu0 0.0
    %1818 = vmatprep.subr.mxu0 0.0
    %1819 = vmatpush1.msra.mxu0 0.0
    %1820 = vmatprep.subr.mxu0 0.0
    %1821 = vmatpush1.msra.mxu0 0.0
    %1822 = vmatprep.subr.mxu0 0.0
    %1823 = vmatpush1.msra.mxu0 0.0
    %1824 = vmatprep.mubr.f32.mxu0 0.0
    %v1825 = vand.u32 %v1577, 4294901760
    %v1826 = vsub.f32 %v1577, %v1825
    %1827 = vmatmul.mubr.f32.gmra.mrb[0].mxu0 %v1826
    %v1828 = vpop.f32.mrb[0].mxu0
    %v1829 = vadd.f32 %v1747, %v1828
    %v1830 = vpop.f32.mrb[0].mxu0
    %1831 = vmatprep.mubr.f32.mxu0 0.0
    %v1832 = vand.u32 %v1580, 4294901760
    %v1833 = vsub.f32 %v1580, %v1832
    %1834 = vmatmul.mubr.f32.gmra.mrb[0].mxu0 %v1833
    %v1835 = vpop.f32.mrb[0].mxu0
    %v1836 = vadd.f32 %v1753, %v1835
    %v1837 = vpop.f32.mrb[0].mxu0
    %1838 = vdwg.mxu0
    %1839 = vmatprep.subr.mxu0 0.0
    %v1840 = vand.u32 %v49, 4294901760
    %1841 = vmatpush1.msra.mxu0 %v1840
    %1842 = vmatprep.subr.mxu0 0.0
    %v1843 = vand.u32 %v50, 4294901760
    %1844 = vmatpush1.msra.mxu0 %v1843
    %1845 = vmatprep.subr.mxu0 0.0
    %1846 = vmatpush1.msra.mxu0 0.0
    %1847 = vmatprep.subr.mxu0 0.0
    %1848 = vmatpush1.msra.mxu0 0.0
    %1849 = vmatprep.subr.mxu0 0.0
    %1850 = vmatpush1.msra.mxu0 0.0
    %1851 = vmatprep.subr.mxu0 0.0
    %1852 = vmatpush1.msra.mxu0 0.0
    %1853 = vmatprep.subr.mxu0 0.0
    %1854 = vmatpush1.msra.mxu0 0.0
    %1855 = vmatprep.subr.mxu0 0.0
    %1856 = vmatpush1.msra.mxu0 0.0
    %1857 = vmatprep.subr.mxu0 0.0
    %1858 = vmatpush1.msra.mxu0 0.0
    %1859 = vmatprep.subr.mxu0 0.0
    %1860 = vmatpush1.msra.mxu0 0.0
    %1861 = vmatprep.subr.mxu0 0.0
    %1862 = vmatpush1.msra.mxu0 0.0
    %1863 = vmatprep.subr.mxu0 0.0
    %1864 = vmatpush1.msra.mxu0 0.0
    %1865 = vmatprep.subr.mxu0 0.0
    %1866 = vmatpush1.msra.mxu0 0.0
    %1867 = vmatprep.subr.mxu0 0.0
    %1868 = vmatpush1.msra.mxu0 0.0
    %1869 = vmatprep.subr.mxu0 0.0
    %1870 = vmatpush1.msra.mxu0 0.0
    %1871 = vmatprep.subr.mxu0 0.0
    %1872 = vmatpush1.msra.mxu0 0.0
    %1873 = vmatprep.subr.mxu0 0.0
    %1874 = vmatpush1.msra.mxu0 0.0
    %1875 = vmatprep.subr.mxu0 0.0
    %1876 = vmatpush1.msra.mxu0 0.0
    %1877 = vmatprep.subr.mxu0 0.0
    %1878 = vmatpush1.msra.mxu0 0.0
    %1879 = vmatprep.subr.mxu0 0.0
    %1880 = vmatpush1.msra.mxu0 0.0
    %1881 = vmatprep.subr.mxu0 0.0
    %1882 = vmatpush1.msra.mxu0 0.0
    %1883 = vmatprep.subr.mxu0 0.0
    %1884 = vmatpush1.msra.mxu0 0.0
    %1885 = vmatprep.subr.mxu0 0.0
    %1886 = vmatpush1.msra.mxu0 0.0
    %1887 = vmatprep.subr.mxu0 0.0
    %1888 = vmatpush1.msra.mxu0 0.0
    %1889 = vmatprep.subr.mxu0 0.0
    %1890 = vmatpush1.msra.mxu0 0.0
    %1891 = vmatprep.subr.mxu0 0.0
    %1892 = vmatpush1.msra.mxu0 0.0
    %1893 = vmatprep.subr.mxu0 0.0
    %1894 = vmatpush1.msra.mxu0 0.0
    %1895 = vmatprep.subr.mxu0 0.0
    %1896 = vmatpush1.msra.mxu0 0.0
    %1897 = vmatprep.subr.mxu0 0.0
    %1898 = vmatpush1.msra.mxu0 0.0
    %1899 = vmatprep.subr.mxu0 0.0
    %1900 = vmatpush1.msra.mxu0 0.0
    %1901 = vmatprep.subr.mxu0 0.0
    %1902 = vmatpush1.msra.mxu0 0.0
    %1903 = vmatprep.subr.mxu0 0.0
    %1904 = vmatpush1.msra.mxu0 0.0
    %1905 = vmatprep.mubr.f32.mxu0 0.0
    %v1906 = vand.u32 %v1577, 4294901760
    %v1907 = vsub.f32 %v1577, %v1906
    %v1908 = vand.u32 %v1907, 4294901760
    %1909 = vmatmul.mubr.f32.gmra.mrb[0].mxu0 %v1908
    %v1910 = vpop.f32.mrb[0].mxu0
    %v1911 = vadd.f32 %v1829, %v1910
    %v1912 = vpop.f32.mrb[0].mxu0
    %1913 = vmatprep.mubr.f32.mxu0 0.0
    %v1914 = vand.u32 %v1580, 4294901760
    %v1915 = vsub.f32 %v1580, %v1914
    %v1916 = vand.u32 %v1915, 4294901760
    %1917 = vmatmul.mubr.f32.gmra.mrb[0].mxu0 %v1916
    %v1918 = vpop.f32.mrb[0].mxu0
    %v1919 = vadd.f32 %v1836, %v1918
    %v1920 = vpop.f32.mrb[0].mxu0
    %1921 = vdwg.mxu0
    %1922 = vmatprep.subr.mxu0 0.0
    %v1923 = vand.u32 %v49, 4294901760
    %v1924 = vsub.f32 %v49, %v1923
    %v1925 = vand.u32 %v1924, 4294901760
    %1926 = vmatpush1.msra.mxu0 %v1925
    %1927 = vmatprep.subr.mxu0 0.0
    %v1928 = vand.u32 %v50, 4294901760
    %v1929 = vsub.f32 %v50, %v1928
    %v1930 = vand.u32 %v1929, 4294901760
    %1931 = vmatpush1.msra.mxu0 %v1930
    %1932 = vmatprep.subr.mxu0 0.0
    %1933 = vmatpush1.msra.mxu0 0.0
    %1934 = vmatprep.subr.mxu0 0.0
    %1935 = vmatpush1.msra.mxu0 0.0
    %1936 = vmatprep.subr.mxu0 0.0
    %1937 = vmatpush1.msra.mxu0 0.0
    %1938 = vmatprep.subr.mxu0 0.0
    %1939 = vmatpush1.msra.mxu0 0.0
    %1940 = vmatprep.subr.mxu0 0.0
    %1941 = vmatpush1.msra.mxu0 0.0
    %1942 = vmatprep.subr.mxu0 0.0
    %1943 = vmatpush1.msra.mxu0 0.0
    %1944 = vmatprep.subr.mxu0 0.0
    %1945 = vmatpush1.msra.mxu0 0.0
    %1946 = vmatprep.subr.mxu0 0.0
    %1947 = vmatpush1.msra.mxu0 0.0
    %1948 = vmatprep.subr.mxu0 0.0
    %1949 = vmatpush1.msra.mxu0 0.0
    %1950 = vmatprep.subr.mxu0 0.0
    %1951 = vmatpush1.msra.mxu0 0.0
    %1952 = vmatprep.subr.mxu0 0.0
    %1953 = vmatpush1.msra.mxu0 0.0
    %1954 = vmatprep.subr.mxu0 0.0
    %1955 = vmatpush1.msra.mxu0 0.0
    %1956 = vmatprep.subr.mxu0 0.0
    %1957 = vmatpush1.msra.mxu0 0.0
    %1958 = vmatprep.subr.mxu0 0.0
    %1959 = vmatpush1.msra.mxu0 0.0
    %1960 = vmatprep.subr.mxu0 0.0
    %1961 = vmatpush1.msra.mxu0 0.0
    %1962 = vmatprep.subr.mxu0 0.0
    %1963 = vmatpush1.msra.mxu0 0.0
    %1964 = vmatprep.subr.mxu0 0.0
    %1965 = vmatpush1.msra.mxu0 0.0
    %1966 = vmatprep.subr.mxu0 0.0
    %1967 = vmatpush1.msra.mxu0 0.0
    %1968 = vmatprep.subr.mxu0 0.0
    %1969 = vmatpush1.msra.mxu0 0.0
    %1970 = vmatprep.subr.mxu0 0.0
    %1971 = vmatpush1.msra.mxu0 0.0
    %1972 = vmatprep.subr.mxu0 0.0
    %1973 = vmatpush1.msra.mxu0 0.0
    %1974 = vmatprep.subr.mxu0 0.0
    %1975 = vmatpush1.msra.mxu0 0.0
    %1976 = vmatprep.subr.mxu0 0.0
    %1977 = vmatpush1.msra.mxu0 0.0
    %1978 = vmatprep.subr.mxu0 0.0
    %1979 = vmatpush1.msra.mxu0 0.0
    %1980 = vmatprep.subr.mxu0 0.0
    %1981 = vmatpush1.msra.mxu0 0.0
    %1982 = vmatprep.subr.mxu0 0.0
    %1983 = vmatpush1.msra.mxu0 0.0
    %1984 = vmatprep.subr.mxu0 0.0
    %1985 = vmatpush1.msra.mxu0 0.0
    %1986 = vmatprep.subr.mxu0 0.0
    %1987 = vmatpush1.msra.mxu0 0.0
    %1988 = vmatprep.subr.mxu0 0.0
    %1989 = vmatpush1.msra.mxu0 0.0
    %1990 = vmatprep.subr.mxu0 0.0
    %1991 = vmatpush1.msra.mxu0 0.0
    %1992 = vmatprep.mubr.f32.mxu0 0.0
    %v1993 = vand.u32 %v1577, 4294901760
    %1994 = vmatmul.mubr.f32.gmra.mrb[0].mxu0 %v1993
    %v1995 = vpop.f32.mrb[0].mxu0
    %v1996 = vadd.f32 %v1911, %v1995
    %v1997 = vpop.f32.mrb[0].mxu0
    %1998 = vmatprep.mubr.f32.mxu0 0.0
    %v1999 = vand.u32 %v1580, 4294901760
    %2000 = vmatmul.mubr.f32.gmra.mrb[0].mxu0 %v1999
    %v2001 = vpop.f32.mrb[0].mxu0
    %v2002 = vadd.f32 %v1919, %v2001
    %v2003 = vpop.f32.mrb[0].mxu0
    %2004 = vdwg.mxu0
    %2005 = vmatprep.subr.mxu0 0.0
    %v2006 = vand.u32 %v49, 4294901760
    %2007 = vmatpush1.msra.mxu0 %v2006
    %2008 = vmatprep.subr.mxu0 0.0
    %v2009 = vand.u32 %v50, 4294901760
    %2010 = vmatpush1.msra.mxu0 %v2009
    %2011 = vmatprep.subr.mxu0 0.0
    %2012 = vmatpush1.msra.mxu0 0.0
    %2013 = vmatprep.subr.mxu0 0.0
    %2014 = vmatpush1.msra.mxu0 0.0
    %2015 = vmatprep.subr.mxu0 0.0
    %2016 = vmatpush1.msra.mxu0 0.0
    %2017 = vmatprep.subr.mxu0 0.0
    %2018 = vmatpush1.msra.mxu0 0.0
    %2019 = vmatprep.subr.mxu0 0.0
    %2020 = vmatpush1.msra.mxu0 0.0
    %2021 = vmatprep.subr.mxu0 0.0
    %2022 = vmatpush1.msra.mxu0 0.0
    %2023 = vmatprep.subr.mxu0 0.0
    %2024 = vmatpush1.msra.mxu0 0.0
    %2025 = vmatprep.subr.mxu0 0.0
    %2026 = vmatpush1.msra.mxu0 0.0
    %2027 = vmatprep.subr.mxu0 0.0
    %2028 = vmatpush1.msra.mxu0 0.0
    %2029 = vmatprep.subr.mxu0 0.0
    %2030 = vmatpush1.msra.mxu0 0.0
    %2031 = vmatprep.subr.mxu0 0.0
    %2032 = vmatpush1.msra.mxu0 0.0
    %2033 = vmatprep.subr.mxu0 0.0
    %2034 = vmatpush1.msra.mxu0 0.0
    %2035 = vmatprep.subr.mxu0 0.0
    %2036 = vmatpush1.msra.mxu0 0.0
    %2037 = vmatprep.subr.mxu0 0.0
    %2038 = vmatpush1.msra.mxu0 0.0
    %2039 = vmatprep.subr.mxu0 0.0
    %2040 = vmatpush1.msra.mxu0 0.0
    %2041 = vmatprep.subr.mxu0 0.0
    %2042 = vmatpush1.msra.mxu0 0.0
    %2043 = vmatprep.subr.mxu0 0.0
    %2044 = vmatpush1.msra.mxu0 0.0
    %2045 = vmatprep.subr.mxu0 0.0
    %2046 = vmatpush1.msra.mxu0 0.0
    %2047 = vmatprep.subr.mxu0 0.0
    %2048 = vmatpush1.msra.mxu0 0.0
    %2049 = vmatprep.subr.mxu0 0.0
    %2050 = vmatpush1.msra.mxu0 0.0
    %2051 = vmatprep.subr.mxu0 0.0
    %2052 = vmatpush1.msra.mxu0 0.0
    %2053 = vmatprep.subr.mxu0 0.0
    %2054 = vmatpush1.msra.mxu0 0.0
    %2055 = vmatprep.subr.mxu0 0.0
    %2056 = vmatpush1.msra.mxu0 0.0
    %2057 = vmatprep.subr.mxu0 0.0
    %2058 = vmatpush1.msra.mxu0 0.0
    %2059 = vmatprep.subr.mxu0 0.0
    %2060 = vmatpush1.msra.mxu0 0.0
    %2061 = vmatprep.subr.mxu0 0.0
    %2062 = vmatpush1.msra.mxu0 0.0
    %2063 = vmatprep.subr.mxu0 0.0
    %2064 = vmatpush1.msra.mxu0 0.0
    %2065 = vmatprep.subr.mxu0 0.0
    %2066 = vmatpush1.msra.mxu0 0.0
    %2067 = vmatprep.subr.mxu0 0.0
    %2068 = vmatpush1.msra.mxu0 0.0
    %2069 = vmatprep.subr.mxu0 0.0
    %2070 = vmatpush1.msra.mxu0 0.0
    %2071 = vmatprep.mubr.f32.mxu0 0.0
    %v2072 = vand.u32 %v1577, 4294901760
    %2073 = vmatmul.mubr.f32.gmra.mrb[0].mxu0 %v2072
    %v2074 = vpop.f32.mrb[0].mxu0
    %v2075 = vadd.f32 %v1996, %v2074
    %v2076 = vpop.f32.mrb[0].mxu0
    %2077 = vmatprep.mubr.f32.mxu0 0.0
    %v2078 = vand.u32 %v1580, 4294901760
    %2079 = vmatmul.mubr.f32.gmra.mrb[0].mxu0 %v2078
    %v2080 = vpop.f32.mrb[0].mxu0
    %v2081 = vadd.f32 %v2002, %v2080
    %v2082 = vpop.f32.mrb[0].mxu0
    %2083 = vdwg.mxu0
    %v2085 = vsel %vm51, %v37, 0
    %v2088 = vsel %vm51, %v38, 0
    %2090 = vmatprep.subr.mxu0 0.0
    %v2091 = vand.u32 %v49, 4294901760
    %2092 = vmatpush1.msra.mxu0 %v2091
    %2093 = vmatprep.subr.mxu0 0.0
    %v2094 = vand.u32 %v50, 4294901760
    %2095 = vmatpush1.msra.mxu0 %v2094
    %2096 = vmatprep.subr.mxu0 0.0
    %2097 = vmatpush1.msra.mxu0 0.0
    %2098 = vmatprep.subr.mxu0 0.0
    %2099 = vmatpush1.msra.mxu0 0.0
    %2100 = vmatprep.subr.mxu0 0.0
    %2101 = vmatpush1.msra.mxu0 0.0
    %2102 = vmatprep.subr.mxu0 0.0
    %2103 = vmatpush1.msra.mxu0 0.0
    %2104 = vmatprep.subr.mxu0 0.0
    %2105 = vmatpush1.msra.mxu0 0.0
    %2106 = vmatprep.subr.mxu0 0.0
    %2107 = vmatpush1.msra.mxu0 0.0
    %2108 = vmatprep.subr.mxu0 0.0
    %2109 = vmatpush1.msra.mxu0 0.0
    %2110 = vmatprep.subr.mxu0 0.0
    %2111 = vmatpush1.msra.mxu0 0.0
    %2112 = vmatprep.subr.mxu0 0.0
    %2113 = vmatpush1.msra.mxu0 0.0
    %2114 = vmatprep.subr.mxu0 0.0
    %2115 = vmatpush1.msra.mxu0 0.0
    %2116 = vmatprep.subr.mxu0 0.0
    %2117 = vmatpush1.msra.mxu0 0.0
    %2118 = vmatprep.subr.mxu0 0.0
    %2119 = vmatpush1.msra.mxu0 0.0
    %2120 = vmatprep.subr.mxu0 0.0
    %2121 = vmatpush1.msra.mxu0 0.0
    %2122 = vmatprep.subr.mxu0 0.0
    %2123 = vmatpush1.msra.mxu0 0.0
    %2124 = vmatprep.subr.mxu0 0.0
    %2125 = vmatpush1.msra.mxu0 0.0
    %2126 = vmatprep.subr.mxu0 0.0
    %2127 = vmatpush1.msra.mxu0 0.0
    %2128 = vmatprep.subr.mxu0 0.0
    %2129 = vmatpush1.msra.mxu0 0.0
    %2130 = vmatprep.subr.mxu0 0.0
    %2131 = vmatpush1.msra.mxu0 0.0
    %2132 = vmatprep.subr.mxu0 0.0
    %2133 = vmatpush1.msra.mxu0 0.0
    %2134 = vmatprep.subr.mxu0 0.0
    %2135 = vmatpush1.msra.mxu0 0.0
    %2136 = vmatprep.subr.mxu0 0.0
    %2137 = vmatpush1.msra.mxu0 0.0
    %2138 = vmatprep.subr.mxu0 0.0
    %2139 = vmatpush1.msra.mxu0 0.0
    %2140 = vmatprep.subr.mxu0 0.0
    %2141 = vmatpush1.msra.mxu0 0.0
    %2142 = vmatprep.subr.mxu0 0.0
    %2143 = vmatpush1.msra.mxu0 0.0
    %2144 = vmatprep.subr.mxu0 0.0
    %2145 = vmatpush1.msra.mxu0 0.0
    %2146 = vmatprep.subr.mxu0 0.0
    %2147 = vmatpush1.msra.mxu0 0.0
    %2148 = vmatprep.subr.mxu0 0.0
    %2149 = vmatpush1.msra.mxu0 0.0
    %2150 = vmatprep.subr.mxu0 0.0
    %2151 = vmatpush1.msra.mxu0 0.0
    %2152 = vmatprep.subr.mxu0 0.0
    %2153 = vmatpush1.msra.mxu0 0.0
    %2154 = vmatprep.subr.mxu0 0.0
    %2155 = vmatpush1.msra.mxu0 0.0
    %2156 = vmatprep.mubr.f32.mxu0 0.0
    %v2157 = vand.u32 %v2085, 4294901760
    %v2158 = vsub.f32 %v2085, %v2157
    %v2159 = vand.u32 %v2158, 4294901760
    %v2160 = vsub.f32 %v2158, %v2159
    %v2161 = vand.u32 %v2160, 4294901760
    %2162 = vmatmul.mubr.f32.gmra.mrb[0].mxu0 %v2161
    %v2163 = vpop.f32.mrb[0].mxu0
    %v2164 = vadd.f32 0.0, %v2163
    %v2165 = vpop.f32.mrb[0].mxu0
    %2166 = vmatprep.mubr.f32.mxu0 0.0
    %v2167 = vand.u32 %v2088, 4294901760
    %v2168 = vsub.f32 %v2088, %v2167
    %v2169 = vand.u32 %v2168, 4294901760
    %v2170 = vsub.f32 %v2168, %v2169
    %v2171 = vand.u32 %v2170, 4294901760
    %2172 = vmatmul.mubr.f32.gmra.mrb[0].mxu0 %v2171
    %v2173 = vpop.f32.mrb[0].mxu0
    %v2174 = vadd.f32 0.0, %v2173
    %v2175 = vpop.f32.mrb[0].mxu0
    %2176 = vdwg.mxu0
    %2177 = vmatprep.subr.mxu0 0.0
    %v2178 = vand.u32 %v49, 4294901760
    %v2179 = vsub.f32 %v49, %v2178
    %v2180 = vand.u32 %v2179, 4294901760
    %v2181 = vsub.f32 %v2179, %v2180
    %v2182 = vand.u32 %v2181, 4294901760
    %2183 = vmatpush1.msra.mxu0 %v2182
    %2184 = vmatprep.subr.mxu0 0.0
    %v2185 = vand.u32 %v50, 4294901760
    %v2186 = vsub.f32 %v50, %v2185
    %v2187 = vand.u32 %v2186, 4294901760
    %v2188 = vsub.f32 %v2186, %v2187
    %v2189 = vand.u32 %v2188, 4294901760
    %2190 = vmatpush1.msra.mxu0 %v2189
    %2191 = vmatprep.subr.mxu0 0.0
    %2192 = vmatpush1.msra.mxu0 0.0
    %2193 = vmatprep.subr.mxu0 0.0
    %2194 = vmatpush1.msra.mxu0 0.0
    %2195 = vmatprep.subr.mxu0 0.0
    %2196 = vmatpush1.msra.mxu0 0.0
    %2197 = vmatprep.subr.mxu0 0.0
    %2198 = vmatpush1.msra.mxu0 0.0
    %2199 = vmatprep.subr.mxu0 0.0
    %2200 = vmatpush1.msra.mxu0 0.0
    %2201 = vmatprep.subr.mxu0 0.0
    %2202 = vmatpush1.msra.mxu0 0.0
    %2203 = vmatprep.subr.mxu0 0.0
    %2204 = vmatpush1.msra.mxu0 0.0
    %2205 = vmatprep.subr.mxu0 0.0
    %2206 = vmatpush1.msra.mxu0 0.0
    %2207 = vmatprep.subr.mxu0 0.0
    %2208 = vmatpush1.msra.mxu0 0.0
    %2209 = vmatprep.subr.mxu0 0.0
    %2210 = vmatpush1.msra.mxu0 0.0
    %2211 = vmatprep.subr.mxu0 0.0
    %2212 = vmatpush1.msra.mxu0 0.0
    %2213 = vmatprep.subr.mxu0 0.0
    %2214 = vmatpush1.msra.mxu0 0.0
    %2215 = vmatprep.subr.mxu0 0.0
    %2216 = vmatpush1.msra.mxu0 0.0
    %2217 = vmatprep.subr.mxu0 0.0
    %2218 = vmatpush1.msra.mxu0 0.0
    %2219 = vmatprep.subr.mxu0 0.0
    %2220 = vmatpush1.msra.mxu0 0.0
    %2221 = vmatprep.subr.mxu0 0.0
    %2222 = vmatpush1.msra.mxu0 0.0
    %2223 = vmatprep.subr.mxu0 0.0
    %2224 = vmatpush1.msra.mxu0 0.0
    %2225 = vmatprep.subr.mxu0 0.0
    %2226 = vmatpush1.msra.mxu0 0.0
    %2227 = vmatprep.subr.mxu0 0.0
    %2228 = vmatpush1.msra.mxu0 0.0
    %2229 = vmatprep.subr.mxu0 0.0
    %2230 = vmatpush1.msra.mxu0 0.0
    %2231 = vmatprep.subr.mxu0 0.0
    %2232 = vmatpush1.msra.mxu0 0.0
    %2233 = vmatprep.subr.mxu0 0.0
    %2234 = vmatpush1.msra.mxu0 0.0
    %2235 = vmatprep.subr.mxu0 0.0
    %2236 = vmatpush1.msra.mxu0 0.0
    %2237 = vmatprep.subr.mxu0 0.0
    %2238 = vmatpush1.msra.mxu0 0.0
    %2239 = vmatprep.subr.mxu0 0.0
    %2240 = vmatpush1.msra.mxu0 0.0
    %2241 = vmatprep.subr.mxu0 0.0
    %2242 = vmatpush1.msra.mxu0 0.0
    %2243 = vmatprep.subr.mxu0 0.0
    %2244 = vmatpush1.msra.mxu0 0.0
    %2245 = vmatprep.subr.mxu0 0.0
    %2246 = vmatpush1.msra.mxu0 0.0
    %2247 = vmatprep.subr.mxu0 0.0
    %2248 = vmatpush1.msra.mxu0 0.0
    %2249 = vmatprep.subr.mxu0 0.0
    %2250 = vmatpush1.msra.mxu0 0.0
    %2251 = vmatprep.mubr.f32.mxu0 0.0
    %v2252 = vand.u32 %v2085, 4294901760
    %2253 = vmatmul.mubr.f32.gmra.mrb[0].mxu0 %v2252
    %v2254 = vpop.f32.mrb[0].mxu0
    %v2255 = vadd.f32 %v2164, %v2254
    %v2256 = vpop.f32.mrb[0].mxu0
    %2257 = vmatprep.mubr.f32.mxu0 0.0
    %v2258 = vand.u32 %v2088, 4294901760
    %2259 = vmatmul.mubr.f32.gmra.mrb[0].mxu0 %v2258
    %v2260 = vpop.f32.mrb[0].mxu0
    %v2261 = vadd.f32 %v2174, %v2260
    %v2262 = vpop.f32.mrb[0].mxu0
    %2263 = vdwg.mxu0
    %2264 = vmatprep.subr.mxu0 0.0
    %v2265 = vand.u32 %v49, 4294901760
    %v2266 = vsub.f32 %v49, %v2265
    %2267 = vmatpush1.msra.mxu0 %v2266
    %2268 = vmatprep.subr.mxu0 0.0
    %v2269 = vand.u32 %v50, 4294901760
    %v2270 = vsub.f32 %v50, %v2269
    %2271 = vmatpush1.msra.mxu0 %v2270
    %2272 = vmatprep.subr.mxu0 0.0
    %2273 = vmatpush1.msra.mxu0 0.0
    %2274 = vmatprep.subr.mxu0 0.0
    %2275 = vmatpush1.msra.mxu0 0.0
    %2276 = vmatprep.subr.mxu0 0.0
    %2277 = vmatpush1.msra.mxu0 0.0
    %2278 = vmatprep.subr.mxu0 0.0
    %2279 = vmatpush1.msra.mxu0 0.0
    %2280 = vmatprep.subr.mxu0 0.0
    %2281 = vmatpush1.msra.mxu0 0.0
    %2282 = vmatprep.subr.mxu0 0.0
    %2283 = vmatpush1.msra.mxu0 0.0
    %2284 = vmatprep.subr.mxu0 0.0
    %2285 = vmatpush1.msra.mxu0 0.0
    %2286 = vmatprep.subr.mxu0 0.0
    %2287 = vmatpush1.msra.mxu0 0.0
    %2288 = vmatprep.subr.mxu0 0.0
    %2289 = vmatpush1.msra.mxu0 0.0
    %2290 = vmatprep.subr.mxu0 0.0
    %2291 = vmatpush1.msra.mxu0 0.0
    %2292 = vmatprep.subr.mxu0 0.0
    %2293 = vmatpush1.msra.mxu0 0.0
    %2294 = vmatprep.subr.mxu0 0.0
    %2295 = vmatpush1.msra.mxu0 0.0
    %2296 = vmatprep.subr.mxu0 0.0
    %2297 = vmatpush1.msra.mxu0 0.0
    %2298 = vmatprep.subr.mxu0 0.0
    %2299 = vmatpush1.msra.mxu0 0.0
    %2300 = vmatprep.subr.mxu0 0.0
    %2301 = vmatpush1.msra.mxu0 0.0
    %2302 = vmatprep.subr.mxu0 0.0
    %2303 = vmatpush1.msra.mxu0 0.0
    %2304 = vmatprep.subr.mxu0 0.0
    %2305 = vmatpush1.msra.mxu0 0.0
    %2306 = vmatprep.subr.mxu0 0.0
    %2307 = vmatpush1.msra.mxu0 0.0
    %2308 = vmatprep.subr.mxu0 0.0
    %2309 = vmatpush1.msra.mxu0 0.0
    %2310 = vmatprep.subr.mxu0 0.0
    %2311 = vmatpush1.msra.mxu0 0.0
    %2312 = vmatprep.subr.mxu0 0.0
    %2313 = vmatpush1.msra.mxu0 0.0
    %2314 = vmatprep.subr.mxu0 0.0
    %2315 = vmatpush1.msra.mxu0 0.0
    %2316 = vmatprep.subr.mxu0 0.0
    %2317 = vmatpush1.msra.mxu0 0.0
    %2318 = vmatprep.subr.mxu0 0.0
    %2319 = vmatpush1.msra.mxu0 0.0
    %2320 = vmatprep.subr.mxu0 0.0
    %2321 = vmatpush1.msra.mxu0 0.0
    %2322 = vmatprep.subr.mxu0 0.0
    %2323 = vmatpush1.msra.mxu0 0.0
    %2324 = vmatprep.subr.mxu0 0.0
    %2325 = vmatpush1.msra.mxu0 0.0
    %2326 = vmatprep.subr.mxu0 0.0
    %2327 = vmatpush1.msra.mxu0 0.0
    %2328 = vmatprep.subr.mxu0 0.0
    %2329 = vmatpush1.msra.mxu0 0.0
    %2330 = vmatprep.subr.mxu0 0.0
    %2331 = vmatpush1.msra.mxu0 0.0
    %2332 = vmatprep.mubr.f32.mxu0 0.0
    %v2333 = vand.u32 %v2085, 4294901760
    %v2334 = vsub.f32 %v2085, %v2333
    %2335 = vmatmul.mubr.f32.gmra.mrb[0].mxu0 %v2334
    %v2336 = vpop.f32.mrb[0].mxu0
    %v2337 = vadd.f32 %v2255, %v2336
    %v2338 = vpop.f32.mrb[0].mxu0
    %2339 = vmatprep.mubr.f32.mxu0 0.0
    %v2340 = vand.u32 %v2088, 4294901760
    %v2341 = vsub.f32 %v2088, %v2340
    %2342 = vmatmul.mubr.f32.gmra.mrb[0].mxu0 %v2341
    %v2343 = vpop.f32.mrb[0].mxu0
    %v2344 = vadd.f32 %v2261, %v2343
    %v2345 = vpop.f32.mrb[0].mxu0
    %2346 = vdwg.mxu0
    %2347 = vmatprep.subr.mxu0 0.0
    %v2348 = vand.u32 %v49, 4294901760
    %2349 = vmatpush1.msra.mxu0 %v2348
    %2350 = vmatprep.subr.mxu0 0.0
    %v2351 = vand.u32 %v50, 4294901760
    %2352 = vmatpush1.msra.mxu0 %v2351
    %2353 = vmatprep.subr.mxu0 0.0
    %2354 = vmatpush1.msra.mxu0 0.0
    %2355 = vmatprep.subr.mxu0 0.0
    %2356 = vmatpush1.msra.mxu0 0.0
    %2357 = vmatprep.subr.mxu0 0.0
    %2358 = vmatpush1.msra.mxu0 0.0
    %2359 = vmatprep.subr.mxu0 0.0
    %2360 = vmatpush1.msra.mxu0 0.0
    %2361 = vmatprep.subr.mxu0 0.0
    %2362 = vmatpush1.msra.mxu0 0.0
    %2363 = vmatprep.subr.mxu0 0.0
    %2364 = vmatpush1.msra.mxu0 0.0
    %2365 = vmatprep.subr.mxu0 0.0
    %2366 = vmatpush1.msra.mxu0 0.0
    %2367 = vmatprep.subr.mxu0 0.0
    %2368 = vmatpush1.msra.mxu0 0.0
    %2369 = vmatprep.subr.mxu0 0.0
    %2370 = vmatpush1.msra.mxu0 0.0
    %2371 = vmatprep.subr.mxu0 0.0
    %2372 = vmatpush1.msra.mxu0 0.0
    %2373 = vmatprep.subr.mxu0 0.0
    %2374 = vmatpush1.msra.mxu0 0.0
    %2375 = vmatprep.subr.mxu0 0.0
    %2376 = vmatpush1.msra.mxu0 0.0
    %2377 = vmatprep.subr.mxu0 0.0
    %2378 = vmatpush1.msra.mxu0 0.0
    %2379 = vmatprep.subr.mxu0 0.0
    %2380 = vmatpush1.msra.mxu0 0.0
    %2381 = vmatprep.subr.mxu0 0.0
    %2382 = vmatpush1.msra.mxu0 0.0
    %2383 = vmatprep.subr.mxu0 0.0
    %2384 = vmatpush1.msra.mxu0 0.0
    %2385 = vmatprep.subr.mxu0 0.0
    %2386 = vmatpush1.msra.mxu0 0.0
    %2387 = vmatprep.subr.mxu0 0.0
    %2388 = vmatpush1.msra.mxu0 0.0
    %2389 = vmatprep.subr.mxu0 0.0
    %2390 = vmatpush1.msra.mxu0 0.0
    %2391 = vmatprep.subr.mxu0 0.0
    %2392 = vmatpush1.msra.mxu0 0.0
    %2393 = vmatprep.subr.mxu0 0.0
    %2394 = vmatpush1.msra.mxu0 0.0
    %2395 = vmatprep.subr.mxu0 0.0
    %2396 = vmatpush1.msra.mxu0 0.0
    %2397 = vmatprep.subr.mxu0 0.0
    %2398 = vmatpush1.msra.mxu0 0.0
    %2399 = vmatprep.subr.mxu0 0.0
    %2400 = vmatpush1.msra.mxu0 0.0
    %2401 = vmatprep.subr.mxu0 0.0
    %2402 = vmatpush1.msra.mxu0 0.0
    %2403 = vmatprep.subr.mxu0 0.0
    %2404 = vmatpush1.msra.mxu0 0.0
    %2405 = vmatprep.subr.mxu0 0.0
    %2406 = vmatpush1.msra.mxu0 0.0
    %2407 = vmatprep.subr.mxu0 0.0
    %2408 = vmatpush1.msra.mxu0 0.0
    %2409 = vmatprep.subr.mxu0 0.0
    %2410 = vmatpush1.msra.mxu0 0.0
    %2411 = vmatprep.subr.mxu0 0.0
    %2412 = vmatpush1.msra.mxu0 0.0
    %2413 = vmatprep.mubr.f32.mxu0 0.0
    %v2414 = vand.u32 %v2085, 4294901760
    %v2415 = vsub.f32 %v2085, %v2414
    %v2416 = vand.u32 %v2415, 4294901760
    %2417 = vmatmul.mubr.f32.gmra.mrb[0].mxu0 %v2416
    %v2418 = vpop.f32.mrb[0].mxu0
    %v2419 = vadd.f32 %v2337, %v2418
    %v2420 = vpop.f32.mrb[0].mxu0
    %2421 = vmatprep.mubr.f32.mxu0 0.0
    %v2422 = vand.u32 %v2088, 4294901760
    %v2423 = vsub.f32 %v2088, %v2422
    %v2424 = vand.u32 %v2423, 4294901760
    %2425 = vmatmul.mubr.f32.gmra.mrb[0].mxu0 %v2424
    %v2426 = vpop.f32.mrb[0].mxu0
    %v2427 = vadd.f32 %v2344, %v2426
    %v2428 = vpop.f32.mrb[0].mxu0
    %2429 = vdwg.mxu0
    %2430 = vmatprep.subr.mxu0 0.0
    %v2431 = vand.u32 %v49, 4294901760
    %v2432 = vsub.f32 %v49, %v2431
    %v2433 = vand.u32 %v2432, 4294901760
    %2434 = vmatpush1.msra.mxu0 %v2433
    %2435 = vmatprep.subr.mxu0 0.0
    %v2436 = vand.u32 %v50, 4294901760
    %v2437 = vsub.f32 %v50, %v2436
    %v2438 = vand.u32 %v2437, 4294901760
    %2439 = vmatpush1.msra.mxu0 %v2438
    %2440 = vmatprep.subr.mxu0 0.0
    %2441 = vmatpush1.msra.mxu0 0.0
    %2442 = vmatprep.subr.mxu0 0.0
    %2443 = vmatpush1.msra.mxu0 0.0
    %2444 = vmatprep.subr.mxu0 0.0
    %2445 = vmatpush1.msra.mxu0 0.0
    %2446 = vmatprep.subr.mxu0 0.0
    %2447 = vmatpush1.msra.mxu0 0.0
    %2448 = vmatprep.subr.mxu0 0.0
    %2449 = vmatpush1.msra.mxu0 0.0
    %2450 = vmatprep.subr.mxu0 0.0
    %2451 = vmatpush1.msra.mxu0 0.0
    %2452 = vmatprep.subr.mxu0 0.0
    %2453 = vmatpush1.msra.mxu0 0.0
    %2454 = vmatprep.subr.mxu0 0.0
    %2455 = vmatpush1.msra.mxu0 0.0
    %2456 = vmatprep.subr.mxu0 0.0
    %2457 = vmatpush1.msra.mxu0 0.0
    %2458 = vmatprep.subr.mxu0 0.0
    %2459 = vmatpush1.msra.mxu0 0.0
    %2460 = vmatprep.subr.mxu0 0.0
    %2461 = vmatpush1.msra.mxu0 0.0
    %2462 = vmatprep.subr.mxu0 0.0
    %2463 = vmatpush1.msra.mxu0 0.0
    %2464 = vmatprep.subr.mxu0 0.0
    %2465 = vmatpush1.msra.mxu0 0.0
    %2466 = vmatprep.subr.mxu0 0.0
    %2467 = vmatpush1.msra.mxu0 0.0
    %2468 = vmatprep.subr.mxu0 0.0
    %2469 = vmatpush1.msra.mxu0 0.0
    %2470 = vmatprep.subr.mxu0 0.0
    %2471 = vmatpush1.msra.mxu0 0.0
    %2472 = vmatprep.subr.mxu0 0.0
    %2473 = vmatpush1.msra.mxu0 0.0
    %2474 = vmatprep.subr.mxu0 0.0
    %2475 = vmatpush1.msra.mxu0 0.0
    %2476 = vmatprep.subr.mxu0 0.0
    %2477 = vmatpush1.msra.mxu0 0.0
    %2478 = vmatprep.subr.mxu0 0.0
    %2479 = vmatpush1.msra.mxu0 0.0
    %2480 = vmatprep.subr.mxu0 0.0
    %2481 = vmatpush1.msra.mxu0 0.0
    %2482 = vmatprep.subr.mxu0 0.0
    %2483 = vmatpush1.msra.mxu0 0.0
    %2484 = vmatprep.subr.mxu0 0.0
    %2485 = vmatpush1.msra.mxu0 0.0
    %2486 = vmatprep.subr.mxu0 0.0
    %2487 = vmatpush1.msra.mxu0 0.0
    %2488 = vmatprep.subr.mxu0 0.0
    %2489 = vmatpush1.msra.mxu0 0.0
    %2490 = vmatprep.subr.mxu0 0.0
    %2491 = vmatpush1.msra.mxu0 0.0
    %2492 = vmatprep.subr.mxu0 0.0
    %2493 = vmatpush1.msra.mxu0 0.0
    %2494 = vmatprep.subr.mxu0 0.0
    %2495 = vmatpush1.msra.mxu0 0.0
    %2496 = vmatprep.subr.mxu0 0.0
    %2497 = vmatpush1.msra.mxu0 0.0
    %2498 = vmatprep.subr.mxu0 0.0
    %2499 = vmatpush1.msra.mxu0 0.0
    %2500 = vmatprep.mubr.f32.mxu0 0.0
    %v2501 = vand.u32 %v2085, 4294901760
    %2502 = vmatmul.mubr.f32.gmra.mrb[0].mxu0 %v2501
    %v2503 = vpop.f32.mrb[0].mxu0
    %v2504 = vadd.f32 %v2419, %v2503
    %v2505 = vpop.f32.mrb[0].mxu0
    %2506 = vmatprep.mubr.f32.mxu0 0.0
    %v2507 = vand.u32 %v2088, 4294901760
    %2508 = vmatmul.mubr.f32.gmra.mrb[0].mxu0 %v2507
    %v2509 = vpop.f32.mrb[0].mxu0
    %v2510 = vadd.f32 %v2427, %v2509
    %v2511 = vpop.f32.mrb[0].mxu0
    %2512 = vdwg.mxu0
    %2513 = vmatprep.subr.mxu0 0.0
    %v2514 = vand.u32 %v49, 4294901760
    %2515 = vmatpush1.msra.mxu0 %v2514
    %2516 = vmatprep.subr.mxu0 0.0
    %v2517 = vand.u32 %v50, 4294901760
    %2518 = vmatpush1.msra.mxu0 %v2517
    %2519 = vmatprep.subr.mxu0 0.0
    %2520 = vmatpush1.msra.mxu0 0.0
    %2521 = vmatprep.subr.mxu0 0.0
    %2522 = vmatpush1.msra.mxu0 0.0
    %2523 = vmatprep.subr.mxu0 0.0
    %2524 = vmatpush1.msra.mxu0 0.0
    %2525 = vmatprep.subr.mxu0 0.0
    %2526 = vmatpush1.msra.mxu0 0.0
    %2527 = vmatprep.subr.mxu0 0.0
    %2528 = vmatpush1.msra.mxu0 0.0
    %2529 = vmatprep.subr.mxu0 0.0
    %2530 = vmatpush1.msra.mxu0 0.0
    %2531 = vmatprep.subr.mxu0 0.0
    %2532 = vmatpush1.msra.mxu0 0.0
    %2533 = vmatprep.subr.mxu0 0.0
    %2534 = vmatpush1.msra.mxu0 0.0
    %2535 = vmatprep.subr.mxu0 0.0
    %2536 = vmatpush1.msra.mxu0 0.0
    %2537 = vmatprep.subr.mxu0 0.0
    %2538 = vmatpush1.msra.mxu0 0.0
    %2539 = vmatprep.subr.mxu0 0.0
    %2540 = vmatpush1.msra.mxu0 0.0
    %2541 = vmatprep.subr.mxu0 0.0
    %2542 = vmatpush1.msra.mxu0 0.0
    %2543 = vmatprep.subr.mxu0 0.0
    %2544 = vmatpush1.msra.mxu0 0.0
    %2545 = vmatprep.subr.mxu0 0.0
    %2546 = vmatpush1.msra.mxu0 0.0
    %2547 = vmatprep.subr.mxu0 0.0
    %2548 = vmatpush1.msra.mxu0 0.0
    %2549 = vmatprep.subr.mxu0 0.0
    %2550 = vmatpush1.msra.mxu0 0.0
    %2551 = vmatprep.subr.mxu0 0.0
    %2552 = vmatpush1.msra.mxu0 0.0
    %2553 = vmatprep.subr.mxu0 0.0
    %2554 = vmatpush1.msra.mxu0 0.0
    %2555 = vmatprep.subr.mxu0 0.0
    %2556 = vmatpush1.msra.mxu0 0.0
    %2557 = vmatprep.subr.mxu0 0.0
    %2558 = vmatpush1.msra.mxu0 0.0
    %2559 = vmatprep.subr.mxu0 0.0
    %2560 = vmatpush1.msra.mxu0 0.0
    %2561 = vmatprep.subr.mxu0 0.0
    %2562 = vmatpush1.msra.mxu0 0.0
    %2563 = vmatprep.subr.mxu0 0.0
    %2564 = vmatpush1.msra.mxu0 0.0
    %2565 = vmatprep.subr.mxu0 0.0
    %2566 = vmatpush1.msra.mxu0 0.0
    %2567 = vmatprep.subr.mxu0 0.0
    %2568 = vmatpush1.msra.mxu0 0.0
    %2569 = vmatprep.subr.mxu0 0.0
    %2570 = vmatpush1.msra.mxu0 0.0
    %2571 = vmatprep.subr.mxu0 0.0
    %2572 = vmatpush1.msra.mxu0 0.0
    %2573 = vmatprep.subr.mxu0 0.0
    %2574 = vmatpush1.msra.mxu0 0.0
    %2575 = vmatprep.subr.mxu0 0.0
    %2576 = vmatpush1.msra.mxu0 0.0
    %2577 = vmatprep.subr.mxu0 0.0
    %2578 = vmatpush1.msra.mxu0 0.0
    %2579 = vmatprep.mubr.f32.mxu0 0.0
    %v2580 = vand.u32 %v2085, 4294901760
    %2581 = vmatmul.mubr.f32.gmra.mrb[0].mxu0 %v2580
    %v2582 = vpop.f32.mrb[0].mxu0
    %v2583 = vadd.f32 %v2504, %v2582
    %v2584 = vpop.f32.mrb[0].mxu0
    %2585 = vmatprep.mubr.f32.mxu0 0.0
    %v2586 = vand.u32 %v2088, 4294901760
    %2587 = vmatmul.mubr.f32.gmra.mrb[0].mxu0 %v2586
    %v2588 = vpop.f32.mrb[0].mxu0
    %v2589 = vadd.f32 %v2510, %v2588
    %v2590 = vpop.f32.mrb[0].mxu0
    %2591 = vdwg.mxu0
    %v2593 = vsel %vm51, %v39, 0
    %v2596 = vsel %vm51, %v40, 0
    %2598 = vmatprep.subr.mxu0 0.0
    %v2599 = vand.u32 %v49, 4294901760
    %2600 = vmatpush1.msra.mxu0 %v2599
    %2601 = vmatprep.subr.mxu0 0.0
    %v2602 = vand.u32 %v50, 4294901760
    %2603 = vmatpush1.msra.mxu0 %v2602
    %2604 = vmatprep.subr.mxu0 0.0
    %2605 = vmatpush1.msra.mxu0 0.0
    %2606 = vmatprep.subr.mxu0 0.0
    %2607 = vmatpush1.msra.mxu0 0.0
    %2608 = vmatprep.subr.mxu0 0.0
    %2609 = vmatpush1.msra.mxu0 0.0
    %2610 = vmatprep.subr.mxu0 0.0
    %2611 = vmatpush1.msra.mxu0 0.0
    %2612 = vmatprep.subr.mxu0 0.0
    %2613 = vmatpush1.msra.mxu0 0.0
    %2614 = vmatprep.subr.mxu0 0.0
    %2615 = vmatpush1.msra.mxu0 0.0
    %2616 = vmatprep.subr.mxu0 0.0
    %2617 = vmatpush1.msra.mxu0 0.0
    %2618 = vmatprep.subr.mxu0 0.0
    %2619 = vmatpush1.msra.mxu0 0.0
    %2620 = vmatprep.subr.mxu0 0.0
    %2621 = vmatpush1.msra.mxu0 0.0
    %2622 = vmatprep.subr.mxu0 0.0
    %2623 = vmatpush1.msra.mxu0 0.0
    %2624 = vmatprep.subr.mxu0 0.0
    %2625 = vmatpush1.msra.mxu0 0.0
    %2626 = vmatprep.subr.mxu0 0.0
    %2627 = vmatpush1.msra.mxu0 0.0
    %2628 = vmatprep.subr.mxu0 0.0
    %2629 = vmatpush1.msra.mxu0 0.0
    %2630 = vmatprep.subr.mxu0 0.0
    %2631 = vmatpush1.msra.mxu0 0.0
    %2632 = vmatprep.subr.mxu0 0.0
    %2633 = vmatpush1.msra.mxu0 0.0
    %2634 = vmatprep.subr.mxu0 0.0
    %2635 = vmatpush1.msra.mxu0 0.0
    %2636 = vmatprep.subr.mxu0 0.0
    %2637 = vmatpush1.msra.mxu0 0.0
    %2638 = vmatprep.subr.mxu0 0.0
    %2639 = vmatpush1.msra.mxu0 0.0
    %2640 = vmatprep.subr.mxu0 0.0
    %2641 = vmatpush1.msra.mxu0 0.0
    %2642 = vmatprep.subr.mxu0 0.0
    %2643 = vmatpush1.msra.mxu0 0.0
    %2644 = vmatprep.subr.mxu0 0.0
    %2645 = vmatpush1.msra.mxu0 0.0
    %2646 = vmatprep.subr.mxu0 0.0
    %2647 = vmatpush1.msra.mxu0 0.0
    %2648 = vmatprep.subr.mxu0 0.0
    %2649 = vmatpush1.msra.mxu0 0.0
    %2650 = vmatprep.subr.mxu0 0.0
    %2651 = vmatpush1.msra.mxu0 0.0
    %2652 = vmatprep.subr.mxu0 0.0
    %2653 = vmatpush1.msra.mxu0 0.0
    %2654 = vmatprep.subr.mxu0 0.0
    %2655 = vmatpush1.msra.mxu0 0.0
    %2656 = vmatprep.subr.mxu0 0.0
    %2657 = vmatpush1.msra.mxu0 0.0
    %2658 = vmatprep.subr.mxu0 0.0
    %2659 = vmatpush1.msra.mxu0 0.0
    %2660 = vmatprep.subr.mxu0 0.0
    %2661 = vmatpush1.msra.mxu0 0.0
    %2662 = vmatprep.subr.mxu0 0.0
    %2663 = vmatpush1.msra.mxu0 0.0
    %2664 = vmatprep.mubr.f32.mxu0 0.0
    %v2665 = vand.u32 %v2593, 4294901760
    %v2666 = vsub.f32 %v2593, %v2665
    %v2667 = vand.u32 %v2666, 4294901760
    %v2668 = vsub.f32 %v2666, %v2667
    %v2669 = vand.u32 %v2668, 4294901760
    %2670 = vmatmul.mubr.f32.gmra.mrb[0].mxu0 %v2669
    %v2671 = vpop.f32.mrb[0].mxu0
    %v2672 = vadd.f32 0.0, %v2671
    %v2673 = vpop.f32.mrb[0].mxu0
    %2674 = vmatprep.mubr.f32.mxu0 0.0
    %v2675 = vand.u32 %v2596, 4294901760
    %v2676 = vsub.f32 %v2596, %v2675
    %v2677 = vand.u32 %v2676, 4294901760
    %v2678 = vsub.f32 %v2676, %v2677
    %v2679 = vand.u32 %v2678, 4294901760
    %2680 = vmatmul.mubr.f32.gmra.mrb[0].mxu0 %v2679
    %v2681 = vpop.f32.mrb[0].mxu0
    %v2682 = vadd.f32 0.0, %v2681
    %v2683 = vpop.f32.mrb[0].mxu0
    %2684 = vdwg.mxu0
    %2685 = vmatprep.subr.mxu0 0.0
    %v2686 = vand.u32 %v49, 4294901760
    %v2687 = vsub.f32 %v49, %v2686
    %v2688 = vand.u32 %v2687, 4294901760
    %v2689 = vsub.f32 %v2687, %v2688
    %v2690 = vand.u32 %v2689, 4294901760
    %2691 = vmatpush1.msra.mxu0 %v2690
    %2692 = vmatprep.subr.mxu0 0.0
    %v2693 = vand.u32 %v50, 4294901760
    %v2694 = vsub.f32 %v50, %v2693
    %v2695 = vand.u32 %v2694, 4294901760
    %v2696 = vsub.f32 %v2694, %v2695
    %v2697 = vand.u32 %v2696, 4294901760
    %2698 = vmatpush1.msra.mxu0 %v2697
    %2699 = vmatprep.subr.mxu0 0.0
    %2700 = vmatpush1.msra.mxu0 0.0
    %2701 = vmatprep.subr.mxu0 0.0
    %2702 = vmatpush1.msra.mxu0 0.0
    %2703 = vmatprep.subr.mxu0 0.0
    %2704 = vmatpush1.msra.mxu0 0.0
    %2705 = vmatprep.subr.mxu0 0.0
    %2706 = vmatpush1.msra.mxu0 0.0
    %2707 = vmatprep.subr.mxu0 0.0
    %2708 = vmatpush1.msra.mxu0 0.0
    %2709 = vmatprep.subr.mxu0 0.0
    %2710 = vmatpush1.msra.mxu0 0.0
    %2711 = vmatprep.subr.mxu0 0.0
    %2712 = vmatpush1.msra.mxu0 0.0
    %2713 = vmatprep.subr.mxu0 0.0
    %2714 = vmatpush1.msra.mxu0 0.0
    %2715 = vmatprep.subr.mxu0 0.0
    %2716 = vmatpush1.msra.mxu0 0.0
    %2717 = vmatprep.subr.mxu0 0.0
    %2718 = vmatpush1.msra.mxu0 0.0
    %2719 = vmatprep.subr.mxu0 0.0
    %2720 = vmatpush1.msra.mxu0 0.0
    %2721 = vmatprep.subr.mxu0 0.0
    %2722 = vmatpush1.msra.mxu0 0.0
    %2723 = vmatprep.subr.mxu0 0.0
    %2724 = vmatpush1.msra.mxu0 0.0
    %2725 = vmatprep.subr.mxu0 0.0
    %2726 = vmatpush1.msra.mxu0 0.0
    %2727 = vmatprep.subr.mxu0 0.0
    %2728 = vmatpush1.msra.mxu0 0.0
    %2729 = vmatprep.subr.mxu0 0.0
    %2730 = vmatpush1.msra.mxu0 0.0
    %2731 = vmatprep.subr.mxu0 0.0
    %2732 = vmatpush1.msra.mxu0 0.0
    %2733 = vmatprep.subr.mxu0 0.0
    %2734 = vmatpush1.msra.mxu0 0.0
    %2735 = vmatprep.subr.mxu0 0.0
    %2736 = vmatpush1.msra.mxu0 0.0
    %2737 = vmatprep.subr.mxu0 0.0
    %2738 = vmatpush1.msra.mxu0 0.0
    %2739 = vmatprep.subr.mxu0 0.0
    %2740 = vmatpush1.msra.mxu0 0.0
    %2741 = vmatprep.subr.mxu0 0.0
    %2742 = vmatpush1.msra.mxu0 0.0
    %2743 = vmatprep.subr.mxu0 0.0
    %2744 = vmatpush1.msra.mxu0 0.0
    %2745 = vmatprep.subr.mxu0 0.0
    %2746 = vmatpush1.msra.mxu0 0.0
    %2747 = vmatprep.subr.mxu0 0.0
    %2748 = vmatpush1.msra.mxu0 0.0
    %2749 = vmatprep.subr.mxu0 0.0
    %2750 = vmatpush1.msra.mxu0 0.0
    %2751 = vmatprep.subr.mxu0 0.0
    %2752 = vmatpush1.msra.mxu0 0.0
    %2753 = vmatprep.subr.mxu0 0.0
    %2754 = vmatpush1.msra.mxu0 0.0
    %2755 = vmatprep.subr.mxu0 0.0
    %2756 = vmatpush1.msra.mxu0 0.0
    %2757 = vmatprep.subr.mxu0 0.0
    %2758 = vmatpush1.msra.mxu0 0.0
    %2759 = vmatprep.mubr.f32.mxu0 0.0
    %v2760 = vand.u32 %v2593, 4294901760
    %2761 = vmatmul.mubr.f32.gmra.mrb[0].mxu0 %v2760
    %v2762 = vpop.f32.mrb[0].mxu0
    %v2763 = vadd.f32 %v2672, %v2762
    %v2764 = vpop.f32.mrb[0].mxu0
    %2765 = vmatprep.mubr.f32.mxu0 0.0
    %v2766 = vand.u32 %v2596, 4294901760
    %2767 = vmatmul.mubr.f32.gmra.mrb[0].mxu0 %v2766
    %v2768 = vpop.f32.mrb[0].mxu0
    %v2769 = vadd.f32 %v2682, %v2768
    %v2770 = vpop.f32.mrb[0].mxu0
    %2771 = vdwg.mxu0
    %2772 = vmatprep.subr.mxu0 0.0
    %v2773 = vand.u32 %v49, 4294901760
    %v2774 = vsub.f32 %v49, %v2773
    %2775 = vmatpush1.msra.mxu0 %v2774
    %2776 = vmatprep.subr.mxu0 0.0
    %v2777 = vand.u32 %v50, 4294901760
    %v2778 = vsub.f32 %v50, %v2777
    %2779 = vmatpush1.msra.mxu0 %v2778
    %2780 = vmatprep.subr.mxu0 0.0
    %2781 = vmatpush1.msra.mxu0 0.0
    %2782 = vmatprep.subr.mxu0 0.0
    %2783 = vmatpush1.msra.mxu0 0.0
    %2784 = vmatprep.subr.mxu0 0.0
    %2785 = vmatpush1.msra.mxu0 0.0
    %2786 = vmatprep.subr.mxu0 0.0
    %2787 = vmatpush1.msra.mxu0 0.0
    %2788 = vmatprep.subr.mxu0 0.0
    %2789 = vmatpush1.msra.mxu0 0.0
    %2790 = vmatprep.subr.mxu0 0.0
    %2791 = vmatpush1.msra.mxu0 0.0
    %2792 = vmatprep.subr.mxu0 0.0
    %2793 = vmatpush1.msra.mxu0 0.0
    %2794 = vmatprep.subr.mxu0 0.0
    %2795 = vmatpush1.msra.mxu0 0.0
    %2796 = vmatprep.subr.mxu0 0.0
    %2797 = vmatpush1.msra.mxu0 0.0
    %2798 = vmatprep.subr.mxu0 0.0
    %2799 = vmatpush1.msra.mxu0 0.0
    %2800 = vmatprep.subr.mxu0 0.0
    %2801 = vmatpush1.msra.mxu0 0.0
    %2802 = vmatprep.subr.mxu0 0.0
    %2803 = vmatpush1.msra.mxu0 0.0
    %2804 = vmatprep.subr.mxu0 0.0
    %2805 = vmatpush1.msra.mxu0 0.0
    %2806 = vmatprep.subr.mxu0 0.0
    %2807 = vmatpush1.msra.mxu0 0.0
    %2808 = vmatprep.subr.mxu0 0.0
    %2809 = vmatpush1.msra.mxu0 0.0
    %2810 = vmatprep.subr.mxu0 0.0
    %2811 = vmatpush1.msra.mxu0 0.0
    %2812 = vmatprep.subr.mxu0 0.0
    %2813 = vmatpush1.msra.mxu0 0.0
    %2814 = vmatprep.subr.mxu0 0.0
    %2815 = vmatpush1.msra.mxu0 0.0
    %2816 = vmatprep.subr.mxu0 0.0
    %2817 = vmatpush1.msra.mxu0 0.0
    %2818 = vmatprep.subr.mxu0 0.0
    %2819 = vmatpush1.msra.mxu0 0.0
    %2820 = vmatprep.subr.mxu0 0.0
    %2821 = vmatpush1.msra.mxu0 0.0
    %2822 = vmatprep.subr.mxu0 0.0
    %2823 = vmatpush1.msra.mxu0 0.0
    %2824 = vmatprep.subr.mxu0 0.0
    %2825 = vmatpush1.msra.mxu0 0.0
    %2826 = vmatprep.subr.mxu0 0.0
    %2827 = vmatpush1.msra.mxu0 0.0
    %2828 = vmatprep.subr.mxu0 0.0
    %2829 = vmatpush1.msra.mxu0 0.0
    %2830 = vmatprep.subr.mxu0 0.0
    %2831 = vmatpush1.msra.mxu0 0.0
    %2832 = vmatprep.subr.mxu0 0.0
    %2833 = vmatpush1.msra.mxu0 0.0
    %2834 = vmatprep.subr.mxu0 0.0
    %2835 = vmatpush1.msra.mxu0 0.0
    %2836 = vmatprep.subr.mxu0 0.0
    %2837 = vmatpush1.msra.mxu0 0.0
    %2838 = vmatprep.subr.mxu0 0.0
    %2839 = vmatpush1.msra.mxu0 0.0
    %2840 = vmatprep.mubr.f32.mxu0 0.0
    %v2841 = vand.u32 %v2593, 4294901760
    %v2842 = vsub.f32 %v2593, %v2841
    %2843 = vmatmul.mubr.f32.gmra.mrb[0].mxu0 %v2842
    %v2844 = vpop.f32.mrb[0].mxu0
    %v2845 = vadd.f32 %v2763, %v2844
    %v2846 = vpop.f32.mrb[0].mxu0
    %2847 = vmatprep.mubr.f32.mxu0 0.0
    %v2848 = vand.u32 %v2596, 4294901760
    %v2849 = vsub.f32 %v2596, %v2848
    %2850 = vmatmul.mubr.f32.gmra.mrb[0].mxu0 %v2849
    %v2851 = vpop.f32.mrb[0].mxu0
    %v2852 = vadd.f32 %v2769, %v2851
    %v2853 = vpop.f32.mrb[0].mxu0
    %2854 = vdwg.mxu0
    %2855 = vmatprep.subr.mxu0 0.0
    %v2856 = vand.u32 %v49, 4294901760
    %2857 = vmatpush1.msra.mxu0 %v2856
    %2858 = vmatprep.subr.mxu0 0.0
    %v2859 = vand.u32 %v50, 4294901760
    %2860 = vmatpush1.msra.mxu0 %v2859
    %2861 = vmatprep.subr.mxu0 0.0
    %2862 = vmatpush1.msra.mxu0 0.0
    %2863 = vmatprep.subr.mxu0 0.0
    %2864 = vmatpush1.msra.mxu0 0.0
    %2865 = vmatprep.subr.mxu0 0.0
    %2866 = vmatpush1.msra.mxu0 0.0
    %2867 = vmatprep.subr.mxu0 0.0
    %2868 = vmatpush1.msra.mxu0 0.0
    %2869 = vmatprep.subr.mxu0 0.0
    %2870 = vmatpush1.msra.mxu0 0.0
    %2871 = vmatprep.subr.mxu0 0.0
    %2872 = vmatpush1.msra.mxu0 0.0
    %2873 = vmatprep.subr.mxu0 0.0
    %2874 = vmatpush1.msra.mxu0 0.0
    %2875 = vmatprep.subr.mxu0 0.0
    %2876 = vmatpush1.msra.mxu0 0.0
    %2877 = vmatprep.subr.mxu0 0.0
    %2878 = vmatpush1.msra.mxu0 0.0
    %2879 = vmatprep.subr.mxu0 0.0
    %2880 = vmatpush1.msra.mxu0 0.0
    %2881 = vmatprep.subr.mxu0 0.0
    %2882 = vmatpush1.msra.mxu0 0.0
    %2883 = vmatprep.subr.mxu0 0.0
    %2884 = vmatpush1.msra.mxu0 0.0
    %2885 = vmatprep.subr.mxu0 0.0
    %2886 = vmatpush1.msra.mxu0 0.0
    %2887 = vmatprep.subr.mxu0 0.0
    %2888 = vmatpush1.msra.mxu0 0.0
    %2889 = vmatprep.subr.mxu0 0.0
    %2890 = vmatpush1.msra.mxu0 0.0
    %2891 = vmatprep.subr.mxu0 0.0
    %2892 = vmatpush1.msra.mxu0 0.0
    %2893 = vmatprep.subr.mxu0 0.0
    %2894 = vmatpush1.msra.mxu0 0.0
    %2895 = vmatprep.subr.mxu0 0.0
    %2896 = vmatpush1.msra.mxu0 0.0
    %2897 = vmatprep.subr.mxu0 0.0
    %2898 = vmatpush1.msra.mxu0 0.0
    %2899 = vmatprep.subr.mxu0 0.0
    %2900 = vmatpush1.msra.mxu0 0.0
    %2901 = vmatprep.subr.mxu0 0.0
    %2902 = vmatpush1.msra.mxu0 0.0
    %2903 = vmatprep.subr.mxu0 0.0
    %2904 = vmatpush1.msra.mxu0 0.0
    %2905 = vmatprep.subr.mxu0 0.0
    %2906 = vmatpush1.msra.mxu0 0.0
    %2907 = vmatprep.subr.mxu0 0.0
    %2908 = vmatpush1.msra.mxu0 0.0
    %2909 = vmatprep.subr.mxu0 0.0
    %2910 = vmatpush1.msra.mxu0 0.0
    %2911 = vmatprep.subr.mxu0 0.0
    %2912 = vmatpush1.msra.mxu0 0.0
    %2913 = vmatprep.subr.mxu0 0.0
    %2914 = vmatpush1.msra.mxu0 0.0
    %2915 = vmatprep.subr.mxu0 0.0
    %2916 = vmatpush1.msra.mxu0 0.0
    %2917 = vmatprep.subr.mxu0 0.0
    %2918 = vmatpush1.msra.mxu0 0.0
    %2919 = vmatprep.subr.mxu0 0.0
    %2920 = vmatpush1.msra.mxu0 0.0
    %2921 = vmatprep.mubr.f32.mxu0 0.0
    %v2922 = vand.u32 %v2593, 4294901760
    %v2923 = vsub.f32 %v2593, %v2922
    %v2924 = vand.u32 %v2923, 4294901760
    %2925 = vmatmul.mubr.f32.gmra.mrb[0].mxu0 %v2924
    %v2926 = vpop.f32.mrb[0].mxu0
    %v2927 = vadd.f32 %v2845, %v2926
    %v2928 = vpop.f32.mrb[0].mxu0
    %2929 = vmatprep.mubr.f32.mxu0 0.0
    %v2930 = vand.u32 %v2596, 4294901760
    %v2931 = vsub.f32 %v2596, %v2930
    %v2932 = vand.u32 %v2931, 4294901760
    %2933 = vmatmul.mubr.f32.gmra.mrb[0].mxu0 %v2932
    %v2934 = vpop.f32.mrb[0].mxu0
    %v2935 = vadd.f32 %v2852, %v2934
    %v2936 = vpop.f32.mrb[0].mxu0
    %2937 = vdwg.mxu0
    %2938 = vmatprep.subr.mxu0 0.0
    %v2939 = vand.u32 %v49, 4294901760
    %v2940 = vsub.f32 %v49, %v2939
    %v2941 = vand.u32 %v2940, 4294901760
    %2942 = vmatpush1.msra.mxu0 %v2941
    %2943 = vmatprep.subr.mxu0 0.0
    %v2944 = vand.u32 %v50, 4294901760
    %v2945 = vsub.f32 %v50, %v2944
    %v2946 = vand.u32 %v2945, 4294901760
    %2947 = vmatpush1.msra.mxu0 %v2946
    %2948 = vmatprep.subr.mxu0 0.0
    %2949 = vmatpush1.msra.mxu0 0.0
    %2950 = vmatprep.subr.mxu0 0.0
    %2951 = vmatpush1.msra.mxu0 0.0
    %2952 = vmatprep.subr.mxu0 0.0
    %2953 = vmatpush1.msra.mxu0 0.0
    %2954 = vmatprep.subr.mxu0 0.0
    %2955 = vmatpush1.msra.mxu0 0.0
    %2956 = vmatprep.subr.mxu0 0.0
    %2957 = vmatpush1.msra.mxu0 0.0
    %2958 = vmatprep.subr.mxu0 0.0
    %2959 = vmatpush1.msra.mxu0 0.0
    %2960 = vmatprep.subr.mxu0 0.0
    %2961 = vmatpush1.msra.mxu0 0.0
    %2962 = vmatprep.subr.mxu0 0.0
    %2963 = vmatpush1.msra.mxu0 0.0
    %2964 = vmatprep.subr.mxu0 0.0
    %2965 = vmatpush1.msra.mxu0 0.0
    %2966 = vmatprep.subr.mxu0 0.0
    %2967 = vmatpush1.msra.mxu0 0.0
    %2968 = vmatprep.subr.mxu0 0.0
    %2969 = vmatpush1.msra.mxu0 0.0
    %2970 = vmatprep.subr.mxu0 0.0
    %2971 = vmatpush1.msra.mxu0 0.0
    %2972 = vmatprep.subr.mxu0 0.0
    %2973 = vmatpush1.msra.mxu0 0.0
    %2974 = vmatprep.subr.mxu0 0.0
    %2975 = vmatpush1.msra.mxu0 0.0
    %2976 = vmatprep.subr.mxu0 0.0
    %2977 = vmatpush1.msra.mxu0 0.0
    %2978 = vmatprep.subr.mxu0 0.0
    %2979 = vmatpush1.msra.mxu0 0.0
    %2980 = vmatprep.subr.mxu0 0.0
    %2981 = vmatpush1.msra.mxu0 0.0
    %2982 = vmatprep.subr.mxu0 0.0
    %2983 = vmatpush1.msra.mxu0 0.0
    %2984 = vmatprep.subr.mxu0 0.0
    %2985 = vmatpush1.msra.mxu0 0.0
    %2986 = vmatprep.subr.mxu0 0.0
    %2987 = vmatpush1.msra.mxu0 0.0
    %2988 = vmatprep.subr.mxu0 0.0
    %2989 = vmatpush1.msra.mxu0 0.0
    %2990 = vmatprep.subr.mxu0 0.0
    %2991 = vmatpush1.msra.mxu0 0.0
    %2992 = vmatprep.subr.mxu0 0.0
    %2993 = vmatpush1.msra.mxu0 0.0
    %2994 = vmatprep.subr.mxu0 0.0
    %2995 = vmatpush1.msra.mxu0 0.0
    %2996 = vmatprep.subr.mxu0 0.0
    %2997 = vmatpush1.msra.mxu0 0.0
    %2998 = vmatprep.subr.mxu0 0.0
    %2999 = vmatpush1.msra.mxu0 0.0
    %3000 = vmatprep.subr.mxu0 0.0
    %3001 = vmatpush1.msra.mxu0 0.0
    %3002 = vmatprep.subr.mxu0 0.0
    %3003 = vmatpush1.msra.mxu0 0.0
    %3004 = vmatprep.subr.mxu0 0.0
    %3005 = vmatpush1.msra.mxu0 0.0
    %3006 = vmatprep.subr.mxu0 0.0
    %3007 = vmatpush1.msra.mxu0 0.0
    %3008 = vmatprep.mubr.f32.mxu0 0.0
    %v3009 = vand.u32 %v2593, 4294901760
    %3010 = vmatmul.mubr.f32.gmra.mrb[0].mxu0 %v3009
    %v3011 = vpop.f32.mrb[0].mxu0
    %v3012 = vadd.f32 %v2927, %v3011
    %v3013 = vpop.f32.mrb[0].mxu0
    %3014 = vmatprep.mubr.f32.mxu0 0.0
    %v3015 = vand.u32 %v2596, 4294901760
    %3016 = vmatmul.mubr.f32.gmra.mrb[0].mxu0 %v3015
    %v3017 = vpop.f32.mrb[0].mxu0
    %v3018 = vadd.f32 %v2935, %v3017
    %v3019 = vpop.f32.mrb[0].mxu0
    %3020 = vdwg.mxu0
    %3021 = vmatprep.subr.mxu0 0.0
    %v3022 = vand.u32 %v49, 4294901760
    %3023 = vmatpush1.msra.mxu0 %v3022
    %3024 = vmatprep.subr.mxu0 0.0
    %v3025 = vand.u32 %v50, 4294901760
    %3026 = vmatpush1.msra.mxu0 %v3025
    %3027 = vmatprep.subr.mxu0 0.0
    %3028 = vmatpush1.msra.mxu0 0.0
    %3029 = vmatprep.subr.mxu0 0.0
    %3030 = vmatpush1.msra.mxu0 0.0
    %3031 = vmatprep.subr.mxu0 0.0
    %3032 = vmatpush1.msra.mxu0 0.0
    %3033 = vmatprep.subr.mxu0 0.0
    %3034 = vmatpush1.msra.mxu0 0.0
    %3035 = vmatprep.subr.mxu0 0.0
    %3036 = vmatpush1.msra.mxu0 0.0
    %3037 = vmatprep.subr.mxu0 0.0
    %3038 = vmatpush1.msra.mxu0 0.0
    %3039 = vmatprep.subr.mxu0 0.0
    %3040 = vmatpush1.msra.mxu0 0.0
    %3041 = vmatprep.subr.mxu0 0.0
    %3042 = vmatpush1.msra.mxu0 0.0
    %3043 = vmatprep.subr.mxu0 0.0
    %3044 = vmatpush1.msra.mxu0 0.0
    %3045 = vmatprep.subr.mxu0 0.0
    %3046 = vmatpush1.msra.mxu0 0.0
    %3047 = vmatprep.subr.mxu0 0.0
    %3048 = vmatpush1.msra.mxu0 0.0
    %3049 = vmatprep.subr.mxu0 0.0
    %3050 = vmatpush1.msra.mxu0 0.0
    %3051 = vmatprep.subr.mxu0 0.0
    %3052 = vmatpush1.msra.mxu0 0.0
    %3053 = vmatprep.subr.mxu0 0.0
    %3054 = vmatpush1.msra.mxu0 0.0
    %3055 = vmatprep.subr.mxu0 0.0
    %3056 = vmatpush1.msra.mxu0 0.0
    %3057 = vmatprep.subr.mxu0 0.0
    %3058 = vmatpush1.msra.mxu0 0.0
    %3059 = vmatprep.subr.mxu0 0.0
    %3060 = vmatpush1.msra.mxu0 0.0
    %3061 = vmatprep.subr.mxu0 0.0
    %3062 = vmatpush1.msra.mxu0 0.0
    %3063 = vmatprep.subr.mxu0 0.0
    %3064 = vmatpush1.msra.mxu0 0.0
    %3065 = vmatprep.subr.mxu0 0.0
    %3066 = vmatpush1.msra.mxu0 0.0
    %3067 = vmatprep.subr.mxu0 0.0
    %3068 = vmatpush1.msra.mxu0 0.0
    %3069 = vmatprep.subr.mxu0 0.0
    %3070 = vmatpush1.msra.mxu0 0.0
    %3071 = vmatprep.subr.mxu0 0.0
    %3072 = vmatpush1.msra.mxu0 0.0
    %3073 = vmatprep.subr.mxu0 0.0
    %3074 = vmatpush1.msra.mxu0 0.0
    %3075 = vmatprep.subr.mxu0 0.0
    %3076 = vmatpush1.msra.mxu0 0.0
    %3077 = vmatprep.subr.mxu0 0.0
    %3078 = vmatpush1.msra.mxu0 0.0
    %3079 = vmatprep.subr.mxu0 0.0
    %3080 = vmatpush1.msra.mxu0 0.0
    %3081 = vmatprep.subr.mxu0 0.0
    %3082 = vmatpush1.msra.mxu0 0.0
    %3083 = vmatprep.subr.mxu0 0.0
    %3084 = vmatpush1.msra.mxu0 0.0
    %3085 = vmatprep.subr.mxu0 0.0
    %3086 = vmatpush1.msra.mxu0 0.0
    %3087 = vmatprep.mubr.f32.mxu0 0.0
    %v3088 = vand.u32 %v2593, 4294901760
    %3089 = vmatmul.mubr.f32.gmra.mrb[0].mxu0 %v3088
    %v3090 = vpop.f32.mrb[0].mxu0
    %v3091 = vadd.f32 %v3012, %v3090
    %v3092 = vpop.f32.mrb[0].mxu0
    %3093 = vmatprep.mubr.f32.mxu0 0.0
    %v3094 = vand.u32 %v2596, 4294901760
    %3095 = vmatmul.mubr.f32.gmra.mrb[0].mxu0 %v3094
    %v3096 = vpop.f32.mrb[0].mxu0
    %v3097 = vadd.f32 %v3018, %v3096
    %v3098 = vpop.f32.mrb[0].mxu0
    %3099 = vdwg.mxu0
    %v3101 = vsel %vm51, %v41, 0
    %v3104 = vsel %vm51, %v42, 0
    %3106 = vmatprep.subr.mxu0 0.0
    %v3107 = vand.u32 %v49, 4294901760
    %3108 = vmatpush1.msra.mxu0 %v3107
    %3109 = vmatprep.subr.mxu0 0.0
    %v3110 = vand.u32 %v50, 4294901760
    %3111 = vmatpush1.msra.mxu0 %v3110
    %3112 = vmatprep.subr.mxu0 0.0
    %3113 = vmatpush1.msra.mxu0 0.0
    %3114 = vmatprep.subr.mxu0 0.0
    %3115 = vmatpush1.msra.mxu0 0.0
    %3116 = vmatprep.subr.mxu0 0.0
    %3117 = vmatpush1.msra.mxu0 0.0
    %3118 = vmatprep.subr.mxu0 0.0
    %3119 = vmatpush1.msra.mxu0 0.0
    %3120 = vmatprep.subr.mxu0 0.0
    %3121 = vmatpush1.msra.mxu0 0.0
    %3122 = vmatprep.subr.mxu0 0.0
    %3123 = vmatpush1.msra.mxu0 0.0
    %3124 = vmatprep.subr.mxu0 0.0
    %3125 = vmatpush1.msra.mxu0 0.0
    %3126 = vmatprep.subr.mxu0 0.0
    %3127 = vmatpush1.msra.mxu0 0.0
    %3128 = vmatprep.subr.mxu0 0.0
    %3129 = vmatpush1.msra.mxu0 0.0
    %3130 = vmatprep.subr.mxu0 0.0
    %3131 = vmatpush1.msra.mxu0 0.0
    %3132 = vmatprep.subr.mxu0 0.0
    %3133 = vmatpush1.msra.mxu0 0.0
    %3134 = vmatprep.subr.mxu0 0.0
    %3135 = vmatpush1.msra.mxu0 0.0
    %3136 = vmatprep.subr.mxu0 0.0
    %3137 = vmatpush1.msra.mxu0 0.0
    %3138 = vmatprep.subr.mxu0 0.0
    %3139 = vmatpush1.msra.mxu0 0.0
    %3140 = vmatprep.subr.mxu0 0.0
    %3141 = vmatpush1.msra.mxu0 0.0
    %3142 = vmatprep.subr.mxu0 0.0
    %3143 = vmatpush1.msra.mxu0 0.0
    %3144 = vmatprep.subr.mxu0 0.0
    %3145 = vmatpush1.msra.mxu0 0.0
    %3146 = vmatprep.subr.mxu0 0.0
    %3147 = vmatpush1.msra.mxu0 0.0
    %3148 = vmatprep.subr.mxu0 0.0
    %3149 = vmatpush1.msra.mxu0 0.0
    %3150 = vmatprep.subr.mxu0 0.0
    %3151 = vmatpush1.msra.mxu0 0.0
    %3152 = vmatprep.subr.mxu0 0.0
    %3153 = vmatpush1.msra.mxu0 0.0
    %3154 = vmatprep.subr.mxu0 0.0
    %3155 = vmatpush1.msra.mxu0 0.0
    %3156 = vmatprep.subr.mxu0 0.0
    %3157 = vmatpush1.msra.mxu0 0.0
    %3158 = vmatprep.subr.mxu0 0.0
    %3159 = vmatpush1.msra.mxu0 0.0
    %3160 = vmatprep.subr.mxu0 0.0
    %3161 = vmatpush1.msra.mxu0 0.0
    %3162 = vmatprep.subr.mxu0 0.0
    %3163 = vmatpush1.msra.mxu0 0.0
    %3164 = vmatprep.subr.mxu0 0.0
    %3165 = vmatpush1.msra.mxu0 0.0
    %3166 = vmatprep.subr.mxu0 0.0
    %3167 = vmatpush1.msra.mxu0 0.0
    %3168 = vmatprep.subr.mxu0 0.0
    %3169 = vmatpush1.msra.mxu0 0.0
    %3170 = vmatprep.subr.mxu0 0.0
    %3171 = vmatpush1.msra.mxu0 0.0
    %3172 = vmatprep.mubr.f32.mxu0 0.0
    %v3173 = vand.u32 %v3101, 4294901760
    %v3174 = vsub.f32 %v3101, %v3173
    %v3175 = vand.u32 %v3174, 4294901760
    %v3176 = vsub.f32 %v3174, %v3175
    %v3177 = vand.u32 %v3176, 4294901760
    %3178 = vmatmul.mubr.f32.gmra.mrb[0].mxu0 %v3177
    %v3179 = vpop.f32.mrb[0].mxu0
    %v3180 = vadd.f32 0.0, %v3179
    %v3181 = vpop.f32.mrb[0].mxu0
    %3182 = vmatprep.mubr.f32.mxu0 0.0
    %v3183 = vand.u32 %v3104, 4294901760
    %v3184 = vsub.f32 %v3104, %v3183
    %v3185 = vand.u32 %v3184, 4294901760
    %v3186 = vsub.f32 %v3184, %v3185
    %v3187 = vand.u32 %v3186, 4294901760
    %3188 = vmatmul.mubr.f32.gmra.mrb[0].mxu0 %v3187
    %v3189 = vpop.f32.mrb[0].mxu0
    %v3190 = vadd.f32 0.0, %v3189
    %v3191 = vpop.f32.mrb[0].mxu0
    %3192 = vdwg.mxu0
    %3193 = vmatprep.subr.mxu0 0.0
    %v3194 = vand.u32 %v49, 4294901760
    %v3195 = vsub.f32 %v49, %v3194
    %v3196 = vand.u32 %v3195, 4294901760
    %v3197 = vsub.f32 %v3195, %v3196
    %v3198 = vand.u32 %v3197, 4294901760
    %3199 = vmatpush1.msra.mxu0 %v3198
    %3200 = vmatprep.subr.mxu0 0.0
    %v3201 = vand.u32 %v50, 4294901760
    %v3202 = vsub.f32 %v50, %v3201
    %v3203 = vand.u32 %v3202, 4294901760
    %v3204 = vsub.f32 %v3202, %v3203
    %v3205 = vand.u32 %v3204, 4294901760
    %3206 = vmatpush1.msra.mxu0 %v3205
    %3207 = vmatprep.subr.mxu0 0.0
    %3208 = vmatpush1.msra.mxu0 0.0
    %3209 = vmatprep.subr.mxu0 0.0
    %3210 = vmatpush1.msra.mxu0 0.0
    %3211 = vmatprep.subr.mxu0 0.0
    %3212 = vmatpush1.msra.mxu0 0.0
    %3213 = vmatprep.subr.mxu0 0.0
    %3214 = vmatpush1.msra.mxu0 0.0
    %3215 = vmatprep.subr.mxu0 0.0
    %3216 = vmatpush1.msra.mxu0 0.0
    %3217 = vmatprep.subr.mxu0 0.0
    %3218 = vmatpush1.msra.mxu0 0.0
    %3219 = vmatprep.subr.mxu0 0.0
    %3220 = vmatpush1.msra.mxu0 0.0
    %3221 = vmatprep.subr.mxu0 0.0
    %3222 = vmatpush1.msra.mxu0 0.0
    %3223 = vmatprep.subr.mxu0 0.0
    %3224 = vmatpush1.msra.mxu0 0.0
    %3225 = vmatprep.subr.mxu0 0.0
    %3226 = vmatpush1.msra.mxu0 0.0
    %3227 = vmatprep.subr.mxu0 0.0
    %3228 = vmatpush1.msra.mxu0 0.0
    %3229 = vmatprep.subr.mxu0 0.0
    %3230 = vmatpush1.msra.mxu0 0.0
    %3231 = vmatprep.subr.mxu0 0.0
    %3232 = vmatpush1.msra.mxu0 0.0
    %3233 = vmatprep.subr.mxu0 0.0
    %3234 = vmatpush1.msra.mxu0 0.0
    %3235 = vmatprep.subr.mxu0 0.0
    %3236 = vmatpush1.msra.mxu0 0.0
    %3237 = vmatprep.subr.mxu0 0.0
    %3238 = vmatpush1.msra.mxu0 0.0
    %3239 = vmatprep.subr.mxu0 0.0
    %3240 = vmatpush1.msra.mxu0 0.0
    %3241 = vmatprep.subr.mxu0 0.0
    %3242 = vmatpush1.msra.mxu0 0.0
    %3243 = vmatprep.subr.mxu0 0.0
    %3244 = vmatpush1.msra.mxu0 0.0
    %3245 = vmatprep.subr.mxu0 0.0
    %3246 = vmatpush1.msra.mxu0 0.0
    %3247 = vmatprep.subr.mxu0 0.0
    %3248 = vmatpush1.msra.mxu0 0.0
    %3249 = vmatprep.subr.mxu0 0.0
    %3250 = vmatpush1.msra.mxu0 0.0
    %3251 = vmatprep.subr.mxu0 0.0
    %3252 = vmatpush1.msra.mxu0 0.0
    %3253 = vmatprep.subr.mxu0 0.0
    %3254 = vmatpush1.msra.mxu0 0.0
    %3255 = vmatprep.subr.mxu0 0.0
    %3256 = vmatpush1.msra.mxu0 0.0
    %3257 = vmatprep.subr.mxu0 0.0
    %3258 = vmatpush1.msra.mxu0 0.0
    %3259 = vmatprep.subr.mxu0 0.0
    %3260 = vmatpush1.msra.mxu0 0.0
    %3261 = vmatprep.subr.mxu0 0.0
    %3262 = vmatpush1.msra.mxu0 0.0
    %3263 = vmatprep.subr.mxu0 0.0
    %3264 = vmatpush1.msra.mxu0 0.0
    %3265 = vmatprep.subr.mxu0 0.0
    %3266 = vmatpush1.msra.mxu0 0.0
    %3267 = vmatprep.mubr.f32.mxu0 0.0
    %v3268 = vand.u32 %v3101, 4294901760
    %3269 = vmatmul.mubr.f32.gmra.mrb[0].mxu0 %v3268
    %v3270 = vpop.f32.mrb[0].mxu0
    %v3271 = vadd.f32 %v3180, %v3270
    %v3272 = vpop.f32.mrb[0].mxu0
    %3273 = vmatprep.mubr.f32.mxu0 0.0
    %v3274 = vand.u32 %v3104, 4294901760
    %3275 = vmatmul.mubr.f32.gmra.mrb[0].mxu0 %v3274
    %v3276 = vpop.f32.mrb[0].mxu0
    %v3277 = vadd.f32 %v3190, %v3276
    %v3278 = vpop.f32.mrb[0].mxu0
    %3279 = vdwg.mxu0
    %3280 = vmatprep.subr.mxu0 0.0
    %v3281 = vand.u32 %v49, 4294901760
    %v3282 = vsub.f32 %v49, %v3281
    %3283 = vmatpush1.msra.mxu0 %v3282
    %3284 = vmatprep.subr.mxu0 0.0
    %v3285 = vand.u32 %v50, 4294901760
    %v3286 = vsub.f32 %v50, %v3285
    %3287 = vmatpush1.msra.mxu0 %v3286
    %3288 = vmatprep.subr.mxu0 0.0
    %3289 = vmatpush1.msra.mxu0 0.0
    %3290 = vmatprep.subr.mxu0 0.0
    %3291 = vmatpush1.msra.mxu0 0.0
    %3292 = vmatprep.subr.mxu0 0.0
    %3293 = vmatpush1.msra.mxu0 0.0
    %3294 = vmatprep.subr.mxu0 0.0
    %3295 = vmatpush1.msra.mxu0 0.0
    %3296 = vmatprep.subr.mxu0 0.0
    %3297 = vmatpush1.msra.mxu0 0.0
    %3298 = vmatprep.subr.mxu0 0.0
    %3299 = vmatpush1.msra.mxu0 0.0
    %3300 = vmatprep.subr.mxu0 0.0
    %3301 = vmatpush1.msra.mxu0 0.0
    %3302 = vmatprep.subr.mxu0 0.0
    %3303 = vmatpush1.msra.mxu0 0.0
    %3304 = vmatprep.subr.mxu0 0.0
    %3305 = vmatpush1.msra.mxu0 0.0
    %3306 = vmatprep.subr.mxu0 0.0
    %3307 = vmatpush1.msra.mxu0 0.0
    %3308 = vmatprep.subr.mxu0 0.0
    %3309 = vmatpush1.msra.mxu0 0.0
    %3310 = vmatprep.subr.mxu0 0.0
    %3311 = vmatpush1.msra.mxu0 0.0
    %3312 = vmatprep.subr.mxu0 0.0
    %3313 = vmatpush1.msra.mxu0 0.0
    %3314 = vmatprep.subr.mxu0 0.0
    %3315 = vmatpush1.msra.mxu0 0.0
    %3316 = vmatprep.subr.mxu0 0.0
    %3317 = vmatpush1.msra.mxu0 0.0
    %3318 = vmatprep.subr.mxu0 0.0
    %3319 = vmatpush1.msra.mxu0 0.0
    %3320 = vmatprep.subr.mxu0 0.0
    %3321 = vmatpush1.msra.mxu0 0.0
    %3322 = vmatprep.subr.mxu0 0.0
    %3323 = vmatpush1.msra.mxu0 0.0
    %3324 = vmatprep.subr.mxu0 0.0
    %3325 = vmatpush1.msra.mxu0 0.0
    %3326 = vmatprep.subr.mxu0 0.0
    %3327 = vmatpush1.msra.mxu0 0.0
    %3328 = vmatprep.subr.mxu0 0.0
    %3329 = vmatpush1.msra.mxu0 0.0
    %3330 = vmatprep.subr.mxu0 0.0
    %3331 = vmatpush1.msra.mxu0 0.0
    %3332 = vmatprep.subr.mxu0 0.0
    %3333 = vmatpush1.msra.mxu0 0.0
    %3334 = vmatprep.subr.mxu0 0.0
    %3335 = vmatpush1.msra.mxu0 0.0
    %3336 = vmatprep.subr.mxu0 0.0
    %3337 = vmatpush1.msra.mxu0 0.0
    %3338 = vmatprep.subr.mxu0 0.0
    %3339 = vmatpush1.msra.mxu0 0.0
    %3340 = vmatprep.subr.mxu0 0.0
    %3341 = vmatpush1.msra.mxu0 0.0
    %3342 = vmatprep.subr.mxu0 0.0
    %3343 = vmatpush1.msra.mxu0 0.0
    %3344 = vmatprep.subr.mxu0 0.0
    %3345 = vmatpush1.msra.mxu0 0.0
    %3346 = vmatprep.subr.mxu0 0.0
    %3347 = vmatpush1.msra.mxu0 0.0
    %3348 = vmatprep.mubr.f32.mxu0 0.0
    %v3349 = vand.u32 %v3101, 4294901760
    %v3350 = vsub.f32 %v3101, %v3349
    %3351 = vmatmul.mubr.f32.gmra.mrb[0].mxu0 %v3350
    %v3352 = vpop.f32.mrb[0].mxu0
    %v3353 = vadd.f32 %v3271, %v3352
    %v3354 = vpop.f32.mrb[0].mxu0
    %3355 = vmatprep.mubr.f32.mxu0 0.0
    %v3356 = vand.u32 %v3104, 4294901760
    %v3357 = vsub.f32 %v3104, %v3356
    %3358 = vmatmul.mubr.f32.gmra.mrb[0].mxu0 %v3357
    %v3359 = vpop.f32.mrb[0].mxu0
    %v3360 = vadd.f32 %v3277, %v3359
    %v3361 = vpop.f32.mrb[0].mxu0
    %3362 = vdwg.mxu0
    %3363 = vmatprep.subr.mxu0 0.0
    %v3364 = vand.u32 %v49, 4294901760
    %3365 = vmatpush1.msra.mxu0 %v3364
    %3366 = vmatprep.subr.mxu0 0.0
    %v3367 = vand.u32 %v50, 4294901760
    %3368 = vmatpush1.msra.mxu0 %v3367
    %3369 = vmatprep.subr.mxu0 0.0
    %3370 = vmatpush1.msra.mxu0 0.0
    %3371 = vmatprep.subr.mxu0 0.0
    %3372 = vmatpush1.msra.mxu0 0.0
    %3373 = vmatprep.subr.mxu0 0.0
    %3374 = vmatpush1.msra.mxu0 0.0
    %3375 = vmatprep.subr.mxu0 0.0
    %3376 = vmatpush1.msra.mxu0 0.0
    %3377 = vmatprep.subr.mxu0 0.0
    %3378 = vmatpush1.msra.mxu0 0.0
    %3379 = vmatprep.subr.mxu0 0.0
    %3380 = vmatpush1.msra.mxu0 0.0
    %3381 = vmatprep.subr.mxu0 0.0
    %3382 = vmatpush1.msra.mxu0 0.0
    %3383 = vmatprep.subr.mxu0 0.0
    %3384 = vmatpush1.msra.mxu0 0.0
    %3385 = vmatprep.subr.mxu0 0.0
    %3386 = vmatpush1.msra.mxu0 0.0
    %3387 = vmatprep.subr.mxu0 0.0
    %3388 = vmatpush1.msra.mxu0 0.0
    %3389 = vmatprep.subr.mxu0 0.0
    %3390 = vmatpush1.msra.mxu0 0.0
    %3391 = vmatprep.subr.mxu0 0.0
    %3392 = vmatpush1.msra.mxu0 0.0
    %3393 = vmatprep.subr.mxu0 0.0
    %3394 = vmatpush1.msra.mxu0 0.0
    %3395 = vmatprep.subr.mxu0 0.0
    %3396 = vmatpush1.msra.mxu0 0.0
    %3397 = vmatprep.subr.mxu0 0.0
    %3398 = vmatpush1.msra.mxu0 0.0
    %3399 = vmatprep.subr.mxu0 0.0
    %3400 = vmatpush1.msra.mxu0 0.0
    %3401 = vmatprep.subr.mxu0 0.0
    %3402 = vmatpush1.msra.mxu0 0.0
    %3403 = vmatprep.subr.mxu0 0.0
    %3404 = vmatpush1.msra.mxu0 0.0
    %3405 = vmatprep.subr.mxu0 0.0
    %3406 = vmatpush1.msra.mxu0 0.0
    %3407 = vmatprep.subr.mxu0 0.0
    %3408 = vmatpush1.msra.mxu0 0.0
    %3409 = vmatprep.subr.mxu0 0.0
    %3410 = vmatpush1.msra.mxu0 0.0
    %3411 = vmatprep.subr.mxu0 0.0
    %3412 = vmatpush1.msra.mxu0 0.0
    %3413 = vmatprep.subr.mxu0 0.0
    %3414 = vmatpush1.msra.mxu0 0.0
    %3415 = vmatprep.subr.mxu0 0.0
    %3416 = vmatpush1.msra.mxu0 0.0
    %3417 = vmatprep.subr.mxu0 0.0
    %3418 = vmatpush1.msra.mxu0 0.0
    %3419 = vmatprep.subr.mxu0 0.0
    %3420 = vmatpush1.msra.mxu0 0.0
    %3421 = vmatprep.subr.mxu0 0.0
    %3422 = vmatpush1.msra.mxu0 0.0
    %3423 = vmatprep.subr.mxu0 0.0
    %3424 = vmatpush1.msra.mxu0 0.0
    %3425 = vmatprep.subr.mxu0 0.0
    %3426 = vmatpush1.msra.mxu0 0.0
    %3427 = vmatprep.subr.mxu0 0.0
    %3428 = vmatpush1.msra.mxu0 0.0
    %3429 = vmatprep.mubr.f32.mxu0 0.0
    %v3430 = vand.u32 %v3101, 4294901760
    %v3431 = vsub.f32 %v3101, %v3430
    %v3432 = vand.u32 %v3431, 4294901760
    %3433 = vmatmul.mubr.f32.gmra.mrb[0].mxu0 %v3432
    %v3434 = vpop.f32.mrb[0].mxu0
    %v3435 = vadd.f32 %v3353, %v3434
    %v3436 = vpop.f32.mrb[0].mxu0
    %3437 = vmatprep.mubr.f32.mxu0 0.0
    %v3438 = vand.u32 %v3104, 4294901760
    %v3439 = vsub.f32 %v3104, %v3438
    %v3440 = vand.u32 %v3439, 4294901760
    %3441 = vmatmul.mubr.f32.gmra.mrb[0].mxu0 %v3440
    %v3442 = vpop.f32.mrb[0].mxu0
    %v3443 = vadd.f32 %v3360, %v3442
    %v3444 = vpop.f32.mrb[0].mxu0
    %3445 = vdwg.mxu0
    %3446 = vmatprep.subr.mxu0 0.0
    %v3447 = vand.u32 %v49, 4294901760
    %v3448 = vsub.f32 %v49, %v3447
    %v3449 = vand.u32 %v3448, 4294901760
    %3450 = vmatpush1.msra.mxu0 %v3449
    %3451 = vmatprep.subr.mxu0 0.0
    %v3452 = vand.u32 %v50, 4294901760
    %v3453 = vsub.f32 %v50, %v3452
    %v3454 = vand.u32 %v3453, 4294901760
    %3455 = vmatpush1.msra.mxu0 %v3454
    %3456 = vmatprep.subr.mxu0 0.0
    %3457 = vmatpush1.msra.mxu0 0.0
    %3458 = vmatprep.subr.mxu0 0.0
    %3459 = vmatpush1.msra.mxu0 0.0
    %3460 = vmatprep.subr.mxu0 0.0
    %3461 = vmatpush1.msra.mxu0 0.0
    %3462 = vmatprep.subr.mxu0 0.0
    %3463 = vmatpush1.msra.mxu0 0.0
    %3464 = vmatprep.subr.mxu0 0.0
    %3465 = vmatpush1.msra.mxu0 0.0
    %3466 = vmatprep.subr.mxu0 0.0
    %3467 = vmatpush1.msra.mxu0 0.0
    %3468 = vmatprep.subr.mxu0 0.0
    %3469 = vmatpush1.msra.mxu0 0.0
    %3470 = vmatprep.subr.mxu0 0.0
    %3471 = vmatpush1.msra.mxu0 0.0
    %3472 = vmatprep.subr.mxu0 0.0
    %3473 = vmatpush1.msra.mxu0 0.0
    %3474 = vmatprep.subr.mxu0 0.0
    %3475 = vmatpush1.msra.mxu0 0.0
    %3476 = vmatprep.subr.mxu0 0.0
    %3477 = vmatpush1.msra.mxu0 0.0
    %3478 = vmatprep.subr.mxu0 0.0
    %3479 = vmatpush1.msra.mxu0 0.0
    %3480 = vmatprep.subr.mxu0 0.0
    %3481 = vmatpush1.msra.mxu0 0.0
    %3482 = vmatprep.subr.mxu0 0.0
    %3483 = vmatpush1.msra.mxu0 0.0
    %3484 = vmatprep.subr.mxu0 0.0
    %3485 = vmatpush1.msra.mxu0 0.0
    %3486 = vmatprep.subr.mxu0 0.0
    %3487 = vmatpush1.msra.mxu0 0.0
    %3488 = vmatprep.subr.mxu0 0.0
    %3489 = vmatpush1.msra.mxu0 0.0
    %3490 = vmatprep.subr.mxu0 0.0
    %3491 = vmatpush1.msra.mxu0 0.0
    %3492 = vmatprep.subr.mxu0 0.0
    %3493 = vmatpush1.msra.mxu0 0.0
    %3494 = vmatprep.subr.mxu0 0.0
    %3495 = vmatpush1.msra.mxu0 0.0
    %3496 = vmatprep.subr.mxu0 0.0
    %3497 = vmatpush1.msra.mxu0 0.0
    %3498 = vmatprep.subr.mxu0 0.0
    %3499 = vmatpush1.msra.mxu0 0.0
    %3500 = vmatprep.subr.mxu0 0.0
    %3501 = vmatpush1.msra.mxu0 0.0
    %3502 = vmatprep.subr.mxu0 0.0
    %3503 = vmatpush1.msra.mxu0 0.0
    %3504 = vmatprep.subr.mxu0 0.0
    %3505 = vmatpush1.msra.mxu0 0.0
    %3506 = vmatprep.subr.mxu0 0.0
    %3507 = vmatpush1.msra.mxu0 0.0
    %3508 = vmatprep.subr.mxu0 0.0
    %3509 = vmatpush1.msra.mxu0 0.0
    %3510 = vmatprep.subr.mxu0 0.0
    %3511 = vmatpush1.msra.mxu0 0.0
    %3512 = vmatprep.subr.mxu0 0.0
    %3513 = vmatpush1.msra.mxu0 0.0
    %3514 = vmatprep.subr.mxu0 0.0
    %3515 = vmatpush1.msra.mxu0 0.0
    %3516 = vmatprep.mubr.f32.mxu0 0.0
    %v3517 = vand.u32 %v3101, 4294901760
    %3518 = vmatmul.mubr.f32.gmra.mrb[0].mxu0 %v3517
    %v3519 = vpop.f32.mrb[0].mxu0
    %v3520 = vadd.f32 %v3435, %v3519
    %v3521 = vpop.f32.mrb[0].mxu0
    %3522 = vmatprep.mubr.f32.mxu0 0.0
    %v3523 = vand.u32 %v3104, 4294901760
    %3524 = vmatmul.mubr.f32.gmra.mrb[0].mxu0 %v3523
    %v3525 = vpop.f32.mrb[0].mxu0
    %v3526 = vadd.f32 %v3443, %v3525
    %v3527 = vpop.f32.mrb[0].mxu0
    %3528 = vdwg.mxu0
    %3529 = vmatprep.subr.mxu0 0.0
    %v3530 = vand.u32 %v49, 4294901760
    %3531 = vmatpush1.msra.mxu0 %v3530
    %3532 = vmatprep.subr.mxu0 0.0
    %v3533 = vand.u32 %v50, 4294901760
    %3534 = vmatpush1.msra.mxu0 %v3533
    %3535 = vmatprep.subr.mxu0 0.0
    %3536 = vmatpush1.msra.mxu0 0.0
    %3537 = vmatprep.subr.mxu0 0.0
    %3538 = vmatpush1.msra.mxu0 0.0
    %3539 = vmatprep.subr.mxu0 0.0
    %3540 = vmatpush1.msra.mxu0 0.0
    %3541 = vmatprep.subr.mxu0 0.0
    %3542 = vmatpush1.msra.mxu0 0.0
    %3543 = vmatprep.subr.mxu0 0.0
    %3544 = vmatpush1.msra.mxu0 0.0
    %3545 = vmatprep.subr.mxu0 0.0
    %3546 = vmatpush1.msra.mxu0 0.0
    %3547 = vmatprep.subr.mxu0 0.0
    %3548 = vmatpush1.msra.mxu0 0.0
    %3549 = vmatprep.subr.mxu0 0.0
    %3550 = vmatpush1.msra.mxu0 0.0
    %3551 = vmatprep.subr.mxu0 0.0
    %3552 = vmatpush1.msra.mxu0 0.0
    %3553 = vmatprep.subr.mxu0 0.0
    %3554 = vmatpush1.msra.mxu0 0.0
    %3555 = vmatprep.subr.mxu0 0.0
    %3556 = vmatpush1.msra.mxu0 0.0
    %3557 = vmatprep.subr.mxu0 0.0
    %3558 = vmatpush1.msra.mxu0 0.0
    %3559 = vmatprep.subr.mxu0 0.0
    %3560 = vmatpush1.msra.mxu0 0.0
    %3561 = vmatprep.subr.mxu0 0.0
    %3562 = vmatpush1.msra.mxu0 0.0
    %3563 = vmatprep.subr.mxu0 0.0
    %3564 = vmatpush1.msra.mxu0 0.0
    %3565 = vmatprep.subr.mxu0 0.0
    %3566 = vmatpush1.msra.mxu0 0.0
    %3567 = vmatprep.subr.mxu0 0.0
    %3568 = vmatpush1.msra.mxu0 0.0
    %3569 = vmatprep.subr.mxu0 0.0
    %3570 = vmatpush1.msra.mxu0 0.0
    %3571 = vmatprep.subr.mxu0 0.0
    %3572 = vmatpush1.msra.mxu0 0.0
    %3573 = vmatprep.subr.mxu0 0.0
    %3574 = vmatpush1.msra.mxu0 0.0
    %3575 = vmatprep.subr.mxu0 0.0
    %3576 = vmatpush1.msra.mxu0 0.0
    %3577 = vmatprep.subr.mxu0 0.0
    %3578 = vmatpush1.msra.mxu0 0.0
    %3579 = vmatprep.subr.mxu0 0.0
    %3580 = vmatpush1.msra.mxu0 0.0
    %3581 = vmatprep.subr.mxu0 0.0
    %3582 = vmatpush1.msra.mxu0 0.0
    %3583 = vmatprep.subr.mxu0 0.0
    %3584 = vmatpush1.msra.mxu0 0.0
    %3585 = vmatprep.subr.mxu0 0.0
    %3586 = vmatpush1.msra.mxu0 0.0
    %3587 = vmatprep.subr.mxu0 0.0
    %3588 = vmatpush1.msra.mxu0 0.0
    %3589 = vmatprep.subr.mxu0 0.0
    %3590 = vmatpush1.msra.mxu0 0.0
    %3591 = vmatprep.subr.mxu0 0.0
    %3592 = vmatpush1.msra.mxu0 0.0
    %3593 = vmatprep.subr.mxu0 0.0
    %3594 = vmatpush1.msra.mxu0 0.0
    %3595 = vmatprep.mubr.f32.mxu0 0.0
    %v3596 = vand.u32 %v3101, 4294901760
    %3597 = vmatmul.mubr.f32.gmra.mrb[0].mxu0 %v3596
    %v3598 = vpop.f32.mrb[0].mxu0
    %v3599 = vadd.f32 %v3520, %v3598
    %v3600 = vpop.f32.mrb[0].mxu0
    %3601 = vmatprep.mubr.f32.mxu0 0.0
    %v3602 = vand.u32 %v3104, 4294901760
    %3603 = vmatmul.mubr.f32.gmra.mrb[0].mxu0 %v3602
    %v3604 = vpop.f32.mrb[0].mxu0
    %v3605 = vadd.f32 %v3526, %v3604
    %v3606 = vpop.f32.mrb[0].mxu0
    %3607 = vdwg.mxu0
    %v3609 = vsel %vm51, %v43, 0
    %v3612 = vsel %vm51, %v44, 0
    %3614 = vmatprep.subr.mxu0 0.0
    %v3615 = vand.u32 %v49, 4294901760
    %3616 = vmatpush1.msra.mxu0 %v3615
    %3617 = vmatprep.subr.mxu0 0.0
    %v3618 = vand.u32 %v50, 4294901760
    %3619 = vmatpush1.msra.mxu0 %v3618
    %3620 = vmatprep.subr.mxu0 0.0
    %3621 = vmatpush1.msra.mxu0 0.0
    %3622 = vmatprep.subr.mxu0 0.0
    %3623 = vmatpush1.msra.mxu0 0.0
    %3624 = vmatprep.subr.mxu0 0.0
    %3625 = vmatpush1.msra.mxu0 0.0
    %3626 = vmatprep.subr.mxu0 0.0
    %3627 = vmatpush1.msra.mxu0 0.0
    %3628 = vmatprep.subr.mxu0 0.0
    %3629 = vmatpush1.msra.mxu0 0.0
    %3630 = vmatprep.subr.mxu0 0.0
    %3631 = vmatpush1.msra.mxu0 0.0
    %3632 = vmatprep.subr.mxu0 0.0
    %3633 = vmatpush1.msra.mxu0 0.0
    %3634 = vmatprep.subr.mxu0 0.0
    %3635 = vmatpush1.msra.mxu0 0.0
    %3636 = vmatprep.subr.mxu0 0.0
    %3637 = vmatpush1.msra.mxu0 0.0
    %3638 = vmatprep.subr.mxu0 0.0
    %3639 = vmatpush1.msra.mxu0 0.0
    %3640 = vmatprep.subr.mxu0 0.0
    %3641 = vmatpush1.msra.mxu0 0.0
    %3642 = vmatprep.subr.mxu0 0.0
    %3643 = vmatpush1.msra.mxu0 0.0
    %3644 = vmatprep.subr.mxu0 0.0
    %3645 = vmatpush1.msra.mxu0 0.0
    %3646 = vmatprep.subr.mxu0 0.0
    %3647 = vmatpush1.msra.mxu0 0.0
    %3648 = vmatprep.subr.mxu0 0.0
    %3649 = vmatpush1.msra.mxu0 0.0
    %3650 = vmatprep.subr.mxu0 0.0
    %3651 = vmatpush1.msra.mxu0 0.0
    %3652 = vmatprep.subr.mxu0 0.0
    %3653 = vmatpush1.msra.mxu0 0.0
    %3654 = vmatprep.subr.mxu0 0.0
    %3655 = vmatpush1.msra.mxu0 0.0
    %3656 = vmatprep.subr.mxu0 0.0
    %3657 = vmatpush1.msra.mxu0 0.0
    %3658 = vmatprep.subr.mxu0 0.0
    %3659 = vmatpush1.msra.mxu0 0.0
    %3660 = vmatprep.subr.mxu0 0.0
    %3661 = vmatpush1.msra.mxu0 0.0
    %3662 = vmatprep.subr.mxu0 0.0
    %3663 = vmatpush1.msra.mxu0 0.0
    %3664 = vmatprep.subr.mxu0 0.0
    %3665 = vmatpush1.msra.mxu0 0.0
    %3666 = vmatprep.subr.mxu0 0.0
    %3667 = vmatpush1.msra.mxu0 0.0
    %3668 = vmatprep.subr.mxu0 0.0
    %3669 = vmatpush1.msra.mxu0 0.0
    %3670 = vmatprep.subr.mxu0 0.0
    %3671 = vmatpush1.msra.mxu0 0.0
    %3672 = vmatprep.subr.mxu0 0.0
    %3673 = vmatpush1.msra.mxu0 0.0
    %3674 = vmatprep.subr.mxu0 0.0
    %3675 = vmatpush1.msra.mxu0 0.0
    %3676 = vmatprep.subr.mxu0 0.0
    %3677 = vmatpush1.msra.mxu0 0.0
    %3678 = vmatprep.subr.mxu0 0.0
    %3679 = vmatpush1.msra.mxu0 0.0
    %3680 = vmatprep.mubr.f32.mxu0 0.0
    %v3681 = vand.u32 %v3609, 4294901760
    %v3682 = vsub.f32 %v3609, %v3681
    %v3683 = vand.u32 %v3682, 4294901760
    %v3684 = vsub.f32 %v3682, %v3683
    %v3685 = vand.u32 %v3684, 4294901760
    %3686 = vmatmul.mubr.f32.gmra.mrb[0].mxu0 %v3685
    %v3687 = vpop.f32.mrb[0].mxu0
    %v3688 = vadd.f32 0.0, %v3687
    %v3689 = vpop.f32.mrb[0].mxu0
    %3690 = vmatprep.mubr.f32.mxu0 0.0
    %v3691 = vand.u32 %v3612, 4294901760
    %v3692 = vsub.f32 %v3612, %v3691
    %v3693 = vand.u32 %v3692, 4294901760
    %v3694 = vsub.f32 %v3692, %v3693
    %v3695 = vand.u32 %v3694, 4294901760
    %3696 = vmatmul.mubr.f32.gmra.mrb[0].mxu0 %v3695
    %v3697 = vpop.f32.mrb[0].mxu0
    %v3698 = vadd.f32 0.0, %v3697
    %v3699 = vpop.f32.mrb[0].mxu0
    %3700 = vdwg.mxu0
    %3701 = vmatprep.subr.mxu0 0.0
    %v3702 = vand.u32 %v49, 4294901760
    %v3703 = vsub.f32 %v49, %v3702
    %v3704 = vand.u32 %v3703, 4294901760
    %v3705 = vsub.f32 %v3703, %v3704
    %v3706 = vand.u32 %v3705, 4294901760
    %3707 = vmatpush1.msra.mxu0 %v3706
    %3708 = vmatprep.subr.mxu0 0.0
    %v3709 = vand.u32 %v50, 4294901760
    %v3710 = vsub.f32 %v50, %v3709
    %v3711 = vand.u32 %v3710, 4294901760
    %v3712 = vsub.f32 %v3710, %v3711
    %v3713 = vand.u32 %v3712, 4294901760
    %3714 = vmatpush1.msra.mxu0 %v3713
    %3715 = vmatprep.subr.mxu0 0.0
    %3716 = vmatpush1.msra.mxu0 0.0
    %3717 = vmatprep.subr.mxu0 0.0
    %3718 = vmatpush1.msra.mxu0 0.0
    %3719 = vmatprep.subr.mxu0 0.0
    %3720 = vmatpush1.msra.mxu0 0.0
    %3721 = vmatprep.subr.mxu0 0.0
    %3722 = vmatpush1.msra.mxu0 0.0
    %3723 = vmatprep.subr.mxu0 0.0
    %3724 = vmatpush1.msra.mxu0 0.0
    %3725 = vmatprep.subr.mxu0 0.0
    %3726 = vmatpush1.msra.mxu0 0.0
    %3727 = vmatprep.subr.mxu0 0.0
    %3728 = vmatpush1.msra.mxu0 0.0
    %3729 = vmatprep.subr.mxu0 0.0
    %3730 = vmatpush1.msra.mxu0 0.0
    %3731 = vmatprep.subr.mxu0 0.0
    %3732 = vmatpush1.msra.mxu0 0.0
    %3733 = vmatprep.subr.mxu0 0.0
    %3734 = vmatpush1.msra.mxu0 0.0
    %3735 = vmatprep.subr.mxu0 0.0
    %3736 = vmatpush1.msra.mxu0 0.0
    %3737 = vmatprep.subr.mxu0 0.0
    %3738 = vmatpush1.msra.mxu0 0.0
    %3739 = vmatprep.subr.mxu0 0.0
    %3740 = vmatpush1.msra.mxu0 0.0
    %3741 = vmatprep.subr.mxu0 0.0
    %3742 = vmatpush1.msra.mxu0 0.0
    %3743 = vmatprep.subr.mxu0 0.0
    %3744 = vmatpush1.msra.mxu0 0.0
    %3745 = vmatprep.subr.mxu0 0.0
    %3746 = vmatpush1.msra.mxu0 0.0
    %3747 = vmatprep.subr.mxu0 0.0
    %3748 = vmatpush1.msra.mxu0 0.0
    %3749 = vmatprep.subr.mxu0 0.0
    %3750 = vmatpush1.msra.mxu0 0.0
    %3751 = vmatprep.subr.mxu0 0.0
    %3752 = vmatpush1.msra.mxu0 0.0
    %3753 = vmatprep.subr.mxu0 0.0
    %3754 = vmatpush1.msra.mxu0 0.0
    %3755 = vmatprep.subr.mxu0 0.0
    %3756 = vmatpush1.msra.mxu0 0.0
    %3757 = vmatprep.subr.mxu0 0.0
    %3758 = vmatpush1.msra.mxu0 0.0
    %3759 = vmatprep.subr.mxu0 0.0
    %3760 = vmatpush1.msra.mxu0 0.0
    %3761 = vmatprep.subr.mxu0 0.0
    %3762 = vmatpush1.msra.mxu0 0.0
    %3763 = vmatprep.subr.mxu0 0.0
    %3764 = vmatpush1.msra.mxu0 0.0
    %3765 = vmatprep.subr.mxu0 0.0
    %3766 = vmatpush1.msra.mxu0 0.0
    %3767 = vmatprep.subr.mxu0 0.0
    %3768 = vmatpush1.msra.mxu0 0.0
    %3769 = vmatprep.subr.mxu0 0.0
    %3770 = vmatpush1.msra.mxu0 0.0
    %3771 = vmatprep.subr.mxu0 0.0
    %3772 = vmatpush1.msra.mxu0 0.0
    %3773 = vmatprep.subr.mxu0 0.0
    %3774 = vmatpush1.msra.mxu0 0.0
    %3775 = vmatprep.mubr.f32.mxu0 0.0
    %v3776 = vand.u32 %v3609, 4294901760
    %3777 = vmatmul.mubr.f32.gmra.mrb[0].mxu0 %v3776
    %v3778 = vpop.f32.mrb[0].mxu0
    %v3779 = vadd.f32 %v3688, %v3778
    %v3780 = vpop.f32.mrb[0].mxu0
    %3781 = vmatprep.mubr.f32.mxu0 0.0
    %v3782 = vand.u32 %v3612, 4294901760
    %3783 = vmatmul.mubr.f32.gmra.mrb[0].mxu0 %v3782
    %v3784 = vpop.f32.mrb[0].mxu0
    %v3785 = vadd.f32 %v3698, %v3784
    %v3786 = vpop.f32.mrb[0].mxu0
    %3787 = vdwg.mxu0
    %3788 = vmatprep.subr.mxu0 0.0
    %v3789 = vand.u32 %v49, 4294901760
    %v3790 = vsub.f32 %v49, %v3789
    %3791 = vmatpush1.msra.mxu0 %v3790
    %3792 = vmatprep.subr.mxu0 0.0
    %v3793 = vand.u32 %v50, 4294901760
    %v3794 = vsub.f32 %v50, %v3793
    %3795 = vmatpush1.msra.mxu0 %v3794
    %3796 = vmatprep.subr.mxu0 0.0
    %3797 = vmatpush1.msra.mxu0 0.0
    %3798 = vmatprep.subr.mxu0 0.0
    %3799 = vmatpush1.msra.mxu0 0.0
    %3800 = vmatprep.subr.mxu0 0.0
    %3801 = vmatpush1.msra.mxu0 0.0
    %3802 = vmatprep.subr.mxu0 0.0
    %3803 = vmatpush1.msra.mxu0 0.0
    %3804 = vmatprep.subr.mxu0 0.0
    %3805 = vmatpush1.msra.mxu0 0.0
    %3806 = vmatprep.subr.mxu0 0.0
    %3807 = vmatpush1.msra.mxu0 0.0
    %3808 = vmatprep.subr.mxu0 0.0
    %3809 = vmatpush1.msra.mxu0 0.0
    %3810 = vmatprep.subr.mxu0 0.0
    %3811 = vmatpush1.msra.mxu0 0.0
    %3812 = vmatprep.subr.mxu0 0.0
    %3813 = vmatpush1.msra.mxu0 0.0
    %3814 = vmatprep.subr.mxu0 0.0
    %3815 = vmatpush1.msra.mxu0 0.0
    %3816 = vmatprep.subr.mxu0 0.0
    %3817 = vmatpush1.msra.mxu0 0.0
    %3818 = vmatprep.subr.mxu0 0.0
    %3819 = vmatpush1.msra.mxu0 0.0
    %3820 = vmatprep.subr.mxu0 0.0
    %3821 = vmatpush1.msra.mxu0 0.0
    %3822 = vmatprep.subr.mxu0 0.0
    %3823 = vmatpush1.msra.mxu0 0.0
    %3824 = vmatprep.subr.mxu0 0.0
    %3825 = vmatpush1.msra.mxu0 0.0
    %3826 = vmatprep.subr.mxu0 0.0
    %3827 = vmatpush1.msra.mxu0 0.0
    %3828 = vmatprep.subr.mxu0 0.0
    %3829 = vmatpush1.msra.mxu0 0.0
    %3830 = vmatprep.subr.mxu0 0.0
    %3831 = vmatpush1.msra.mxu0 0.0
    %3832 = vmatprep.subr.mxu0 0.0
    %3833 = vmatpush1.msra.mxu0 0.0
    %3834 = vmatprep.subr.mxu0 0.0
    %3835 = vmatpush1.msra.mxu0 0.0
    %3836 = vmatprep.subr.mxu0 0.0
    %3837 = vmatpush1.msra.mxu0 0.0
    %3838 = vmatprep.subr.mxu0 0.0
    %3839 = vmatpush1.msra.mxu0 0.0
    %3840 = vmatprep.subr.mxu0 0.0
    %3841 = vmatpush1.msra.mxu0 0.0
    %3842 = vmatprep.subr.mxu0 0.0
    %3843 = vmatpush1.msra.mxu0 0.0
    %3844 = vmatprep.subr.mxu0 0.0
    %3845 = vmatpush1.msra.mxu0 0.0
    %3846 = vmatprep.subr.mxu0 0.0
    %3847 = vmatpush1.msra.mxu0 0.0
    %3848 = vmatprep.subr.mxu0 0.0
    %3849 = vmatpush1.msra.mxu0 0.0
    %3850 = vmatprep.subr.mxu0 0.0
    %3851 = vmatpush1.msra.mxu0 0.0
    %3852 = vmatprep.subr.mxu0 0.0
    %3853 = vmatpush1.msra.mxu0 0.0
    %3854 = vmatprep.subr.mxu0 0.0
    %3855 = vmatpush1.msra.mxu0 0.0
    %3856 = vmatprep.mubr.f32.mxu0 0.0
    %v3857 = vand.u32 %v3609, 4294901760
    %v3858 = vsub.f32 %v3609, %v3857
    %3859 = vmatmul.mubr.f32.gmra.mrb[0].mxu0 %v3858
    %v3860 = vpop.f32.mrb[0].mxu0
    %v3861 = vadd.f32 %v3779, %v3860
    %v3862 = vpop.f32.mrb[0].mxu0
    %3863 = vmatprep.mubr.f32.mxu0 0.0
    %v3864 = vand.u32 %v3612, 4294901760
    %v3865 = vsub.f32 %v3612, %v3864
    %3866 = vmatmul.mubr.f32.gmra.mrb[0].mxu0 %v3865
    %v3867 = vpop.f32.mrb[0].mxu0
    %v3868 = vadd.f32 %v3785, %v3867
    %v3869 = vpop.f32.mrb[0].mxu0
    %3870 = vdwg.mxu0
    %3871 = vmatprep.subr.mxu0 0.0
    %v3872 = vand.u32 %v49, 4294901760
    %3873 = vmatpush1.msra.mxu0 %v3872
    %3874 = vmatprep.subr.mxu0 0.0
    %v3875 = vand.u32 %v50, 4294901760
    %3876 = vmatpush1.msra.mxu0 %v3875
    %3877 = vmatprep.subr.mxu0 0.0
    %3878 = vmatpush1.msra.mxu0 0.0
    %3879 = vmatprep.subr.mxu0 0.0
    %3880 = vmatpush1.msra.mxu0 0.0
    %3881 = vmatprep.subr.mxu0 0.0
    %3882 = vmatpush1.msra.mxu0 0.0
    %3883 = vmatprep.subr.mxu0 0.0
    %3884 = vmatpush1.msra.mxu0 0.0
    %3885 = vmatprep.subr.mxu0 0.0
    %3886 = vmatpush1.msra.mxu0 0.0
    %3887 = vmatprep.subr.mxu0 0.0
    %3888 = vmatpush1.msra.mxu0 0.0
    %3889 = vmatprep.subr.mxu0 0.0
    %3890 = vmatpush1.msra.mxu0 0.0
    %3891 = vmatprep.subr.mxu0 0.0
    %3892 = vmatpush1.msra.mxu0 0.0
    %3893 = vmatprep.subr.mxu0 0.0
    %3894 = vmatpush1.msra.mxu0 0.0
    %3895 = vmatprep.subr.mxu0 0.0
    %3896 = vmatpush1.msra.mxu0 0.0
    %3897 = vmatprep.subr.mxu0 0.0
    %3898 = vmatpush1.msra.mxu0 0.0
    %3899 = vmatprep.subr.mxu0 0.0
    %3900 = vmatpush1.msra.mxu0 0.0
    %3901 = vmatprep.subr.mxu0 0.0
    %3902 = vmatpush1.msra.mxu0 0.0
    %3903 = vmatprep.subr.mxu0 0.0
    %3904 = vmatpush1.msra.mxu0 0.0
    %3905 = vmatprep.subr.mxu0 0.0
    %3906 = vmatpush1.msra.mxu0 0.0
    %3907 = vmatprep.subr.mxu0 0.0
    %3908 = vmatpush1.msra.mxu0 0.0
    %3909 = vmatprep.subr.mxu0 0.0
    %3910 = vmatpush1.msra.mxu0 0.0
    %3911 = vmatprep.subr.mxu0 0.0
    %3912 = vmatpush1.msra.mxu0 0.0
    %3913 = vmatprep.subr.mxu0 0.0
    %3914 = vmatpush1.msra.mxu0 0.0
    %3915 = vmatprep.subr.mxu0 0.0
    %3916 = vmatpush1.msra.mxu0 0.0
    %3917 = vmatprep.subr.mxu0 0.0
    %3918 = vmatpush1.msra.mxu0 0.0
    %3919 = vmatprep.subr.mxu0 0.0
    %3920 = vmatpush1.msra.mxu0 0.0
    %3921 = vmatprep.subr.mxu0 0.0
    %3922 = vmatpush1.msra.mxu0 0.0
    %3923 = vmatprep.subr.mxu0 0.0
    %3924 = vmatpush1.msra.mxu0 0.0
    %3925 = vmatprep.subr.mxu0 0.0
    %3926 = vmatpush1.msra.mxu0 0.0
    %3927 = vmatprep.subr.mxu0 0.0
    %3928 = vmatpush1.msra.mxu0 0.0
    %3929 = vmatprep.subr.mxu0 0.0
    %3930 = vmatpush1.msra.mxu0 0.0
    %3931 = vmatprep.subr.mxu0 0.0
    %3932 = vmatpush1.msra.mxu0 0.0
    %3933 = vmatprep.subr.mxu0 0.0
    %3934 = vmatpush1.msra.mxu0 0.0
    %3935 = vmatprep.subr.mxu0 0.0
    %3936 = vmatpush1.msra.mxu0 0.0
    %3937 = vmatprep.mubr.f32.mxu0 0.0
    %v3938 = vand.u32 %v3609, 4294901760
    %v3939 = vsub.f32 %v3609, %v3938
    %v3940 = vand.u32 %v3939, 4294901760
    %3941 = vmatmul.mubr.f32.gmra.mrb[0].mxu0 %v3940
    %v3942 = vpop.f32.mrb[0].mxu0
    %v3943 = vadd.f32 %v3861, %v3942
    %v3944 = vpop.f32.mrb[0].mxu0
    %3945 = vmatprep.mubr.f32.mxu0 0.0
    %v3946 = vand.u32 %v3612, 4294901760
    %v3947 = vsub.f32 %v3612, %v3946
    %v3948 = vand.u32 %v3947, 4294901760
    %3949 = vmatmul.mubr.f32.gmra.mrb[0].mxu0 %v3948
    %v3950 = vpop.f32.mrb[0].mxu0
    %v3951 = vadd.f32 %v3868, %v3950
    %v3952 = vpop.f32.mrb[0].mxu0
    %3953 = vdwg.mxu0
    %3954 = vmatprep.subr.mxu0 0.0
    %v3955 = vand.u32 %v49, 4294901760
    %v3956 = vsub.f32 %v49, %v3955
    %v3957 = vand.u32 %v3956, 4294901760
    %3958 = vmatpush1.msra.mxu0 %v3957
    %3959 = vmatprep.subr.mxu0 0.0
    %v3960 = vand.u32 %v50, 4294901760
    %v3961 = vsub.f32 %v50, %v3960
    %v3962 = vand.u32 %v3961, 4294901760
    %3963 = vmatpush1.msra.mxu0 %v3962
    %3964 = vmatprep.subr.mxu0 0.0
    %3965 = vmatpush1.msra.mxu0 0.0
    %3966 = vmatprep.subr.mxu0 0.0
    %3967 = vmatpush1.msra.mxu0 0.0
    %3968 = vmatprep.subr.mxu0 0.0
    %3969 = vmatpush1.msra.mxu0 0.0
    %3970 = vmatprep.subr.mxu0 0.0
    %3971 = vmatpush1.msra.mxu0 0.0
    %3972 = vmatprep.subr.mxu0 0.0
    %3973 = vmatpush1.msra.mxu0 0.0
    %3974 = vmatprep.subr.mxu0 0.0
    %3975 = vmatpush1.msra.mxu0 0.0
    %3976 = vmatprep.subr.mxu0 0.0
    %3977 = vmatpush1.msra.mxu0 0.0
    %3978 = vmatprep.subr.mxu0 0.0
    %3979 = vmatpush1.msra.mxu0 0.0
    %3980 = vmatprep.subr.mxu0 0.0
    %3981 = vmatpush1.msra.mxu0 0.0
    %3982 = vmatprep.subr.mxu0 0.0
    %3983 = vmatpush1.msra.mxu0 0.0
    %3984 = vmatprep.subr.mxu0 0.0
    %3985 = vmatpush1.msra.mxu0 0.0
    %3986 = vmatprep.subr.mxu0 0.0
    %3987 = vmatpush1.msra.mxu0 0.0
    %3988 = vmatprep.subr.mxu0 0.0
    %3989 = vmatpush1.msra.mxu0 0.0
    %3990 = vmatprep.subr.mxu0 0.0
    %3991 = vmatpush1.msra.mxu0 0.0
    %3992 = vmatprep.subr.mxu0 0.0
    %3993 = vmatpush1.msra.mxu0 0.0
    %3994 = vmatprep.subr.mxu0 0.0
    %3995 = vmatpush1.msra.mxu0 0.0
    %3996 = vmatprep.subr.mxu0 0.0
    %3997 = vmatpush1.msra.mxu0 0.0
    %3998 = vmatprep.subr.mxu0 0.0
    %3999 = vmatpush1.msra.mxu0 0.0
    %4000 = vmatprep.subr.mxu0 0.0
    %4001 = vmatpush1.msra.mxu0 0.0
    %4002 = vmatprep.subr.mxu0 0.0
    %4003 = vmatpush1.msra.mxu0 0.0
    %4004 = vmatprep.subr.mxu0 0.0
    %4005 = vmatpush1.msra.mxu0 0.0
    %4006 = vmatprep.subr.mxu0 0.0
    %4007 = vmatpush1.msra.mxu0 0.0
    %4008 = vmatprep.subr.mxu0 0.0
    %4009 = vmatpush1.msra.mxu0 0.0
    %4010 = vmatprep.subr.mxu0 0.0
    %4011 = vmatpush1.msra.mxu0 0.0
    %4012 = vmatprep.subr.mxu0 0.0
    %4013 = vmatpush1.msra.mxu0 0.0
    %4014 = vmatprep.subr.mxu0 0.0
    %4015 = vmatpush1.msra.mxu0 0.0
    %4016 = vmatprep.subr.mxu0 0.0
    %4017 = vmatpush1.msra.mxu0 0.0
    %4018 = vmatprep.subr.mxu0 0.0
    %4019 = vmatpush1.msra.mxu0 0.0
    %4020 = vmatprep.subr.mxu0 0.0
    %4021 = vmatpush1.msra.mxu0 0.0
    %4022 = vmatprep.subr.mxu0 0.0
    %4023 = vmatpush1.msra.mxu0 0.0
    %4024 = vmatprep.mubr.f32.mxu0 0.0
    %v4025 = vand.u32 %v3609, 4294901760
    %4026 = vmatmul.mubr.f32.gmra.mrb[0].mxu0 %v4025
    %v4027 = vpop.f32.mrb[0].mxu0
    %v4028 = vadd.f32 %v3943, %v4027
    %v4029 = vpop.f32.mrb[0].mxu0
    %4030 = vmatprep.mubr.f32.mxu0 0.0
    %v4031 = vand.u32 %v3612, 4294901760
    %4032 = vmatmul.mubr.f32.gmra.mrb[0].mxu0 %v4031
    %v4033 = vpop.f32.mrb[0].mxu0
    %v4034 = vadd.f32 %v3951, %v4033
    %v4035 = vpop.f32.mrb[0].mxu0
    %4036 = vdwg.mxu0
    %4037 = vmatprep.subr.mxu0 0.0
    %v4038 = vand.u32 %v49, 4294901760
    %4039 = vmatpush1.msra.mxu0 %v4038
    %4040 = vmatprep.subr.mxu0 0.0
    %v4041 = vand.u32 %v50, 4294901760
    %4042 = vmatpush1.msra.mxu0 %v4041
    %4043 = vmatprep.subr.mxu0 0.0
    %4044 = vmatpush1.msra.mxu0 0.0
    %4045 = vmatprep.subr.mxu0 0.0
    %4046 = vmatpush1.msra.mxu0 0.0
    %4047 = vmatprep.subr.mxu0 0.0
    %4048 = vmatpush1.msra.mxu0 0.0
    %4049 = vmatprep.subr.mxu0 0.0
    %4050 = vmatpush1.msra.mxu0 0.0
    %4051 = vmatprep.subr.mxu0 0.0
    %4052 = vmatpush1.msra.mxu0 0.0
    %4053 = vmatprep.subr.mxu0 0.0
    %4054 = vmatpush1.msra.mxu0 0.0
    %4055 = vmatprep.subr.mxu0 0.0
    %4056 = vmatpush1.msra.mxu0 0.0
    %4057 = vmatprep.subr.mxu0 0.0
    %4058 = vmatpush1.msra.mxu0 0.0
    %4059 = vmatprep.subr.mxu0 0.0
    %4060 = vmatpush1.msra.mxu0 0.0
    %4061 = vmatprep.subr.mxu0 0.0
    %4062 = vmatpush1.msra.mxu0 0.0
    %4063 = vmatprep.subr.mxu0 0.0
    %4064 = vmatpush1.msra.mxu0 0.0
    %4065 = vmatprep.subr.mxu0 0.0
    %4066 = vmatpush1.msra.mxu0 0.0
    %4067 = vmatprep.subr.mxu0 0.0
    %4068 = vmatpush1.msra.mxu0 0.0
    %4069 = vmatprep.subr.mxu0 0.0
    %4070 = vmatpush1.msra.mxu0 0.0
    %4071 = vmatprep.subr.mxu0 0.0
    %4072 = vmatpush1.msra.mxu0 0.0
    %4073 = vmatprep.subr.mxu0 0.0
    %4074 = vmatpush1.msra.mxu0 0.0
    %4075 = vmatprep.subr.mxu0 0.0
    %4076 = vmatpush1.msra.mxu0 0.0
    %4077 = vmatprep.subr.mxu0 0.0
    %4078 = vmatpush1.msra.mxu0 0.0
    %4079 = vmatprep.subr.mxu0 0.0
    %4080 = vmatpush1.msra.mxu0 0.0
    %4081 = vmatprep.subr.mxu0 0.0
    %4082 = vmatpush1.msra.mxu0 0.0
    %4083 = vmatprep.subr.mxu0 0.0
    %4084 = vmatpush1.msra.mxu0 0.0
    %4085 = vmatprep.subr.mxu0 0.0
    %4086 = vmatpush1.msra.mxu0 0.0
    %4087 = vmatprep.subr.mxu0 0.0
    %4088 = vmatpush1.msra.mxu0 0.0
    %4089 = vmatprep.subr.mxu0 0.0
    %4090 = vmatpush1.msra.mxu0 0.0
    %4091 = vmatprep.subr.mxu0 0.0
    %4092 = vmatpush1.msra.mxu0 0.0
    %4093 = vmatprep.subr.mxu0 0.0
    %4094 = vmatpush1.msra.mxu0 0.0
    %4095 = vmatprep.subr.mxu0 0.0
    %4096 = vmatpush1.msra.mxu0 0.0
    %4097 = vmatprep.subr.mxu0 0.0
    %4098 = vmatpush1.msra.mxu0 0.0
    %4099 = vmatprep.subr.mxu0 0.0
    %4100 = vmatpush1.msra.mxu0 0.0
    %4101 = vmatprep.subr.mxu0 0.0
    %4102 = vmatpush1.msra.mxu0 0.0
    %4103 = vmatprep.mubr.f32.mxu0 0.0
    %v4104 = vand.u32 %v3609, 4294901760
    %4105 = vmatmul.mubr.f32.gmra.mrb[0].mxu0 %v4104
    %v4106 = vpop.f32.mrb[0].mxu0
    %v4107 = vadd.f32 %v4028, %v4106
    %v4108 = vpop.f32.mrb[0].mxu0
    %4109 = vmatprep.mubr.f32.mxu0 0.0
    %v4110 = vand.u32 %v3612, 4294901760
    %4111 = vmatmul.mubr.f32.gmra.mrb[0].mxu0 %v4110
    %v4112 = vpop.f32.mrb[0].mxu0
    %v4113 = vadd.f32 %v4034, %v4112
    %v4114 = vpop.f32.mrb[0].mxu0
    %4115 = vdwg.mxu0
    %v4117 = vsel %vm51, %v45, 0
    %v4120 = vsel %vm51, %v46, 0
    %v4123 = vsel %vm51, %v47, 0
    %v4126 = vsel %vm51, %v48, 0
    %4128 = vmatprep.subr.mxu0 0.0
    %v4129 = vand.u32 %v551, 4294901760
    %4130 = vmatpush1.msra.mxu0 %v4129
    %4131 = vmatprep.subr.mxu0 0.0
    %v4132 = vand.u32 %v557, 4294901760
    %4133 = vmatpush1.msra.mxu0 %v4132
    %4134 = vmatprep.subr.mxu0 0.0
    %4135 = vmatpush1.msra.mxu0 0.0
    %4136 = vmatprep.subr.mxu0 0.0
    %4137 = vmatpush1.msra.mxu0 0.0
    %4138 = vmatprep.subr.mxu0 0.0
    %4139 = vmatpush1.msra.mxu0 0.0
    %4140 = vmatprep.subr.mxu0 0.0
    %4141 = vmatpush1.msra.mxu0 0.0
    %4142 = vmatprep.subr.mxu0 0.0
    %4143 = vmatpush1.msra.mxu0 0.0
    %4144 = vmatprep.subr.mxu0 0.0
    %4145 = vmatpush1.msra.mxu0 0.0
    %4146 = vmatprep.subr.mxu0 0.0
    %4147 = vmatpush1.msra.mxu0 0.0
    %4148 = vmatprep.subr.mxu0 0.0
    %4149 = vmatpush1.msra.mxu0 0.0
    %4150 = vmatprep.subr.mxu0 0.0
    %4151 = vmatpush1.msra.mxu0 0.0
    %4152 = vmatprep.subr.mxu0 0.0
    %4153 = vmatpush1.msra.mxu0 0.0
    %4154 = vmatprep.subr.mxu0 0.0
    %4155 = vmatpush1.msra.mxu0 0.0
    %4156 = vmatprep.subr.mxu0 0.0
    %4157 = vmatpush1.msra.mxu0 0.0
    %4158 = vmatprep.subr.mxu0 0.0
    %4159 = vmatpush1.msra.mxu0 0.0
    %4160 = vmatprep.subr.mxu0 0.0
    %4161 = vmatpush1.msra.mxu0 0.0
    %4162 = vmatprep.subr.mxu0 0.0
    %4163 = vmatpush1.msra.mxu0 0.0
    %4164 = vmatprep.subr.mxu0 0.0
    %4165 = vmatpush1.msra.mxu0 0.0
    %4166 = vmatprep.subr.mxu0 0.0
    %4167 = vmatpush1.msra.mxu0 0.0
    %4168 = vmatprep.subr.mxu0 0.0
    %4169 = vmatpush1.msra.mxu0 0.0
    %4170 = vmatprep.subr.mxu0 0.0
    %4171 = vmatpush1.msra.mxu0 0.0
    %4172 = vmatprep.subr.mxu0 0.0
    %4173 = vmatpush1.msra.mxu0 0.0
    %4174 = vmatprep.subr.mxu0 0.0
    %4175 = vmatpush1.msra.mxu0 0.0
    %4176 = vmatprep.subr.mxu0 0.0
    %4177 = vmatpush1.msra.mxu0 0.0
    %4178 = vmatprep.subr.mxu0 0.0
    %4179 = vmatpush1.msra.mxu0 0.0
    %4180 = vmatprep.subr.mxu0 0.0
    %4181 = vmatpush1.msra.mxu0 0.0
    %4182 = vmatprep.subr.mxu0 0.0
    %4183 = vmatpush1.msra.mxu0 0.0
    %4184 = vmatprep.subr.mxu0 0.0
    %4185 = vmatpush1.msra.mxu0 0.0
    %4186 = vmatprep.subr.mxu0 0.0
    %4187 = vmatpush1.msra.mxu0 0.0
    %4188 = vmatprep.subr.mxu0 0.0
    %4189 = vmatpush1.msra.mxu0 0.0
    %4190 = vmatprep.subr.mxu0 0.0
    %4191 = vmatpush1.msra.mxu0 0.0
    %4192 = vmatprep.subr.mxu0 0.0
    %4193 = vmatpush1.msra.mxu0 0.0
    %4194 = vmatprep.mubr.f32.mxu0 0.0
    %v4195 = vand.u32 %v4117, 4294901760
    %v4196 = vsub.f32 %v4117, %v4195
    %v4197 = vand.u32 %v4196, 4294901760
    %v4198 = vsub.f32 %v4196, %v4197
    %v4199 = vand.u32 %v4198, 4294901760
    %4200 = vmatmul.mubr.f32.gmra.mrb[0].mxu0 %v4199
    %v4201 = vpop.f32.mrb[0].mxu0
    %v4202 = vadd.f32 0.0, %v4201
    %v4203 = vpop.f32.mrb[0].mxu0
    %4204 = vmatprep.mubr.f32.mxu0 0.0
    %v4205 = vand.u32 %v4120, 4294901760
    %v4206 = vsub.f32 %v4120, %v4205
    %v4207 = vand.u32 %v4206, 4294901760
    %v4208 = vsub.f32 %v4206, %v4207
    %v4209 = vand.u32 %v4208, 4294901760
    %4210 = vmatmul.mubr.f32.gmra.mrb[0].mxu0 %v4209
    %v4211 = vpop.f32.mrb[0].mxu0
    %v4212 = vadd.f32 0.0, %v4211
    %v4213 = vpop.f32.mrb[0].mxu0
    %4214 = vmatprep.mubr.f32.mxu0 0.0
    %v4215 = vand.u32 %v4123, 4294901760
    %v4216 = vsub.f32 %v4123, %v4215
    %v4217 = vand.u32 %v4216, 4294901760
    %v4218 = vsub.f32 %v4216, %v4217
    %v4219 = vand.u32 %v4218, 4294901760
    %4220 = vmatmul.mubr.f32.gmra.mrb[0].mxu0 %v4219
    %v4221 = vpop.f32.mrb[0].mxu0
    %v4222 = vadd.f32 0.0, %v4221
    %v4223 = vpop.f32.mrb[0].mxu0
    %4224 = vmatprep.mubr.f32.mxu0 0.0
    %v4225 = vand.u32 %v4126, 4294901760
    %v4226 = vsub.f32 %v4126, %v4225
    %v4227 = vand.u32 %v4226, 4294901760
    %v4228 = vsub.f32 %v4226, %v4227
    %v4229 = vand.u32 %v4228, 4294901760
    %4230 = vmatmul.mubr.f32.gmra.mrb[0].mxu0 %v4229
    %v4231 = vpop.f32.mrb[0].mxu0
    %v4232 = vadd.f32 0.0, %v4231
    %v4233 = vpop.f32.mrb[0].mxu0
    %4234 = vdwg.mxu0
    %4235 = vmatprep.subr.mxu0 0.0
    %v4236 = vand.u32 %v551, 4294901760
    %v4237 = vsub.f32 %v551, %v4236
    %v4238 = vand.u32 %v4237, 4294901760
    %v4239 = vsub.f32 %v4237, %v4238
    %v4240 = vand.u32 %v4239, 4294901760
    %4241 = vmatpush1.msra.mxu0 %v4240
    %4242 = vmatprep.subr.mxu0 0.0
    %v4243 = vand.u32 %v557, 4294901760
    %v4244 = vsub.f32 %v557, %v4243
    %v4245 = vand.u32 %v4244, 4294901760
    %v4246 = vsub.f32 %v4244, %v4245
    %v4247 = vand.u32 %v4246, 4294901760
    %4248 = vmatpush1.msra.mxu0 %v4247
    %4249 = vmatprep.subr.mxu0 0.0
    %4250 = vmatpush1.msra.mxu0 0.0
    %4251 = vmatprep.subr.mxu0 0.0
    %4252 = vmatpush1.msra.mxu0 0.0
    %4253 = vmatprep.subr.mxu0 0.0
    %4254 = vmatpush1.msra.mxu0 0.0
    %4255 = vmatprep.subr.mxu0 0.0
    %4256 = vmatpush1.msra.mxu0 0.0
    %4257 = vmatprep.subr.mxu0 0.0
    %4258 = vmatpush1.msra.mxu0 0.0
    %4259 = vmatprep.subr.mxu0 0.0
    %4260 = vmatpush1.msra.mxu0 0.0
    %4261 = vmatprep.subr.mxu0 0.0
    %4262 = vmatpush1.msra.mxu0 0.0
    %4263 = vmatprep.subr.mxu0 0.0
    %4264 = vmatpush1.msra.mxu0 0.0
    %4265 = vmatprep.subr.mxu0 0.0
    %4266 = vmatpush1.msra.mxu0 0.0
    %4267 = vmatprep.subr.mxu0 0.0
    %4268 = vmatpush1.msra.mxu0 0.0
    %4269 = vmatprep.subr.mxu0 0.0
    %4270 = vmatpush1.msra.mxu0 0.0
    %4271 = vmatprep.subr.mxu0 0.0
    %4272 = vmatpush1.msra.mxu0 0.0
    %4273 = vmatprep.subr.mxu0 0.0
    %4274 = vmatpush1.msra.mxu0 0.0
    %4275 = vmatprep.subr.mxu0 0.0
    %4276 = vmatpush1.msra.mxu0 0.0
    %4277 = vmatprep.subr.mxu0 0.0
    %4278 = vmatpush1.msra.mxu0 0.0
    %4279 = vmatprep.subr.mxu0 0.0
    %4280 = vmatpush1.msra.mxu0 0.0
    %4281 = vmatprep.subr.mxu0 0.0
    %4282 = vmatpush1.msra.mxu0 0.0
    %4283 = vmatprep.subr.mxu0 0.0
    %4284 = vmatpush1.msra.mxu0 0.0
    %4285 = vmatprep.subr.mxu0 0.0
    %4286 = vmatpush1.msra.mxu0 0.0
    %4287 = vmatprep.subr.mxu0 0.0
    %4288 = vmatpush1.msra.mxu0 0.0
    %4289 = vmatprep.subr.mxu0 0.0
    %4290 = vmatpush1.msra.mxu0 0.0
    %4291 = vmatprep.subr.mxu0 0.0
    %4292 = vmatpush1.msra.mxu0 0.0
    %4293 = vmatprep.subr.mxu0 0.0
    %4294 = vmatpush1.msra.mxu0 0.0
    %4295 = vmatprep.subr.mxu0 0.0
    %4296 = vmatpush1.msra.mxu0 0.0
    %4297 = vmatprep.subr.mxu0 0.0
    %4298 = vmatpush1.msra.mxu0 0.0
    %4299 = vmatprep.subr.mxu0 0.0
    %4300 = vmatpush1.msra.mxu0 0.0
    %4301 = vmatprep.subr.mxu0 0.0
    %4302 = vmatpush1.msra.mxu0 0.0
    %4303 = vmatprep.subr.mxu0 0.0
    %4304 = vmatpush1.msra.mxu0 0.0
    %4305 = vmatprep.subr.mxu0 0.0
    %4306 = vmatpush1.msra.mxu0 0.0
    %4307 = vmatprep.subr.mxu0 0.0
    %4308 = vmatpush1.msra.mxu0 0.0
    %4309 = vmatprep.mubr.f32.mxu0 0.0
    %v4310 = vand.u32 %v4117, 4294901760
    %4311 = vmatmul.mubr.f32.gmra.mrb[0].mxu0 %v4310
    %v4312 = vpop.f32.mrb[0].mxu0
    %v4313 = vadd.f32 %v4202, %v4312
    %v4314 = vpop.f32.mrb[0].mxu0
    %4315 = vmatprep.mubr.f32.mxu0 0.0
    %v4316 = vand.u32 %v4120, 4294901760
    %4317 = vmatmul.mubr.f32.gmra.mrb[0].mxu0 %v4316
    %v4318 = vpop.f32.mrb[0].mxu0
    %v4319 = vadd.f32 %v4212, %v4318
    %v4320 = vpop.f32.mrb[0].mxu0
    %4321 = vmatprep.mubr.f32.mxu0 0.0
    %v4322 = vand.u32 %v4123, 4294901760
    %4323 = vmatmul.mubr.f32.gmra.mrb[0].mxu0 %v4322
    %v4324 = vpop.f32.mrb[0].mxu0
    %v4325 = vadd.f32 %v4222, %v4324
    %v4326 = vpop.f32.mrb[0].mxu0
    %4327 = vmatprep.mubr.f32.mxu0 0.0
    %v4328 = vand.u32 %v4126, 4294901760
    %4329 = vmatmul.mubr.f32.gmra.mrb[0].mxu0 %v4328
    %v4330 = vpop.f32.mrb[0].mxu0
    %v4331 = vadd.f32 %v4232, %v4330
    %v4332 = vpop.f32.mrb[0].mxu0
    %4333 = vdwg.mxu0
    %4334 = vmatprep.subr.mxu0 0.0
    %v4335 = vand.u32 %v551, 4294901760
    %v4336 = vsub.f32 %v551, %v4335
    %4337 = vmatpush1.msra.mxu0 %v4336
    %4338 = vmatprep.subr.mxu0 0.0
    %v4339 = vand.u32 %v557, 4294901760
    %v4340 = vsub.f32 %v557, %v4339
    %4341 = vmatpush1.msra.mxu0 %v4340
    %4342 = vmatprep.subr.mxu0 0.0
    %4343 = vmatpush1.msra.mxu0 0.0
    %4344 = vmatprep.subr.mxu0 0.0
    %4345 = vmatpush1.msra.mxu0 0.0
    %4346 = vmatprep.subr.mxu0 0.0
    %4347 = vmatpush1.msra.mxu0 0.0
    %4348 = vmatprep.subr.mxu0 0.0
    %4349 = vmatpush1.msra.mxu0 0.0
    %4350 = vmatprep.subr.mxu0 0.0
    %4351 = vmatpush1.msra.mxu0 0.0
    %4352 = vmatprep.subr.mxu0 0.0
    %4353 = vmatpush1.msra.mxu0 0.0
    %4354 = vmatprep.subr.mxu0 0.0
    %4355 = vmatpush1.msra.mxu0 0.0
    %4356 = vmatprep.subr.mxu0 0.0
    %4357 = vmatpush1.msra.mxu0 0.0
    %4358 = vmatprep.subr.mxu0 0.0
    %4359 = vmatpush1.msra.mxu0 0.0
    %4360 = vmatprep.subr.mxu0 0.0
    %4361 = vmatpush1.msra.mxu0 0.0
    %4362 = vmatprep.subr.mxu0 0.0
    %4363 = vmatpush1.msra.mxu0 0.0
    %4364 = vmatprep.subr.mxu0 0.0
    %4365 = vmatpush1.msra.mxu0 0.0
    %4366 = vmatprep.subr.mxu0 0.0
    %4367 = vmatpush1.msra.mxu0 0.0
    %4368 = vmatprep.subr.mxu0 0.0
    %4369 = vmatpush1.msra.mxu0 0.0
    %4370 = vmatprep.subr.mxu0 0.0
    %4371 = vmatpush1.msra.mxu0 0.0
    %4372 = vmatprep.subr.mxu0 0.0
    %4373 = vmatpush1.msra.mxu0 0.0
    %4374 = vmatprep.subr.mxu0 0.0
    %4375 = vmatpush1.msra.mxu0 0.0
    %4376 = vmatprep.subr.mxu0 0.0
    %4377 = vmatpush1.msra.mxu0 0.0
    %4378 = vmatprep.subr.mxu0 0.0
    %4379 = vmatpush1.msra.mxu0 0.0
    %4380 = vmatprep.subr.mxu0 0.0
    %4381 = vmatpush1.msra.mxu0 0.0
    %4382 = vmatprep.subr.mxu0 0.0
    %4383 = vmatpush1.msra.mxu0 0.0
    %4384 = vmatprep.subr.mxu0 0.0
    %4385 = vmatpush1.msra.mxu0 0.0
    %4386 = vmatprep.subr.mxu0 0.0
    %4387 = vmatpush1.msra.mxu0 0.0
    %4388 = vmatprep.subr.mxu0 0.0
    %4389 = vmatpush1.msra.mxu0 0.0
    %4390 = vmatprep.subr.mxu0 0.0
    %4391 = vmatpush1.msra.mxu0 0.0
    %4392 = vmatprep.subr.mxu0 0.0
    %4393 = vmatpush1.msra.mxu0 0.0
    %4394 = vmatprep.subr.mxu0 0.0
    %4395 = vmatpush1.msra.mxu0 0.0
    %4396 = vmatprep.subr.mxu0 0.0
    %4397 = vmatpush1.msra.mxu0 0.0
    %4398 = vmatprep.subr.mxu0 0.0
    %4399 = vmatpush1.msra.mxu0 0.0
    %4400 = vmatprep.subr.mxu0 0.0
    %4401 = vmatpush1.msra.mxu0 0.0
    %4402 = vmatprep.mubr.f32.mxu0 0.0
    %v4403 = vand.u32 %v4117, 4294901760
    %v4404 = vsub.f32 %v4117, %v4403
    %4405 = vmatmul.mubr.f32.gmra.mrb[0].mxu0 %v4404
    %v4406 = vpop.f32.mrb[0].mxu0
    %v4407 = vadd.f32 %v4313, %v4406
    %v4408 = vpop.f32.mrb[0].mxu0
    %4409 = vmatprep.mubr.f32.mxu0 0.0
    %v4410 = vand.u32 %v4120, 4294901760
    %v4411 = vsub.f32 %v4120, %v4410
    %4412 = vmatmul.mubr.f32.gmra.mrb[0].mxu0 %v4411
    %v4413 = vpop.f32.mrb[0].mxu0
    %v4414 = vadd.f32 %v4319, %v4413
    %v4415 = vpop.f32.mrb[0].mxu0
    %4416 = vmatprep.mubr.f32.mxu0 0.0
    %v4417 = vand.u32 %v4123, 4294901760
    %v4418 = vsub.f32 %v4123, %v4417
    %4419 = vmatmul.mubr.f32.gmra.mrb[0].mxu0 %v4418
    %v4420 = vpop.f32.mrb[0].mxu0
    %v4421 = vadd.f32 %v4325, %v4420
    %v4422 = vpop.f32.mrb[0].mxu0
    %4423 = vmatprep.mubr.f32.mxu0 0.0
    %v4424 = vand.u32 %v4126, 4294901760
    %v4425 = vsub.f32 %v4126, %v4424
    %4426 = vmatmul.mubr.f32.gmra.mrb[0].mxu0 %v4425
    %v4427 = vpop.f32.mrb[0].mxu0
    %v4428 = vadd.f32 %v4331, %v4427
    %v4429 = vpop.f32.mrb[0].mxu0
    %4430 = vdwg.mxu0
    %4431 = vmatprep.subr.mxu0 0.0
    %v4432 = vand.u32 %v551, 4294901760
    %4433 = vmatpush1.msra.mxu0 %v4432
    %4434 = vmatprep.subr.mxu0 0.0
    %v4435 = vand.u32 %v557, 4294901760
    %4436 = vmatpush1.msra.mxu0 %v4435
    %4437 = vmatprep.subr.mxu0 0.0
    %4438 = vmatpush1.msra.mxu0 0.0
    %4439 = vmatprep.subr.mxu0 0.0
    %4440 = vmatpush1.msra.mxu0 0.0
    %4441 = vmatprep.subr.mxu0 0.0
    %4442 = vmatpush1.msra.mxu0 0.0
    %4443 = vmatprep.subr.mxu0 0.0
    %4444 = vmatpush1.msra.mxu0 0.0
    %4445 = vmatprep.subr.mxu0 0.0
    %4446 = vmatpush1.msra.mxu0 0.0
    %4447 = vmatprep.subr.mxu0 0.0
    %4448 = vmatpush1.msra.mxu0 0.0
    %4449 = vmatprep.subr.mxu0 0.0
    %4450 = vmatpush1.msra.mxu0 0.0
    %4451 = vmatprep.subr.mxu0 0.0
    %4452 = vmatpush1.msra.mxu0 0.0
    %4453 = vmatprep.subr.mxu0 0.0
    %4454 = vmatpush1.msra.mxu0 0.0
    %4455 = vmatprep.subr.mxu0 0.0
    %4456 = vmatpush1.msra.mxu0 0.0
    %4457 = vmatprep.subr.mxu0 0.0
    %4458 = vmatpush1.msra.mxu0 0.0
    %4459 = vmatprep.subr.mxu0 0.0
    %4460 = vmatpush1.msra.mxu0 0.0
    %4461 = vmatprep.subr.mxu0 0.0
    %4462 = vmatpush1.msra.mxu0 0.0
    %4463 = vmatprep.subr.mxu0 0.0
    %4464 = vmatpush1.msra.mxu0 0.0
    %4465 = vmatprep.subr.mxu0 0.0
    %4466 = vmatpush1.msra.mxu0 0.0
    %4467 = vmatprep.subr.mxu0 0.0
    %4468 = vmatpush1.msra.mxu0 0.0
    %4469 = vmatprep.subr.mxu0 0.0
    %4470 = vmatpush1.msra.mxu0 0.0
    %4471 = vmatprep.subr.mxu0 0.0
    %4472 = vmatpush1.msra.mxu0 0.0
    %4473 = vmatprep.subr.mxu0 0.0
    %4474 = vmatpush1.msra.mxu0 0.0
    %4475 = vmatprep.subr.mxu0 0.0
    %4476 = vmatpush1.msra.mxu0 0.0
    %4477 = vmatprep.subr.mxu0 0.0
    %4478 = vmatpush1.msra.mxu0 0.0
    %4479 = vmatprep.subr.mxu0 0.0
    %4480 = vmatpush1.msra.mxu0 0.0
    %4481 = vmatprep.subr.mxu0 0.0
    %4482 = vmatpush1.msra.mxu0 0.0
    %4483 = vmatprep.subr.mxu0 0.0
    %4484 = vmatpush1.msra.mxu0 0.0
    %4485 = vmatprep.subr.mxu0 0.0
    %4486 = vmatpush1.msra.mxu0 0.0
    %4487 = vmatprep.subr.mxu0 0.0
    %4488 = vmatpush1.msra.mxu0 0.0
    %4489 = vmatprep.subr.mxu0 0.0
    %4490 = vmatpush1.msra.mxu0 0.0
    %4491 = vmatprep.subr.mxu0 0.0
    %4492 = vmatpush1.msra.mxu0 0.0
    %4493 = vmatprep.subr.mxu0 0.0
    %4494 = vmatpush1.msra.mxu0 0.0
    %4495 = vmatprep.subr.mxu0 0.0
    %4496 = vmatpush1.msra.mxu0 0.0
    %4497 = vmatprep.mubr.f32.mxu0 0.0
    %v4498 = vand.u32 %v4117, 4294901760
    %v4499 = vsub.f32 %v4117, %v4498
    %v4500 = vand.u32 %v4499, 4294901760
    %4501 = vmatmul.mubr.f32.gmra.mrb[0].mxu0 %v4500
    %v4502 = vpop.f32.mrb[0].mxu0
    %v4503 = vadd.f32 %v4407, %v4502
    %v4504 = vpop.f32.mrb[0].mxu0
    %4505 = vmatprep.mubr.f32.mxu0 0.0
    %v4506 = vand.u32 %v4120, 4294901760
    %v4507 = vsub.f32 %v4120, %v4506
    %v4508 = vand.u32 %v4507, 4294901760
    %4509 = vmatmul.mubr.f32.gmra.mrb[0].mxu0 %v4508
    %v4510 = vpop.f32.mrb[0].mxu0
    %v4511 = vadd.f32 %v4414, %v4510
    %v4512 = vpop.f32.mrb[0].mxu0
    %4513 = vmatprep.mubr.f32.mxu0 0.0
    %v4514 = vand.u32 %v4123, 4294901760
    %v4515 = vsub.f32 %v4123, %v4514
    %v4516 = vand.u32 %v4515, 4294901760
    %4517 = vmatmul.mubr.f32.gmra.mrb[0].mxu0 %v4516
    %v4518 = vpop.f32.mrb[0].mxu0
    %v4519 = vadd.f32 %v4421, %v4518
    %v4520 = vpop.f32.mrb[0].mxu0
    %4521 = vmatprep.mubr.f32.mxu0 0.0
    %v4522 = vand.u32 %v4126, 4294901760
    %v4523 = vsub.f32 %v4126, %v4522
    %v4524 = vand.u32 %v4523, 4294901760
    %4525 = vmatmul.mubr.f32.gmra.mrb[0].mxu0 %v4524
    %v4526 = vpop.f32.mrb[0].mxu0
    %v4527 = vadd.f32 %v4428, %v4526
    %v4528 = vpop.f32.mrb[0].mxu0
    %4529 = vdwg.mxu0
    %4530 = vmatprep.subr.mxu0 0.0
    %v4531 = vand.u32 %v551, 4294901760
    %v4532 = vsub.f32 %v551, %v4531
    %v4533 = vand.u32 %v4532, 4294901760
    %4534 = vmatpush1.msra.mxu0 %v4533
    %4535 = vmatprep.subr.mxu0 0.0
    %v4536 = vand.u32 %v557, 4294901760
    %v4537 = vsub.f32 %v557, %v4536
    %v4538 = vand.u32 %v4537, 4294901760
    %4539 = vmatpush1.msra.mxu0 %v4538
    %4540 = vmatprep.subr.mxu0 0.0
    %4541 = vmatpush1.msra.mxu0 0.0
    %4542 = vmatprep.subr.mxu0 0.0
    %4543 = vmatpush1.msra.mxu0 0.0
    %4544 = vmatprep.subr.mxu0 0.0
    %4545 = vmatpush1.msra.mxu0 0.0
    %4546 = vmatprep.subr.mxu0 0.0
    %4547 = vmatpush1.msra.mxu0 0.0
    %4548 = vmatprep.subr.mxu0 0.0
    %4549 = vmatpush1.msra.mxu0 0.0
    %4550 = vmatprep.subr.mxu0 0.0
    %4551 = vmatpush1.msra.mxu0 0.0
    %4552 = vmatprep.subr.mxu0 0.0
    %4553 = vmatpush1.msra.mxu0 0.0
    %4554 = vmatprep.subr.mxu0 0.0
    %4555 = vmatpush1.msra.mxu0 0.0
    %4556 = vmatprep.subr.mxu0 0.0
    %4557 = vmatpush1.msra.mxu0 0.0
    %4558 = vmatprep.subr.mxu0 0.0
    %4559 = vmatpush1.msra.mxu0 0.0
    %4560 = vmatprep.subr.mxu0 0.0
    %4561 = vmatpush1.msra.mxu0 0.0
    %4562 = vmatprep.subr.mxu0 0.0
    %4563 = vmatpush1.msra.mxu0 0.0
    %4564 = vmatprep.subr.mxu0 0.0
    %4565 = vmatpush1.msra.mxu0 0.0
    %4566 = vmatprep.subr.mxu0 0.0
    %4567 = vmatpush1.msra.mxu0 0.0
    %4568 = vmatprep.subr.mxu0 0.0
    %4569 = vmatpush1.msra.mxu0 0.0
    %4570 = vmatprep.subr.mxu0 0.0
    %4571 = vmatpush1.msra.mxu0 0.0
    %4572 = vmatprep.subr.mxu0 0.0
    %4573 = vmatpush1.msra.mxu0 0.0
    %4574 = vmatprep.subr.mxu0 0.0
    %4575 = vmatpush1.msra.mxu0 0.0
    %4576 = vmatprep.subr.mxu0 0.0
    %4577 = vmatpush1.msra.mxu0 0.0
    %4578 = vmatprep.subr.mxu0 0.0
    %4579 = vmatpush1.msra.mxu0 0.0
    %4580 = vmatprep.subr.mxu0 0.0
    %4581 = vmatpush1.msra.mxu0 0.0
    %4582 = vmatprep.subr.mxu0 0.0
    %4583 = vmatpush1.msra.mxu0 0.0
    %4584 = vmatprep.subr.mxu0 0.0
    %4585 = vmatpush1.msra.mxu0 0.0
    %4586 = vmatprep.subr.mxu0 0.0
    %4587 = vmatpush1.msra.mxu0 0.0
    %4588 = vmatprep.subr.mxu0 0.0
    %4589 = vmatpush1.msra.mxu0 0.0
    %4590 = vmatprep.subr.mxu0 0.0
    %4591 = vmatpush1.msra.mxu0 0.0
    %4592 = vmatprep.subr.mxu0 0.0
    %4593 = vmatpush1.msra.mxu0 0.0
    %4594 = vmatprep.subr.mxu0 0.0
    %4595 = vmatpush1.msra.mxu0 0.0
    %4596 = vmatprep.subr.mxu0 0.0
    %4597 = vmatpush1.msra.mxu0 0.0
    %4598 = vmatprep.subr.mxu0 0.0
    %4599 = vmatpush1.msra.mxu0 0.0
    %4600 = vmatprep.mubr.f32.mxu0 0.0
    %v4601 = vand.u32 %v4117, 4294901760
    %4602 = vmatmul.mubr.f32.gmra.mrb[0].mxu0 %v4601
    %v4603 = vpop.f32.mrb[0].mxu0
    %v4604 = vadd.f32 %v4503, %v4603
    %v4605 = vpop.f32.mrb[0].mxu0
    %4606 = vmatprep.mubr.f32.mxu0 0.0
    %v4607 = vand.u32 %v4120, 4294901760
    %4608 = vmatmul.mubr.f32.gmra.mrb[0].mxu0 %v4607
    %v4609 = vpop.f32.mrb[0].mxu0
    %v4610 = vadd.f32 %v4511, %v4609
    %v4611 = vpop.f32.mrb[0].mxu0
    %4612 = vmatprep.mubr.f32.mxu0 0.0
    %v4613 = vand.u32 %v4123, 4294901760
    %4614 = vmatmul.mubr.f32.gmra.mrb[0].mxu0 %v4613
    %v4615 = vpop.f32.mrb[0].mxu0
    %v4616 = vadd.f32 %v4519, %v4615
    %v4617 = vpop.f32.mrb[0].mxu0
    %4618 = vmatprep.mubr.f32.mxu0 0.0
    %v4619 = vand.u32 %v4126, 4294901760
    %4620 = vmatmul.mubr.f32.gmra.mrb[0].mxu0 %v4619
    %v4621 = vpop.f32.mrb[0].mxu0
    %v4622 = vadd.f32 %v4527, %v4621
    %v4623 = vpop.f32.mrb[0].mxu0
    %4624 = vdwg.mxu0
    %4625 = vmatprep.subr.mxu0 0.0
    %v4626 = vand.u32 %v551, 4294901760
    %4627 = vmatpush1.msra.mxu0 %v4626
    %4628 = vmatprep.subr.mxu0 0.0
    %v4629 = vand.u32 %v557, 4294901760
    %4630 = vmatpush1.msra.mxu0 %v4629
    %4631 = vmatprep.subr.mxu0 0.0
    %4632 = vmatpush1.msra.mxu0 0.0
    %4633 = vmatprep.subr.mxu0 0.0
    %4634 = vmatpush1.msra.mxu0 0.0
    %4635 = vmatprep.subr.mxu0 0.0
    %4636 = vmatpush1.msra.mxu0 0.0
    %4637 = vmatprep.subr.mxu0 0.0
    %4638 = vmatpush1.msra.mxu0 0.0
    %4639 = vmatprep.subr.mxu0 0.0
    %4640 = vmatpush1.msra.mxu0 0.0
    %4641 = vmatprep.subr.mxu0 0.0
    %4642 = vmatpush1.msra.mxu0 0.0
    %4643 = vmatprep.subr.mxu0 0.0
    %4644 = vmatpush1.msra.mxu0 0.0
    %4645 = vmatprep.subr.mxu0 0.0
    %4646 = vmatpush1.msra.mxu0 0.0
    %4647 = vmatprep.subr.mxu0 0.0
    %4648 = vmatpush1.msra.mxu0 0.0
    %4649 = vmatprep.subr.mxu0 0.0
    %4650 = vmatpush1.msra.mxu0 0.0
    %4651 = vmatprep.subr.mxu0 0.0
    %4652 = vmatpush1.msra.mxu0 0.0
    %4653 = vmatprep.subr.mxu0 0.0
    %4654 = vmatpush1.msra.mxu0 0.0
    %4655 = vmatprep.subr.mxu0 0.0
    %4656 = vmatpush1.msra.mxu0 0.0
    %4657 = vmatprep.subr.mxu0 0.0
    %4658 = vmatpush1.msra.mxu0 0.0
    %4659 = vmatprep.subr.mxu0 0.0
    %4660 = vmatpush1.msra.mxu0 0.0
    %4661 = vmatprep.subr.mxu0 0.0
    %4662 = vmatpush1.msra.mxu0 0.0
    %4663 = vmatprep.subr.mxu0 0.0
    %4664 = vmatpush1.msra.mxu0 0.0
    %4665 = vmatprep.subr.mxu0 0.0
    %4666 = vmatpush1.msra.mxu0 0.0
    %4667 = vmatprep.subr.mxu0 0.0
    %4668 = vmatpush1.msra.mxu0 0.0
    %4669 = vmatprep.subr.mxu0 0.0
    %4670 = vmatpush1.msra.mxu0 0.0
    %4671 = vmatprep.subr.mxu0 0.0
    %4672 = vmatpush1.msra.mxu0 0.0
    %4673 = vmatprep.subr.mxu0 0.0
    %4674 = vmatpush1.msra.mxu0 0.0
    %4675 = vmatprep.subr.mxu0 0.0
    %4676 = vmatpush1.msra.mxu0 0.0
    %4677 = vmatprep.subr.mxu0 0.0
    %4678 = vmatpush1.msra.mxu0 0.0
    %4679 = vmatprep.subr.mxu0 0.0
    %4680 = vmatpush1.msra.mxu0 0.0
    %4681 = vmatprep.subr.mxu0 0.0
    %4682 = vmatpush1.msra.mxu0 0.0
    %4683 = vmatprep.subr.mxu0 0.0
    %4684 = vmatpush1.msra.mxu0 0.0
    %4685 = vmatprep.subr.mxu0 0.0
    %4686 = vmatpush1.msra.mxu0 0.0
    %4687 = vmatprep.subr.mxu0 0.0
    %4688 = vmatpush1.msra.mxu0 0.0
    %4689 = vmatprep.subr.mxu0 0.0
    %4690 = vmatpush1.msra.mxu0 0.0
    %4691 = vmatprep.mubr.f32.mxu0 0.0
    %v4692 = vand.u32 %v4117, 4294901760
    %4693 = vmatmul.mubr.f32.gmra.mrb[0].mxu0 %v4692
    %v4694 = vpop.f32.mrb[0].mxu0
    %v4695 = vadd.f32 %v4604, %v4694
    %v4696 = vpop.f32.mrb[0].mxu0
    %4697 = vmatprep.mubr.f32.mxu0 0.0
    %v4698 = vand.u32 %v4120, 4294901760
    %4699 = vmatmul.mubr.f32.gmra.mrb[0].mxu0 %v4698
    %v4700 = vpop.f32.mrb[0].mxu0
    %v4701 = vadd.f32 %v4610, %v4700
    %v4702 = vpop.f32.mrb[0].mxu0
    %4703 = vmatprep.mubr.f32.mxu0 0.0
    %v4704 = vand.u32 %v4123, 4294901760
    %4705 = vmatmul.mubr.f32.gmra.mrb[0].mxu0 %v4704
    %v4706 = vpop.f32.mrb[0].mxu0
    %v4707 = vadd.f32 %v4616, %v4706
    %v4708 = vpop.f32.mrb[0].mxu0
    %4709 = vmatprep.mubr.f32.mxu0 0.0
    %v4710 = vand.u32 %v4126, 4294901760
    %4711 = vmatmul.mubr.f32.gmra.mrb[0].mxu0 %v4710
    %v4712 = vpop.f32.mrb[0].mxu0
    %v4713 = vadd.f32 %v4622, %v4712
    %v4714 = vpop.f32.mrb[0].mxu0
    %4715 = vdwg.mxu0
    %4716 = vmatprep.subr.mxu0 0.0
    %v4717 = vand.u32 %v1059, 4294901760
    %4718 = vmatpush1.msra.mxu0 %v4717
    %4719 = vmatprep.subr.mxu0 0.0
    %v4720 = vand.u32 %v1065, 4294901760
    %4721 = vmatpush1.msra.mxu0 %v4720
    %4722 = vmatprep.subr.mxu0 0.0
    %4723 = vmatpush1.msra.mxu0 0.0
    %4724 = vmatprep.subr.mxu0 0.0
    %4725 = vmatpush1.msra.mxu0 0.0
    %4726 = vmatprep.subr.mxu0 0.0
    %4727 = vmatpush1.msra.mxu0 0.0
    %4728 = vmatprep.subr.mxu0 0.0
    %4729 = vmatpush1.msra.mxu0 0.0
    %4730 = vmatprep.subr.mxu0 0.0
    %4731 = vmatpush1.msra.mxu0 0.0
    %4732 = vmatprep.subr.mxu0 0.0
    %4733 = vmatpush1.msra.mxu0 0.0
    %4734 = vmatprep.subr.mxu0 0.0
    %4735 = vmatpush1.msra.mxu0 0.0
    %4736 = vmatprep.subr.mxu0 0.0
    %4737 = vmatpush1.msra.mxu0 0.0
    %4738 = vmatprep.subr.mxu0 0.0
    %4739 = vmatpush1.msra.mxu0 0.0
    %4740 = vmatprep.subr.mxu0 0.0
    %4741 = vmatpush1.msra.mxu0 0.0
    %4742 = vmatprep.subr.mxu0 0.0
    %4743 = vmatpush1.msra.mxu0 0.0
    %4744 = vmatprep.subr.mxu0 0.0
    %4745 = vmatpush1.msra.mxu0 0.0
    %4746 = vmatprep.subr.mxu0 0.0
    %4747 = vmatpush1.msra.mxu0 0.0
    %4748 = vmatprep.subr.mxu0 0.0
    %4749 = vmatpush1.msra.mxu0 0.0
    %4750 = vmatprep.subr.mxu0 0.0
    %4751 = vmatpush1.msra.mxu0 0.0
    %4752 = vmatprep.subr.mxu0 0.0
    %4753 = vmatpush1.msra.mxu0 0.0
    %4754 = vmatprep.subr.mxu0 0.0
    %4755 = vmatpush1.msra.mxu0 0.0
    %4756 = vmatprep.subr.mxu0 0.0
    %4757 = vmatpush1.msra.mxu0 0.0
    %4758 = vmatprep.subr.mxu0 0.0
    %4759 = vmatpush1.msra.mxu0 0.0
    %4760 = vmatprep.subr.mxu0 0.0
    %4761 = vmatpush1.msra.mxu0 0.0
    %4762 = vmatprep.subr.mxu0 0.0
    %4763 = vmatpush1.msra.mxu0 0.0
    %4764 = vmatprep.subr.mxu0 0.0
    %4765 = vmatpush1.msra.mxu0 0.0
    %4766 = vmatprep.subr.mxu0 0.0
    %4767 = vmatpush1.msra.mxu0 0.0
    %4768 = vmatprep.subr.mxu0 0.0
    %4769 = vmatpush1.msra.mxu0 0.0
    %4770 = vmatprep.subr.mxu0 0.0
    %4771 = vmatpush1.msra.mxu0 0.0
    %4772 = vmatprep.subr.mxu0 0.0
    %4773 = vmatpush1.msra.mxu0 0.0
    %4774 = vmatprep.subr.mxu0 0.0
    %4775 = vmatpush1.msra.mxu0 0.0
    %4776 = vmatprep.subr.mxu0 0.0
    %4777 = vmatpush1.msra.mxu0 0.0
    %4778 = vmatprep.subr.mxu0 0.0
    %4779 = vmatpush1.msra.mxu0 0.0
    %4780 = vmatprep.subr.mxu0 0.0
    %4781 = vmatpush1.msra.mxu0 0.0
    %4782 = vmatprep.mubr.f32.mxu0 0.0
    %v4783 = vand.u32 %v4117, 4294901760
    %v4784 = vsub.f32 %v4117, %v4783
    %v4785 = vand.u32 %v4784, 4294901760
    %v4786 = vsub.f32 %v4784, %v4785
    %v4787 = vand.u32 %v4786, 4294901760
    %4788 = vmatmul.mubr.f32.gmra.mrb[0].mxu0 %v4787
    %v4789 = vpop.f32.mrb[0].mxu0
    %v4790 = vadd.f32 0.0, %v4789
    %v4791 = vpop.f32.mrb[0].mxu0
    %4792 = vmatprep.mubr.f32.mxu0 0.0
    %v4793 = vand.u32 %v4120, 4294901760
    %v4794 = vsub.f32 %v4120, %v4793
    %v4795 = vand.u32 %v4794, 4294901760
    %v4796 = vsub.f32 %v4794, %v4795
    %v4797 = vand.u32 %v4796, 4294901760
    %4798 = vmatmul.mubr.f32.gmra.mrb[0].mxu0 %v4797
    %v4799 = vpop.f32.mrb[0].mxu0
    %v4800 = vadd.f32 0.0, %v4799
    %v4801 = vpop.f32.mrb[0].mxu0
    %4802 = vmatprep.mubr.f32.mxu0 0.0
    %v4803 = vand.u32 %v4123, 4294901760
    %v4804 = vsub.f32 %v4123, %v4803
    %v4805 = vand.u32 %v4804, 4294901760
    %v4806 = vsub.f32 %v4804, %v4805
    %v4807 = vand.u32 %v4806, 4294901760
    %4808 = vmatmul.mubr.f32.gmra.mrb[0].mxu0 %v4807
    %v4809 = vpop.f32.mrb[0].mxu0
    %v4810 = vadd.f32 0.0, %v4809
    %v4811 = vpop.f32.mrb[0].mxu0
    %4812 = vmatprep.mubr.f32.mxu0 0.0
    %v4813 = vand.u32 %v4126, 4294901760
    %v4814 = vsub.f32 %v4126, %v4813
    %v4815 = vand.u32 %v4814, 4294901760
    %v4816 = vsub.f32 %v4814, %v4815
    %v4817 = vand.u32 %v4816, 4294901760
    %4818 = vmatmul.mubr.f32.gmra.mrb[0].mxu0 %v4817
    %v4819 = vpop.f32.mrb[0].mxu0
    %v4820 = vadd.f32 0.0, %v4819
    %v4821 = vpop.f32.mrb[0].mxu0
    %4822 = vdwg.mxu0
    %4823 = vmatprep.subr.mxu0 0.0
    %v4824 = vand.u32 %v1059, 4294901760
    %v4825 = vsub.f32 %v1059, %v4824
    %v4826 = vand.u32 %v4825, 4294901760
    %v4827 = vsub.f32 %v4825, %v4826
    %v4828 = vand.u32 %v4827, 4294901760
    %4829 = vmatpush1.msra.mxu0 %v4828
    %4830 = vmatprep.subr.mxu0 0.0
    %v4831 = vand.u32 %v1065, 4294901760
    %v4832 = vsub.f32 %v1065, %v4831
    %v4833 = vand.u32 %v4832, 4294901760
    %v4834 = vsub.f32 %v4832, %v4833
    %v4835 = vand.u32 %v4834, 4294901760
    %4836 = vmatpush1.msra.mxu0 %v4835
    %4837 = vmatprep.subr.mxu0 0.0
    %4838 = vmatpush1.msra.mxu0 0.0
    %4839 = vmatprep.subr.mxu0 0.0
    %4840 = vmatpush1.msra.mxu0 0.0
    %4841 = vmatprep.subr.mxu0 0.0
    %4842 = vmatpush1.msra.mxu0 0.0
    %4843 = vmatprep.subr.mxu0 0.0
    %4844 = vmatpush1.msra.mxu0 0.0
    %4845 = vmatprep.subr.mxu0 0.0
    %4846 = vmatpush1.msra.mxu0 0.0
    %4847 = vmatprep.subr.mxu0 0.0
    %4848 = vmatpush1.msra.mxu0 0.0
    %4849 = vmatprep.subr.mxu0 0.0
    %4850 = vmatpush1.msra.mxu0 0.0
    %4851 = vmatprep.subr.mxu0 0.0
    %4852 = vmatpush1.msra.mxu0 0.0
    %4853 = vmatprep.subr.mxu0 0.0
    %4854 = vmatpush1.msra.mxu0 0.0
    %4855 = vmatprep.subr.mxu0 0.0
    %4856 = vmatpush1.msra.mxu0 0.0
    %4857 = vmatprep.subr.mxu0 0.0
    %4858 = vmatpush1.msra.mxu0 0.0
    %4859 = vmatprep.subr.mxu0 0.0
    %4860 = vmatpush1.msra.mxu0 0.0
    %4861 = vmatprep.subr.mxu0 0.0
    %4862 = vmatpush1.msra.mxu0 0.0
    %4863 = vmatprep.subr.mxu0 0.0
    %4864 = vmatpush1.msra.mxu0 0.0
    %4865 = vmatprep.subr.mxu0 0.0
    %4866 = vmatpush1.msra.mxu0 0.0
    %4867 = vmatprep.subr.mxu0 0.0
    %4868 = vmatpush1.msra.mxu0 0.0
    %4869 = vmatprep.subr.mxu0 0.0
    %4870 = vmatpush1.msra.mxu0 0.0
    %4871 = vmatprep.subr.mxu0 0.0
    %4872 = vmatpush1.msra.mxu0 0.0
    %4873 = vmatprep.subr.mxu0 0.0
    %4874 = vmatpush1.msra.mxu0 0.0
    %4875 = vmatprep.subr.mxu0 0.0
    %4876 = vmatpush1.msra.mxu0 0.0
    %4877 = vmatprep.subr.mxu0 0.0
    %4878 = vmatpush1.msra.mxu0 0.0
    %4879 = vmatprep.subr.mxu0 0.0
    %4880 = vmatpush1.msra.mxu0 0.0
    %4881 = vmatprep.subr.mxu0 0.0
    %4882 = vmatpush1.msra.mxu0 0.0
    %4883 = vmatprep.subr.mxu0 0.0
    %4884 = vmatpush1.msra.mxu0 0.0
    %4885 = vmatprep.subr.mxu0 0.0
    %4886 = vmatpush1.msra.mxu0 0.0
    %4887 = vmatprep.subr.mxu0 0.0
    %4888 = vmatpush1.msra.mxu0 0.0
    %4889 = vmatprep.subr.mxu0 0.0
    %4890 = vmatpush1.msra.mxu0 0.0
    %4891 = vmatprep.subr.mxu0 0.0
    %4892 = vmatpush1.msra.mxu0 0.0
    %4893 = vmatprep.subr.mxu0 0.0
    %4894 = vmatpush1.msra.mxu0 0.0
    %4895 = vmatprep.subr.mxu0 0.0
    %4896 = vmatpush1.msra.mxu0 0.0
    %4897 = vmatprep.mubr.f32.mxu0 0.0
    %v4898 = vand.u32 %v4117, 4294901760
    %4899 = vmatmul.mubr.f32.gmra.mrb[0].mxu0 %v4898
    %v4900 = vpop.f32.mrb[0].mxu0
    %v4901 = vadd.f32 %v4790, %v4900
    %v4902 = vpop.f32.mrb[0].mxu0
    %4903 = vmatprep.mubr.f32.mxu0 0.0
    %v4904 = vand.u32 %v4120, 4294901760
    %4905 = vmatmul.mubr.f32.gmra.mrb[0].mxu0 %v4904
    %v4906 = vpop.f32.mrb[0].mxu0
    %v4907 = vadd.f32 %v4800, %v4906
    %v4908 = vpop.f32.mrb[0].mxu0
    %4909 = vmatprep.mubr.f32.mxu0 0.0
    %v4910 = vand.u32 %v4123, 4294901760
    %4911 = vmatmul.mubr.f32.gmra.mrb[0].mxu0 %v4910
    %v4912 = vpop.f32.mrb[0].mxu0
    %v4913 = vadd.f32 %v4810, %v4912
    %v4914 = vpop.f32.mrb[0].mxu0
    %4915 = vmatprep.mubr.f32.mxu0 0.0
    %v4916 = vand.u32 %v4126, 4294901760
    %4917 = vmatmul.mubr.f32.gmra.mrb[0].mxu0 %v4916
    %v4918 = vpop.f32.mrb[0].mxu0
    %v4919 = vadd.f32 %v4820, %v4918
    %v4920 = vpop.f32.mrb[0].mxu0
    %4921 = vdwg.mxu0
    %4922 = vmatprep.subr.mxu0 0.0
    %v4923 = vand.u32 %v1059, 4294901760
    %v4924 = vsub.f32 %v1059, %v4923
    %4925 = vmatpush1.msra.mxu0 %v4924
    %4926 = vmatprep.subr.mxu0 0.0
    %v4927 = vand.u32 %v1065, 4294901760
    %v4928 = vsub.f32 %v1065, %v4927
    %4929 = vmatpush1.msra.mxu0 %v4928
    %4930 = vmatprep.subr.mxu0 0.0
    %4931 = vmatpush1.msra.mxu0 0.0
    %4932 = vmatprep.subr.mxu0 0.0
    %4933 = vmatpush1.msra.mxu0 0.0
    %4934 = vmatprep.subr.mxu0 0.0
    %4935 = vmatpush1.msra.mxu0 0.0
    %4936 = vmatprep.subr.mxu0 0.0
    %4937 = vmatpush1.msra.mxu0 0.0
    %4938 = vmatprep.subr.mxu0 0.0
    %4939 = vmatpush1.msra.mxu0 0.0
    %4940 = vmatprep.subr.mxu0 0.0
    %4941 = vmatpush1.msra.mxu0 0.0
    %4942 = vmatprep.subr.mxu0 0.0
    %4943 = vmatpush1.msra.mxu0 0.0
    %4944 = vmatprep.subr.mxu0 0.0
    %4945 = vmatpush1.msra.mxu0 0.0
    %4946 = vmatprep.subr.mxu0 0.0
    %4947 = vmatpush1.msra.mxu0 0.0
    %4948 = vmatprep.subr.mxu0 0.0
    %4949 = vmatpush1.msra.mxu0 0.0
    %4950 = vmatprep.subr.mxu0 0.0
    %4951 = vmatpush1.msra.mxu0 0.0
    %4952 = vmatprep.subr.mxu0 0.0
    %4953 = vmatpush1.msra.mxu0 0.0
    %4954 = vmatprep.subr.mxu0 0.0
    %4955 = vmatpush1.msra.mxu0 0.0
    %4956 = vmatprep.subr.mxu0 0.0
    %4957 = vmatpush1.msra.mxu0 0.0
    %4958 = vmatprep.subr.mxu0 0.0
    %4959 = vmatpush1.msra.mxu0 0.0
    %4960 = vmatprep.subr.mxu0 0.0
    %4961 = vmatpush1.msra.mxu0 0.0
    %4962 = vmatprep.subr.mxu0 0.0
    %4963 = vmatpush1.msra.mxu0 0.0
    %4964 = vmatprep.subr.mxu0 0.0
    %4965 = vmatpush1.msra.mxu0 0.0
    %4966 = vmatprep.subr.mxu0 0.0
    %4967 = vmatpush1.msra.mxu0 0.0
    %4968 = vmatprep.subr.mxu0 0.0
    %4969 = vmatpush1.msra.mxu0 0.0
    %4970 = vmatprep.subr.mxu0 0.0
    %4971 = vmatpush1.msra.mxu0 0.0
    %4972 = vmatprep.subr.mxu0 0.0
    %4973 = vmatpush1.msra.mxu0 0.0
    %4974 = vmatprep.subr.mxu0 0.0
    %4975 = vmatpush1.msra.mxu0 0.0
    %4976 = vmatprep.subr.mxu0 0.0
    %4977 = vmatpush1.msra.mxu0 0.0
    %4978 = vmatprep.subr.mxu0 0.0
    %4979 = vmatpush1.msra.mxu0 0.0
    %4980 = vmatprep.subr.mxu0 0.0
    %4981 = vmatpush1.msra.mxu0 0.0
    %4982 = vmatprep.subr.mxu0 0.0
    %4983 = vmatpush1.msra.mxu0 0.0
    %4984 = vmatprep.subr.mxu0 0.0
    %4985 = vmatpush1.msra.mxu0 0.0
    %4986 = vmatprep.subr.mxu0 0.0
    %4987 = vmatpush1.msra.mxu0 0.0
    %4988 = vmatprep.subr.mxu0 0.0
    %4989 = vmatpush1.msra.mxu0 0.0
    %4990 = vmatprep.mubr.f32.mxu0 0.0
    %v4991 = vand.u32 %v4117, 4294901760
    %v4992 = vsub.f32 %v4117, %v4991
    %4993 = vmatmul.mubr.f32.gmra.mrb[0].mxu0 %v4992
    %v4994 = vpop.f32.mrb[0].mxu0
    %v4995 = vadd.f32 %v4901, %v4994
    %v4996 = vpop.f32.mrb[0].mxu0
    %4997 = vmatprep.mubr.f32.mxu0 0.0
    %v4998 = vand.u32 %v4120, 4294901760
    %v4999 = vsub.f32 %v4120, %v4998
    %5000 = vmatmul.mubr.f32.gmra.mrb[0].mxu0 %v4999
    %v5001 = vpop.f32.mrb[0].mxu0
    %v5002 = vadd.f32 %v4907, %v5001
    %v5003 = vpop.f32.mrb[0].mxu0
    %5004 = vmatprep.mubr.f32.mxu0 0.0
    %v5005 = vand.u32 %v4123, 4294901760
    %v5006 = vsub.f32 %v4123, %v5005
    %5007 = vmatmul.mubr.f32.gmra.mrb[0].mxu0 %v5006
    %v5008 = vpop.f32.mrb[0].mxu0
    %v5009 = vadd.f32 %v4913, %v5008
    %v5010 = vpop.f32.mrb[0].mxu0
    %5011 = vmatprep.mubr.f32.mxu0 0.0
    %v5012 = vand.u32 %v4126, 4294901760
    %v5013 = vsub.f32 %v4126, %v5012
    %5014 = vmatmul.mubr.f32.gmra.mrb[0].mxu0 %v5013
    %v5015 = vpop.f32.mrb[0].mxu0
    %v5016 = vadd.f32 %v4919, %v5015
    %v5017 = vpop.f32.mrb[0].mxu0
    %5018 = vdwg.mxu0
    %5019 = vmatprep.subr.mxu0 0.0
    %v5020 = vand.u32 %v1059, 4294901760
    %5021 = vmatpush1.msra.mxu0 %v5020
    %5022 = vmatprep.subr.mxu0 0.0
    %v5023 = vand.u32 %v1065, 4294901760
    %5024 = vmatpush1.msra.mxu0 %v5023
    %5025 = vmatprep.subr.mxu0 0.0
    %5026 = vmatpush1.msra.mxu0 0.0
    %5027 = vmatprep.subr.mxu0 0.0
    %5028 = vmatpush1.msra.mxu0 0.0
    %5029 = vmatprep.subr.mxu0 0.0
    %5030 = vmatpush1.msra.mxu0 0.0
    %5031 = vmatprep.subr.mxu0 0.0
    %5032 = vmatpush1.msra.mxu0 0.0
    %5033 = vmatprep.subr.mxu0 0.0
    %5034 = vmatpush1.msra.mxu0 0.0
    %5035 = vmatprep.subr.mxu0 0.0
    %5036 = vmatpush1.msra.mxu0 0.0
    %5037 = vmatprep.subr.mxu0 0.0
    %5038 = vmatpush1.msra.mxu0 0.0
    %5039 = vmatprep.subr.mxu0 0.0
    %5040 = vmatpush1.msra.mxu0 0.0
    %5041 = vmatprep.subr.mxu0 0.0
    %5042 = vmatpush1.msra.mxu0 0.0
    %5043 = vmatprep.subr.mxu0 0.0
    %5044 = vmatpush1.msra.mxu0 0.0
    %5045 = vmatprep.subr.mxu0 0.0
    %5046 = vmatpush1.msra.mxu0 0.0
    %5047 = vmatprep.subr.mxu0 0.0
    %5048 = vmatpush1.msra.mxu0 0.0
    %5049 = vmatprep.subr.mxu0 0.0
    %5050 = vmatpush1.msra.mxu0 0.0
    %5051 = vmatprep.subr.mxu0 0.0
    %5052 = vmatpush1.msra.mxu0 0.0
    %5053 = vmatprep.subr.mxu0 0.0
    %5054 = vmatpush1.msra.mxu0 0.0
    %5055 = vmatprep.subr.mxu0 0.0
    %5056 = vmatpush1.msra.mxu0 0.0
    %5057 = vmatprep.subr.mxu0 0.0
    %5058 = vmatpush1.msra.mxu0 0.0
    %5059 = vmatprep.subr.mxu0 0.0
    %5060 = vmatpush1.msra.mxu0 0.0
    %5061 = vmatprep.subr.mxu0 0.0
    %5062 = vmatpush1.msra.mxu0 0.0
    %5063 = vmatprep.subr.mxu0 0.0
    %5064 = vmatpush1.msra.mxu0 0.0
    %5065 = vmatprep.subr.mxu0 0.0
    %5066 = vmatpush1.msra.mxu0 0.0
    %5067 = vmatprep.subr.mxu0 0.0
    %5068 = vmatpush1.msra.mxu0 0.0
    %5069 = vmatprep.subr.mxu0 0.0
    %5070 = vmatpush1.msra.mxu0 0.0
    %5071 = vmatprep.subr.mxu0 0.0
    %5072 = vmatpush1.msra.mxu0 0.0
    %5073 = vmatprep.subr.mxu0 0.0
    %5074 = vmatpush1.msra.mxu0 0.0
    %5075 = vmatprep.subr.mxu0 0.0
    %5076 = vmatpush1.msra.mxu0 0.0
    %5077 = vmatprep.subr.mxu0 0.0
    %5078 = vmatpush1.msra.mxu0 0.0
    %5079 = vmatprep.subr.mxu0 0.0
    %5080 = vmatpush1.msra.mxu0 0.0
    %5081 = vmatprep.subr.mxu0 0.0
    %5082 = vmatpush1.msra.mxu0 0.0
    %5083 = vmatprep.subr.mxu0 0.0
    %5084 = vmatpush1.msra.mxu0 0.0
    %5085 = vmatprep.mubr.f32.mxu0 0.0
    %v5086 = vand.u32 %v4117, 4294901760
    %v5087 = vsub.f32 %v4117, %v5086
    %v5088 = vand.u32 %v5087, 4294901760
    %5089 = vmatmul.mubr.f32.gmra.mrb[0].mxu0 %v5088
    %v5090 = vpop.f32.mrb[0].mxu0
    %v5091 = vadd.f32 %v4995, %v5090
    %v5092 = vpop.f32.mrb[0].mxu0
    %5093 = vmatprep.mubr.f32.mxu0 0.0
    %v5094 = vand.u32 %v4120, 4294901760
    %v5095 = vsub.f32 %v4120, %v5094
    %v5096 = vand.u32 %v5095, 4294901760
    %5097 = vmatmul.mubr.f32.gmra.mrb[0].mxu0 %v5096
    %v5098 = vpop.f32.mrb[0].mxu0
    %v5099 = vadd.f32 %v5002, %v5098
    %v5100 = vpop.f32.mrb[0].mxu0
    %5101 = vmatprep.mubr.f32.mxu0 0.0
    %v5102 = vand.u32 %v4123, 4294901760
    %v5103 = vsub.f32 %v4123, %v5102
    %v5104 = vand.u32 %v5103, 4294901760
    %5105 = vmatmul.mubr.f32.gmra.mrb[0].mxu0 %v5104
    %v5106 = vpop.f32.mrb[0].mxu0
    %v5107 = vadd.f32 %v5009, %v5106
    %v5108 = vpop.f32.mrb[0].mxu0
    %5109 = vmatprep.mubr.f32.mxu0 0.0
    %v5110 = vand.u32 %v4126, 4294901760
    %v5111 = vsub.f32 %v4126, %v5110
    %v5112 = vand.u32 %v5111, 4294901760
    %5113 = vmatmul.mubr.f32.gmra.mrb[0].mxu0 %v5112
    %v5114 = vpop.f32.mrb[0].mxu0
    %v5115 = vadd.f32 %v5016, %v5114
    %v5116 = vpop.f32.mrb[0].mxu0
    %5117 = vdwg.mxu0
    %5118 = vmatprep.subr.mxu0 0.0
    %v5119 = vand.u32 %v1059, 4294901760
    %v5120 = vsub.f32 %v1059, %v5119
    %v5121 = vand.u32 %v5120, 4294901760
    %5122 = vmatpush1.msra.mxu0 %v5121
    %5123 = vmatprep.subr.mxu0 0.0
    %v5124 = vand.u32 %v1065, 4294901760
    %v5125 = vsub.f32 %v1065, %v5124
    %v5126 = vand.u32 %v5125, 4294901760
    %5127 = vmatpush1.msra.mxu0 %v5126
    %5128 = vmatprep.subr.mxu0 0.0
    %5129 = vmatpush1.msra.mxu0 0.0
    %5130 = vmatprep.subr.mxu0 0.0
    %5131 = vmatpush1.msra.mxu0 0.0
    %5132 = vmatprep.subr.mxu0 0.0
    %5133 = vmatpush1.msra.mxu0 0.0
    %5134 = vmatprep.subr.mxu0 0.0
    %5135 = vmatpush1.msra.mxu0 0.0
    %5136 = vmatprep.subr.mxu0 0.0
    %5137 = vmatpush1.msra.mxu0 0.0
    %5138 = vmatprep.subr.mxu0 0.0
    %5139 = vmatpush1.msra.mxu0 0.0
    %5140 = vmatprep.subr.mxu0 0.0
    %5141 = vmatpush1.msra.mxu0 0.0
    %5142 = vmatprep.subr.mxu0 0.0
    %5143 = vmatpush1.msra.mxu0 0.0
    %5144 = vmatprep.subr.mxu0 0.0
    %5145 = vmatpush1.msra.mxu0 0.0
    %5146 = vmatprep.subr.mxu0 0.0
    %5147 = vmatpush1.msra.mxu0 0.0
    %5148 = vmatprep.subr.mxu0 0.0
    %5149 = vmatpush1.msra.mxu0 0.0
    %5150 = vmatprep.subr.mxu0 0.0
    %5151 = vmatpush1.msra.mxu0 0.0
    %5152 = vmatprep.subr.mxu0 0.0
    %5153 = vmatpush1.msra.mxu0 0.0
    %5154 = vmatprep.subr.mxu0 0.0
    %5155 = vmatpush1.msra.mxu0 0.0
    %5156 = vmatprep.subr.mxu0 0.0
    %5157 = vmatpush1.msra.mxu0 0.0
    %5158 = vmatprep.subr.mxu0 0.0
    %5159 = vmatpush1.msra.mxu0 0.0
    %5160 = vmatprep.subr.mxu0 0.0
    %5161 = vmatpush1.msra.mxu0 0.0
    %5162 = vmatprep.subr.mxu0 0.0
    %5163 = vmatpush1.msra.mxu0 0.0
    %5164 = vmatprep.subr.mxu0 0.0
    %5165 = vmatpush1.msra.mxu0 0.0
    %5166 = vmatprep.subr.mxu0 0.0
    %5167 = vmatpush1.msra.mxu0 0.0
    %5168 = vmatprep.subr.mxu0 0.0
    %5169 = vmatpush1.msra.mxu0 0.0
    %5170 = vmatprep.subr.mxu0 0.0
    %5171 = vmatpush1.msra.mxu0 0.0
    %5172 = vmatprep.subr.mxu0 0.0
    %5173 = vmatpush1.msra.mxu0 0.0
    %5174 = vmatprep.subr.mxu0 0.0
    %5175 = vmatpush1.msra.mxu0 0.0
    %5176 = vmatprep.subr.mxu0 0.0
    %5177 = vmatpush1.msra.mxu0 0.0
    %5178 = vmatprep.subr.mxu0 0.0
    %5179 = vmatpush1.msra.mxu0 0.0
    %5180 = vmatprep.subr.mxu0 0.0
    %5181 = vmatpush1.msra.mxu0 0.0
    %5182 = vmatprep.subr.mxu0 0.0
    %5183 = vmatpush1.msra.mxu0 0.0
    %5184 = vmatprep.subr.mxu0 0.0
    %5185 = vmatpush1.msra.mxu0 0.0
    %5186 = vmatprep.subr.mxu0 0.0
    %5187 = vmatpush1.msra.mxu0 0.0
    %5188 = vmatprep.mubr.f32.mxu0 0.0
    %v5189 = vand.u32 %v4117, 4294901760
    %5190 = vmatmul.mubr.f32.gmra.mrb[0].mxu0 %v5189
    %v5191 = vpop.f32.mrb[0].mxu0
    %v5192 = vadd.f32 %v5091, %v5191
    %v5193 = vpop.f32.mrb[0].mxu0
    %5194 = vmatprep.mubr.f32.mxu0 0.0
    %v5195 = vand.u32 %v4120, 4294901760
    %5196 = vmatmul.mubr.f32.gmra.mrb[0].mxu0 %v5195
    %v5197 = vpop.f32.mrb[0].mxu0
    %v5198 = vadd.f32 %v5099, %v5197
    %v5199 = vpop.f32.mrb[0].mxu0
    %5200 = vmatprep.mubr.f32.mxu0 0.0
    %v5201 = vand.u32 %v4123, 4294901760
    %5202 = vmatmul.mubr.f32.gmra.mrb[0].mxu0 %v5201
    %v5203 = vpop.f32.mrb[0].mxu0
    %v5204 = vadd.f32 %v5107, %v5203
    %v5205 = vpop.f32.mrb[0].mxu0
    %5206 = vmatprep.mubr.f32.mxu0 0.0
    %v5207 = vand.u32 %v4126, 4294901760
    %5208 = vmatmul.mubr.f32.gmra.mrb[0].mxu0 %v5207
    %v5209 = vpop.f32.mrb[0].mxu0
    %v5210 = vadd.f32 %v5115, %v5209
    %v5211 = vpop.f32.mrb[0].mxu0
    %5212 = vdwg.mxu0
    %5213 = vmatprep.subr.mxu0 0.0
    %v5214 = vand.u32 %v1059, 4294901760
    %5215 = vmatpush1.msra.mxu0 %v5214
    %5216 = vmatprep.subr.mxu0 0.0
    %v5217 = vand.u32 %v1065, 4294901760
    %5218 = vmatpush1.msra.mxu0 %v5217
    %5219 = vmatprep.subr.mxu0 0.0
    %5220 = vmatpush1.msra.mxu0 0.0
    %5221 = vmatprep.subr.mxu0 0.0
    %5222 = vmatpush1.msra.mxu0 0.0
    %5223 = vmatprep.subr.mxu0 0.0
    %5224 = vmatpush1.msra.mxu0 0.0
    %5225 = vmatprep.subr.mxu0 0.0
    %5226 = vmatpush1.msra.mxu0 0.0
    %5227 = vmatprep.subr.mxu0 0.0
    %5228 = vmatpush1.msra.mxu0 0.0
    %5229 = vmatprep.subr.mxu0 0.0
    %5230 = vmatpush1.msra.mxu0 0.0
    %5231 = vmatprep.subr.mxu0 0.0
    %5232 = vmatpush1.msra.mxu0 0.0
    %5233 = vmatprep.subr.mxu0 0.0
    %5234 = vmatpush1.msra.mxu0 0.0
    %5235 = vmatprep.subr.mxu0 0.0
    %5236 = vmatpush1.msra.mxu0 0.0
    %5237 = vmatprep.subr.mxu0 0.0
    %5238 = vmatpush1.msra.mxu0 0.0
    %5239 = vmatprep.subr.mxu0 0.0
    %5240 = vmatpush1.msra.mxu0 0.0
    %5241 = vmatprep.subr.mxu0 0.0
    %5242 = vmatpush1.msra.mxu0 0.0
    %5243 = vmatprep.subr.mxu0 0.0
    %5244 = vmatpush1.msra.mxu0 0.0
    %5245 = vmatprep.subr.mxu0 0.0
    %5246 = vmatpush1.msra.mxu0 0.0
    %5247 = vmatprep.subr.mxu0 0.0
    %5248 = vmatpush1.msra.mxu0 0.0
    %5249 = vmatprep.subr.mxu0 0.0
    %5250 = vmatpush1.msra.mxu0 0.0
    %5251 = vmatprep.subr.mxu0 0.0
    %5252 = vmatpush1.msra.mxu0 0.0
    %5253 = vmatprep.subr.mxu0 0.0
    %5254 = vmatpush1.msra.mxu0 0.0
    %5255 = vmatprep.subr.mxu0 0.0
    %5256 = vmatpush1.msra.mxu0 0.0
    %5257 = vmatprep.subr.mxu0 0.0
    %5258 = vmatpush1.msra.mxu0 0.0
    %5259 = vmatprep.subr.mxu0 0.0
    %5260 = vmatpush1.msra.mxu0 0.0
    %5261 = vmatprep.subr.mxu0 0.0
    %5262 = vmatpush1.msra.mxu0 0.0
    %5263 = vmatprep.subr.mxu0 0.0
    %5264 = vmatpush1.msra.mxu0 0.0
    %5265 = vmatprep.subr.mxu0 0.0
    %5266 = vmatpush1.msra.mxu0 0.0
    %5267 = vmatprep.subr.mxu0 0.0
    %5268 = vmatpush1.msra.mxu0 0.0
    %5269 = vmatprep.subr.mxu0 0.0
    %5270 = vmatpush1.msra.mxu0 0.0
    %5271 = vmatprep.subr.mxu0 0.0
    %5272 = vmatpush1.msra.mxu0 0.0
    %5273 = vmatprep.subr.mxu0 0.0
    %5274 = vmatpush1.msra.mxu0 0.0
    %5275 = vmatprep.subr.mxu0 0.0
    %5276 = vmatpush1.msra.mxu0 0.0
    %5277 = vmatprep.subr.mxu0 0.0
    %5278 = vmatpush1.msra.mxu0 0.0
    %5279 = vmatprep.mubr.f32.mxu0 0.0
    %v5280 = vand.u32 %v4117, 4294901760
    %5281 = vmatmul.mubr.f32.gmra.mrb[0].mxu0 %v5280
    %v5282 = vpop.f32.mrb[0].mxu0
    %v5283 = vadd.f32 %v5192, %v5282
    %v5284 = vpop.f32.mrb[0].mxu0
    %5285 = vmatprep.mubr.f32.mxu0 0.0
    %v5286 = vand.u32 %v4120, 4294901760
    %5287 = vmatmul.mubr.f32.gmra.mrb[0].mxu0 %v5286
    %v5288 = vpop.f32.mrb[0].mxu0
    %v5289 = vadd.f32 %v5198, %v5288
    %v5290 = vpop.f32.mrb[0].mxu0
    %5291 = vmatprep.mubr.f32.mxu0 0.0
    %v5292 = vand.u32 %v4123, 4294901760
    %5293 = vmatmul.mubr.f32.gmra.mrb[0].mxu0 %v5292
    %v5294 = vpop.f32.mrb[0].mxu0
    %v5295 = vadd.f32 %v5204, %v5294
    %v5296 = vpop.f32.mrb[0].mxu0
    %5297 = vmatprep.mubr.f32.mxu0 0.0
    %v5298 = vand.u32 %v4126, 4294901760
    %5299 = vmatmul.mubr.f32.gmra.mrb[0].mxu0 %v5298
    %v5300 = vpop.f32.mrb[0].mxu0
    %v5301 = vadd.f32 %v5210, %v5300
    %v5302 = vpop.f32.mrb[0].mxu0
    %5303 = vdwg.mxu0
    %5304 = vmatprep.subr.mxu0 0.0
    %v5305 = vand.u32 %v1567, 4294901760
    %5306 = vmatpush1.msra.mxu0 %v5305
    %5307 = vmatprep.subr.mxu0 0.0
    %v5308 = vand.u32 %v1573, 4294901760
    %5309 = vmatpush1.msra.mxu0 %v5308
    %5310 = vmatprep.subr.mxu0 0.0
    %5311 = vmatpush1.msra.mxu0 0.0
    %5312 = vmatprep.subr.mxu0 0.0
    %5313 = vmatpush1.msra.mxu0 0.0
    %5314 = vmatprep.subr.mxu0 0.0
    %5315 = vmatpush1.msra.mxu0 0.0
    %5316 = vmatprep.subr.mxu0 0.0
    %5317 = vmatpush1.msra.mxu0 0.0
    %5318 = vmatprep.subr.mxu0 0.0
    %5319 = vmatpush1.msra.mxu0 0.0
    %5320 = vmatprep.subr.mxu0 0.0
    %5321 = vmatpush1.msra.mxu0 0.0
    %5322 = vmatprep.subr.mxu0 0.0
    %5323 = vmatpush1.msra.mxu0 0.0
    %5324 = vmatprep.subr.mxu0 0.0
    %5325 = vmatpush1.msra.mxu0 0.0
    %5326 = vmatprep.subr.mxu0 0.0
    %5327 = vmatpush1.msra.mxu0 0.0
    %5328 = vmatprep.subr.mxu0 0.0
    %5329 = vmatpush1.msra.mxu0 0.0
    %5330 = vmatprep.subr.mxu0 0.0
    %5331 = vmatpush1.msra.mxu0 0.0
    %5332 = vmatprep.subr.mxu0 0.0
    %5333 = vmatpush1.msra.mxu0 0.0
    %5334 = vmatprep.subr.mxu0 0.0
    %5335 = vmatpush1.msra.mxu0 0.0
    %5336 = vmatprep.subr.mxu0 0.0
    %5337 = vmatpush1.msra.mxu0 0.0
    %5338 = vmatprep.subr.mxu0 0.0
    %5339 = vmatpush1.msra.mxu0 0.0
    %5340 = vmatprep.subr.mxu0 0.0
    %5341 = vmatpush1.msra.mxu0 0.0
    %5342 = vmatprep.subr.mxu0 0.0
    %5343 = vmatpush1.msra.mxu0 0.0
    %5344 = vmatprep.subr.mxu0 0.0
    %5345 = vmatpush1.msra.mxu0 0.0
    %5346 = vmatprep.subr.mxu0 0.0
    %5347 = vmatpush1.msra.mxu0 0.0
    %5348 = vmatprep.subr.mxu0 0.0
    %5349 = vmatpush1.msra.mxu0 0.0
    %5350 = vmatprep.subr.mxu0 0.0
    %5351 = vmatpush1.msra.mxu0 0.0
    %5352 = vmatprep.subr.mxu0 0.0
    %5353 = vmatpush1.msra.mxu0 0.0
    %5354 = vmatprep.subr.mxu0 0.0
    %5355 = vmatpush1.msra.mxu0 0.0
    %5356 = vmatprep.subr.mxu0 0.0
    %5357 = vmatpush1.msra.mxu0 0.0
    %5358 = vmatprep.subr.mxu0 0.0
    %5359 = vmatpush1.msra.mxu0 0.0
    %5360 = vmatprep.subr.mxu0 0.0
    %5361 = vmatpush1.msra.mxu0 0.0
    %5362 = vmatprep.subr.mxu0 0.0
    %5363 = vmatpush1.msra.mxu0 0.0
    %5364 = vmatprep.subr.mxu0 0.0
    %5365 = vmatpush1.msra.mxu0 0.0
    %5366 = vmatprep.subr.mxu0 0.0
    %5367 = vmatpush1.msra.mxu0 0.0
    %5368 = vmatprep.subr.mxu0 0.0
    %5369 = vmatpush1.msra.mxu0 0.0
    %5370 = vmatprep.mubr.f32.mxu0 0.0
    %v5371 = vand.u32 %v4117, 4294901760
    %v5372 = vsub.f32 %v4117, %v5371
    %v5373 = vand.u32 %v5372, 4294901760
    %v5374 = vsub.f32 %v5372, %v5373
    %v5375 = vand.u32 %v5374, 4294901760
    %5376 = vmatmul.mubr.f32.gmra.mrb[0].mxu0 %v5375
    %v5377 = vpop.f32.mrb[0].mxu0
    %v5378 = vadd.f32 0.0, %v5377
    %v5379 = vpop.f32.mrb[0].mxu0
    %5380 = vmatprep.mubr.f32.mxu0 0.0
    %v5381 = vand.u32 %v4120, 4294901760
    %v5382 = vsub.f32 %v4120, %v5381
    %v5383 = vand.u32 %v5382, 4294901760
    %v5384 = vsub.f32 %v5382, %v5383
    %v5385 = vand.u32 %v5384, 4294901760
    %5386 = vmatmul.mubr.f32.gmra.mrb[0].mxu0 %v5385
    %v5387 = vpop.f32.mrb[0].mxu0
    %v5388 = vadd.f32 0.0, %v5387
    %v5389 = vpop.f32.mrb[0].mxu0
    %5390 = vmatprep.mubr.f32.mxu0 0.0
    %v5391 = vand.u32 %v4123, 4294901760
    %v5392 = vsub.f32 %v4123, %v5391
    %v5393 = vand.u32 %v5392, 4294901760
    %v5394 = vsub.f32 %v5392, %v5393
    %v5395 = vand.u32 %v5394, 4294901760
    %5396 = vmatmul.mubr.f32.gmra.mrb[0].mxu0 %v5395
    %v5397 = vpop.f32.mrb[0].mxu0
    %v5398 = vadd.f32 0.0, %v5397
    %v5399 = vpop.f32.mrb[0].mxu0
    %5400 = vmatprep.mubr.f32.mxu0 0.0
    %v5401 = vand.u32 %v4126, 4294901760
    %v5402 = vsub.f32 %v4126, %v5401
    %v5403 = vand.u32 %v5402, 4294901760
    %v5404 = vsub.f32 %v5402, %v5403
    %v5405 = vand.u32 %v5404, 4294901760
    %5406 = vmatmul.mubr.f32.gmra.mrb[0].mxu0 %v5405
    %v5407 = vpop.f32.mrb[0].mxu0
    %v5408 = vadd.f32 0.0, %v5407
    %v5409 = vpop.f32.mrb[0].mxu0
    %5410 = vdwg.mxu0
    %5411 = vmatprep.subr.mxu0 0.0
    %v5412 = vand.u32 %v1567, 4294901760
    %v5413 = vsub.f32 %v1567, %v5412
    %v5414 = vand.u32 %v5413, 4294901760
    %v5415 = vsub.f32 %v5413, %v5414
    %v5416 = vand.u32 %v5415, 4294901760
    %5417 = vmatpush1.msra.mxu0 %v5416
    %5418 = vmatprep.subr.mxu0 0.0
    %v5419 = vand.u32 %v1573, 4294901760
    %v5420 = vsub.f32 %v1573, %v5419
    %v5421 = vand.u32 %v5420, 4294901760
    %v5422 = vsub.f32 %v5420, %v5421
    %v5423 = vand.u32 %v5422, 4294901760
    %5424 = vmatpush1.msra.mxu0 %v5423
    %5425 = vmatprep.subr.mxu0 0.0
    %5426 = vmatpush1.msra.mxu0 0.0
    %5427 = vmatprep.subr.mxu0 0.0
    %5428 = vmatpush1.msra.mxu0 0.0
    %5429 = vmatprep.subr.mxu0 0.0
    %5430 = vmatpush1.msra.mxu0 0.0
    %5431 = vmatprep.subr.mxu0 0.0
    %5432 = vmatpush1.msra.mxu0 0.0
    %5433 = vmatprep.subr.mxu0 0.0
    %5434 = vmatpush1.msra.mxu0 0.0
    %5435 = vmatprep.subr.mxu0 0.0
    %5436 = vmatpush1.msra.mxu0 0.0
    %5437 = vmatprep.subr.mxu0 0.0
    %5438 = vmatpush1.msra.mxu0 0.0
    %5439 = vmatprep.subr.mxu0 0.0
    %5440 = vmatpush1.msra.mxu0 0.0
    %5441 = vmatprep.subr.mxu0 0.0
    %5442 = vmatpush1.msra.mxu0 0.0
    %5443 = vmatprep.subr.mxu0 0.0
    %5444 = vmatpush1.msra.mxu0 0.0
    %5445 = vmatprep.subr.mxu0 0.0
    %5446 = vmatpush1.msra.mxu0 0.0
    %5447 = vmatprep.subr.mxu0 0.0
    %5448 = vmatpush1.msra.mxu0 0.0
    %5449 = vmatprep.subr.mxu0 0.0
    %5450 = vmatpush1.msra.mxu0 0.0
    %5451 = vmatprep.subr.mxu0 0.0
    %5452 = vmatpush1.msra.mxu0 0.0
    %5453 = vmatprep.subr.mxu0 0.0
    %5454 = vmatpush1.msra.mxu0 0.0
    %5455 = vmatprep.subr.mxu0 0.0
    %5456 = vmatpush1.msra.mxu0 0.0
    %5457 = vmatprep.subr.mxu0 0.0
    %5458 = vmatpush1.msra.mxu0 0.0
    %5459 = vmatprep.subr.mxu0 0.0
    %5460 = vmatpush1.msra.mxu0 0.0
    %5461 = vmatprep.subr.mxu0 0.0
    %5462 = vmatpush1.msra.mxu0 0.0
    %5463 = vmatprep.subr.mxu0 0.0
    %5464 = vmatpush1.msra.mxu0 0.0
    %5465 = vmatprep.subr.mxu0 0.0
    %5466 = vmatpush1.msra.mxu0 0.0
    %5467 = vmatprep.subr.mxu0 0.0
    %5468 = vmatpush1.msra.mxu0 0.0
    %5469 = vmatprep.subr.mxu0 0.0
    %5470 = vmatpush1.msra.mxu0 0.0
    %5471 = vmatprep.subr.mxu0 0.0
    %5472 = vmatpush1.msra.mxu0 0.0
    %5473 = vmatprep.subr.mxu0 0.0
    %5474 = vmatpush1.msra.mxu0 0.0
    %5475 = vmatprep.subr.mxu0 0.0
    %5476 = vmatpush1.msra.mxu0 0.0
    %5477 = vmatprep.subr.mxu0 0.0
    %5478 = vmatpush1.msra.mxu0 0.0
    %5479 = vmatprep.subr.mxu0 0.0
    %5480 = vmatpush1.msra.mxu0 0.0
    %5481 = vmatprep.subr.mxu0 0.0
    %5482 = vmatpush1.msra.mxu0 0.0
    %5483 = vmatprep.subr.mxu0 0.0
    %5484 = vmatpush1.msra.mxu0 0.0
    %5485 = vmatprep.mubr.f32.mxu0 0.0
    %v5486 = vand.u32 %v4117, 4294901760
    %5487 = vmatmul.mubr.f32.gmra.mrb[0].mxu0 %v5486
    %v5488 = vpop.f32.mrb[0].mxu0
    %v5489 = vadd.f32 %v5378, %v5488
    %v5490 = vpop.f32.mrb[0].mxu0
    %5491 = vmatprep.mubr.f32.mxu0 0.0
    %v5492 = vand.u32 %v4120, 4294901760
    %5493 = vmatmul.mubr.f32.gmra.mrb[0].mxu0 %v5492
    %v5494 = vpop.f32.mrb[0].mxu0
    %v5495 = vadd.f32 %v5388, %v5494
    %v5496 = vpop.f32.mrb[0].mxu0
    %5497 = vmatprep.mubr.f32.mxu0 0.0
    %v5498 = vand.u32 %v4123, 4294901760
    %5499 = vmatmul.mubr.f32.gmra.mrb[0].mxu0 %v5498
    %v5500 = vpop.f32.mrb[0].mxu0
    %v5501 = vadd.f32 %v5398, %v5500
    %v5502 = vpop.f32.mrb[0].mxu0
    %5503 = vmatprep.mubr.f32.mxu0 0.0
    %v5504 = vand.u32 %v4126, 4294901760
    %5505 = vmatmul.mubr.f32.gmra.mrb[0].mxu0 %v5504
    %v5506 = vpop.f32.mrb[0].mxu0
    %v5507 = vadd.f32 %v5408, %v5506
    %v5508 = vpop.f32.mrb[0].mxu0
    %5509 = vdwg.mxu0
    %5510 = vmatprep.subr.mxu0 0.0
    %v5511 = vand.u32 %v1567, 4294901760
    %v5512 = vsub.f32 %v1567, %v5511
    %5513 = vmatpush1.msra.mxu0 %v5512
    %5514 = vmatprep.subr.mxu0 0.0
    %v5515 = vand.u32 %v1573, 4294901760
    %v5516 = vsub.f32 %v1573, %v5515
    %5517 = vmatpush1.msra.mxu0 %v5516
    %5518 = vmatprep.subr.mxu0 0.0
    %5519 = vmatpush1.msra.mxu0 0.0
    %5520 = vmatprep.subr.mxu0 0.0
    %5521 = vmatpush1.msra.mxu0 0.0
    %5522 = vmatprep.subr.mxu0 0.0
    %5523 = vmatpush1.msra.mxu0 0.0
    %5524 = vmatprep.subr.mxu0 0.0
    %5525 = vmatpush1.msra.mxu0 0.0
    %5526 = vmatprep.subr.mxu0 0.0
    %5527 = vmatpush1.msra.mxu0 0.0
    %5528 = vmatprep.subr.mxu0 0.0
    %5529 = vmatpush1.msra.mxu0 0.0
    %5530 = vmatprep.subr.mxu0 0.0
    %5531 = vmatpush1.msra.mxu0 0.0
    %5532 = vmatprep.subr.mxu0 0.0
    %5533 = vmatpush1.msra.mxu0 0.0
    %5534 = vmatprep.subr.mxu0 0.0
    %5535 = vmatpush1.msra.mxu0 0.0
    %5536 = vmatprep.subr.mxu0 0.0
    %5537 = vmatpush1.msra.mxu0 0.0
    %5538 = vmatprep.subr.mxu0 0.0
    %5539 = vmatpush1.msra.mxu0 0.0
    %5540 = vmatprep.subr.mxu0 0.0
    %5541 = vmatpush1.msra.mxu0 0.0
    %5542 = vmatprep.subr.mxu0 0.0
    %5543 = vmatpush1.msra.mxu0 0.0
    %5544 = vmatprep.subr.mxu0 0.0
    %5545 = vmatpush1.msra.mxu0 0.0
    %5546 = vmatprep.subr.mxu0 0.0
    %5547 = vmatpush1.msra.mxu0 0.0
    %5548 = vmatprep.subr.mxu0 0.0
    %5549 = vmatpush1.msra.mxu0 0.0
    %5550 = vmatprep.subr.mxu0 0.0
    %5551 = vmatpush1.msra.mxu0 0.0
    %5552 = vmatprep.subr.mxu0 0.0
    %5553 = vmatpush1.msra.mxu0 0.0
    %5554 = vmatprep.subr.mxu0 0.0
    %5555 = vmatpush1.msra.mxu0 0.0
    %5556 = vmatprep.subr.mxu0 0.0
    %5557 = vmatpush1.msra.mxu0 0.0
    %5558 = vmatprep.subr.mxu0 0.0
    %5559 = vmatpush1.msra.mxu0 0.0
    %5560 = vmatprep.subr.mxu0 0.0
    %5561 = vmatpush1.msra.mxu0 0.0
    %5562 = vmatprep.subr.mxu0 0.0
    %5563 = vmatpush1.msra.mxu0 0.0
    %5564 = vmatprep.subr.mxu0 0.0
    %5565 = vmatpush1.msra.mxu0 0.0
    %5566 = vmatprep.subr.mxu0 0.0
    %5567 = vmatpush1.msra.mxu0 0.0
    %5568 = vmatprep.subr.mxu0 0.0
    %5569 = vmatpush1.msra.mxu0 0.0
    %5570 = vmatprep.subr.mxu0 0.0
    %5571 = vmatpush1.msra.mxu0 0.0
    %5572 = vmatprep.subr.mxu0 0.0
    %5573 = vmatpush1.msra.mxu0 0.0
    %5574 = vmatprep.subr.mxu0 0.0
    %5575 = vmatpush1.msra.mxu0 0.0
    %5576 = vmatprep.subr.mxu0 0.0
    %5577 = vmatpush1.msra.mxu0 0.0
    %5578 = vmatprep.mubr.f32.mxu0 0.0
    %v5579 = vand.u32 %v4117, 4294901760
    %v5580 = vsub.f32 %v4117, %v5579
    %5581 = vmatmul.mubr.f32.gmra.mrb[0].mxu0 %v5580
    %v5582 = vpop.f32.mrb[0].mxu0
    %v5583 = vadd.f32 %v5489, %v5582
    %v5584 = vpop.f32.mrb[0].mxu0
    %5585 = vmatprep.mubr.f32.mxu0 0.0
    %v5586 = vand.u32 %v4120, 4294901760
    %v5587 = vsub.f32 %v4120, %v5586
    %5588 = vmatmul.mubr.f32.gmra.mrb[0].mxu0 %v5587
    %v5589 = vpop.f32.mrb[0].mxu0
    %v5590 = vadd.f32 %v5495, %v5589
    %v5591 = vpop.f32.mrb[0].mxu0
    %5592 = vmatprep.mubr.f32.mxu0 0.0
    %v5593 = vand.u32 %v4123, 4294901760
    %v5594 = vsub.f32 %v4123, %v5593
    %5595 = vmatmul.mubr.f32.gmra.mrb[0].mxu0 %v5594
    %v5596 = vpop.f32.mrb[0].mxu0
    %v5597 = vadd.f32 %v5501, %v5596
    %v5598 = vpop.f32.mrb[0].mxu0
    %5599 = vmatprep.mubr.f32.mxu0 0.0
    %v5600 = vand.u32 %v4126, 4294901760
    %v5601 = vsub.f32 %v4126, %v5600
    %5602 = vmatmul.mubr.f32.gmra.mrb[0].mxu0 %v5601
    %v5603 = vpop.f32.mrb[0].mxu0
    %v5604 = vadd.f32 %v5507, %v5603
    %v5605 = vpop.f32.mrb[0].mxu0
    %5606 = vdwg.mxu0
    %5607 = vmatprep.subr.mxu0 0.0
    %v5608 = vand.u32 %v1567, 4294901760
    %5609 = vmatpush1.msra.mxu0 %v5608
    %5610 = vmatprep.subr.mxu0 0.0
    %v5611 = vand.u32 %v1573, 4294901760
    %5612 = vmatpush1.msra.mxu0 %v5611
    %5613 = vmatprep.subr.mxu0 0.0
    %5614 = vmatpush1.msra.mxu0 0.0
    %5615 = vmatprep.subr.mxu0 0.0
    %5616 = vmatpush1.msra.mxu0 0.0
    %5617 = vmatprep.subr.mxu0 0.0
    %5618 = vmatpush1.msra.mxu0 0.0
    %5619 = vmatprep.subr.mxu0 0.0
    %5620 = vmatpush1.msra.mxu0 0.0
    %5621 = vmatprep.subr.mxu0 0.0
    %5622 = vmatpush1.msra.mxu0 0.0
    %5623 = vmatprep.subr.mxu0 0.0
    %5624 = vmatpush1.msra.mxu0 0.0
    %5625 = vmatprep.subr.mxu0 0.0
    %5626 = vmatpush1.msra.mxu0 0.0
    %5627 = vmatprep.subr.mxu0 0.0
    %5628 = vmatpush1.msra.mxu0 0.0
    %5629 = vmatprep.subr.mxu0 0.0
    %5630 = vmatpush1.msra.mxu0 0.0
    %5631 = vmatprep.subr.mxu0 0.0
    %5632 = vmatpush1.msra.mxu0 0.0
    %5633 = vmatprep.subr.mxu0 0.0
    %5634 = vmatpush1.msra.mxu0 0.0
    %5635 = vmatprep.subr.mxu0 0.0
    %5636 = vmatpush1.msra.mxu0 0.0
    %5637 = vmatprep.subr.mxu0 0.0
    %5638 = vmatpush1.msra.mxu0 0.0
    %5639 = vmatprep.subr.mxu0 0.0
    %5640 = vmatpush1.msra.mxu0 0.0
    %5641 = vmatprep.subr.mxu0 0.0
    %5642 = vmatpush1.msra.mxu0 0.0
    %5643 = vmatprep.subr.mxu0 0.0
    %5644 = vmatpush1.msra.mxu0 0.0
    %5645 = vmatprep.subr.mxu0 0.0
    %5646 = vmatpush1.msra.mxu0 0.0
    %5647 = vmatprep.subr.mxu0 0.0
    %5648 = vmatpush1.msra.mxu0 0.0
    %5649 = vmatprep.subr.mxu0 0.0
    %5650 = vmatpush1.msra.mxu0 0.0
    %5651 = vmatprep.subr.mxu0 0.0
    %5652 = vmatpush1.msra.mxu0 0.0
    %5653 = vmatprep.subr.mxu0 0.0
    %5654 = vmatpush1.msra.mxu0 0.0
    %5655 = vmatprep.subr.mxu0 0.0
    %5656 = vmatpush1.msra.mxu0 0.0
    %5657 = vmatprep.subr.mxu0 0.0
    %5658 = vmatpush1.msra.mxu0 0.0
    %5659 = vmatprep.subr.mxu0 0.0
    %5660 = vmatpush1.msra.mxu0 0.0
    %5661 = vmatprep.subr.mxu0 0.0
    %5662 = vmatpush1.msra.mxu0 0.0
    %5663 = vmatprep.subr.mxu0 0.0
    %5664 = vmatpush1.msra.mxu0 0.0
    %5665 = vmatprep.subr.mxu0 0.0
    %5666 = vmatpush1.msra.mxu0 0.0
    %5667 = vmatprep.subr.mxu0 0.0
    %5668 = vmatpush1.msra.mxu0 0.0
    %5669 = vmatprep.subr.mxu0 0.0
    %5670 = vmatpush1.msra.mxu0 0.0
    %5671 = vmatprep.subr.mxu0 0.0
    %5672 = vmatpush1.msra.mxu0 0.0
    %5673 = vmatprep.mubr.f32.mxu0 0.0
    %v5674 = vand.u32 %v4117, 4294901760
    %v5675 = vsub.f32 %v4117, %v5674
    %v5676 = vand.u32 %v5675, 4294901760
    %5677 = vmatmul.mubr.f32.gmra.mrb[0].mxu0 %v5676
    %v5678 = vpop.f32.mrb[0].mxu0
    %v5679 = vadd.f32 %v5583, %v5678
    %v5680 = vpop.f32.mrb[0].mxu0
    %5681 = vmatprep.mubr.f32.mxu0 0.0
    %v5682 = vand.u32 %v4120, 4294901760
    %v5683 = vsub.f32 %v4120, %v5682
    %v5684 = vand.u32 %v5683, 4294901760
    %5685 = vmatmul.mubr.f32.gmra.mrb[0].mxu0 %v5684
    %v5686 = vpop.f32.mrb[0].mxu0
    %v5687 = vadd.f32 %v5590, %v5686
    %v5688 = vpop.f32.mrb[0].mxu0
    %5689 = vmatprep.mubr.f32.mxu0 0.0
    %v5690 = vand.u32 %v4123, 4294901760
    %v5691 = vsub.f32 %v4123, %v5690
    %v5692 = vand.u32 %v5691, 4294901760
    %5693 = vmatmul.mubr.f32.gmra.mrb[0].mxu0 %v5692
    %v5694 = vpop.f32.mrb[0].mxu0
    %v5695 = vadd.f32 %v5597, %v5694
    %v5696 = vpop.f32.mrb[0].mxu0
    %5697 = vmatprep.mubr.f32.mxu0 0.0
    %v5698 = vand.u32 %v4126, 4294901760
    %v5699 = vsub.f32 %v4126, %v5698
    %v5700 = vand.u32 %v5699, 4294901760
    %5701 = vmatmul.mubr.f32.gmra.mrb[0].mxu0 %v5700
    %v5702 = vpop.f32.mrb[0].mxu0
    %v5703 = vadd.f32 %v5604, %v5702
    %v5704 = vpop.f32.mrb[0].mxu0
    %5705 = vdwg.mxu0
    %5706 = vmatprep.subr.mxu0 0.0
    %v5707 = vand.u32 %v1567, 4294901760
    %v5708 = vsub.f32 %v1567, %v5707
    %v5709 = vand.u32 %v5708, 4294901760
    %5710 = vmatpush1.msra.mxu0 %v5709
    %5711 = vmatprep.subr.mxu0 0.0
    %v5712 = vand.u32 %v1573, 4294901760
    %v5713 = vsub.f32 %v1573, %v5712
    %v5714 = vand.u32 %v5713, 4294901760
    %5715 = vmatpush1.msra.mxu0 %v5714
    %5716 = vmatprep.subr.mxu0 0.0
    %5717 = vmatpush1.msra.mxu0 0.0
    %5718 = vmatprep.subr.mxu0 0.0
    %5719 = vmatpush1.msra.mxu0 0.0
    %5720 = vmatprep.subr.mxu0 0.0
    %5721 = vmatpush1.msra.mxu0 0.0
    %5722 = vmatprep.subr.mxu0 0.0
    %5723 = vmatpush1.msra.mxu0 0.0
    %5724 = vmatprep.subr.mxu0 0.0
    %5725 = vmatpush1.msra.mxu0 0.0
    %5726 = vmatprep.subr.mxu0 0.0
    %5727 = vmatpush1.msra.mxu0 0.0
    %5728 = vmatprep.subr.mxu0 0.0
    %5729 = vmatpush1.msra.mxu0 0.0
    %5730 = vmatprep.subr.mxu0 0.0
    %5731 = vmatpush1.msra.mxu0 0.0
    %5732 = vmatprep.subr.mxu0 0.0
    %5733 = vmatpush1.msra.mxu0 0.0
    %5734 = vmatprep.subr.mxu0 0.0
    %5735 = vmatpush1.msra.mxu0 0.0
    %5736 = vmatprep.subr.mxu0 0.0
    %5737 = vmatpush1.msra.mxu0 0.0
    %5738 = vmatprep.subr.mxu0 0.0
    %5739 = vmatpush1.msra.mxu0 0.0
    %5740 = vmatprep.subr.mxu0 0.0
    %5741 = vmatpush1.msra.mxu0 0.0
    %5742 = vmatprep.subr.mxu0 0.0
    %5743 = vmatpush1.msra.mxu0 0.0
    %5744 = vmatprep.subr.mxu0 0.0
    %5745 = vmatpush1.msra.mxu0 0.0
    %5746 = vmatprep.subr.mxu0 0.0
    %5747 = vmatpush1.msra.mxu0 0.0
    %5748 = vmatprep.subr.mxu0 0.0
    %5749 = vmatpush1.msra.mxu0 0.0
    %5750 = vmatprep.subr.mxu0 0.0
    %5751 = vmatpush1.msra.mxu0 0.0
    %5752 = vmatprep.subr.mxu0 0.0
    %5753 = vmatpush1.msra.mxu0 0.0
    %5754 = vmatprep.subr.mxu0 0.0
    %5755 = vmatpush1.msra.mxu0 0.0
    %5756 = vmatprep.subr.mxu0 0.0
    %5757 = vmatpush1.msra.mxu0 0.0
    %5758 = vmatprep.subr.mxu0 0.0
    %5759 = vmatpush1.msra.mxu0 0.0
    %5760 = vmatprep.subr.mxu0 0.0
    %5761 = vmatpush1.msra.mxu0 0.0
    %5762 = vmatprep.subr.mxu0 0.0
    %5763 = vmatpush1.msra.mxu0 0.0
    %5764 = vmatprep.subr.mxu0 0.0
    %5765 = vmatpush1.msra.mxu0 0.0
    %5766 = vmatprep.subr.mxu0 0.0
    %5767 = vmatpush1.msra.mxu0 0.0
    %5768 = vmatprep.subr.mxu0 0.0
    %5769 = vmatpush1.msra.mxu0 0.0
    %5770 = vmatprep.subr.mxu0 0.0
    %5771 = vmatpush1.msra.mxu0 0.0
    %5772 = vmatprep.subr.mxu0 0.0
    %5773 = vmatpush1.msra.mxu0 0.0
    %5774 = vmatprep.subr.mxu0 0.0
    %5775 = vmatpush1.msra.mxu0 0.0
    %5776 = vmatprep.mubr.f32.mxu0 0.0
    %v5777 = vand.u32 %v4117, 4294901760
    %5778 = vmatmul.mubr.f32.gmra.mrb[0].mxu0 %v5777
    %v5779 = vpop.f32.mrb[0].mxu0
    %v5780 = vadd.f32 %v5679, %v5779
    %v5781 = vpop.f32.mrb[0].mxu0
    %5782 = vmatprep.mubr.f32.mxu0 0.0
    %v5783 = vand.u32 %v4120, 4294901760
    %5784 = vmatmul.mubr.f32.gmra.mrb[0].mxu0 %v5783
    %v5785 = vpop.f32.mrb[0].mxu0
    %v5786 = vadd.f32 %v5687, %v5785
    %v5787 = vpop.f32.mrb[0].mxu0
    %5788 = vmatprep.mubr.f32.mxu0 0.0
    %v5789 = vand.u32 %v4123, 4294901760
    %5790 = vmatmul.mubr.f32.gmra.mrb[0].mxu0 %v5789
    %v5791 = vpop.f32.mrb[0].mxu0
    %v5792 = vadd.f32 %v5695, %v5791
    %v5793 = vpop.f32.mrb[0].mxu0
    %5794 = vmatprep.mubr.f32.mxu0 0.0
    %v5795 = vand.u32 %v4126, 4294901760
    %5796 = vmatmul.mubr.f32.gmra.mrb[0].mxu0 %v5795
    %v5797 = vpop.f32.mrb[0].mxu0
    %v5798 = vadd.f32 %v5703, %v5797
    %v5799 = vpop.f32.mrb[0].mxu0
    %5800 = vdwg.mxu0
    %5801 = vmatprep.subr.mxu0 0.0
    %v5802 = vand.u32 %v1567, 4294901760
    %5803 = vmatpush1.msra.mxu0 %v5802
    %5804 = vmatprep.subr.mxu0 0.0
    %v5805 = vand.u32 %v1573, 4294901760
    %5806 = vmatpush1.msra.mxu0 %v5805
    %5807 = vmatprep.subr.mxu0 0.0
    %5808 = vmatpush1.msra.mxu0 0.0
    %5809 = vmatprep.subr.mxu0 0.0
    %5810 = vmatpush1.msra.mxu0 0.0
    %5811 = vmatprep.subr.mxu0 0.0
    %5812 = vmatpush1.msra.mxu0 0.0
    %5813 = vmatprep.subr.mxu0 0.0
    %5814 = vmatpush1.msra.mxu0 0.0
    %5815 = vmatprep.subr.mxu0 0.0
    %5816 = vmatpush1.msra.mxu0 0.0
    %5817 = vmatprep.subr.mxu0 0.0
    %5818 = vmatpush1.msra.mxu0 0.0
    %5819 = vmatprep.subr.mxu0 0.0
    %5820 = vmatpush1.msra.mxu0 0.0
    %5821 = vmatprep.subr.mxu0 0.0
    %5822 = vmatpush1.msra.mxu0 0.0
    %5823 = vmatprep.subr.mxu0 0.0
    %5824 = vmatpush1.msra.mxu0 0.0
    %5825 = vmatprep.subr.mxu0 0.0
    %5826 = vmatpush1.msra.mxu0 0.0
    %5827 = vmatprep.subr.mxu0 0.0
    %5828 = vmatpush1.msra.mxu0 0.0
    %5829 = vmatprep.subr.mxu0 0.0
    %5830 = vmatpush1.msra.mxu0 0.0
    %5831 = vmatprep.subr.mxu0 0.0
    %5832 = vmatpush1.msra.mxu0 0.0
    %5833 = vmatprep.subr.mxu0 0.0
    %5834 = vmatpush1.msra.mxu0 0.0
    %5835 = vmatprep.subr.mxu0 0.0
    %5836 = vmatpush1.msra.mxu0 0.0
    %5837 = vmatprep.subr.mxu0 0.0
    %5838 = vmatpush1.msra.mxu0 0.0
    %5839 = vmatprep.subr.mxu0 0.0
    %5840 = vmatpush1.msra.mxu0 0.0
    %5841 = vmatprep.subr.mxu0 0.0
    %5842 = vmatpush1.msra.mxu0 0.0
    %5843 = vmatprep.subr.mxu0 0.0
    %5844 = vmatpush1.msra.mxu0 0.0
    %5845 = vmatprep.subr.mxu0 0.0
    %5846 = vmatpush1.msra.mxu0 0.0
    %5847 = vmatprep.subr.mxu0 0.0
    %5848 = vmatpush1.msra.mxu0 0.0
    %5849 = vmatprep.subr.mxu0 0.0
    %5850 = vmatpush1.msra.mxu0 0.0
    %5851 = vmatprep.subr.mxu0 0.0
    %5852 = vmatpush1.msra.mxu0 0.0
    %5853 = vmatprep.subr.mxu0 0.0
    %5854 = vmatpush1.msra.mxu0 0.0
    %5855 = vmatprep.subr.mxu0 0.0
    %5856 = vmatpush1.msra.mxu0 0.0
    %5857 = vmatprep.subr.mxu0 0.0
    %5858 = vmatpush1.msra.mxu0 0.0
    %5859 = vmatprep.subr.mxu0 0.0
    %5860 = vmatpush1.msra.mxu0 0.0
    %5861 = vmatprep.subr.mxu0 0.0
    %5862 = vmatpush1.msra.mxu0 0.0
    %5863 = vmatprep.subr.mxu0 0.0
    %5864 = vmatpush1.msra.mxu0 0.0
    %5865 = vmatprep.subr.mxu0 0.0
    %5866 = vmatpush1.msra.mxu0 0.0
    %5867 = vmatprep.mubr.f32.mxu0 0.0
    %v5868 = vand.u32 %v4117, 4294901760
    %5869 = vmatmul.mubr.f32.gmra.mrb[0].mxu0 %v5868
    %v5870 = vpop.f32.mrb[0].mxu0
    %v5871 = vadd.f32 %v5780, %v5870
    %v5872 = vpop.f32.mrb[0].mxu0
    %5873 = vmatprep.mubr.f32.mxu0 0.0
    %v5874 = vand.u32 %v4120, 4294901760
    %5875 = vmatmul.mubr.f32.gmra.mrb[0].mxu0 %v5874
    %v5876 = vpop.f32.mrb[0].mxu0
    %v5877 = vadd.f32 %v5786, %v5876
    %v5878 = vpop.f32.mrb[0].mxu0
    %5879 = vmatprep.mubr.f32.mxu0 0.0
    %v5880 = vand.u32 %v4123, 4294901760
    %5881 = vmatmul.mubr.f32.gmra.mrb[0].mxu0 %v5880
    %v5882 = vpop.f32.mrb[0].mxu0
    %v5883 = vadd.f32 %v5792, %v5882
    %v5884 = vpop.f32.mrb[0].mxu0
    %5885 = vmatprep.mubr.f32.mxu0 0.0
    %v5886 = vand.u32 %v4126, 4294901760
    %5887 = vmatmul.mubr.f32.gmra.mrb[0].mxu0 %v5886
    %v5888 = vpop.f32.mrb[0].mxu0
    %v5889 = vadd.f32 %v5798, %v5888
    %v5890 = vpop.f32.mrb[0].mxu0
    %5891 = vdwg.mxu0
    %5892 = vmatprep.subr.mxu0 0.0
    %v5893 = vand.u32 %v2075, 4294901760
    %5894 = vmatpush1.msra.mxu0 %v5893
    %5895 = vmatprep.subr.mxu0 0.0
    %v5896 = vand.u32 %v2081, 4294901760
    %5897 = vmatpush1.msra.mxu0 %v5896
    %5898 = vmatprep.subr.mxu0 0.0
    %5899 = vmatpush1.msra.mxu0 0.0
    %5900 = vmatprep.subr.mxu0 0.0
    %5901 = vmatpush1.msra.mxu0 0.0
    %5902 = vmatprep.subr.mxu0 0.0
    %5903 = vmatpush1.msra.mxu0 0.0
    %5904 = vmatprep.subr.mxu0 0.0
    %5905 = vmatpush1.msra.mxu0 0.0
    %5906 = vmatprep.subr.mxu0 0.0
    %5907 = vmatpush1.msra.mxu0 0.0
    %5908 = vmatprep.subr.mxu0 0.0
    %5909 = vmatpush1.msra.mxu0 0.0
    %5910 = vmatprep.subr.mxu0 0.0
    %5911 = vmatpush1.msra.mxu0 0.0
    %5912 = vmatprep.subr.mxu0 0.0
    %5913 = vmatpush1.msra.mxu0 0.0
    %5914 = vmatprep.subr.mxu0 0.0
    %5915 = vmatpush1.msra.mxu0 0.0
    %5916 = vmatprep.subr.mxu0 0.0
    %5917 = vmatpush1.msra.mxu0 0.0
    %5918 = vmatprep.subr.mxu0 0.0
    %5919 = vmatpush1.msra.mxu0 0.0
    %5920 = vmatprep.subr.mxu0 0.0
    %5921 = vmatpush1.msra.mxu0 0.0
    %5922 = vmatprep.subr.mxu0 0.0
    %5923 = vmatpush1.msra.mxu0 0.0
    %5924 = vmatprep.subr.mxu0 0.0
    %5925 = vmatpush1.msra.mxu0 0.0
    %5926 = vmatprep.subr.mxu0 0.0
    %5927 = vmatpush1.msra.mxu0 0.0
    %5928 = vmatprep.subr.mxu0 0.0
    %5929 = vmatpush1.msra.mxu0 0.0
    %5930 = vmatprep.subr.mxu0 0.0
    %5931 = vmatpush1.msra.mxu0 0.0
    %5932 = vmatprep.subr.mxu0 0.0
    %5933 = vmatpush1.msra.mxu0 0.0
    %5934 = vmatprep.subr.mxu0 0.0
    %5935 = vmatpush1.msra.mxu0 0.0
    %5936 = vmatprep.subr.mxu0 0.0
    %5937 = vmatpush1.msra.mxu0 0.0
    %5938 = vmatprep.subr.mxu0 0.0
    %5939 = vmatpush1.msra.mxu0 0.0
    %5940 = vmatprep.subr.mxu0 0.0
    %5941 = vmatpush1.msra.mxu0 0.0
    %5942 = vmatprep.subr.mxu0 0.0
    %5943 = vmatpush1.msra.mxu0 0.0
    %5944 = vmatprep.subr.mxu0 0.0
    %5945 = vmatpush1.msra.mxu0 0.0
    %5946 = vmatprep.subr.mxu0 0.0
    %5947 = vmatpush1.msra.mxu0 0.0
    %5948 = vmatprep.subr.mxu0 0.0
    %5949 = vmatpush1.msra.mxu0 0.0
    %5950 = vmatprep.subr.mxu0 0.0
    %5951 = vmatpush1.msra.mxu0 0.0
    %5952 = vmatprep.subr.mxu0 0.0
    %5953 = vmatpush1.msra.mxu0 0.0
    %5954 = vmatprep.subr.mxu0 0.0
    %5955 = vmatpush1.msra.mxu0 0.0
    %5956 = vmatprep.subr.mxu0 0.0
    %5957 = vmatpush1.msra.mxu0 0.0
    %5958 = vmatprep.mubr.f32.mxu0 0.0
    %v5959 = vand.u32 %v4117, 4294901760
    %v5960 = vsub.f32 %v4117, %v5959
    %v5961 = vand.u32 %v5960, 4294901760
    %v5962 = vsub.f32 %v5960, %v5961
    %v5963 = vand.u32 %v5962, 4294901760
    %5964 = vmatmul.mubr.f32.gmra.mrb[0].mxu0 %v5963
    %v5965 = vpop.f32.mrb[0].mxu0
    %v5966 = vadd.f32 0.0, %v5965
    %v5967 = vpop.f32.mrb[0].mxu0
    %5968 = vmatprep.mubr.f32.mxu0 0.0
    %v5969 = vand.u32 %v4120, 4294901760
    %v5970 = vsub.f32 %v4120, %v5969
    %v5971 = vand.u32 %v5970, 4294901760
    %v5972 = vsub.f32 %v5970, %v5971
    %v5973 = vand.u32 %v5972, 4294901760
    %5974 = vmatmul.mubr.f32.gmra.mrb[0].mxu0 %v5973
    %v5975 = vpop.f32.mrb[0].mxu0
    %v5976 = vadd.f32 0.0, %v5975
    %v5977 = vpop.f32.mrb[0].mxu0
    %5978 = vmatprep.mubr.f32.mxu0 0.0
    %v5979 = vand.u32 %v4123, 4294901760
    %v5980 = vsub.f32 %v4123, %v5979
    %v5981 = vand.u32 %v5980, 4294901760
    %v5982 = vsub.f32 %v5980, %v5981
    %v5983 = vand.u32 %v5982, 4294901760
    %5984 = vmatmul.mubr.f32.gmra.mrb[0].mxu0 %v5983
    %v5985 = vpop.f32.mrb[0].mxu0
    %v5986 = vadd.f32 0.0, %v5985
    %v5987 = vpop.f32.mrb[0].mxu0
    %5988 = vmatprep.mubr.f32.mxu0 0.0
    %v5989 = vand.u32 %v4126, 4294901760
    %v5990 = vsub.f32 %v4126, %v5989
    %v5991 = vand.u32 %v5990, 4294901760
    %v5992 = vsub.f32 %v5990, %v5991
    %v5993 = vand.u32 %v5992, 4294901760
    %5994 = vmatmul.mubr.f32.gmra.mrb[0].mxu0 %v5993
    %v5995 = vpop.f32.mrb[0].mxu0
    %v5996 = vadd.f32 0.0, %v5995
    %v5997 = vpop.f32.mrb[0].mxu0
    %5998 = vdwg.mxu0
    %5999 = vmatprep.subr.mxu0 0.0
    %v6000 = vand.u32 %v2075, 4294901760
    %v6001 = vsub.f32 %v2075, %v6000
    %v6002 = vand.u32 %v6001, 4294901760
    %v6003 = vsub.f32 %v6001, %v6002
    %v6004 = vand.u32 %v6003, 4294901760
    %6005 = vmatpush1.msra.mxu0 %v6004
    %6006 = vmatprep.subr.mxu0 0.0
    %v6007 = vand.u32 %v2081, 4294901760
    %v6008 = vsub.f32 %v2081, %v6007
    %v6009 = vand.u32 %v6008, 4294901760
    %v6010 = vsub.f32 %v6008, %v6009
    %v6011 = vand.u32 %v6010, 4294901760
    %6012 = vmatpush1.msra.mxu0 %v6011
    %6013 = vmatprep.subr.mxu0 0.0
    %6014 = vmatpush1.msra.mxu0 0.0
    %6015 = vmatprep.subr.mxu0 0.0
    %6016 = vmatpush1.msra.mxu0 0.0
    %6017 = vmatprep.subr.mxu0 0.0
    %6018 = vmatpush1.msra.mxu0 0.0
    %6019 = vmatprep.subr.mxu0 0.0
    %6020 = vmatpush1.msra.mxu0 0.0
    %6021 = vmatprep.subr.mxu0 0.0
    %6022 = vmatpush1.msra.mxu0 0.0
    %6023 = vmatprep.subr.mxu0 0.0
    %6024 = vmatpush1.msra.mxu0 0.0
    %6025 = vmatprep.subr.mxu0 0.0
    %6026 = vmatpush1.msra.mxu0 0.0
    %6027 = vmatprep.subr.mxu0 0.0
    %6028 = vmatpush1.msra.mxu0 0.0
    %6029 = vmatprep.subr.mxu0 0.0
    %6030 = vmatpush1.msra.mxu0 0.0
    %6031 = vmatprep.subr.mxu0 0.0
    %6032 = vmatpush1.msra.mxu0 0.0
    %6033 = vmatprep.subr.mxu0 0.0
    %6034 = vmatpush1.msra.mxu0 0.0
    %6035 = vmatprep.subr.mxu0 0.0
    %6036 = vmatpush1.msra.mxu0 0.0
    %6037 = vmatprep.subr.mxu0 0.0
    %6038 = vmatpush1.msra.mxu0 0.0
    %6039 = vmatprep.subr.mxu0 0.0
    %6040 = vmatpush1.msra.mxu0 0.0
    %6041 = vmatprep.subr.mxu0 0.0
    %6042 = vmatpush1.msra.mxu0 0.0
    %6043 = vmatprep.subr.mxu0 0.0
    %6044 = vmatpush1.msra.mxu0 0.0
    %6045 = vmatprep.subr.mxu0 0.0
    %6046 = vmatpush1.msra.mxu0 0.0
    %6047 = vmatprep.subr.mxu0 0.0
    %6048 = vmatpush1.msra.mxu0 0.0
    %6049 = vmatprep.subr.mxu0 0.0
    %6050 = vmatpush1.msra.mxu0 0.0
    %6051 = vmatprep.subr.mxu0 0.0
    %6052 = vmatpush1.msra.mxu0 0.0
    %6053 = vmatprep.subr.mxu0 0.0
    %6054 = vmatpush1.msra.mxu0 0.0
    %6055 = vmatprep.subr.mxu0 0.0
    %6056 = vmatpush1.msra.mxu0 0.0
    %6057 = vmatprep.subr.mxu0 0.0
    %6058 = vmatpush1.msra.mxu0 0.0
    %6059 = vmatprep.subr.mxu0 0.0
    %6060 = vmatpush1.msra.mxu0 0.0
    %6061 = vmatprep.subr.mxu0 0.0
    %6062 = vmatpush1.msra.mxu0 0.0
    %6063 = vmatprep.subr.mxu0 0.0
    %6064 = vmatpush1.msra.mxu0 0.0
    %6065 = vmatprep.subr.mxu0 0.0
    %6066 = vmatpush1.msra.mxu0 0.0
    %6067 = vmatprep.subr.mxu0 0.0
    %6068 = vmatpush1.msra.mxu0 0.0
    %6069 = vmatprep.subr.mxu0 0.0
    %6070 = vmatpush1.msra.mxu0 0.0
    %6071 = vmatprep.subr.mxu0 0.0
    %6072 = vmatpush1.msra.mxu0 0.0
    %6073 = vmatprep.mubr.f32.mxu0 0.0
    %v6074 = vand.u32 %v4117, 4294901760
    %6075 = vmatmul.mubr.f32.gmra.mrb[0].mxu0 %v6074
    %v6076 = vpop.f32.mrb[0].mxu0
    %v6077 = vadd.f32 %v5966, %v6076
    %v6078 = vpop.f32.mrb[0].mxu0
    %6079 = vmatprep.mubr.f32.mxu0 0.0
    %v6080 = vand.u32 %v4120, 4294901760
    %6081 = vmatmul.mubr.f32.gmra.mrb[0].mxu0 %v6080
    %v6082 = vpop.f32.mrb[0].mxu0
    %v6083 = vadd.f32 %v5976, %v6082
    %v6084 = vpop.f32.mrb[0].mxu0
    %6085 = vmatprep.mubr.f32.mxu0 0.0
    %v6086 = vand.u32 %v4123, 4294901760
    %6087 = vmatmul.mubr.f32.gmra.mrb[0].mxu0 %v6086
    %v6088 = vpop.f32.mrb[0].mxu0
    %v6089 = vadd.f32 %v5986, %v6088
    %v6090 = vpop.f32.mrb[0].mxu0
    %6091 = vmatprep.mubr.f32.mxu0 0.0
    %v6092 = vand.u32 %v4126, 4294901760
    %6093 = vmatmul.mubr.f32.gmra.mrb[0].mxu0 %v6092
    %v6094 = vpop.f32.mrb[0].mxu0
    %v6095 = vadd.f32 %v5996, %v6094
    %v6096 = vpop.f32.mrb[0].mxu0
    %6097 = vdwg.mxu0
    %6098 = vmatprep.subr.mxu0 0.0
    %v6099 = vand.u32 %v2075, 4294901760
    %v6100 = vsub.f32 %v2075, %v6099
    %6101 = vmatpush1.msra.mxu0 %v6100
    %6102 = vmatprep.subr.mxu0 0.0
    %v6103 = vand.u32 %v2081, 4294901760
    %v6104 = vsub.f32 %v2081, %v6103
    %6105 = vmatpush1.msra.mxu0 %v6104
    %6106 = vmatprep.subr.mxu0 0.0
    %6107 = vmatpush1.msra.mxu0 0.0
    %6108 = vmatprep.subr.mxu0 0.0
    %6109 = vmatpush1.msra.mxu0 0.0
    %6110 = vmatprep.subr.mxu0 0.0
    %6111 = vmatpush1.msra.mxu0 0.0
    %6112 = vmatprep.subr.mxu0 0.0
    %6113 = vmatpush1.msra.mxu0 0.0
    %6114 = vmatprep.subr.mxu0 0.0
    %6115 = vmatpush1.msra.mxu0 0.0
    %6116 = vmatprep.subr.mxu0 0.0
    %6117 = vmatpush1.msra.mxu0 0.0
    %6118 = vmatprep.subr.mxu0 0.0
    %6119 = vmatpush1.msra.mxu0 0.0
    %6120 = vmatprep.subr.mxu0 0.0
    %6121 = vmatpush1.msra.mxu0 0.0
    %6122 = vmatprep.subr.mxu0 0.0
    %6123 = vmatpush1.msra.mxu0 0.0
    %6124 = vmatprep.subr.mxu0 0.0
    %6125 = vmatpush1.msra.mxu0 0.0
    %6126 = vmatprep.subr.mxu0 0.0
    %6127 = vmatpush1.msra.mxu0 0.0
    %6128 = vmatprep.subr.mxu0 0.0
    %6129 = vmatpush1.msra.mxu0 0.0
    %6130 = vmatprep.subr.mxu0 0.0
    %6131 = vmatpush1.msra.mxu0 0.0
    %6132 = vmatprep.subr.mxu0 0.0
    %6133 = vmatpush1.msra.mxu0 0.0
    %6134 = vmatprep.subr.mxu0 0.0
    %6135 = vmatpush1.msra.mxu0 0.0
    %6136 = vmatprep.subr.mxu0 0.0
    %6137 = vmatpush1.msra.mxu0 0.0
    %6138 = vmatprep.subr.mxu0 0.0
    %6139 = vmatpush1.msra.mxu0 0.0
    %6140 = vmatprep.subr.mxu0 0.0
    %6141 = vmatpush1.msra.mxu0 0.0
    %6142 = vmatprep.subr.mxu0 0.0
    %6143 = vmatpush1.msra.mxu0 0.0
    %6144 = vmatprep.subr.mxu0 0.0
    %6145 = vmatpush1.msra.mxu0 0.0
    %6146 = vmatprep.subr.mxu0 0.0
    %6147 = vmatpush1.msra.mxu0 0.0
    %6148 = vmatprep.subr.mxu0 0.0
    %6149 = vmatpush1.msra.mxu0 0.0
    %6150 = vmatprep.subr.mxu0 0.0
    %6151 = vmatpush1.msra.mxu0 0.0
    %6152 = vmatprep.subr.mxu0 0.0
    %6153 = vmatpush1.msra.mxu0 0.0
    %6154 = vmatprep.subr.mxu0 0.0
    %6155 = vmatpush1.msra.mxu0 0.0
    %6156 = vmatprep.subr.mxu0 0.0
    %6157 = vmatpush1.msra.mxu0 0.0
    %6158 = vmatprep.subr.mxu0 0.0
    %6159 = vmatpush1.msra.mxu0 0.0
    %6160 = vmatprep.subr.mxu0 0.0
    %6161 = vmatpush1.msra.mxu0 0.0
    %6162 = vmatprep.subr.mxu0 0.0
    %6163 = vmatpush1.msra.mxu0 0.0
    %6164 = vmatprep.subr.mxu0 0.0
    %6165 = vmatpush1.msra.mxu0 0.0
    %6166 = vmatprep.mubr.f32.mxu0 0.0
    %v6167 = vand.u32 %v4117, 4294901760
    %v6168 = vsub.f32 %v4117, %v6167
    %6169 = vmatmul.mubr.f32.gmra.mrb[0].mxu0 %v6168
    %v6170 = vpop.f32.mrb[0].mxu0
    %v6171 = vadd.f32 %v6077, %v6170
    %v6172 = vpop.f32.mrb[0].mxu0
    %6173 = vmatprep.mubr.f32.mxu0 0.0
    %v6174 = vand.u32 %v4120, 4294901760
    %v6175 = vsub.f32 %v4120, %v6174
    %6176 = vmatmul.mubr.f32.gmra.mrb[0].mxu0 %v6175
    %v6177 = vpop.f32.mrb[0].mxu0
    %v6178 = vadd.f32 %v6083, %v6177
    %v6179 = vpop.f32.mrb[0].mxu0
    %6180 = vmatprep.mubr.f32.mxu0 0.0
    %v6181 = vand.u32 %v4123, 4294901760
    %v6182 = vsub.f32 %v4123, %v6181
    %6183 = vmatmul.mubr.f32.gmra.mrb[0].mxu0 %v6182
    %v6184 = vpop.f32.mrb[0].mxu0
    %v6185 = vadd.f32 %v6089, %v6184
    %v6186 = vpop.f32.mrb[0].mxu0
    %6187 = vmatprep.mubr.f32.mxu0 0.0
    %v6188 = vand.u32 %v4126, 4294901760
    %v6189 = vsub.f32 %v4126, %v6188
    %6190 = vmatmul.mubr.f32.gmra.mrb[0].mxu0 %v6189
    %v6191 = vpop.f32.mrb[0].mxu0
    %v6192 = vadd.f32 %v6095, %v6191
    %v6193 = vpop.f32.mrb[0].mxu0
    %6194 = vdwg.mxu0
    %6195 = vmatprep.subr.mxu0 0.0
    %v6196 = vand.u32 %v2075, 4294901760
    %6197 = vmatpush1.msra.mxu0 %v6196
    %6198 = vmatprep.subr.mxu0 0.0
    %v6199 = vand.u32 %v2081, 4294901760
    %6200 = vmatpush1.msra.mxu0 %v6199
    %6201 = vmatprep.subr.mxu0 0.0
    %6202 = vmatpush1.msra.mxu0 0.0
    %6203 = vmatprep.subr.mxu0 0.0
    %6204 = vmatpush1.msra.mxu0 0.0
    %6205 = vmatprep.subr.mxu0 0.0
    %6206 = vmatpush1.msra.mxu0 0.0
    %6207 = vmatprep.subr.mxu0 0.0
    %6208 = vmatpush1.msra.mxu0 0.0
    %6209 = vmatprep.subr.mxu0 0.0
    %6210 = vmatpush1.msra.mxu0 0.0
    %6211 = vmatprep.subr.mxu0 0.0
    %6212 = vmatpush1.msra.mxu0 0.0
    %6213 = vmatprep.subr.mxu0 0.0
    %6214 = vmatpush1.msra.mxu0 0.0
    %6215 = vmatprep.subr.mxu0 0.0
    %6216 = vmatpush1.msra.mxu0 0.0
    %6217 = vmatprep.subr.mxu0 0.0
    %6218 = vmatpush1.msra.mxu0 0.0
    %6219 = vmatprep.subr.mxu0 0.0
    %6220 = vmatpush1.msra.mxu0 0.0
    %6221 = vmatprep.subr.mxu0 0.0
    %6222 = vmatpush1.msra.mxu0 0.0
    %6223 = vmatprep.subr.mxu0 0.0
    %6224 = vmatpush1.msra.mxu0 0.0
    %6225 = vmatprep.subr.mxu0 0.0
    %6226 = vmatpush1.msra.mxu0 0.0
    %6227 = vmatprep.subr.mxu0 0.0
    %6228 = vmatpush1.msra.mxu0 0.0
    %6229 = vmatprep.subr.mxu0 0.0
    %6230 = vmatpush1.msra.mxu0 0.0
    %6231 = vmatprep.subr.mxu0 0.0
    %6232 = vmatpush1.msra.mxu0 0.0
    %6233 = vmatprep.subr.mxu0 0.0
    %6234 = vmatpush1.msra.mxu0 0.0
    %6235 = vmatprep.subr.mxu0 0.0
    %6236 = vmatpush1.msra.mxu0 0.0
    %6237 = vmatprep.subr.mxu0 0.0
    %6238 = vmatpush1.msra.mxu0 0.0
    %6239 = vmatprep.subr.mxu0 0.0
    %6240 = vmatpush1.msra.mxu0 0.0
    %6241 = vmatprep.subr.mxu0 0.0
    %6242 = vmatpush1.msra.mxu0 0.0
    %6243 = vmatprep.subr.mxu0 0.0
    %6244 = vmatpush1.msra.mxu0 0.0
    %6245 = vmatprep.subr.mxu0 0.0
    %6246 = vmatpush1.msra.mxu0 0.0
    %6247 = vmatprep.subr.mxu0 0.0
    %6248 = vmatpush1.msra.mxu0 0.0
    %6249 = vmatprep.subr.mxu0 0.0
    %6250 = vmatpush1.msra.mxu0 0.0
    %6251 = vmatprep.subr.mxu0 0.0
    %6252 = vmatpush1.msra.mxu0 0.0
    %6253 = vmatprep.subr.mxu0 0.0
    %6254 = vmatpush1.msra.mxu0 0.0
    %6255 = vmatprep.subr.mxu0 0.0
    %6256 = vmatpush1.msra.mxu0 0.0
    %6257 = vmatprep.subr.mxu0 0.0
    %6258 = vmatpush1.msra.mxu0 0.0
    %6259 = vmatprep.subr.mxu0 0.0
    %6260 = vmatpush1.msra.mxu0 0.0
    %6261 = vmatprep.mubr.f32.mxu0 0.0
    %v6262 = vand.u32 %v4117, 4294901760
    %v6263 = vsub.f32 %v4117, %v6262
    %v6264 = vand.u32 %v6263, 4294901760
    %6265 = vmatmul.mubr.f32.gmra.mrb[0].mxu0 %v6264
    %v6266 = vpop.f32.mrb[0].mxu0
    %v6267 = vadd.f32 %v6171, %v6266
    %v6268 = vpop.f32.mrb[0].mxu0
    %6269 = vmatprep.mubr.f32.mxu0 0.0
    %v6270 = vand.u32 %v4120, 4294901760
    %v6271 = vsub.f32 %v4120, %v6270
    %v6272 = vand.u32 %v6271, 4294901760
    %6273 = vmatmul.mubr.f32.gmra.mrb[0].mxu0 %v6272
    %v6274 = vpop.f32.mrb[0].mxu0
    %v6275 = vadd.f32 %v6178, %v6274
    %v6276 = vpop.f32.mrb[0].mxu0
    %6277 = vmatprep.mubr.f32.mxu0 0.0
    %v6278 = vand.u32 %v4123, 4294901760
    %v6279 = vsub.f32 %v4123, %v6278
    %v6280 = vand.u32 %v6279, 4294901760
    %6281 = vmatmul.mubr.f32.gmra.mrb[0].mxu0 %v6280
    %v6282 = vpop.f32.mrb[0].mxu0
    %v6283 = vadd.f32 %v6185, %v6282
    %v6284 = vpop.f32.mrb[0].mxu0
    %6285 = vmatprep.mubr.f32.mxu0 0.0
    %v6286 = vand.u32 %v4126, 4294901760
    %v6287 = vsub.f32 %v4126, %v6286
    %v6288 = vand.u32 %v6287, 4294901760
    %6289 = vmatmul.mubr.f32.gmra.mrb[0].mxu0 %v6288
    %v6290 = vpop.f32.mrb[0].mxu0
    %v6291 = vadd.f32 %v6192, %v6290
    %v6292 = vpop.f32.mrb[0].mxu0
    %6293 = vdwg.mxu0
    %6294 = vmatprep.subr.mxu0 0.0
    %v6295 = vand.u32 %v2075, 4294901760
    %v6296 = vsub.f32 %v2075, %v6295
    %v6297 = vand.u32 %v6296, 4294901760
    %6298 = vmatpush1.msra.mxu0 %v6297
    %6299 = vmatprep.subr.mxu0 0.0
    %v6300 = vand.u32 %v2081, 4294901760
    %v6301 = vsub.f32 %v2081, %v6300
    %v6302 = vand.u32 %v6301, 4294901760
    %6303 = vmatpush1.msra.mxu0 %v6302
    %6304 = vmatprep.subr.mxu0 0.0
    %6305 = vmatpush1.msra.mxu0 0.0
    %6306 = vmatprep.subr.mxu0 0.0
    %6307 = vmatpush1.msra.mxu0 0.0
    %6308 = vmatprep.subr.mxu0 0.0
    %6309 = vmatpush1.msra.mxu0 0.0
    %6310 = vmatprep.subr.mxu0 0.0
    %6311 = vmatpush1.msra.mxu0 0.0
    %6312 = vmatprep.subr.mxu0 0.0
    %6313 = vmatpush1.msra.mxu0 0.0
    %6314 = vmatprep.subr.mxu0 0.0
    %6315 = vmatpush1.msra.mxu0 0.0
    %6316 = vmatprep.subr.mxu0 0.0
    %6317 = vmatpush1.msra.mxu0 0.0
    %6318 = vmatprep.subr.mxu0 0.0
    %6319 = vmatpush1.msra.mxu0 0.0
    %6320 = vmatprep.subr.mxu0 0.0
    %6321 = vmatpush1.msra.mxu0 0.0
    %6322 = vmatprep.subr.mxu0 0.0
    %6323 = vmatpush1.msra.mxu0 0.0
    %6324 = vmatprep.subr.mxu0 0.0
    %6325 = vmatpush1.msra.mxu0 0.0
    %6326 = vmatprep.subr.mxu0 0.0
    %6327 = vmatpush1.msra.mxu0 0.0
    %6328 = vmatprep.subr.mxu0 0.0
    %6329 = vmatpush1.msra.mxu0 0.0
    %6330 = vmatprep.subr.mxu0 0.0
    %6331 = vmatpush1.msra.mxu0 0.0
    %6332 = vmatprep.subr.mxu0 0.0
    %6333 = vmatpush1.msra.mxu0 0.0
    %6334 = vmatprep.subr.mxu0 0.0
    %6335 = vmatpush1.msra.mxu0 0.0
    %6336 = vmatprep.subr.mxu0 0.0
    %6337 = vmatpush1.msra.mxu0 0.0
    %6338 = vmatprep.subr.mxu0 0.0
    %6339 = vmatpush1.msra.mxu0 0.0
    %6340 = vmatprep.subr.mxu0 0.0
    %6341 = vmatpush1.msra.mxu0 0.0
    %6342 = vmatprep.subr.mxu0 0.0
    %6343 = vmatpush1.msra.mxu0 0.0
    %6344 = vmatprep.subr.mxu0 0.0
    %6345 = vmatpush1.msra.mxu0 0.0
    %6346 = vmatprep.subr.mxu0 0.0
    %6347 = vmatpush1.msra.mxu0 0.0
    %6348 = vmatprep.subr.mxu0 0.0
    %6349 = vmatpush1.msra.mxu0 0.0
    %6350 = vmatprep.subr.mxu0 0.0
    %6351 = vmatpush1.msra.mxu0 0.0
    %6352 = vmatprep.subr.mxu0 0.0
    %6353 = vmatpush1.msra.mxu0 0.0
    %6354 = vmatprep.subr.mxu0 0.0
    %6355 = vmatpush1.msra.mxu0 0.0
    %6356 = vmatprep.subr.mxu0 0.0
    %6357 = vmatpush1.msra.mxu0 0.0
    %6358 = vmatprep.subr.mxu0 0.0
    %6359 = vmatpush1.msra.mxu0 0.0
    %6360 = vmatprep.subr.mxu0 0.0
    %6361 = vmatpush1.msra.mxu0 0.0
    %6362 = vmatprep.subr.mxu0 0.0
    %6363 = vmatpush1.msra.mxu0 0.0
    %6364 = vmatprep.mubr.f32.mxu0 0.0
    %v6365 = vand.u32 %v4117, 4294901760
    %6366 = vmatmul.mubr.f32.gmra.mrb[0].mxu0 %v6365
    %v6367 = vpop.f32.mrb[0].mxu0
    %v6368 = vadd.f32 %v6267, %v6367
    %v6369 = vpop.f32.mrb[0].mxu0
    %6370 = vmatprep.mubr.f32.mxu0 0.0
    %v6371 = vand.u32 %v4120, 4294901760
    %6372 = vmatmul.mubr.f32.gmra.mrb[0].mxu0 %v6371
    %v6373 = vpop.f32.mrb[0].mxu0
    %v6374 = vadd.f32 %v6275, %v6373
    %v6375 = vpop.f32.mrb[0].mxu0
    %6376 = vmatprep.mubr.f32.mxu0 0.0
    %v6377 = vand.u32 %v4123, 4294901760
    %6378 = vmatmul.mubr.f32.gmra.mrb[0].mxu0 %v6377
    %v6379 = vpop.f32.mrb[0].mxu0
    %v6380 = vadd.f32 %v6283, %v6379
    %v6381 = vpop.f32.mrb[0].mxu0
    %6382 = vmatprep.mubr.f32.mxu0 0.0
    %v6383 = vand.u32 %v4126, 4294901760
    %6384 = vmatmul.mubr.f32.gmra.mrb[0].mxu0 %v6383
    %v6385 = vpop.f32.mrb[0].mxu0
    %v6386 = vadd.f32 %v6291, %v6385
    %v6387 = vpop.f32.mrb[0].mxu0
    %6388 = vdwg.mxu0
    %6389 = vmatprep.subr.mxu0 0.0
    %v6390 = vand.u32 %v2075, 4294901760
    %6391 = vmatpush1.msra.mxu0 %v6390
    %6392 = vmatprep.subr.mxu0 0.0
    %v6393 = vand.u32 %v2081, 4294901760
    %6394 = vmatpush1.msra.mxu0 %v6393
    %6395 = vmatprep.subr.mxu0 0.0
    %6396 = vmatpush1.msra.mxu0 0.0
    %6397 = vmatprep.subr.mxu0 0.0
    %6398 = vmatpush1.msra.mxu0 0.0
    %6399 = vmatprep.subr.mxu0 0.0
    %6400 = vmatpush1.msra.mxu0 0.0
    %6401 = vmatprep.subr.mxu0 0.0
    %6402 = vmatpush1.msra.mxu0 0.0
    %6403 = vmatprep.subr.mxu0 0.0
    %6404 = vmatpush1.msra.mxu0 0.0
    %6405 = vmatprep.subr.mxu0 0.0
    %6406 = vmatpush1.msra.mxu0 0.0
    %6407 = vmatprep.subr.mxu0 0.0
    %6408 = vmatpush1.msra.mxu0 0.0
    %6409 = vmatprep.subr.mxu0 0.0
    %6410 = vmatpush1.msra.mxu0 0.0
    %6411 = vmatprep.subr.mxu0 0.0
    %6412 = vmatpush1.msra.mxu0 0.0
    %6413 = vmatprep.subr.mxu0 0.0
    %6414 = vmatpush1.msra.mxu0 0.0
    %6415 = vmatprep.subr.mxu0 0.0
    %6416 = vmatpush1.msra.mxu0 0.0
    %6417 = vmatprep.subr.mxu0 0.0
    %6418 = vmatpush1.msra.mxu0 0.0
    %6419 = vmatprep.subr.mxu0 0.0
    %6420 = vmatpush1.msra.mxu0 0.0
    %6421 = vmatprep.subr.mxu0 0.0
    %6422 = vmatpush1.msra.mxu0 0.0
    %6423 = vmatprep.subr.mxu0 0.0
    %6424 = vmatpush1.msra.mxu0 0.0
    %6425 = vmatprep.subr.mxu0 0.0
    %6426 = vmatpush1.msra.mxu0 0.0
    %6427 = vmatprep.subr.mxu0 0.0
    %6428 = vmatpush1.msra.mxu0 0.0
    %6429 = vmatprep.subr.mxu0 0.0
    %6430 = vmatpush1.msra.mxu0 0.0
    %6431 = vmatprep.subr.mxu0 0.0
    %6432 = vmatpush1.msra.mxu0 0.0
    %6433 = vmatprep.subr.mxu0 0.0
    %6434 = vmatpush1.msra.mxu0 0.0
    %6435 = vmatprep.subr.mxu0 0.0
    %6436 = vmatpush1.msra.mxu0 0.0
    %6437 = vmatprep.subr.mxu0 0.0
    %6438 = vmatpush1.msra.mxu0 0.0
    %6439 = vmatprep.subr.mxu0 0.0
    %6440 = vmatpush1.msra.mxu0 0.0
    %6441 = vmatprep.subr.mxu0 0.0
    %6442 = vmatpush1.msra.mxu0 0.0
    %6443 = vmatprep.subr.mxu0 0.0
    %6444 = vmatpush1.msra.mxu0 0.0
    %6445 = vmatprep.subr.mxu0 0.0
    %6446 = vmatpush1.msra.mxu0 0.0
    %6447 = vmatprep.subr.mxu0 0.0
    %6448 = vmatpush1.msra.mxu0 0.0
    %6449 = vmatprep.subr.mxu0 0.0
    %6450 = vmatpush1.msra.mxu0 0.0
    %6451 = vmatprep.subr.mxu0 0.0
    %6452 = vmatpush1.msra.mxu0 0.0
    %6453 = vmatprep.subr.mxu0 0.0
    %6454 = vmatpush1.msra.mxu0 0.0
    %6455 = vmatprep.mubr.f32.mxu0 0.0
    %v6456 = vand.u32 %v4117, 4294901760
    %6457 = vmatmul.mubr.f32.gmra.mrb[0].mxu0 %v6456
    %v6458 = vpop.f32.mrb[0].mxu0
    %v6459 = vadd.f32 %v6368, %v6458
    %v6460 = vpop.f32.mrb[0].mxu0
    %6461 = vmatprep.mubr.f32.mxu0 0.0
    %v6462 = vand.u32 %v4120, 4294901760
    %6463 = vmatmul.mubr.f32.gmra.mrb[0].mxu0 %v6462
    %v6464 = vpop.f32.mrb[0].mxu0
    %v6465 = vadd.f32 %v6374, %v6464
    %v6466 = vpop.f32.mrb[0].mxu0
    %6467 = vmatprep.mubr.f32.mxu0 0.0
    %v6468 = vand.u32 %v4123, 4294901760
    %6469 = vmatmul.mubr.f32.gmra.mrb[0].mxu0 %v6468
    %v6470 = vpop.f32.mrb[0].mxu0
    %v6471 = vadd.f32 %v6380, %v6470
    %v6472 = vpop.f32.mrb[0].mxu0
    %6473 = vmatprep.mubr.f32.mxu0 0.0
    %v6474 = vand.u32 %v4126, 4294901760
    %6475 = vmatmul.mubr.f32.gmra.mrb[0].mxu0 %v6474
    %v6476 = vpop.f32.mrb[0].mxu0
    %v6477 = vadd.f32 %v6386, %v6476
    %v6478 = vpop.f32.mrb[0].mxu0
    %6479 = vdwg.mxu0
    %6480 = vmatprep.subr.mxu0 0.0
    %v6481 = vand.u32 %v2583, 4294901760
    %6482 = vmatpush1.msra.mxu0 %v6481
    %6483 = vmatprep.subr.mxu0 0.0
    %v6484 = vand.u32 %v2589, 4294901760
    %6485 = vmatpush1.msra.mxu0 %v6484
    %6486 = vmatprep.subr.mxu0 0.0
    %6487 = vmatpush1.msra.mxu0 0.0
    %6488 = vmatprep.subr.mxu0 0.0
    %6489 = vmatpush1.msra.mxu0 0.0
    %6490 = vmatprep.subr.mxu0 0.0
    %6491 = vmatpush1.msra.mxu0 0.0
    %6492 = vmatprep.subr.mxu0 0.0
    %6493 = vmatpush1.msra.mxu0 0.0
    %6494 = vmatprep.subr.mxu0 0.0
    %6495 = vmatpush1.msra.mxu0 0.0
    %6496 = vmatprep.subr.mxu0 0.0
    %6497 = vmatpush1.msra.mxu0 0.0
    %6498 = vmatprep.subr.mxu0 0.0
    %6499 = vmatpush1.msra.mxu0 0.0
    %6500 = vmatprep.subr.mxu0 0.0
    %6501 = vmatpush1.msra.mxu0 0.0
    %6502 = vmatprep.subr.mxu0 0.0
    %6503 = vmatpush1.msra.mxu0 0.0
    %6504 = vmatprep.subr.mxu0 0.0
    %6505 = vmatpush1.msra.mxu0 0.0
    %6506 = vmatprep.subr.mxu0 0.0
    %6507 = vmatpush1.msra.mxu0 0.0
    %6508 = vmatprep.subr.mxu0 0.0
    %6509 = vmatpush1.msra.mxu0 0.0
    %6510 = vmatprep.subr.mxu0 0.0
    %6511 = vmatpush1.msra.mxu0 0.0
    %6512 = vmatprep.subr.mxu0 0.0
    %6513 = vmatpush1.msra.mxu0 0.0
    %6514 = vmatprep.subr.mxu0 0.0
    %6515 = vmatpush1.msra.mxu0 0.0
    %6516 = vmatprep.subr.mxu0 0.0
    %6517 = vmatpush1.msra.mxu0 0.0
    %6518 = vmatprep.subr.mxu0 0.0
    %6519 = vmatpush1.msra.mxu0 0.0
    %6520 = vmatprep.subr.mxu0 0.0
    %6521 = vmatpush1.msra.mxu0 0.0
    %6522 = vmatprep.subr.mxu0 0.0
    %6523 = vmatpush1.msra.mxu0 0.0
    %6524 = vmatprep.subr.mxu0 0.0
    %6525 = vmatpush1.msra.mxu0 0.0
    %6526 = vmatprep.subr.mxu0 0.0
    %6527 = vmatpush1.msra.mxu0 0.0
    %6528 = vmatprep.subr.mxu0 0.0
    %6529 = vmatpush1.msra.mxu0 0.0
    %6530 = vmatprep.subr.mxu0 0.0
    %6531 = vmatpush1.msra.mxu0 0.0
    %6532 = vmatprep.subr.mxu0 0.0
    %6533 = vmatpush1.msra.mxu0 0.0
    %6534 = vmatprep.subr.mxu0 0.0
    %6535 = vmatpush1.msra.mxu0 0.0
    %6536 = vmatprep.subr.mxu0 0.0
    %6537 = vmatpush1.msra.mxu0 0.0
    %6538 = vmatprep.subr.mxu0 0.0
    %6539 = vmatpush1.msra.mxu0 0.0
    %6540 = vmatprep.subr.mxu0 0.0
    %6541 = vmatpush1.msra.mxu0 0.0
    %6542 = vmatprep.subr.mxu0 0.0
    %6543 = vmatpush1.msra.mxu0 0.0
    %6544 = vmatprep.subr.mxu0 0.0
    %6545 = vmatpush1.msra.mxu0 0.0
    %6546 = vmatprep.mubr.f32.mxu0 0.0
    %v6547 = vand.u32 %v4117, 4294901760
    %v6548 = vsub.f32 %v4117, %v6547
    %v6549 = vand.u32 %v6548, 4294901760
    %v6550 = vsub.f32 %v6548, %v6549
    %v6551 = vand.u32 %v6550, 4294901760
    %6552 = vmatmul.mubr.f32.gmra.mrb[0].mxu0 %v6551
    %v6553 = vpop.f32.mrb[0].mxu0
    %v6554 = vadd.f32 0.0, %v6553
    %v6555 = vpop.f32.mrb[0].mxu0
    %6556 = vmatprep.mubr.f32.mxu0 0.0
    %v6557 = vand.u32 %v4120, 4294901760
    %v6558 = vsub.f32 %v4120, %v6557
    %v6559 = vand.u32 %v6558, 4294901760
    %v6560 = vsub.f32 %v6558, %v6559
    %v6561 = vand.u32 %v6560, 4294901760
    %6562 = vmatmul.mubr.f32.gmra.mrb[0].mxu0 %v6561
    %v6563 = vpop.f32.mrb[0].mxu0
    %v6564 = vadd.f32 0.0, %v6563
    %v6565 = vpop.f32.mrb[0].mxu0
    %6566 = vmatprep.mubr.f32.mxu0 0.0
    %v6567 = vand.u32 %v4123, 4294901760
    %v6568 = vsub.f32 %v4123, %v6567
    %v6569 = vand.u32 %v6568, 4294901760
    %v6570 = vsub.f32 %v6568, %v6569
    %v6571 = vand.u32 %v6570, 4294901760
    %6572 = vmatmul.mubr.f32.gmra.mrb[0].mxu0 %v6571
    %v6573 = vpop.f32.mrb[0].mxu0
    %v6574 = vadd.f32 0.0, %v6573
    %v6575 = vpop.f32.mrb[0].mxu0
    %6576 = vmatprep.mubr.f32.mxu0 0.0
    %v6577 = vand.u32 %v4126, 4294901760
    %v6578 = vsub.f32 %v4126, %v6577
    %v6579 = vand.u32 %v6578, 4294901760
    %v6580 = vsub.f32 %v6578, %v6579
    %v6581 = vand.u32 %v6580, 4294901760
    %6582 = vmatmul.mubr.f32.gmra.mrb[0].mxu0 %v6581
    %v6583 = vpop.f32.mrb[0].mxu0
    %v6584 = vadd.f32 0.0, %v6583
    %v6585 = vpop.f32.mrb[0].mxu0
    %6586 = vdwg.mxu0
    %6587 = vmatprep.subr.mxu0 0.0
    %v6588 = vand.u32 %v2583, 4294901760
    %v6589 = vsub.f32 %v2583, %v6588
    %v6590 = vand.u32 %v6589, 4294901760
    %v6591 = vsub.f32 %v6589, %v6590
    %v6592 = vand.u32 %v6591, 4294901760
    %6593 = vmatpush1.msra.mxu0 %v6592
    %6594 = vmatprep.subr.mxu0 0.0
    %v6595 = vand.u32 %v2589, 4294901760
    %v6596 = vsub.f32 %v2589, %v6595
    %v6597 = vand.u32 %v6596, 4294901760
    %v6598 = vsub.f32 %v6596, %v6597
    %v6599 = vand.u32 %v6598, 4294901760
    %6600 = vmatpush1.msra.mxu0 %v6599
    %6601 = vmatprep.subr.mxu0 0.0
    %6602 = vmatpush1.msra.mxu0 0.0
    %6603 = vmatprep.subr.mxu0 0.0
    %6604 = vmatpush1.msra.mxu0 0.0
    %6605 = vmatprep.subr.mxu0 0.0
    %6606 = vmatpush1.msra.mxu0 0.0
    %6607 = vmatprep.subr.mxu0 0.0
    %6608 = vmatpush1.msra.mxu0 0.0
    %6609 = vmatprep.subr.mxu0 0.0
    %6610 = vmatpush1.msra.mxu0 0.0
    %6611 = vmatprep.subr.mxu0 0.0
    %6612 = vmatpush1.msra.mxu0 0.0
    %6613 = vmatprep.subr.mxu0 0.0
    %6614 = vmatpush1.msra.mxu0 0.0
    %6615 = vmatprep.subr.mxu0 0.0
    %6616 = vmatpush1.msra.mxu0 0.0
    %6617 = vmatprep.subr.mxu0 0.0
    %6618 = vmatpush1.msra.mxu0 0.0
    %6619 = vmatprep.subr.mxu0 0.0
    %6620 = vmatpush1.msra.mxu0 0.0
    %6621 = vmatprep.subr.mxu0 0.0
    %6622 = vmatpush1.msra.mxu0 0.0
    %6623 = vmatprep.subr.mxu0 0.0
    %6624 = vmatpush1.msra.mxu0 0.0
    %6625 = vmatprep.subr.mxu0 0.0
    %6626 = vmatpush1.msra.mxu0 0.0
    %6627 = vmatprep.subr.mxu0 0.0
    %6628 = vmatpush1.msra.mxu0 0.0
    %6629 = vmatprep.subr.mxu0 0.0
    %6630 = vmatpush1.msra.mxu0 0.0
    %6631 = vmatprep.subr.mxu0 0.0
    %6632 = vmatpush1.msra.mxu0 0.0
    %6633 = vmatprep.subr.mxu0 0.0
    %6634 = vmatpush1.msra.mxu0 0.0
    %6635 = vmatprep.subr.mxu0 0.0
    %6636 = vmatpush1.msra.mxu0 0.0
    %6637 = vmatprep.subr.mxu0 0.0
    %6638 = vmatpush1.msra.mxu0 0.0
    %6639 = vmatprep.subr.mxu0 0.0
    %6640 = vmatpush1.msra.mxu0 0.0
    %6641 = vmatprep.subr.mxu0 0.0
    %6642 = vmatpush1.msra.mxu0 0.0
    %6643 = vmatprep.subr.mxu0 0.0
    %6644 = vmatpush1.msra.mxu0 0.0
    %6645 = vmatprep.subr.mxu0 0.0
    %6646 = vmatpush1.msra.mxu0 0.0
    %6647 = vmatprep.subr.mxu0 0.0
    %6648 = vmatpush1.msra.mxu0 0.0
    %6649 = vmatprep.subr.mxu0 0.0
    %6650 = vmatpush1.msra.mxu0 0.0
    %6651 = vmatprep.subr.mxu0 0.0
    %6652 = vmatpush1.msra.mxu0 0.0
    %6653 = vmatprep.subr.mxu0 0.0
    %6654 = vmatpush1.msra.mxu0 0.0
    %6655 = vmatprep.subr.mxu0 0.0
    %6656 = vmatpush1.msra.mxu0 0.0
    %6657 = vmatprep.subr.mxu0 0.0
    %6658 = vmatpush1.msra.mxu0 0.0
    %6659 = vmatprep.subr.mxu0 0.0
    %6660 = vmatpush1.msra.mxu0 0.0
    %6661 = vmatprep.mubr.f32.mxu0 0.0
    %v6662 = vand.u32 %v4117, 4294901760
    %6663 = vmatmul.mubr.f32.gmra.mrb[0].mxu0 %v6662
    %v6664 = vpop.f32.mrb[0].mxu0
    %v6665 = vadd.f32 %v6554, %v6664
    %v6666 = vpop.f32.mrb[0].mxu0
    %6667 = vmatprep.mubr.f32.mxu0 0.0
    %v6668 = vand.u32 %v4120, 4294901760
    %6669 = vmatmul.mubr.f32.gmra.mrb[0].mxu0 %v6668
    %v6670 = vpop.f32.mrb[0].mxu0
    %v6671 = vadd.f32 %v6564, %v6670
    %v6672 = vpop.f32.mrb[0].mxu0
    %6673 = vmatprep.mubr.f32.mxu0 0.0
    %v6674 = vand.u32 %v4123, 4294901760
    %6675 = vmatmul.mubr.f32.gmra.mrb[0].mxu0 %v6674
    %v6676 = vpop.f32.mrb[0].mxu0
    %v6677 = vadd.f32 %v6574, %v6676
    %v6678 = vpop.f32.mrb[0].mxu0
    %6679 = vmatprep.mubr.f32.mxu0 0.0
    %v6680 = vand.u32 %v4126, 4294901760
    %6681 = vmatmul.mubr.f32.gmra.mrb[0].mxu0 %v6680
    %v6682 = vpop.f32.mrb[0].mxu0
    %v6683 = vadd.f32 %v6584, %v6682
    %v6684 = vpop.f32.mrb[0].mxu0
    %6685 = vdwg.mxu0
    %6686 = vmatprep.subr.mxu0 0.0
    %v6687 = vand.u32 %v2583, 4294901760
    %v6688 = vsub.f32 %v2583, %v6687
    %6689 = vmatpush1.msra.mxu0 %v6688
    %6690 = vmatprep.subr.mxu0 0.0
    %v6691 = vand.u32 %v2589, 4294901760
    %v6692 = vsub.f32 %v2589, %v6691
    %6693 = vmatpush1.msra.mxu0 %v6692
    %6694 = vmatprep.subr.mxu0 0.0
    %6695 = vmatpush1.msra.mxu0 0.0
    %6696 = vmatprep.subr.mxu0 0.0
    %6697 = vmatpush1.msra.mxu0 0.0
    %6698 = vmatprep.subr.mxu0 0.0
    %6699 = vmatpush1.msra.mxu0 0.0
    %6700 = vmatprep.subr.mxu0 0.0
    %6701 = vmatpush1.msra.mxu0 0.0
    %6702 = vmatprep.subr.mxu0 0.0
    %6703 = vmatpush1.msra.mxu0 0.0
    %6704 = vmatprep.subr.mxu0 0.0
    %6705 = vmatpush1.msra.mxu0 0.0
    %6706 = vmatprep.subr.mxu0 0.0
    %6707 = vmatpush1.msra.mxu0 0.0
    %6708 = vmatprep.subr.mxu0 0.0
    %6709 = vmatpush1.msra.mxu0 0.0
    %6710 = vmatprep.subr.mxu0 0.0
    %6711 = vmatpush1.msra.mxu0 0.0
    %6712 = vmatprep.subr.mxu0 0.0
    %6713 = vmatpush1.msra.mxu0 0.0
    %6714 = vmatprep.subr.mxu0 0.0
    %6715 = vmatpush1.msra.mxu0 0.0
    %6716 = vmatprep.subr.mxu0 0.0
    %6717 = vmatpush1.msra.mxu0 0.0
    %6718 = vmatprep.subr.mxu0 0.0
    %6719 = vmatpush1.msra.mxu0 0.0
    %6720 = vmatprep.subr.mxu0 0.0
    %6721 = vmatpush1.msra.mxu0 0.0
    %6722 = vmatprep.subr.mxu0 0.0
    %6723 = vmatpush1.msra.mxu0 0.0
    %6724 = vmatprep.subr.mxu0 0.0
    %6725 = vmatpush1.msra.mxu0 0.0
    %6726 = vmatprep.subr.mxu0 0.0
    %6727 = vmatpush1.msra.mxu0 0.0
    %6728 = vmatprep.subr.mxu0 0.0
    %6729 = vmatpush1.msra.mxu0 0.0
    %6730 = vmatprep.subr.mxu0 0.0
    %6731 = vmatpush1.msra.mxu0 0.0
    %6732 = vmatprep.subr.mxu0 0.0
    %6733 = vmatpush1.msra.mxu0 0.0
    %6734 = vmatprep.subr.mxu0 0.0
    %6735 = vmatpush1.msra.mxu0 0.0
    %6736 = vmatprep.subr.mxu0 0.0
    %6737 = vmatpush1.msra.mxu0 0.0
    %6738 = vmatprep.subr.mxu0 0.0
    %6739 = vmatpush1.msra.mxu0 0.0
    %6740 = vmatprep.subr.mxu0 0.0
    %6741 = vmatpush1.msra.mxu0 0.0
    %6742 = vmatprep.subr.mxu0 0.0
    %6743 = vmatpush1.msra.mxu0 0.0
    %6744 = vmatprep.subr.mxu0 0.0
    %6745 = vmatpush1.msra.mxu0 0.0
    %6746 = vmatprep.subr.mxu0 0.0
    %6747 = vmatpush1.msra.mxu0 0.0
    %6748 = vmatprep.subr.mxu0 0.0
    %6749 = vmatpush1.msra.mxu0 0.0
    %6750 = vmatprep.subr.mxu0 0.0
    %6751 = vmatpush1.msra.mxu0 0.0
    %6752 = vmatprep.subr.mxu0 0.0
    %6753 = vmatpush1.msra.mxu0 0.0
    %6754 = vmatprep.mubr.f32.mxu0 0.0
    %v6755 = vand.u32 %v4117, 4294901760
    %v6756 = vsub.f32 %v4117, %v6755
    %6757 = vmatmul.mubr.f32.gmra.mrb[0].mxu0 %v6756
    %v6758 = vpop.f32.mrb[0].mxu0
    %v6759 = vadd.f32 %v6665, %v6758
    %v6760 = vpop.f32.mrb[0].mxu0
    %6761 = vmatprep.mubr.f32.mxu0 0.0
    %v6762 = vand.u32 %v4120, 4294901760
    %v6763 = vsub.f32 %v4120, %v6762
    %6764 = vmatmul.mubr.f32.gmra.mrb[0].mxu0 %v6763
    %v6765 = vpop.f32.mrb[0].mxu0
    %v6766 = vadd.f32 %v6671, %v6765
    %v6767 = vpop.f32.mrb[0].mxu0
    %6768 = vmatprep.mubr.f32.mxu0 0.0
    %v6769 = vand.u32 %v4123, 4294901760
    %v6770 = vsub.f32 %v4123, %v6769
    %6771 = vmatmul.mubr.f32.gmra.mrb[0].mxu0 %v6770
    %v6772 = vpop.f32.mrb[0].mxu0
    %v6773 = vadd.f32 %v6677, %v6772
    %v6774 = vpop.f32.mrb[0].mxu0
    %6775 = vmatprep.mubr.f32.mxu0 0.0
    %v6776 = vand.u32 %v4126, 4294901760
    %v6777 = vsub.f32 %v4126, %v6776
    %6778 = vmatmul.mubr.f32.gmra.mrb[0].mxu0 %v6777
    %v6779 = vpop.f32.mrb[0].mxu0
    %v6780 = vadd.f32 %v6683, %v6779
    %v6781 = vpop.f32.mrb[0].mxu0
    %6782 = vdwg.mxu0
    %6783 = vmatprep.subr.mxu0 0.0
    %v6784 = vand.u32 %v2583, 4294901760
    %6785 = vmatpush1.msra.mxu0 %v6784
    %6786 = vmatprep.subr.mxu0 0.0
    %v6787 = vand.u32 %v2589, 4294901760
    %6788 = vmatpush1.msra.mxu0 %v6787
    %6789 = vmatprep.subr.mxu0 0.0
    %6790 = vmatpush1.msra.mxu0 0.0
    %6791 = vmatprep.subr.mxu0 0.0
    %6792 = vmatpush1.msra.mxu0 0.0
    %6793 = vmatprep.subr.mxu0 0.0
    %6794 = vmatpush1.msra.mxu0 0.0
    %6795 = vmatprep.subr.mxu0 0.0
    %6796 = vmatpush1.msra.mxu0 0.0
    %6797 = vmatprep.subr.mxu0 0.0
    %6798 = vmatpush1.msra.mxu0 0.0
    %6799 = vmatprep.subr.mxu0 0.0
    %6800 = vmatpush1.msra.mxu0 0.0
    %6801 = vmatprep.subr.mxu0 0.0
    %6802 = vmatpush1.msra.mxu0 0.0
    %6803 = vmatprep.subr.mxu0 0.0
    %6804 = vmatpush1.msra.mxu0 0.0
    %6805 = vmatprep.subr.mxu0 0.0
    %6806 = vmatpush1.msra.mxu0 0.0
    %6807 = vmatprep.subr.mxu0 0.0
    %6808 = vmatpush1.msra.mxu0 0.0
    %6809 = vmatprep.subr.mxu0 0.0
    %6810 = vmatpush1.msra.mxu0 0.0
    %6811 = vmatprep.subr.mxu0 0.0
    %6812 = vmatpush1.msra.mxu0 0.0
    %6813 = vmatprep.subr.mxu0 0.0
    %6814 = vmatpush1.msra.mxu0 0.0
    %6815 = vmatprep.subr.mxu0 0.0
    %6816 = vmatpush1.msra.mxu0 0.0
    %6817 = vmatprep.subr.mxu0 0.0
    %6818 = vmatpush1.msra.mxu0 0.0
    %6819 = vmatprep.subr.mxu0 0.0
    %6820 = vmatpush1.msra.mxu0 0.0
    %6821 = vmatprep.subr.mxu0 0.0
    %6822 = vmatpush1.msra.mxu0 0.0
    %6823 = vmatprep.subr.mxu0 0.0
    %6824 = vmatpush1.msra.mxu0 0.0
    %6825 = vmatprep.subr.mxu0 0.0
    %6826 = vmatpush1.msra.mxu0 0.0
    %6827 = vmatprep.subr.mxu0 0.0
    %6828 = vmatpush1.msra.mxu0 0.0
    %6829 = vmatprep.subr.mxu0 0.0
    %6830 = vmatpush1.msra.mxu0 0.0
    %6831 = vmatprep.subr.mxu0 0.0
    %6832 = vmatpush1.msra.mxu0 0.0
    %6833 = vmatprep.subr.mxu0 0.0
    %6834 = vmatpush1.msra.mxu0 0.0
    %6835 = vmatprep.subr.mxu0 0.0
    %6836 = vmatpush1.msra.mxu0 0.0
    %6837 = vmatprep.subr.mxu0 0.0
    %6838 = vmatpush1.msra.mxu0 0.0
    %6839 = vmatprep.subr.mxu0 0.0
    %6840 = vmatpush1.msra.mxu0 0.0
    %6841 = vmatprep.subr.mxu0 0.0
    %6842 = vmatpush1.msra.mxu0 0.0
    %6843 = vmatprep.subr.mxu0 0.0
    %6844 = vmatpush1.msra.mxu0 0.0
    %6845 = vmatprep.subr.mxu0 0.0
    %6846 = vmatpush1.msra.mxu0 0.0
    %6847 = vmatprep.subr.mxu0 0.0
    %6848 = vmatpush1.msra.mxu0 0.0
    %6849 = vmatprep.mubr.f32.mxu0 0.0
    %v6850 = vand.u32 %v4117, 4294901760
    %v6851 = vsub.f32 %v4117, %v6850
    %v6852 = vand.u32 %v6851, 4294901760
    %6853 = vmatmul.mubr.f32.gmra.mrb[0].mxu0 %v6852
    %v6854 = vpop.f32.mrb[0].mxu0
    %v6855 = vadd.f32 %v6759, %v6854
    %v6856 = vpop.f32.mrb[0].mxu0
    %6857 = vmatprep.mubr.f32.mxu0 0.0
    %v6858 = vand.u32 %v4120, 4294901760
    %v6859 = vsub.f32 %v4120, %v6858
    %v6860 = vand.u32 %v6859, 4294901760
    %6861 = vmatmul.mubr.f32.gmra.mrb[0].mxu0 %v6860
    %v6862 = vpop.f32.mrb[0].mxu0
    %v6863 = vadd.f32 %v6766, %v6862
    %v6864 = vpop.f32.mrb[0].mxu0
    %6865 = vmatprep.mubr.f32.mxu0 0.0
    %v6866 = vand.u32 %v4123, 4294901760
    %v6867 = vsub.f32 %v4123, %v6866
    %v6868 = vand.u32 %v6867, 4294901760
    %6869 = vmatmul.mubr.f32.gmra.mrb[0].mxu0 %v6868
    %v6870 = vpop.f32.mrb[0].mxu0
    %v6871 = vadd.f32 %v6773, %v6870
    %v6872 = vpop.f32.mrb[0].mxu0
    %6873 = vmatprep.mubr.f32.mxu0 0.0
    %v6874 = vand.u32 %v4126, 4294901760
    %v6875 = vsub.f32 %v4126, %v6874
    %v6876 = vand.u32 %v6875, 4294901760
    %6877 = vmatmul.mubr.f32.gmra.mrb[0].mxu0 %v6876
    %v6878 = vpop.f32.mrb[0].mxu0
    %v6879 = vadd.f32 %v6780, %v6878
    %v6880 = vpop.f32.mrb[0].mxu0
    %6881 = vdwg.mxu0
    %6882 = vmatprep.subr.mxu0 0.0
    %v6883 = vand.u32 %v2583, 4294901760
    %v6884 = vsub.f32 %v2583, %v6883
    %v6885 = vand.u32 %v6884, 4294901760
    %6886 = vmatpush1.msra.mxu0 %v6885
    %6887 = vmatprep.subr.mxu0 0.0
    %v6888 = vand.u32 %v2589, 4294901760
    %v6889 = vsub.f32 %v2589, %v6888
    %v6890 = vand.u32 %v6889, 4294901760
    %6891 = vmatpush1.msra.mxu0 %v6890
    %6892 = vmatprep.subr.mxu0 0.0
    %6893 = vmatpush1.msra.mxu0 0.0
    %6894 = vmatprep.subr.mxu0 0.0
    %6895 = vmatpush1.msra.mxu0 0.0
    %6896 = vmatprep.subr.mxu0 0.0
    %6897 = vmatpush1.msra.mxu0 0.0
    %6898 = vmatprep.subr.mxu0 0.0
    %6899 = vmatpush1.msra.mxu0 0.0
    %6900 = vmatprep.subr.mxu0 0.0
    %6901 = vmatpush1.msra.mxu0 0.0
    %6902 = vmatprep.subr.mxu0 0.0
    %6903 = vmatpush1.msra.mxu0 0.0
    %6904 = vmatprep.subr.mxu0 0.0
    %6905 = vmatpush1.msra.mxu0 0.0
    %6906 = vmatprep.subr.mxu0 0.0
    %6907 = vmatpush1.msra.mxu0 0.0
    %6908 = vmatprep.subr.mxu0 0.0
    %6909 = vmatpush1.msra.mxu0 0.0
    %6910 = vmatprep.subr.mxu0 0.0
    %6911 = vmatpush1.msra.mxu0 0.0
    %6912 = vmatprep.subr.mxu0 0.0
    %6913 = vmatpush1.msra.mxu0 0.0
    %6914 = vmatprep.subr.mxu0 0.0
    %6915 = vmatpush1.msra.mxu0 0.0
    %6916 = vmatprep.subr.mxu0 0.0
    %6917 = vmatpush1.msra.mxu0 0.0
    %6918 = vmatprep.subr.mxu0 0.0
    %6919 = vmatpush1.msra.mxu0 0.0
    %6920 = vmatprep.subr.mxu0 0.0
    %6921 = vmatpush1.msra.mxu0 0.0
    %6922 = vmatprep.subr.mxu0 0.0
    %6923 = vmatpush1.msra.mxu0 0.0
    %6924 = vmatprep.subr.mxu0 0.0
    %6925 = vmatpush1.msra.mxu0 0.0
    %6926 = vmatprep.subr.mxu0 0.0
    %6927 = vmatpush1.msra.mxu0 0.0
    %6928 = vmatprep.subr.mxu0 0.0
    %6929 = vmatpush1.msra.mxu0 0.0
    %6930 = vmatprep.subr.mxu0 0.0
    %6931 = vmatpush1.msra.mxu0 0.0
    %6932 = vmatprep.subr.mxu0 0.0
    %6933 = vmatpush1.msra.mxu0 0.0
    %6934 = vmatprep.subr.mxu0 0.0
    %6935 = vmatpush1.msra.mxu0 0.0
    %6936 = vmatprep.subr.mxu0 0.0
    %6937 = vmatpush1.msra.mxu0 0.0
    %6938 = vmatprep.subr.mxu0 0.0
    %6939 = vmatpush1.msra.mxu0 0.0
    %6940 = vmatprep.subr.mxu0 0.0
    %6941 = vmatpush1.msra.mxu0 0.0
    %6942 = vmatprep.subr.mxu0 0.0
    %6943 = vmatpush1.msra.mxu0 0.0
    %6944 = vmatprep.subr.mxu0 0.0
    %6945 = vmatpush1.msra.mxu0 0.0
    %6946 = vmatprep.subr.mxu0 0.0
    %6947 = vmatpush1.msra.mxu0 0.0
    %6948 = vmatprep.subr.mxu0 0.0
    %6949 = vmatpush1.msra.mxu0 0.0
    %6950 = vmatprep.subr.mxu0 0.0
    %6951 = vmatpush1.msra.mxu0 0.0
    %6952 = vmatprep.mubr.f32.mxu0 0.0
    %v6953 = vand.u32 %v4117, 4294901760
    %6954 = vmatmul.mubr.f32.gmra.mrb[0].mxu0 %v6953
    %v6955 = vpop.f32.mrb[0].mxu0
    %v6956 = vadd.f32 %v6855, %v6955
    %v6957 = vpop.f32.mrb[0].mxu0
    %6958 = vmatprep.mubr.f32.mxu0 0.0
    %v6959 = vand.u32 %v4120, 4294901760
    %6960 = vmatmul.mubr.f32.gmra.mrb[0].mxu0 %v6959
    %v6961 = vpop.f32.mrb[0].mxu0
    %v6962 = vadd.f32 %v6863, %v6961
    %v6963 = vpop.f32.mrb[0].mxu0
    %6964 = vmatprep.mubr.f32.mxu0 0.0
    %v6965 = vand.u32 %v4123, 4294901760
    %6966 = vmatmul.mubr.f32.gmra.mrb[0].mxu0 %v6965
    %v6967 = vpop.f32.mrb[0].mxu0
    %v6968 = vadd.f32 %v6871, %v6967
    %v6969 = vpop.f32.mrb[0].mxu0
    %6970 = vmatprep.mubr.f32.mxu0 0.0
    %v6971 = vand.u32 %v4126, 4294901760
    %6972 = vmatmul.mubr.f32.gmra.mrb[0].mxu0 %v6971
    %v6973 = vpop.f32.mrb[0].mxu0
    %v6974 = vadd.f32 %v6879, %v6973
    %v6975 = vpop.f32.mrb[0].mxu0
    %6976 = vdwg.mxu0
    %6977 = vmatprep.subr.mxu0 0.0
    %v6978 = vand.u32 %v2583, 4294901760
    %6979 = vmatpush1.msra.mxu0 %v6978
    %6980 = vmatprep.subr.mxu0 0.0
    %v6981 = vand.u32 %v2589, 4294901760
    %6982 = vmatpush1.msra.mxu0 %v6981
    %6983 = vmatprep.subr.mxu0 0.0
    %6984 = vmatpush1.msra.mxu0 0.0
    %6985 = vmatprep.subr.mxu0 0.0
    %6986 = vmatpush1.msra.mxu0 0.0
    %6987 = vmatprep.subr.mxu0 0.0
    %6988 = vmatpush1.msra.mxu0 0.0
    %6989 = vmatprep.subr.mxu0 0.0
    %6990 = vmatpush1.msra.mxu0 0.0
    %6991 = vmatprep.subr.mxu0 0.0
    %6992 = vmatpush1.msra.mxu0 0.0
    %6993 = vmatprep.subr.mxu0 0.0
    %6994 = vmatpush1.msra.mxu0 0.0
    %6995 = vmatprep.subr.mxu0 0.0
    %6996 = vmatpush1.msra.mxu0 0.0
    %6997 = vmatprep.subr.mxu0 0.0
    %6998 = vmatpush1.msra.mxu0 0.0
    %6999 = vmatprep.subr.mxu0 0.0
    %7000 = vmatpush1.msra.mxu0 0.0
    %7001 = vmatprep.subr.mxu0 0.0
    %7002 = vmatpush1.msra.mxu0 0.0
    %7003 = vmatprep.subr.mxu0 0.0
    %7004 = vmatpush1.msra.mxu0 0.0
    %7005 = vmatprep.subr.mxu0 0.0
    %7006 = vmatpush1.msra.mxu0 0.0
    %7007 = vmatprep.subr.mxu0 0.0
    %7008 = vmatpush1.msra.mxu0 0.0
    %7009 = vmatprep.subr.mxu0 0.0
    %7010 = vmatpush1.msra.mxu0 0.0
    %7011 = vmatprep.subr.mxu0 0.0
    %7012 = vmatpush1.msra.mxu0 0.0
    %7013 = vmatprep.subr.mxu0 0.0
    %7014 = vmatpush1.msra.mxu0 0.0
    %7015 = vmatprep.subr.mxu0 0.0
    %7016 = vmatpush1.msra.mxu0 0.0
    %7017 = vmatprep.subr.mxu0 0.0
    %7018 = vmatpush1.msra.mxu0 0.0
    %7019 = vmatprep.subr.mxu0 0.0
    %7020 = vmatpush1.msra.mxu0 0.0
    %7021 = vmatprep.subr.mxu0 0.0
    %7022 = vmatpush1.msra.mxu0 0.0
    %7023 = vmatprep.subr.mxu0 0.0
    %7024 = vmatpush1.msra.mxu0 0.0
    %7025 = vmatprep.subr.mxu0 0.0
    %7026 = vmatpush1.msra.mxu0 0.0
    %7027 = vmatprep.subr.mxu0 0.0
    %7028 = vmatpush1.msra.mxu0 0.0
    %7029 = vmatprep.subr.mxu0 0.0
    %7030 = vmatpush1.msra.mxu0 0.0
    %7031 = vmatprep.subr.mxu0 0.0
    %7032 = vmatpush1.msra.mxu0 0.0
    %7033 = vmatprep.subr.mxu0 0.0
    %7034 = vmatpush1.msra.mxu0 0.0
    %7035 = vmatprep.subr.mxu0 0.0
    %7036 = vmatpush1.msra.mxu0 0.0
    %7037 = vmatprep.subr.mxu0 0.0
    %7038 = vmatpush1.msra.mxu0 0.0
    %7039 = vmatprep.subr.mxu0 0.0
    %7040 = vmatpush1.msra.mxu0 0.0
    %7041 = vmatprep.subr.mxu0 0.0
    %7042 = vmatpush1.msra.mxu0 0.0
    %7043 = vmatprep.mubr.f32.mxu0 0.0
    %v7044 = vand.u32 %v4117, 4294901760
    %7045 = vmatmul.mubr.f32.gmra.mrb[0].mxu0 %v7044
    %v7046 = vpop.f32.mrb[0].mxu0
    %v7047 = vadd.f32 %v6956, %v7046
    %v7048 = vpop.f32.mrb[0].mxu0
    %7049 = vmatprep.mubr.f32.mxu0 0.0
    %v7050 = vand.u32 %v4120, 4294901760
    %7051 = vmatmul.mubr.f32.gmra.mrb[0].mxu0 %v7050
    %v7052 = vpop.f32.mrb[0].mxu0
    %v7053 = vadd.f32 %v6962, %v7052
    %v7054 = vpop.f32.mrb[0].mxu0
    %7055 = vmatprep.mubr.f32.mxu0 0.0
    %v7056 = vand.u32 %v4123, 4294901760
    %7057 = vmatmul.mubr.f32.gmra.mrb[0].mxu0 %v7056
    %v7058 = vpop.f32.mrb[0].mxu0
    %v7059 = vadd.f32 %v6968, %v7058
    %v7060 = vpop.f32.mrb[0].mxu0
    %7061 = vmatprep.mubr.f32.mxu0 0.0
    %v7062 = vand.u32 %v4126, 4294901760
    %7063 = vmatmul.mubr.f32.gmra.mrb[0].mxu0 %v7062
    %v7064 = vpop.f32.mrb[0].mxu0
    %v7065 = vadd.f32 %v6974, %v7064
    %v7066 = vpop.f32.mrb[0].mxu0
    %7067 = vdwg.mxu0
    %7068 = vmatprep.subr.mxu0 0.0
    %v7069 = vand.u32 %v3091, 4294901760
    %7070 = vmatpush1.msra.mxu0 %v7069
    %7071 = vmatprep.subr.mxu0 0.0
    %v7072 = vand.u32 %v3097, 4294901760
    %7073 = vmatpush1.msra.mxu0 %v7072
    %7074 = vmatprep.subr.mxu0 0.0
    %7075 = vmatpush1.msra.mxu0 0.0
    %7076 = vmatprep.subr.mxu0 0.0
    %7077 = vmatpush1.msra.mxu0 0.0
    %7078 = vmatprep.subr.mxu0 0.0
    %7079 = vmatpush1.msra.mxu0 0.0
    %7080 = vmatprep.subr.mxu0 0.0
    %7081 = vmatpush1.msra.mxu0 0.0
    %7082 = vmatprep.subr.mxu0 0.0
    %7083 = vmatpush1.msra.mxu0 0.0
    %7084 = vmatprep.subr.mxu0 0.0
    %7085 = vmatpush1.msra.mxu0 0.0
    %7086 = vmatprep.subr.mxu0 0.0
    %7087 = vmatpush1.msra.mxu0 0.0
    %7088 = vmatprep.subr.mxu0 0.0
    %7089 = vmatpush1.msra.mxu0 0.0
    %7090 = vmatprep.subr.mxu0 0.0
    %7091 = vmatpush1.msra.mxu0 0.0
    %7092 = vmatprep.subr.mxu0 0.0
    %7093 = vmatpush1.msra.mxu0 0.0
    %7094 = vmatprep.subr.mxu0 0.0
    %7095 = vmatpush1.msra.mxu0 0.0
    %7096 = vmatprep.subr.mxu0 0.0
    %7097 = vmatpush1.msra.mxu0 0.0
    %7098 = vmatprep.subr.mxu0 0.0
    %7099 = vmatpush1.msra.mxu0 0.0
    %7100 = vmatprep.subr.mxu0 0.0
    %7101 = vmatpush1.msra.mxu0 0.0
    %7102 = vmatprep.subr.mxu0 0.0
    %7103 = vmatpush1.msra.mxu0 0.0
    %7104 = vmatprep.subr.mxu0 0.0
    %7105 = vmatpush1.msra.mxu0 0.0
    %7106 = vmatprep.subr.mxu0 0.0
    %7107 = vmatpush1.msra.mxu0 0.0
    %7108 = vmatprep.subr.mxu0 0.0
    %7109 = vmatpush1.msra.mxu0 0.0
    %7110 = vmatprep.subr.mxu0 0.0
    %7111 = vmatpush1.msra.mxu0 0.0
    %7112 = vmatprep.subr.mxu0 0.0
    %7113 = vmatpush1.msra.mxu0 0.0
    %7114 = vmatprep.subr.mxu0 0.0
    %7115 = vmatpush1.msra.mxu0 0.0
    %7116 = vmatprep.subr.mxu0 0.0
    %7117 = vmatpush1.msra.mxu0 0.0
    %7118 = vmatprep.subr.mxu0 0.0
    %7119 = vmatpush1.msra.mxu0 0.0
    %7120 = vmatprep.subr.mxu0 0.0
    %7121 = vmatpush1.msra.mxu0 0.0
    %7122 = vmatprep.subr.mxu0 0.0
    %7123 = vmatpush1.msra.mxu0 0.0
    %7124 = vmatprep.subr.mxu0 0.0
    %7125 = vmatpush1.msra.mxu0 0.0
    %7126 = vmatprep.subr.mxu0 0.0
    %7127 = vmatpush1.msra.mxu0 0.0
    %7128 = vmatprep.subr.mxu0 0.0
    %7129 = vmatpush1.msra.mxu0 0.0
    %7130 = vmatprep.subr.mxu0 0.0
    %7131 = vmatpush1.msra.mxu0 0.0
    %7132 = vmatprep.subr.mxu0 0.0
    %7133 = vmatpush1.msra.mxu0 0.0
    %7134 = vmatprep.mubr.f32.mxu0 0.0
    %v7135 = vand.u32 %v4117, 4294901760
    %v7136 = vsub.f32 %v4117, %v7135
    %v7137 = vand.u32 %v7136, 4294901760
    %v7138 = vsub.f32 %v7136, %v7137
    %v7139 = vand.u32 %v7138, 4294901760
    %7140 = vmatmul.mubr.f32.gmra.mrb[0].mxu0 %v7139
    %v7141 = vpop.f32.mrb[0].mxu0
    %v7142 = vadd.f32 0.0, %v7141
    %v7143 = vpop.f32.mrb[0].mxu0
    %7144 = vmatprep.mubr.f32.mxu0 0.0
    %v7145 = vand.u32 %v4120, 4294901760
    %v7146 = vsub.f32 %v4120, %v7145
    %v7147 = vand.u32 %v7146, 4294901760
    %v7148 = vsub.f32 %v7146, %v7147
    %v7149 = vand.u32 %v7148, 4294901760
    %7150 = vmatmul.mubr.f32.gmra.mrb[0].mxu0 %v7149
    %v7151 = vpop.f32.mrb[0].mxu0
    %v7152 = vadd.f32 0.0, %v7151
    %v7153 = vpop.f32.mrb[0].mxu0
    %7154 = vmatprep.mubr.f32.mxu0 0.0
    %v7155 = vand.u32 %v4123, 4294901760
    %v7156 = vsub.f32 %v4123, %v7155
    %v7157 = vand.u32 %v7156, 4294901760
    %v7158 = vsub.f32 %v7156, %v7157
    %v7159 = vand.u32 %v7158, 4294901760
    %7160 = vmatmul.mubr.f32.gmra.mrb[0].mxu0 %v7159
    %v7161 = vpop.f32.mrb[0].mxu0
    %v7162 = vadd.f32 0.0, %v7161
    %v7163 = vpop.f32.mrb[0].mxu0
    %7164 = vmatprep.mubr.f32.mxu0 0.0
    %v7165 = vand.u32 %v4126, 4294901760
    %v7166 = vsub.f32 %v4126, %v7165
    %v7167 = vand.u32 %v7166, 4294901760
    %v7168 = vsub.f32 %v7166, %v7167
    %v7169 = vand.u32 %v7168, 4294901760
    %7170 = vmatmul.mubr.f32.gmra.mrb[0].mxu0 %v7169
    %v7171 = vpop.f32.mrb[0].mxu0
    %v7172 = vadd.f32 0.0, %v7171
    %v7173 = vpop.f32.mrb[0].mxu0
    %7174 = vdwg.mxu0
    %7175 = vmatprep.subr.mxu0 0.0
    %v7176 = vand.u32 %v3091, 4294901760
    %v7177 = vsub.f32 %v3091, %v7176
    %v7178 = vand.u32 %v7177, 4294901760
    %v7179 = vsub.f32 %v7177, %v7178
    %v7180 = vand.u32 %v7179, 4294901760
    %7181 = vmatpush1.msra.mxu0 %v7180
    %7182 = vmatprep.subr.mxu0 0.0
    %v7183 = vand.u32 %v3097, 4294901760
    %v7184 = vsub.f32 %v3097, %v7183
    %v7185 = vand.u32 %v7184, 4294901760
    %v7186 = vsub.f32 %v7184, %v7185
    %v7187 = vand.u32 %v7186, 4294901760
    %7188 = vmatpush1.msra.mxu0 %v7187
    %7189 = vmatprep.subr.mxu0 0.0
    %7190 = vmatpush1.msra.mxu0 0.0
    %7191 = vmatprep.subr.mxu0 0.0
    %7192 = vmatpush1.msra.mxu0 0.0
    %7193 = vmatprep.subr.mxu0 0.0
    %7194 = vmatpush1.msra.mxu0 0.0
    %7195 = vmatprep.subr.mxu0 0.0
    %7196 = vmatpush1.msra.mxu0 0.0
    %7197 = vmatprep.subr.mxu0 0.0
    %7198 = vmatpush1.msra.mxu0 0.0
    %7199 = vmatprep.subr.mxu0 0.0
    %7200 = vmatpush1.msra.mxu0 0.0
    %7201 = vmatprep.subr.mxu0 0.0
    %7202 = vmatpush1.msra.mxu0 0.0
    %7203 = vmatprep.subr.mxu0 0.0
    %7204 = vmatpush1.msra.mxu0 0.0
    %7205 = vmatprep.subr.mxu0 0.0
    %7206 = vmatpush1.msra.mxu0 0.0
    %7207 = vmatprep.subr.mxu0 0.0
    %7208 = vmatpush1.msra.mxu0 0.0
    %7209 = vmatprep.subr.mxu0 0.0
    %7210 = vmatpush1.msra.mxu0 0.0
    %7211 = vmatprep.subr.mxu0 0.0
    %7212 = vmatpush1.msra.mxu0 0.0
    %7213 = vmatprep.subr.mxu0 0.0
    %7214 = vmatpush1.msra.mxu0 0.0
    %7215 = vmatprep.subr.mxu0 0.0
    %7216 = vmatpush1.msra.mxu0 0.0
    %7217 = vmatprep.subr.mxu0 0.0
    %7218 = vmatpush1.msra.mxu0 0.0
    %7219 = vmatprep.subr.mxu0 0.0
    %7220 = vmatpush1.msra.mxu0 0.0
    %7221 = vmatprep.subr.mxu0 0.0
    %7222 = vmatpush1.msra.mxu0 0.0
    %7223 = vmatprep.subr.mxu0 0.0
    %7224 = vmatpush1.msra.mxu0 0.0
    %7225 = vmatprep.subr.mxu0 0.0
    %7226 = vmatpush1.msra.mxu0 0.0
    %7227 = vmatprep.subr.mxu0 0.0
    %7228 = vmatpush1.msra.mxu0 0.0
    %7229 = vmatprep.subr.mxu0 0.0
    %7230 = vmatpush1.msra.mxu0 0.0
    %7231 = vmatprep.subr.mxu0 0.0
    %7232 = vmatpush1.msra.mxu0 0.0
    %7233 = vmatprep.subr.mxu0 0.0
    %7234 = vmatpush1.msra.mxu0 0.0
    %7235 = vmatprep.subr.mxu0 0.0
    %7236 = vmatpush1.msra.mxu0 0.0
    %7237 = vmatprep.subr.mxu0 0.0
    %7238 = vmatpush1.msra.mxu0 0.0
    %7239 = vmatprep.subr.mxu0 0.0
    %7240 = vmatpush1.msra.mxu0 0.0
    %7241 = vmatprep.subr.mxu0 0.0
    %7242 = vmatpush1.msra.mxu0 0.0
    %7243 = vmatprep.subr.mxu0 0.0
    %7244 = vmatpush1.msra.mxu0 0.0
    %7245 = vmatprep.subr.mxu0 0.0
    %7246 = vmatpush1.msra.mxu0 0.0
    %7247 = vmatprep.subr.mxu0 0.0
    %7248 = vmatpush1.msra.mxu0 0.0
    %7249 = vmatprep.mubr.f32.mxu0 0.0
    %v7250 = vand.u32 %v4117, 4294901760
    %7251 = vmatmul.mubr.f32.gmra.mrb[0].mxu0 %v7250
    %v7252 = vpop.f32.mrb[0].mxu0
    %v7253 = vadd.f32 %v7142, %v7252
    %v7254 = vpop.f32.mrb[0].mxu0
    %7255 = vmatprep.mubr.f32.mxu0 0.0
    %v7256 = vand.u32 %v4120, 4294901760
    %7257 = vmatmul.mubr.f32.gmra.mrb[0].mxu0 %v7256
    %v7258 = vpop.f32.mrb[0].mxu0
    %v7259 = vadd.f32 %v7152, %v7258
    %v7260 = vpop.f32.mrb[0].mxu0
    %7261 = vmatprep.mubr.f32.mxu0 0.0
    %v7262 = vand.u32 %v4123, 4294901760
    %7263 = vmatmul.mubr.f32.gmra.mrb[0].mxu0 %v7262
    %v7264 = vpop.f32.mrb[0].mxu0
    %v7265 = vadd.f32 %v7162, %v7264
    %v7266 = vpop.f32.mrb[0].mxu0
    %7267 = vmatprep.mubr.f32.mxu0 0.0
    %v7268 = vand.u32 %v4126, 4294901760
    %7269 = vmatmul.mubr.f32.gmra.mrb[0].mxu0 %v7268
    %v7270 = vpop.f32.mrb[0].mxu0
    %v7271 = vadd.f32 %v7172, %v7270
    %v7272 = vpop.f32.mrb[0].mxu0
    %7273 = vdwg.mxu0
    %7274 = vmatprep.subr.mxu0 0.0
    %v7275 = vand.u32 %v3091, 4294901760
    %v7276 = vsub.f32 %v3091, %v7275
    %7277 = vmatpush1.msra.mxu0 %v7276
    %7278 = vmatprep.subr.mxu0 0.0
    %v7279 = vand.u32 %v3097, 4294901760
    %v7280 = vsub.f32 %v3097, %v7279
    %7281 = vmatpush1.msra.mxu0 %v7280
    %7282 = vmatprep.subr.mxu0 0.0
    %7283 = vmatpush1.msra.mxu0 0.0
    %7284 = vmatprep.subr.mxu0 0.0
    %7285 = vmatpush1.msra.mxu0 0.0
    %7286 = vmatprep.subr.mxu0 0.0
    %7287 = vmatpush1.msra.mxu0 0.0
    %7288 = vmatprep.subr.mxu0 0.0
    %7289 = vmatpush1.msra.mxu0 0.0
    %7290 = vmatprep.subr.mxu0 0.0
    %7291 = vmatpush1.msra.mxu0 0.0
    %7292 = vmatprep.subr.mxu0 0.0
    %7293 = vmatpush1.msra.mxu0 0.0
    %7294 = vmatprep.subr.mxu0 0.0
    %7295 = vmatpush1.msra.mxu0 0.0
    %7296 = vmatprep.subr.mxu0 0.0
    %7297 = vmatpush1.msra.mxu0 0.0
    %7298 = vmatprep.subr.mxu0 0.0
    %7299 = vmatpush1.msra.mxu0 0.0
    %7300 = vmatprep.subr.mxu0 0.0
    %7301 = vmatpush1.msra.mxu0 0.0
    %7302 = vmatprep.subr.mxu0 0.0
    %7303 = vmatpush1.msra.mxu0 0.0
    %7304 = vmatprep.subr.mxu0 0.0
    %7305 = vmatpush1.msra.mxu0 0.0
    %7306 = vmatprep.subr.mxu0 0.0
    %7307 = vmatpush1.msra.mxu0 0.0
    %7308 = vmatprep.subr.mxu0 0.0
    %7309 = vmatpush1.msra.mxu0 0.0
    %7310 = vmatprep.subr.mxu0 0.0
    %7311 = vmatpush1.msra.mxu0 0.0
    %7312 = vmatprep.subr.mxu0 0.0
    %7313 = vmatpush1.msra.mxu0 0.0
    %7314 = vmatprep.subr.mxu0 0.0
    %7315 = vmatpush1.msra.mxu0 0.0
    %7316 = vmatprep.subr.mxu0 0.0
    %7317 = vmatpush1.msra.mxu0 0.0
    %7318 = vmatprep.subr.mxu0 0.0
    %7319 = vmatpush1.msra.mxu0 0.0
    %7320 = vmatprep.subr.mxu0 0.0
    %7321 = vmatpush1.msra.mxu0 0.0
    %7322 = vmatprep.subr.mxu0 0.0
    %7323 = vmatpush1.msra.mxu0 0.0
    %7324 = vmatprep.subr.mxu0 0.0
    %7325 = vmatpush1.msra.mxu0 0.0
    %7326 = vmatprep.subr.mxu0 0.0
    %7327 = vmatpush1.msra.mxu0 0.0
    %7328 = vmatprep.subr.mxu0 0.0
    %7329 = vmatpush1.msra.mxu0 0.0
    %7330 = vmatprep.subr.mxu0 0.0
    %7331 = vmatpush1.msra.mxu0 0.0
    %7332 = vmatprep.subr.mxu0 0.0
    %7333 = vmatpush1.msra.mxu0 0.0
    %7334 = vmatprep.subr.mxu0 0.0
    %7335 = vmatpush1.msra.mxu0 0.0
    %7336 = vmatprep.subr.mxu0 0.0
    %7337 = vmatpush1.msra.mxu0 0.0
    %7338 = vmatprep.subr.mxu0 0.0
    %7339 = vmatpush1.msra.mxu0 0.0
    %7340 = vmatprep.subr.mxu0 0.0
    %7341 = vmatpush1.msra.mxu0 0.0
    %7342 = vmatprep.mubr.f32.mxu0 0.0
    %v7343 = vand.u32 %v4117, 4294901760
    %v7344 = vsub.f32 %v4117, %v7343
    %7345 = vmatmul.mubr.f32.gmra.mrb[0].mxu0 %v7344
    %v7346 = vpop.f32.mrb[0].mxu0
    %v7347 = vadd.f32 %v7253, %v7346
    %v7348 = vpop.f32.mrb[0].mxu0
    %7349 = vmatprep.mubr.f32.mxu0 0.0
    %v7350 = vand.u32 %v4120, 4294901760
    %v7351 = vsub.f32 %v4120, %v7350
    %7352 = vmatmul.mubr.f32.gmra.mrb[0].mxu0 %v7351
    %v7353 = vpop.f32.mrb[0].mxu0
    %v7354 = vadd.f32 %v7259, %v7353
    %v7355 = vpop.f32.mrb[0].mxu0
    %7356 = vmatprep.mubr.f32.mxu0 0.0
    %v7357 = vand.u32 %v4123, 4294901760
    %v7358 = vsub.f32 %v4123, %v7357
    %7359 = vmatmul.mubr.f32.gmra.mrb[0].mxu0 %v7358
    %v7360 = vpop.f32.mrb[0].mxu0
    %v7361 = vadd.f32 %v7265, %v7360
    %v7362 = vpop.f32.mrb[0].mxu0
    %7363 = vmatprep.mubr.f32.mxu0 0.0
    %v7364 = vand.u32 %v4126, 4294901760
    %v7365 = vsub.f32 %v4126, %v7364
    %7366 = vmatmul.mubr.f32.gmra.mrb[0].mxu0 %v7365
    %v7367 = vpop.f32.mrb[0].mxu0
    %v7368 = vadd.f32 %v7271, %v7367
    %v7369 = vpop.f32.mrb[0].mxu0
    %7370 = vdwg.mxu0
    %7371 = vmatprep.subr.mxu0 0.0
    %v7372 = vand.u32 %v3091, 4294901760
    %7373 = vmatpush1.msra.mxu0 %v7372
    %7374 = vmatprep.subr.mxu0 0.0
    %v7375 = vand.u32 %v3097, 4294901760
    %7376 = vmatpush1.msra.mxu0 %v7375
    %7377 = vmatprep.subr.mxu0 0.0
    %7378 = vmatpush1.msra.mxu0 0.0
    %7379 = vmatprep.subr.mxu0 0.0
    %7380 = vmatpush1.msra.mxu0 0.0
    %7381 = vmatprep.subr.mxu0 0.0
    %7382 = vmatpush1.msra.mxu0 0.0
    %7383 = vmatprep.subr.mxu0 0.0
    %7384 = vmatpush1.msra.mxu0 0.0
    %7385 = vmatprep.subr.mxu0 0.0
    %7386 = vmatpush1.msra.mxu0 0.0
    %7387 = vmatprep.subr.mxu0 0.0
    %7388 = vmatpush1.msra.mxu0 0.0
    %7389 = vmatprep.subr.mxu0 0.0
    %7390 = vmatpush1.msra.mxu0 0.0
    %7391 = vmatprep.subr.mxu0 0.0
    %7392 = vmatpush1.msra.mxu0 0.0
    %7393 = vmatprep.subr.mxu0 0.0
    %7394 = vmatpush1.msra.mxu0 0.0
    %7395 = vmatprep.subr.mxu0 0.0
    %7396 = vmatpush1.msra.mxu0 0.0
    %7397 = vmatprep.subr.mxu0 0.0
    %7398 = vmatpush1.msra.mxu0 0.0
    %7399 = vmatprep.subr.mxu0 0.0
    %7400 = vmatpush1.msra.mxu0 0.0
    %7401 = vmatprep.subr.mxu0 0.0
    %7402 = vmatpush1.msra.mxu0 0.0
    %7403 = vmatprep.subr.mxu0 0.0
    %7404 = vmatpush1.msra.mxu0 0.0
    %7405 = vmatprep.subr.mxu0 0.0
    %7406 = vmatpush1.msra.mxu0 0.0
    %7407 = vmatprep.subr.mxu0 0.0
    %7408 = vmatpush1.msra.mxu0 0.0
    %7409 = vmatprep.subr.mxu0 0.0
    %7410 = vmatpush1.msra.mxu0 0.0
    %7411 = vmatprep.subr.mxu0 0.0
    %7412 = vmatpush1.msra.mxu0 0.0
    %7413 = vmatprep.subr.mxu0 0.0
    %7414 = vmatpush1.msra.mxu0 0.0
    %7415 = vmatprep.subr.mxu0 0.0
    %7416 = vmatpush1.msra.mxu0 0.0
    %7417 = vmatprep.subr.mxu0 0.0
    %7418 = vmatpush1.msra.mxu0 0.0
    %7419 = vmatprep.subr.mxu0 0.0
    %7420 = vmatpush1.msra.mxu0 0.0
    %7421 = vmatprep.subr.mxu0 0.0
    %7422 = vmatpush1.msra.mxu0 0.0
    %7423 = vmatprep.subr.mxu0 0.0
    %7424 = vmatpush1.msra.mxu0 0.0
    %7425 = vmatprep.subr.mxu0 0.0
    %7426 = vmatpush1.msra.mxu0 0.0
    %7427 = vmatprep.subr.mxu0 0.0
    %7428 = vmatpush1.msra.mxu0 0.0
    %7429 = vmatprep.subr.mxu0 0.0
    %7430 = vmatpush1.msra.mxu0 0.0
    %7431 = vmatprep.subr.mxu0 0.0
    %7432 = vmatpush1.msra.mxu0 0.0
    %7433 = vmatprep.subr.mxu0 0.0
    %7434 = vmatpush1.msra.mxu0 0.0
    %7435 = vmatprep.subr.mxu0 0.0
    %7436 = vmatpush1.msra.mxu0 0.0
    %7437 = vmatprep.mubr.f32.mxu0 0.0
    %v7438 = vand.u32 %v4117, 4294901760
    %v7439 = vsub.f32 %v4117, %v7438
    %v7440 = vand.u32 %v7439, 4294901760
    %7441 = vmatmul.mubr.f32.gmra.mrb[0].mxu0 %v7440
    %v7442 = vpop.f32.mrb[0].mxu0
    %v7443 = vadd.f32 %v7347, %v7442
    %v7444 = vpop.f32.mrb[0].mxu0
    %7445 = vmatprep.mubr.f32.mxu0 0.0
    %v7446 = vand.u32 %v4120, 4294901760
    %v7447 = vsub.f32 %v4120, %v7446
    %v7448 = vand.u32 %v7447, 4294901760
    %7449 = vmatmul.mubr.f32.gmra.mrb[0].mxu0 %v7448
    %v7450 = vpop.f32.mrb[0].mxu0
    %v7451 = vadd.f32 %v7354, %v7450
    %v7452 = vpop.f32.mrb[0].mxu0
    %7453 = vmatprep.mubr.f32.mxu0 0.0
    %v7454 = vand.u32 %v4123, 4294901760
    %v7455 = vsub.f32 %v4123, %v7454
    %v7456 = vand.u32 %v7455, 4294901760
    %7457 = vmatmul.mubr.f32.gmra.mrb[0].mxu0 %v7456
    %v7458 = vpop.f32.mrb[0].mxu0
    %v7459 = vadd.f32 %v7361, %v7458
    %v7460 = vpop.f32.mrb[0].mxu0
    %7461 = vmatprep.mubr.f32.mxu0 0.0
    %v7462 = vand.u32 %v4126, 4294901760
    %v7463 = vsub.f32 %v4126, %v7462
    %v7464 = vand.u32 %v7463, 4294901760
    %7465 = vmatmul.mubr.f32.gmra.mrb[0].mxu0 %v7464
    %v7466 = vpop.f32.mrb[0].mxu0
    %v7467 = vadd.f32 %v7368, %v7466
    %v7468 = vpop.f32.mrb[0].mxu0
    %7469 = vdwg.mxu0
    %7470 = vmatprep.subr.mxu0 0.0
    %v7471 = vand.u32 %v3091, 4294901760
    %v7472 = vsub.f32 %v3091, %v7471
    %v7473 = vand.u32 %v7472, 4294901760
    %7474 = vmatpush1.msra.mxu0 %v7473
    %7475 = vmatprep.subr.mxu0 0.0
    %v7476 = vand.u32 %v3097, 4294901760
    %v7477 = vsub.f32 %v3097, %v7476
    %v7478 = vand.u32 %v7477, 4294901760
    %7479 = vmatpush1.msra.mxu0 %v7478
    %7480 = vmatprep.subr.mxu0 0.0
    %7481 = vmatpush1.msra.mxu0 0.0
    %7482 = vmatprep.subr.mxu0 0.0
    %7483 = vmatpush1.msra.mxu0 0.0
    %7484 = vmatprep.subr.mxu0 0.0
    %7485 = vmatpush1.msra.mxu0 0.0
    %7486 = vmatprep.subr.mxu0 0.0
    %7487 = vmatpush1.msra.mxu0 0.0
    %7488 = vmatprep.subr.mxu0 0.0
    %7489 = vmatpush1.msra.mxu0 0.0
    %7490 = vmatprep.subr.mxu0 0.0
    %7491 = vmatpush1.msra.mxu0 0.0
    %7492 = vmatprep.subr.mxu0 0.0
    %7493 = vmatpush1.msra.mxu0 0.0
    %7494 = vmatprep.subr.mxu0 0.0
    %7495 = vmatpush1.msra.mxu0 0.0
    %7496 = vmatprep.subr.mxu0 0.0
    %7497 = vmatpush1.msra.mxu0 0.0
    %7498 = vmatprep.subr.mxu0 0.0
    %7499 = vmatpush1.msra.mxu0 0.0
    %7500 = vmatprep.subr.mxu0 0.0
    %7501 = vmatpush1.msra.mxu0 0.0
    %7502 = vmatprep.subr.mxu0 0.0
    %7503 = vmatpush1.msra.mxu0 0.0
    %7504 = vmatprep.subr.mxu0 0.0
    %7505 = vmatpush1.msra.mxu0 0.0
    %7506 = vmatprep.subr.mxu0 0.0
    %7507 = vmatpush1.msra.mxu0 0.0
    %7508 = vmatprep.subr.mxu0 0.0
    %7509 = vmatpush1.msra.mxu0 0.0
    %7510 = vmatprep.subr.mxu0 0.0
    %7511 = vmatpush1.msra.mxu0 0.0
    %7512 = vmatprep.subr.mxu0 0.0
    %7513 = vmatpush1.msra.mxu0 0.0
    %7514 = vmatprep.subr.mxu0 0.0
    %7515 = vmatpush1.msra.mxu0 0.0
    %7516 = vmatprep.subr.mxu0 0.0
    %7517 = vmatpush1.msra.mxu0 0.0
    %7518 = vmatprep.subr.mxu0 0.0
    %7519 = vmatpush1.msra.mxu0 0.0
    %7520 = vmatprep.subr.mxu0 0.0
    %7521 = vmatpush1.msra.mxu0 0.0
    %7522 = vmatprep.subr.mxu0 0.0
    %7523 = vmatpush1.msra.mxu0 0.0
    %7524 = vmatprep.subr.mxu0 0.0
    %7525 = vmatpush1.msra.mxu0 0.0
    %7526 = vmatprep.subr.mxu0 0.0
    %7527 = vmatpush1.msra.mxu0 0.0
    %7528 = vmatprep.subr.mxu0 0.0
    %7529 = vmatpush1.msra.mxu0 0.0
    %7530 = vmatprep.subr.mxu0 0.0
    %7531 = vmatpush1.msra.mxu0 0.0
    %7532 = vmatprep.subr.mxu0 0.0
    %7533 = vmatpush1.msra.mxu0 0.0
    %7534 = vmatprep.subr.mxu0 0.0
    %7535 = vmatpush1.msra.mxu0 0.0
    %7536 = vmatprep.subr.mxu0 0.0
    %7537 = vmatpush1.msra.mxu0 0.0
    %7538 = vmatprep.subr.mxu0 0.0
    %7539 = vmatpush1.msra.mxu0 0.0
    %7540 = vmatprep.mubr.f32.mxu0 0.0
    %v7541 = vand.u32 %v4117, 4294901760
    %7542 = vmatmul.mubr.f32.gmra.mrb[0].mxu0 %v7541
    %v7543 = vpop.f32.mrb[0].mxu0
    %v7544 = vadd.f32 %v7443, %v7543
    %v7545 = vpop.f32.mrb[0].mxu0
    %7546 = vmatprep.mubr.f32.mxu0 0.0
    %v7547 = vand.u32 %v4120, 4294901760
    %7548 = vmatmul.mubr.f32.gmra.mrb[0].mxu0 %v7547
    %v7549 = vpop.f32.mrb[0].mxu0
    %v7550 = vadd.f32 %v7451, %v7549
    %v7551 = vpop.f32.mrb[0].mxu0
    %7552 = vmatprep.mubr.f32.mxu0 0.0
    %v7553 = vand.u32 %v4123, 4294901760
    %7554 = vmatmul.mubr.f32.gmra.mrb[0].mxu0 %v7553
    %v7555 = vpop.f32.mrb[0].mxu0
    %v7556 = vadd.f32 %v7459, %v7555
    %v7557 = vpop.f32.mrb[0].mxu0
    %7558 = vmatprep.mubr.f32.mxu0 0.0
    %v7559 = vand.u32 %v4126, 4294901760
    %7560 = vmatmul.mubr.f32.gmra.mrb[0].mxu0 %v7559
    %v7561 = vpop.f32.mrb[0].mxu0
    %v7562 = vadd.f32 %v7467, %v7561
    %v7563 = vpop.f32.mrb[0].mxu0
    %7564 = vdwg.mxu0
    %7565 = vmatprep.subr.mxu0 0.0
    %v7566 = vand.u32 %v3091, 4294901760
    %7567 = vmatpush1.msra.mxu0 %v7566
    %7568 = vmatprep.subr.mxu0 0.0
    %v7569 = vand.u32 %v3097, 4294901760
    %7570 = vmatpush1.msra.mxu0 %v7569
    %7571 = vmatprep.subr.mxu0 0.0
    %7572 = vmatpush1.msra.mxu0 0.0
    %7573 = vmatprep.subr.mxu0 0.0
    %7574 = vmatpush1.msra.mxu0 0.0
    %7575 = vmatprep.subr.mxu0 0.0
    %7576 = vmatpush1.msra.mxu0 0.0
    %7577 = vmatprep.subr.mxu0 0.0
    %7578 = vmatpush1.msra.mxu0 0.0
    %7579 = vmatprep.subr.mxu0 0.0
    %7580 = vmatpush1.msra.mxu0 0.0
    %7581 = vmatprep.subr.mxu0 0.0
    %7582 = vmatpush1.msra.mxu0 0.0
    %7583 = vmatprep.subr.mxu0 0.0
    %7584 = vmatpush1.msra.mxu0 0.0
    %7585 = vmatprep.subr.mxu0 0.0
    %7586 = vmatpush1.msra.mxu0 0.0
    %7587 = vmatprep.subr.mxu0 0.0
    %7588 = vmatpush1.msra.mxu0 0.0
    %7589 = vmatprep.subr.mxu0 0.0
    %7590 = vmatpush1.msra.mxu0 0.0
    %7591 = vmatprep.subr.mxu0 0.0
    %7592 = vmatpush1.msra.mxu0 0.0
    %7593 = vmatprep.subr.mxu0 0.0
    %7594 = vmatpush1.msra.mxu0 0.0
    %7595 = vmatprep.subr.mxu0 0.0
    %7596 = vmatpush1.msra.mxu0 0.0
    %7597 = vmatprep.subr.mxu0 0.0
    %7598 = vmatpush1.msra.mxu0 0.0
    %7599 = vmatprep.subr.mxu0 0.0
    %7600 = vmatpush1.msra.mxu0 0.0
    %7601 = vmatprep.subr.mxu0 0.0
    %7602 = vmatpush1.msra.mxu0 0.0
    %7603 = vmatprep.subr.mxu0 0.0
    %7604 = vmatpush1.msra.mxu0 0.0
    %7605 = vmatprep.subr.mxu0 0.0
    %7606 = vmatpush1.msra.mxu0 0.0
    %7607 = vmatprep.subr.mxu0 0.0
    %7608 = vmatpush1.msra.mxu0 0.0
    %7609 = vmatprep.subr.mxu0 0.0
    %7610 = vmatpush1.msra.mxu0 0.0
    %7611 = vmatprep.subr.mxu0 0.0
    %7612 = vmatpush1.msra.mxu0 0.0
    %7613 = vmatprep.subr.mxu0 0.0
    %7614 = vmatpush1.msra.mxu0 0.0
    %7615 = vmatprep.subr.mxu0 0.0
    %7616 = vmatpush1.msra.mxu0 0.0
    %7617 = vmatprep.subr.mxu0 0.0
    %7618 = vmatpush1.msra.mxu0 0.0
    %7619 = vmatprep.subr.mxu0 0.0
    %7620 = vmatpush1.msra.mxu0 0.0
    %7621 = vmatprep.subr.mxu0 0.0
    %7622 = vmatpush1.msra.mxu0 0.0
    %7623 = vmatprep.subr.mxu0 0.0
    %7624 = vmatpush1.msra.mxu0 0.0
    %7625 = vmatprep.subr.mxu0 0.0
    %7626 = vmatpush1.msra.mxu0 0.0
    %7627 = vmatprep.subr.mxu0 0.0
    %7628 = vmatpush1.msra.mxu0 0.0
    %7629 = vmatprep.subr.mxu0 0.0
    %7630 = vmatpush1.msra.mxu0 0.0
    %7631 = vmatprep.mubr.f32.mxu0 0.0
    %v7632 = vand.u32 %v4117, 4294901760
    %7633 = vmatmul.mubr.f32.gmra.mrb[0].mxu0 %v7632
    %v7634 = vpop.f32.mrb[0].mxu0
    %v7635 = vadd.f32 %v7544, %v7634
    %v7636 = vpop.f32.mrb[0].mxu0
    %7637 = vmatprep.mubr.f32.mxu0 0.0
    %v7638 = vand.u32 %v4120, 4294901760
    %7639 = vmatmul.mubr.f32.gmra.mrb[0].mxu0 %v7638
    %v7640 = vpop.f32.mrb[0].mxu0
    %v7641 = vadd.f32 %v7550, %v7640
    %v7642 = vpop.f32.mrb[0].mxu0
    %7643 = vmatprep.mubr.f32.mxu0 0.0
    %v7644 = vand.u32 %v4123, 4294901760
    %7645 = vmatmul.mubr.f32.gmra.mrb[0].mxu0 %v7644
    %v7646 = vpop.f32.mrb[0].mxu0
    %v7647 = vadd.f32 %v7556, %v7646
    %v7648 = vpop.f32.mrb[0].mxu0
    %7649 = vmatprep.mubr.f32.mxu0 0.0
    %v7650 = vand.u32 %v4126, 4294901760
    %7651 = vmatmul.mubr.f32.gmra.mrb[0].mxu0 %v7650
    %v7652 = vpop.f32.mrb[0].mxu0
    %v7653 = vadd.f32 %v7562, %v7652
    %v7654 = vpop.f32.mrb[0].mxu0
    %7655 = vdwg.mxu0
    %7656 = vmatprep.subr.mxu0 0.0
    %v7657 = vand.u32 %v3599, 4294901760
    %7658 = vmatpush1.msra.mxu0 %v7657
    %7659 = vmatprep.subr.mxu0 0.0
    %v7660 = vand.u32 %v3605, 4294901760
    %7661 = vmatpush1.msra.mxu0 %v7660
    %7662 = vmatprep.subr.mxu0 0.0
    %7663 = vmatpush1.msra.mxu0 0.0
    %7664 = vmatprep.subr.mxu0 0.0
    %7665 = vmatpush1.msra.mxu0 0.0
    %7666 = vmatprep.subr.mxu0 0.0
    %7667 = vmatpush1.msra.mxu0 0.0
    %7668 = vmatprep.subr.mxu0 0.0
    %7669 = vmatpush1.msra.mxu0 0.0
    %7670 = vmatprep.subr.mxu0 0.0
    %7671 = vmatpush1.msra.mxu0 0.0
    %7672 = vmatprep.subr.mxu0 0.0
    %7673 = vmatpush1.msra.mxu0 0.0
    %7674 = vmatprep.subr.mxu0 0.0
    %7675 = vmatpush1.msra.mxu0 0.0
    %7676 = vmatprep.subr.mxu0 0.0
    %7677 = vmatpush1.msra.mxu0 0.0
    %7678 = vmatprep.subr.mxu0 0.0
    %7679 = vmatpush1.msra.mxu0 0.0
    %7680 = vmatprep.subr.mxu0 0.0
    %7681 = vmatpush1.msra.mxu0 0.0
    %7682 = vmatprep.subr.mxu0 0.0
    %7683 = vmatpush1.msra.mxu0 0.0
    %7684 = vmatprep.subr.mxu0 0.0
    %7685 = vmatpush1.msra.mxu0 0.0
    %7686 = vmatprep.subr.mxu0 0.0
    %7687 = vmatpush1.msra.mxu0 0.0
    %7688 = vmatprep.subr.mxu0 0.0
    %7689 = vmatpush1.msra.mxu0 0.0
    %7690 = vmatprep.subr.mxu0 0.0
    %7691 = vmatpush1.msra.mxu0 0.0
    %7692 = vmatprep.subr.mxu0 0.0
    %7693 = vmatpush1.msra.mxu0 0.0
    %7694 = vmatprep.subr.mxu0 0.0
    %7695 = vmatpush1.msra.mxu0 0.0
    %7696 = vmatprep.subr.mxu0 0.0
    %7697 = vmatpush1.msra.mxu0 0.0
    %7698 = vmatprep.subr.mxu0 0.0
    %7699 = vmatpush1.msra.mxu0 0.0
    %7700 = vmatprep.subr.mxu0 0.0
    %7701 = vmatpush1.msra.mxu0 0.0
    %7702 = vmatprep.subr.mxu0 0.0
    %7703 = vmatpush1.msra.mxu0 0.0
    %7704 = vmatprep.subr.mxu0 0.0
    %7705 = vmatpush1.msra.mxu0 0.0
    %7706 = vmatprep.subr.mxu0 0.0
    %7707 = vmatpush1.msra.mxu0 0.0
    %7708 = vmatprep.subr.mxu0 0.0
    %7709 = vmatpush1.msra.mxu0 0.0
    %7710 = vmatprep.subr.mxu0 0.0
    %7711 = vmatpush1.msra.mxu0 0.0
    %7712 = vmatprep.subr.mxu0 0.0
    %7713 = vmatpush1.msra.mxu0 0.0
    %7714 = vmatprep.subr.mxu0 0.0
    %7715 = vmatpush1.msra.mxu0 0.0
    %7716 = vmatprep.subr.mxu0 0.0
    %7717 = vmatpush1.msra.mxu0 0.0
    %7718 = vmatprep.subr.mxu0 0.0
    %7719 = vmatpush1.msra.mxu0 0.0
    %7720 = vmatprep.subr.mxu0 0.0
    %7721 = vmatpush1.msra.mxu0 0.0
    %7722 = vmatprep.mubr.f32.mxu0 0.0
    %v7723 = vand.u32 %v4117, 4294901760
    %v7724 = vsub.f32 %v4117, %v7723
    %v7725 = vand.u32 %v7724, 4294901760
    %v7726 = vsub.f32 %v7724, %v7725
    %v7727 = vand.u32 %v7726, 4294901760
    %7728 = vmatmul.mubr.f32.gmra.mrb[0].mxu0 %v7727
    %v7729 = vpop.f32.mrb[0].mxu0
    %v7730 = vadd.f32 0.0, %v7729
    %v7731 = vpop.f32.mrb[0].mxu0
    %7732 = vmatprep.mubr.f32.mxu0 0.0
    %v7733 = vand.u32 %v4120, 4294901760
    %v7734 = vsub.f32 %v4120, %v7733
    %v7735 = vand.u32 %v7734, 4294901760
    %v7736 = vsub.f32 %v7734, %v7735
    %v7737 = vand.u32 %v7736, 4294901760
    %7738 = vmatmul.mubr.f32.gmra.mrb[0].mxu0 %v7737
    %v7739 = vpop.f32.mrb[0].mxu0
    %v7740 = vadd.f32 0.0, %v7739
    %v7741 = vpop.f32.mrb[0].mxu0
    %7742 = vmatprep.mubr.f32.mxu0 0.0
    %v7743 = vand.u32 %v4123, 4294901760
    %v7744 = vsub.f32 %v4123, %v7743
    %v7745 = vand.u32 %v7744, 4294901760
    %v7746 = vsub.f32 %v7744, %v7745
    %v7747 = vand.u32 %v7746, 4294901760
    %7748 = vmatmul.mubr.f32.gmra.mrb[0].mxu0 %v7747
    %v7749 = vpop.f32.mrb[0].mxu0
    %v7750 = vadd.f32 0.0, %v7749
    %v7751 = vpop.f32.mrb[0].mxu0
    %7752 = vmatprep.mubr.f32.mxu0 0.0
    %v7753 = vand.u32 %v4126, 4294901760
    %v7754 = vsub.f32 %v4126, %v7753
    %v7755 = vand.u32 %v7754, 4294901760
    %v7756 = vsub.f32 %v7754, %v7755
    %v7757 = vand.u32 %v7756, 4294901760
    %7758 = vmatmul.mubr.f32.gmra.mrb[0].mxu0 %v7757
    %v7759 = vpop.f32.mrb[0].mxu0
    %v7760 = vadd.f32 0.0, %v7759
    %v7761 = vpop.f32.mrb[0].mxu0
    %7762 = vdwg.mxu0
    %7763 = vmatprep.subr.mxu0 0.0
    %v7764 = vand.u32 %v3599, 4294901760
    %v7765 = vsub.f32 %v3599, %v7764
    %v7766 = vand.u32 %v7765, 4294901760
    %v7767 = vsub.f32 %v7765, %v7766
    %v7768 = vand.u32 %v7767, 4294901760
    %7769 = vmatpush1.msra.mxu0 %v7768
    %7770 = vmatprep.subr.mxu0 0.0
    %v7771 = vand.u32 %v3605, 4294901760
    %v7772 = vsub.f32 %v3605, %v7771
    %v7773 = vand.u32 %v7772, 4294901760
    %v7774 = vsub.f32 %v7772, %v7773
    %v7775 = vand.u32 %v7774, 4294901760
    %7776 = vmatpush1.msra.mxu0 %v7775
    %7777 = vmatprep.subr.mxu0 0.0
    %7778 = vmatpush1.msra.mxu0 0.0
    %7779 = vmatprep.subr.mxu0 0.0
    %7780 = vmatpush1.msra.mxu0 0.0
    %7781 = vmatprep.subr.mxu0 0.0
    %7782 = vmatpush1.msra.mxu0 0.0
    %7783 = vmatprep.subr.mxu0 0.0
    %7784 = vmatpush1.msra.mxu0 0.0
    %7785 = vmatprep.subr.mxu0 0.0
    %7786 = vmatpush1.msra.mxu0 0.0
    %7787 = vmatprep.subr.mxu0 0.0
    %7788 = vmatpush1.msra.mxu0 0.0
    %7789 = vmatprep.subr.mxu0 0.0
    %7790 = vmatpush1.msra.mxu0 0.0
    %7791 = vmatprep.subr.mxu0 0.0
    %7792 = vmatpush1.msra.mxu0 0.0
    %7793 = vmatprep.subr.mxu0 0.0
    %7794 = vmatpush1.msra.mxu0 0.0
    %7795 = vmatprep.subr.mxu0 0.0
    %7796 = vmatpush1.msra.mxu0 0.0
    %7797 = vmatprep.subr.mxu0 0.0
    %7798 = vmatpush1.msra.mxu0 0.0
    %7799 = vmatprep.subr.mxu0 0.0
    %7800 = vmatpush1.msra.mxu0 0.0
    %7801 = vmatprep.subr.mxu0 0.0
    %7802 = vmatpush1.msra.mxu0 0.0
    %7803 = vmatprep.subr.mxu0 0.0
    %7804 = vmatpush1.msra.mxu0 0.0
    %7805 = vmatprep.subr.mxu0 0.0
    %7806 = vmatpush1.msra.mxu0 0.0
    %7807 = vmatprep.subr.mxu0 0.0
    %7808 = vmatpush1.msra.mxu0 0.0
    %7809 = vmatprep.subr.mxu0 0.0
    %7810 = vmatpush1.msra.mxu0 0.0
    %7811 = vmatprep.subr.mxu0 0.0
    %7812 = vmatpush1.msra.mxu0 0.0
    %7813 = vmatprep.subr.mxu0 0.0
    %7814 = vmatpush1.msra.mxu0 0.0
    %7815 = vmatprep.subr.mxu0 0.0
    %7816 = vmatpush1.msra.mxu0 0.0
    %7817 = vmatprep.subr.mxu0 0.0
    %7818 = vmatpush1.msra.mxu0 0.0
    %7819 = vmatprep.subr.mxu0 0.0
    %7820 = vmatpush1.msra.mxu0 0.0
    %7821 = vmatprep.subr.mxu0 0.0
    %7822 = vmatpush1.msra.mxu0 0.0
    %7823 = vmatprep.subr.mxu0 0.0
    %7824 = vmatpush1.msra.mxu0 0.0
    %7825 = vmatprep.subr.mxu0 0.0
    %7826 = vmatpush1.msra.mxu0 0.0
    %7827 = vmatprep.subr.mxu0 0.0
    %7828 = vmatpush1.msra.mxu0 0.0
    %7829 = vmatprep.subr.mxu0 0.0
    %7830 = vmatpush1.msra.mxu0 0.0
    %7831 = vmatprep.subr.mxu0 0.0
    %7832 = vmatpush1.msra.mxu0 0.0
    %7833 = vmatprep.subr.mxu0 0.0
    %7834 = vmatpush1.msra.mxu0 0.0
    %7835 = vmatprep.subr.mxu0 0.0
    %7836 = vmatpush1.msra.mxu0 0.0
    %7837 = vmatprep.mubr.f32.mxu0 0.0
    %v7838 = vand.u32 %v4117, 4294901760
    %7839 = vmatmul.mubr.f32.gmra.mrb[0].mxu0 %v7838
    %v7840 = vpop.f32.mrb[0].mxu0
    %v7841 = vadd.f32 %v7730, %v7840
    %v7842 = vpop.f32.mrb[0].mxu0
    %7843 = vmatprep.mubr.f32.mxu0 0.0
    %v7844 = vand.u32 %v4120, 4294901760
    %7845 = vmatmul.mubr.f32.gmra.mrb[0].mxu0 %v7844
    %v7846 = vpop.f32.mrb[0].mxu0
    %v7847 = vadd.f32 %v7740, %v7846
    %v7848 = vpop.f32.mrb[0].mxu0
    %7849 = vmatprep.mubr.f32.mxu0 0.0
    %v7850 = vand.u32 %v4123, 4294901760
    %7851 = vmatmul.mubr.f32.gmra.mrb[0].mxu0 %v7850
    %v7852 = vpop.f32.mrb[0].mxu0
    %v7853 = vadd.f32 %v7750, %v7852
    %v7854 = vpop.f32.mrb[0].mxu0
    %7855 = vmatprep.mubr.f32.mxu0 0.0
    %v7856 = vand.u32 %v4126, 4294901760
    %7857 = vmatmul.mubr.f32.gmra.mrb[0].mxu0 %v7856
    %v7858 = vpop.f32.mrb[0].mxu0
    %v7859 = vadd.f32 %v7760, %v7858
    %v7860 = vpop.f32.mrb[0].mxu0
    %7861 = vdwg.mxu0
    %7862 = vmatprep.subr.mxu0 0.0
    %v7863 = vand.u32 %v3599, 4294901760
    %v7864 = vsub.f32 %v3599, %v7863
    %7865 = vmatpush1.msra.mxu0 %v7864
    %7866 = vmatprep.subr.mxu0 0.0
    %v7867 = vand.u32 %v3605, 4294901760
    %v7868 = vsub.f32 %v3605, %v7867
    %7869 = vmatpush1.msra.mxu0 %v7868
    %7870 = vmatprep.subr.mxu0 0.0
    %7871 = vmatpush1.msra.mxu0 0.0
    %7872 = vmatprep.subr.mxu0 0.0
    %7873 = vmatpush1.msra.mxu0 0.0
    %7874 = vmatprep.subr.mxu0 0.0
    %7875 = vmatpush1.msra.mxu0 0.0
    %7876 = vmatprep.subr.mxu0 0.0
    %7877 = vmatpush1.msra.mxu0 0.0
    %7878 = vmatprep.subr.mxu0 0.0
    %7879 = vmatpush1.msra.mxu0 0.0
    %7880 = vmatprep.subr.mxu0 0.0
    %7881 = vmatpush1.msra.mxu0 0.0
    %7882 = vmatprep.subr.mxu0 0.0
    %7883 = vmatpush1.msra.mxu0 0.0
    %7884 = vmatprep.subr.mxu0 0.0
    %7885 = vmatpush1.msra.mxu0 0.0
    %7886 = vmatprep.subr.mxu0 0.0
    %7887 = vmatpush1.msra.mxu0 0.0
    %7888 = vmatprep.subr.mxu0 0.0
    %7889 = vmatpush1.msra.mxu0 0.0
    %7890 = vmatprep.subr.mxu0 0.0
    %7891 = vmatpush1.msra.mxu0 0.0
    %7892 = vmatprep.subr.mxu0 0.0
    %7893 = vmatpush1.msra.mxu0 0.0
    %7894 = vmatprep.subr.mxu0 0.0
    %7895 = vmatpush1.msra.mxu0 0.0
    %7896 = vmatprep.subr.mxu0 0.0
    %7897 = vmatpush1.msra.mxu0 0.0
    %7898 = vmatprep.subr.mxu0 0.0
    %7899 = vmatpush1.msra.mxu0 0.0
    %7900 = vmatprep.subr.mxu0 0.0
    %7901 = vmatpush1.msra.mxu0 0.0
    %7902 = vmatprep.subr.mxu0 0.0
    %7903 = vmatpush1.msra.mxu0 0.0
    %7904 = vmatprep.subr.mxu0 0.0
    %7905 = vmatpush1.msra.mxu0 0.0
    %7906 = vmatprep.subr.mxu0 0.0
    %7907 = vmatpush1.msra.mxu0 0.0
    %7908 = vmatprep.subr.mxu0 0.0
    %7909 = vmatpush1.msra.mxu0 0.0
    %7910 = vmatprep.subr.mxu0 0.0
    %7911 = vmatpush1.msra.mxu0 0.0
    %7912 = vmatprep.subr.mxu0 0.0
    %7913 = vmatpush1.msra.mxu0 0.0
    %7914 = vmatprep.subr.mxu0 0.0
    %7915 = vmatpush1.msra.mxu0 0.0
    %7916 = vmatprep.subr.mxu0 0.0
    %7917 = vmatpush1.msra.mxu0 0.0
    %7918 = vmatprep.subr.mxu0 0.0
    %7919 = vmatpush1.msra.mxu0 0.0
    %7920 = vmatprep.subr.mxu0 0.0
    %7921 = vmatpush1.msra.mxu0 0.0
    %7922 = vmatprep.subr.mxu0 0.0
    %7923 = vmatpush1.msra.mxu0 0.0
    %7924 = vmatprep.subr.mxu0 0.0
    %7925 = vmatpush1.msra.mxu0 0.0
    %7926 = vmatprep.subr.mxu0 0.0
    %7927 = vmatpush1.msra.mxu0 0.0
    %7928 = vmatprep.subr.mxu0 0.0
    %7929 = vmatpush1.msra.mxu0 0.0
    %7930 = vmatprep.mubr.f32.mxu0 0.0
    %v7931 = vand.u32 %v4117, 4294901760
    %v7932 = vsub.f32 %v4117, %v7931
    %7933 = vmatmul.mubr.f32.gmra.mrb[0].mxu0 %v7932
    %v7934 = vpop.f32.mrb[0].mxu0
    %v7935 = vadd.f32 %v7841, %v7934
    %v7936 = vpop.f32.mrb[0].mxu0
    %7937 = vmatprep.mubr.f32.mxu0 0.0
    %v7938 = vand.u32 %v4120, 4294901760
    %v7939 = vsub.f32 %v4120, %v7938
    %7940 = vmatmul.mubr.f32.gmra.mrb[0].mxu0 %v7939
    %v7941 = vpop.f32.mrb[0].mxu0
    %v7942 = vadd.f32 %v7847, %v7941
    %v7943 = vpop.f32.mrb[0].mxu0
    %7944 = vmatprep.mubr.f32.mxu0 0.0
    %v7945 = vand.u32 %v4123, 4294901760
    %v7946 = vsub.f32 %v4123, %v7945
    %7947 = vmatmul.mubr.f32.gmra.mrb[0].mxu0 %v7946
    %v7948 = vpop.f32.mrb[0].mxu0
    %v7949 = vadd.f32 %v7853, %v7948
    %v7950 = vpop.f32.mrb[0].mxu0
    %7951 = vmatprep.mubr.f32.mxu0 0.0
    %v7952 = vand.u32 %v4126, 4294901760
    %v7953 = vsub.f32 %v4126, %v7952
    %7954 = vmatmul.mubr.f32.gmra.mrb[0].mxu0 %v7953
    %v7955 = vpop.f32.mrb[0].mxu0
    %v7956 = vadd.f32 %v7859, %v7955
    %v7957 = vpop.f32.mrb[0].mxu0
    %7958 = vdwg.mxu0
    %7959 = vmatprep.subr.mxu0 0.0
    %v7960 = vand.u32 %v3599, 4294901760
    %7961 = vmatpush1.msra.mxu0 %v7960
    %7962 = vmatprep.subr.mxu0 0.0
    %v7963 = vand.u32 %v3605, 4294901760
    %7964 = vmatpush1.msra.mxu0 %v7963
    %7965 = vmatprep.subr.mxu0 0.0
    %7966 = vmatpush1.msra.mxu0 0.0
    %7967 = vmatprep.subr.mxu0 0.0
    %7968 = vmatpush1.msra.mxu0 0.0
    %7969 = vmatprep.subr.mxu0 0.0
    %7970 = vmatpush1.msra.mxu0 0.0
    %7971 = vmatprep.subr.mxu0 0.0
    %7972 = vmatpush1.msra.mxu0 0.0
    %7973 = vmatprep.subr.mxu0 0.0
    %7974 = vmatpush1.msra.mxu0 0.0
    %7975 = vmatprep.subr.mxu0 0.0
    %7976 = vmatpush1.msra.mxu0 0.0
    %7977 = vmatprep.subr.mxu0 0.0
    %7978 = vmatpush1.msra.mxu0 0.0
    %7979 = vmatprep.subr.mxu0 0.0
    %7980 = vmatpush1.msra.mxu0 0.0
    %7981 = vmatprep.subr.mxu0 0.0
    %7982 = vmatpush1.msra.mxu0 0.0
    %7983 = vmatprep.subr.mxu0 0.0
    %7984 = vmatpush1.msra.mxu0 0.0
    %7985 = vmatprep.subr.mxu0 0.0
    %7986 = vmatpush1.msra.mxu0 0.0
    %7987 = vmatprep.subr.mxu0 0.0
    %7988 = vmatpush1.msra.mxu0 0.0
    %7989 = vmatprep.subr.mxu0 0.0
    %7990 = vmatpush1.msra.mxu0 0.0
    %7991 = vmatprep.subr.mxu0 0.0
    %7992 = vmatpush1.msra.mxu0 0.0
    %7993 = vmatprep.subr.mxu0 0.0
    %7994 = vmatpush1.msra.mxu0 0.0
    %7995 = vmatprep.subr.mxu0 0.0
    %7996 = vmatpush1.msra.mxu0 0.0
    %7997 = vmatprep.subr.mxu0 0.0
    %7998 = vmatpush1.msra.mxu0 0.0
    %7999 = vmatprep.subr.mxu0 0.0
    %8000 = vmatpush1.msra.mxu0 0.0
    %8001 = vmatprep.subr.mxu0 0.0
    %8002 = vmatpush1.msra.mxu0 0.0
    %8003 = vmatprep.subr.mxu0 0.0
    %8004 = vmatpush1.msra.mxu0 0.0
    %8005 = vmatprep.subr.mxu0 0.0
    %8006 = vmatpush1.msra.mxu0 0.0
    %8007 = vmatprep.subr.mxu0 0.0
    %8008 = vmatpush1.msra.mxu0 0.0
    %8009 = vmatprep.subr.mxu0 0.0
    %8010 = vmatpush1.msra.mxu0 0.0
    %8011 = vmatprep.subr.mxu0 0.0
    %8012 = vmatpush1.msra.mxu0 0.0
    %8013 = vmatprep.subr.mxu0 0.0
    %8014 = vmatpush1.msra.mxu0 0.0
    %8015 = vmatprep.subr.mxu0 0.0
    %8016 = vmatpush1.msra.mxu0 0.0
    %8017 = vmatprep.subr.mxu0 0.0
    %8018 = vmatpush1.msra.mxu0 0.0
    %8019 = vmatprep.subr.mxu0 0.0
    %8020 = vmatpush1.msra.mxu0 0.0
    %8021 = vmatprep.subr.mxu0 0.0
    %8022 = vmatpush1.msra.mxu0 0.0
    %8023 = vmatprep.subr.mxu0 0.0
    %8024 = vmatpush1.msra.mxu0 0.0
    %8025 = vmatprep.mubr.f32.mxu0 0.0
    %v8026 = vand.u32 %v4117, 4294901760
    %v8027 = vsub.f32 %v4117, %v8026
    %v8028 = vand.u32 %v8027, 4294901760
    %8029 = vmatmul.mubr.f32.gmra.mrb[0].mxu0 %v8028
    %v8030 = vpop.f32.mrb[0].mxu0
    %v8031 = vadd.f32 %v7935, %v8030
    %v8032 = vpop.f32.mrb[0].mxu0
    %8033 = vmatprep.mubr.f32.mxu0 0.0
    %v8034 = vand.u32 %v4120, 4294901760
    %v8035 = vsub.f32 %v4120, %v8034
    %v8036 = vand.u32 %v8035, 4294901760
    %8037 = vmatmul.mubr.f32.gmra.mrb[0].mxu0 %v8036
    %v8038 = vpop.f32.mrb[0].mxu0
    %v8039 = vadd.f32 %v7942, %v8038
    %v8040 = vpop.f32.mrb[0].mxu0
    %8041 = vmatprep.mubr.f32.mxu0 0.0
    %v8042 = vand.u32 %v4123, 4294901760
    %v8043 = vsub.f32 %v4123, %v8042
    %v8044 = vand.u32 %v8043, 4294901760
    %8045 = vmatmul.mubr.f32.gmra.mrb[0].mxu0 %v8044
    %v8046 = vpop.f32.mrb[0].mxu0
    %v8047 = vadd.f32 %v7949, %v8046
    %v8048 = vpop.f32.mrb[0].mxu0
    %8049 = vmatprep.mubr.f32.mxu0 0.0
    %v8050 = vand.u32 %v4126, 4294901760
    %v8051 = vsub.f32 %v4126, %v8050
    %v8052 = vand.u32 %v8051, 4294901760
    %8053 = vmatmul.mubr.f32.gmra.mrb[0].mxu0 %v8052
    %v8054 = vpop.f32.mrb[0].mxu0
    %v8055 = vadd.f32 %v7956, %v8054
    %v8056 = vpop.f32.mrb[0].mxu0
    %8057 = vdwg.mxu0
    %8058 = vmatprep.subr.mxu0 0.0
    %v8059 = vand.u32 %v3599, 4294901760
    %v8060 = vsub.f32 %v3599, %v8059
    %v8061 = vand.u32 %v8060, 4294901760
    %8062 = vmatpush1.msra.mxu0 %v8061
    %8063 = vmatprep.subr.mxu0 0.0
    %v8064 = vand.u32 %v3605, 4294901760
    %v8065 = vsub.f32 %v3605, %v8064
    %v8066 = vand.u32 %v8065, 4294901760
    %8067 = vmatpush1.msra.mxu0 %v8066
    %8068 = vmatprep.subr.mxu0 0.0
    %8069 = vmatpush1.msra.mxu0 0.0
    %8070 = vmatprep.subr.mxu0 0.0
    %8071 = vmatpush1.msra.mxu0 0.0
    %8072 = vmatprep.subr.mxu0 0.0
    %8073 = vmatpush1.msra.mxu0 0.0
    %8074 = vmatprep.subr.mxu0 0.0
    %8075 = vmatpush1.msra.mxu0 0.0
    %8076 = vmatprep.subr.mxu0 0.0
    %8077 = vmatpush1.msra.mxu0 0.0
    %8078 = vmatprep.subr.mxu0 0.0
    %8079 = vmatpush1.msra.mxu0 0.0
    %8080 = vmatprep.subr.mxu0 0.0
    %8081 = vmatpush1.msra.mxu0 0.0
    %8082 = vmatprep.subr.mxu0 0.0
    %8083 = vmatpush1.msra.mxu0 0.0
    %8084 = vmatprep.subr.mxu0 0.0
    %8085 = vmatpush1.msra.mxu0 0.0
    %8086 = vmatprep.subr.mxu0 0.0
    %8087 = vmatpush1.msra.mxu0 0.0
    %8088 = vmatprep.subr.mxu0 0.0
    %8089 = vmatpush1.msra.mxu0 0.0
    %8090 = vmatprep.subr.mxu0 0.0
    %8091 = vmatpush1.msra.mxu0 0.0
    %8092 = vmatprep.subr.mxu0 0.0
    %8093 = vmatpush1.msra.mxu0 0.0
    %8094 = vmatprep.subr.mxu0 0.0
    %8095 = vmatpush1.msra.mxu0 0.0
    %8096 = vmatprep.subr.mxu0 0.0
    %8097 = vmatpush1.msra.mxu0 0.0
    %8098 = vmatprep.subr.mxu0 0.0
    %8099 = vmatpush1.msra.mxu0 0.0
    %8100 = vmatprep.subr.mxu0 0.0
    %8101 = vmatpush1.msra.mxu0 0.0
    %8102 = vmatprep.subr.mxu0 0.0
    %8103 = vmatpush1.msra.mxu0 0.0
    %8104 = vmatprep.subr.mxu0 0.0
    %8105 = vmatpush1.msra.mxu0 0.0
    %8106 = vmatprep.subr.mxu0 0.0
    %8107 = vmatpush1.msra.mxu0 0.0
    %8108 = vmatprep.subr.mxu0 0.0
    %8109 = vmatpush1.msra.mxu0 0.0
    %8110 = vmatprep.subr.mxu0 0.0
    %8111 = vmatpush1.msra.mxu0 0.0
    %8112 = vmatprep.subr.mxu0 0.0
    %8113 = vmatpush1.msra.mxu0 0.0
    %8114 = vmatprep.subr.mxu0 0.0
    %8115 = vmatpush1.msra.mxu0 0.0
    %8116 = vmatprep.subr.mxu0 0.0
    %8117 = vmatpush1.msra.mxu0 0.0
    %8118 = vmatprep.subr.mxu0 0.0
    %8119 = vmatpush1.msra.mxu0 0.0
    %8120 = vmatprep.subr.mxu0 0.0
    %8121 = vmatpush1.msra.mxu0 0.0
    %8122 = vmatprep.subr.mxu0 0.0
    %8123 = vmatpush1.msra.mxu0 0.0
    %8124 = vmatprep.subr.mxu0 0.0
    %8125 = vmatpush1.msra.mxu0 0.0
    %8126 = vmatprep.subr.mxu0 0.0
    %8127 = vmatpush1.msra.mxu0 0.0
    %8128 = vmatprep.mubr.f32.mxu0 0.0
    %v8129 = vand.u32 %v4117, 4294901760
    %8130 = vmatmul.mubr.f32.gmra.mrb[0].mxu0 %v8129
    %v8131 = vpop.f32.mrb[0].mxu0
    %v8132 = vadd.f32 %v8031, %v8131
    %v8133 = vpop.f32.mrb[0].mxu0
    %8134 = vmatprep.mubr.f32.mxu0 0.0
    %v8135 = vand.u32 %v4120, 4294901760
    %8136 = vmatmul.mubr.f32.gmra.mrb[0].mxu0 %v8135
    %v8137 = vpop.f32.mrb[0].mxu0
    %v8138 = vadd.f32 %v8039, %v8137
    %v8139 = vpop.f32.mrb[0].mxu0
    %8140 = vmatprep.mubr.f32.mxu0 0.0
    %v8141 = vand.u32 %v4123, 4294901760
    %8142 = vmatmul.mubr.f32.gmra.mrb[0].mxu0 %v8141
    %v8143 = vpop.f32.mrb[0].mxu0
    %v8144 = vadd.f32 %v8047, %v8143
    %v8145 = vpop.f32.mrb[0].mxu0
    %8146 = vmatprep.mubr.f32.mxu0 0.0
    %v8147 = vand.u32 %v4126, 4294901760
    %8148 = vmatmul.mubr.f32.gmra.mrb[0].mxu0 %v8147
    %v8149 = vpop.f32.mrb[0].mxu0
    %v8150 = vadd.f32 %v8055, %v8149
    %v8151 = vpop.f32.mrb[0].mxu0
    %8152 = vdwg.mxu0
    %8153 = vmatprep.subr.mxu0 0.0
    %v8154 = vand.u32 %v3599, 4294901760
    %8155 = vmatpush1.msra.mxu0 %v8154
    %8156 = vmatprep.subr.mxu0 0.0
    %v8157 = vand.u32 %v3605, 4294901760
    %8158 = vmatpush1.msra.mxu0 %v8157
    %8159 = vmatprep.subr.mxu0 0.0
    %8160 = vmatpush1.msra.mxu0 0.0
    %8161 = vmatprep.subr.mxu0 0.0
    %8162 = vmatpush1.msra.mxu0 0.0
    %8163 = vmatprep.subr.mxu0 0.0
    %8164 = vmatpush1.msra.mxu0 0.0
    %8165 = vmatprep.subr.mxu0 0.0
    %8166 = vmatpush1.msra.mxu0 0.0
    %8167 = vmatprep.subr.mxu0 0.0
    %8168 = vmatpush1.msra.mxu0 0.0
    %8169 = vmatprep.subr.mxu0 0.0
    %8170 = vmatpush1.msra.mxu0 0.0
    %8171 = vmatprep.subr.mxu0 0.0
    %8172 = vmatpush1.msra.mxu0 0.0
    %8173 = vmatprep.subr.mxu0 0.0
    %8174 = vmatpush1.msra.mxu0 0.0
    %8175 = vmatprep.subr.mxu0 0.0
    %8176 = vmatpush1.msra.mxu0 0.0
    %8177 = vmatprep.subr.mxu0 0.0
    %8178 = vmatpush1.msra.mxu0 0.0
    %8179 = vmatprep.subr.mxu0 0.0
    %8180 = vmatpush1.msra.mxu0 0.0
    %8181 = vmatprep.subr.mxu0 0.0
    %8182 = vmatpush1.msra.mxu0 0.0
    %8183 = vmatprep.subr.mxu0 0.0
    %8184 = vmatpush1.msra.mxu0 0.0
    %8185 = vmatprep.subr.mxu0 0.0
    %8186 = vmatpush1.msra.mxu0 0.0
    %8187 = vmatprep.subr.mxu0 0.0
    %8188 = vmatpush1.msra.mxu0 0.0
    %8189 = vmatprep.subr.mxu0 0.0
    %8190 = vmatpush1.msra.mxu0 0.0
    %8191 = vmatprep.subr.mxu0 0.0
    %8192 = vmatpush1.msra.mxu0 0.0
    %8193 = vmatprep.subr.mxu0 0.0
    %8194 = vmatpush1.msra.mxu0 0.0
    %8195 = vmatprep.subr.mxu0 0.0
    %8196 = vmatpush1.msra.mxu0 0.0
    %8197 = vmatprep.subr.mxu0 0.0
    %8198 = vmatpush1.msra.mxu0 0.0
    %8199 = vmatprep.subr.mxu0 0.0
    %8200 = vmatpush1.msra.mxu0 0.0
    %8201 = vmatprep.subr.mxu0 0.0
    %8202 = vmatpush1.msra.mxu0 0.0
    %8203 = vmatprep.subr.mxu0 0.0
    %8204 = vmatpush1.msra.mxu0 0.0
    %8205 = vmatprep.subr.mxu0 0.0
    %8206 = vmatpush1.msra.mxu0 0.0
    %8207 = vmatprep.subr.mxu0 0.0
    %8208 = vmatpush1.msra.mxu0 0.0
    %8209 = vmatprep.subr.mxu0 0.0
    %8210 = vmatpush1.msra.mxu0 0.0
    %8211 = vmatprep.subr.mxu0 0.0
    %8212 = vmatpush1.msra.mxu0 0.0
    %8213 = vmatprep.subr.mxu0 0.0
    %8214 = vmatpush1.msra.mxu0 0.0
    %8215 = vmatprep.subr.mxu0 0.0
    %8216 = vmatpush1.msra.mxu0 0.0
    %8217 = vmatprep.subr.mxu0 0.0
    %8218 = vmatpush1.msra.mxu0 0.0
    %8219 = vmatprep.mubr.f32.mxu0 0.0
    %v8220 = vand.u32 %v4117, 4294901760
    %8221 = vmatmul.mubr.f32.gmra.mrb[0].mxu0 %v8220
    %v8222 = vpop.f32.mrb[0].mxu0
    %v8223 = vadd.f32 %v8132, %v8222
    %v8224 = vpop.f32.mrb[0].mxu0
    %8225 = vmatprep.mubr.f32.mxu0 0.0
    %v8226 = vand.u32 %v4120, 4294901760
    %8227 = vmatmul.mubr.f32.gmra.mrb[0].mxu0 %v8226
    %v8228 = vpop.f32.mrb[0].mxu0
    %v8229 = vadd.f32 %v8138, %v8228
    %v8230 = vpop.f32.mrb[0].mxu0
    %8231 = vmatprep.mubr.f32.mxu0 0.0
    %v8232 = vand.u32 %v4123, 4294901760
    %8233 = vmatmul.mubr.f32.gmra.mrb[0].mxu0 %v8232
    %v8234 = vpop.f32.mrb[0].mxu0
    %v8235 = vadd.f32 %v8144, %v8234
    %v8236 = vpop.f32.mrb[0].mxu0
    %8237 = vmatprep.mubr.f32.mxu0 0.0
    %v8238 = vand.u32 %v4126, 4294901760
    %8239 = vmatmul.mubr.f32.gmra.mrb[0].mxu0 %v8238
    %v8240 = vpop.f32.mrb[0].mxu0
    %v8241 = vadd.f32 %v8150, %v8240
    %v8242 = vpop.f32.mrb[0].mxu0
    %8243 = vdwg.mxu0
    %8244 = vmatprep.subr.mxu0 0.0
    %v8245 = vand.u32 %v4107, 4294901760
    %8246 = vmatpush1.msra.mxu0 %v8245
    %8247 = vmatprep.subr.mxu0 0.0
    %v8248 = vand.u32 %v4113, 4294901760
    %8249 = vmatpush1.msra.mxu0 %v8248
    %8250 = vmatprep.subr.mxu0 0.0
    %8251 = vmatpush1.msra.mxu0 0.0
    %8252 = vmatprep.subr.mxu0 0.0
    %8253 = vmatpush1.msra.mxu0 0.0
    %8254 = vmatprep.subr.mxu0 0.0
    %8255 = vmatpush1.msra.mxu0 0.0
    %8256 = vmatprep.subr.mxu0 0.0
    %8257 = vmatpush1.msra.mxu0 0.0
    %8258 = vmatprep.subr.mxu0 0.0
    %8259 = vmatpush1.msra.mxu0 0.0
    %8260 = vmatprep.subr.mxu0 0.0
    %8261 = vmatpush1.msra.mxu0 0.0
    %8262 = vmatprep.subr.mxu0 0.0
    %8263 = vmatpush1.msra.mxu0 0.0
    %8264 = vmatprep.subr.mxu0 0.0
    %8265 = vmatpush1.msra.mxu0 0.0
    %8266 = vmatprep.subr.mxu0 0.0
    %8267 = vmatpush1.msra.mxu0 0.0
    %8268 = vmatprep.subr.mxu0 0.0
    %8269 = vmatpush1.msra.mxu0 0.0
    %8270 = vmatprep.subr.mxu0 0.0
    %8271 = vmatpush1.msra.mxu0 0.0
    %8272 = vmatprep.subr.mxu0 0.0
    %8273 = vmatpush1.msra.mxu0 0.0
    %8274 = vmatprep.subr.mxu0 0.0
    %8275 = vmatpush1.msra.mxu0 0.0
    %8276 = vmatprep.subr.mxu0 0.0
    %8277 = vmatpush1.msra.mxu0 0.0
    %8278 = vmatprep.subr.mxu0 0.0
    %8279 = vmatpush1.msra.mxu0 0.0
    %8280 = vmatprep.subr.mxu0 0.0
    %8281 = vmatpush1.msra.mxu0 0.0
    %8282 = vmatprep.subr.mxu0 0.0
    %8283 = vmatpush1.msra.mxu0 0.0
    %8284 = vmatprep.subr.mxu0 0.0
    %8285 = vmatpush1.msra.mxu0 0.0
    %8286 = vmatprep.subr.mxu0 0.0
    %8287 = vmatpush1.msra.mxu0 0.0
    %8288 = vmatprep.subr.mxu0 0.0
    %8289 = vmatpush1.msra.mxu0 0.0
    %8290 = vmatprep.subr.mxu0 0.0
    %8291 = vmatpush1.msra.mxu0 0.0
    %8292 = vmatprep.subr.mxu0 0.0
    %8293 = vmatpush1.msra.mxu0 0.0
    %8294 = vmatprep.subr.mxu0 0.0
    %8295 = vmatpush1.msra.mxu0 0.0
    %8296 = vmatprep.subr.mxu0 0.0
    %8297 = vmatpush1.msra.mxu0 0.0
    %8298 = vmatprep.subr.mxu0 0.0
    %8299 = vmatpush1.msra.mxu0 0.0
    %8300 = vmatprep.subr.mxu0 0.0
    %8301 = vmatpush1.msra.mxu0 0.0
    %8302 = vmatprep.subr.mxu0 0.0
    %8303 = vmatpush1.msra.mxu0 0.0
    %8304 = vmatprep.subr.mxu0 0.0
    %8305 = vmatpush1.msra.mxu0 0.0
    %8306 = vmatprep.subr.mxu0 0.0
    %8307 = vmatpush1.msra.mxu0 0.0
    %8308 = vmatprep.subr.mxu0 0.0
    %8309 = vmatpush1.msra.mxu0 0.0
    %8310 = vmatprep.mubr.f32.mxu0 0.0
    %v8311 = vand.u32 %v4117, 4294901760
    %v8312 = vsub.f32 %v4117, %v8311
    %v8313 = vand.u32 %v8312, 4294901760
    %v8314 = vsub.f32 %v8312, %v8313
    %v8315 = vand.u32 %v8314, 4294901760
    %8316 = vmatmul.mubr.f32.gmra.mrb[0].mxu0 %v8315
    %v8317 = vpop.f32.mrb[0].mxu0
    %v8318 = vadd.f32 0.0, %v8317
    %v8319 = vpop.f32.mrb[0].mxu0
    %8320 = vmatprep.mubr.f32.mxu0 0.0
    %v8321 = vand.u32 %v4120, 4294901760
    %v8322 = vsub.f32 %v4120, %v8321
    %v8323 = vand.u32 %v8322, 4294901760
    %v8324 = vsub.f32 %v8322, %v8323
    %v8325 = vand.u32 %v8324, 4294901760
    %8326 = vmatmul.mubr.f32.gmra.mrb[0].mxu0 %v8325
    %v8327 = vpop.f32.mrb[0].mxu0
    %v8328 = vadd.f32 0.0, %v8327
    %v8329 = vpop.f32.mrb[0].mxu0
    %8330 = vmatprep.mubr.f32.mxu0 0.0
    %v8331 = vand.u32 %v4123, 4294901760
    %v8332 = vsub.f32 %v4123, %v8331
    %v8333 = vand.u32 %v8332, 4294901760
    %v8334 = vsub.f32 %v8332, %v8333
    %v8335 = vand.u32 %v8334, 4294901760
    %8336 = vmatmul.mubr.f32.gmra.mrb[0].mxu0 %v8335
    %v8337 = vpop.f32.mrb[0].mxu0
    %v8338 = vadd.f32 0.0, %v8337
    %v8339 = vpop.f32.mrb[0].mxu0
    %8340 = vmatprep.mubr.f32.mxu0 0.0
    %v8341 = vand.u32 %v4126, 4294901760
    %v8342 = vsub.f32 %v4126, %v8341
    %v8343 = vand.u32 %v8342, 4294901760
    %v8344 = vsub.f32 %v8342, %v8343
    %v8345 = vand.u32 %v8344, 4294901760
    %8346 = vmatmul.mubr.f32.gmra.mrb[0].mxu0 %v8345
    %v8347 = vpop.f32.mrb[0].mxu0
    %v8348 = vadd.f32 0.0, %v8347
    %v8349 = vpop.f32.mrb[0].mxu0
    %8350 = vdwg.mxu0
    %8351 = vmatprep.subr.mxu0 0.0
    %v8352 = vand.u32 %v4107, 4294901760
    %v8353 = vsub.f32 %v4107, %v8352
    %v8354 = vand.u32 %v8353, 4294901760
    %v8355 = vsub.f32 %v8353, %v8354
    %v8356 = vand.u32 %v8355, 4294901760
    %8357 = vmatpush1.msra.mxu0 %v8356
    %8358 = vmatprep.subr.mxu0 0.0
    %v8359 = vand.u32 %v4113, 4294901760
    %v8360 = vsub.f32 %v4113, %v8359
    %v8361 = vand.u32 %v8360, 4294901760
    %v8362 = vsub.f32 %v8360, %v8361
    %v8363 = vand.u32 %v8362, 4294901760
    %8364 = vmatpush1.msra.mxu0 %v8363
    %8365 = vmatprep.subr.mxu0 0.0
    %8366 = vmatpush1.msra.mxu0 0.0
    %8367 = vmatprep.subr.mxu0 0.0
    %8368 = vmatpush1.msra.mxu0 0.0
    %8369 = vmatprep.subr.mxu0 0.0
    %8370 = vmatpush1.msra.mxu0 0.0
    %8371 = vmatprep.subr.mxu0 0.0
    %8372 = vmatpush1.msra.mxu0 0.0
    %8373 = vmatprep.subr.mxu0 0.0
    %8374 = vmatpush1.msra.mxu0 0.0
    %8375 = vmatprep.subr.mxu0 0.0
    %8376 = vmatpush1.msra.mxu0 0.0
    %8377 = vmatprep.subr.mxu0 0.0
    %8378 = vmatpush1.msra.mxu0 0.0
    %8379 = vmatprep.subr.mxu0 0.0
    %8380 = vmatpush1.msra.mxu0 0.0
    %8381 = vmatprep.subr.mxu0 0.0
    %8382 = vmatpush1.msra.mxu0 0.0
    %8383 = vmatprep.subr.mxu0 0.0
    %8384 = vmatpush1.msra.mxu0 0.0
    %8385 = vmatprep.subr.mxu0 0.0
    %8386 = vmatpush1.msra.mxu0 0.0
    %8387 = vmatprep.subr.mxu0 0.0
    %8388 = vmatpush1.msra.mxu0 0.0
    %8389 = vmatprep.subr.mxu0 0.0
    %8390 = vmatpush1.msra.mxu0 0.0
    %8391 = vmatprep.subr.mxu0 0.0
    %8392 = vmatpush1.msra.mxu0 0.0
    %8393 = vmatprep.subr.mxu0 0.0
    %8394 = vmatpush1.msra.mxu0 0.0
    %8395 = vmatprep.subr.mxu0 0.0
    %8396 = vmatpush1.msra.mxu0 0.0
    %8397 = vmatprep.subr.mxu0 0.0
    %8398 = vmatpush1.msra.mxu0 0.0
    %8399 = vmatprep.subr.mxu0 0.0
    %8400 = vmatpush1.msra.mxu0 0.0
    %8401 = vmatprep.subr.mxu0 0.0
    %8402 = vmatpush1.msra.mxu0 0.0
    %8403 = vmatprep.subr.mxu0 0.0
    %8404 = vmatpush1.msra.mxu0 0.0
    %8405 = vmatprep.subr.mxu0 0.0
    %8406 = vmatpush1.msra.mxu0 0.0
    %8407 = vmatprep.subr.mxu0 0.0
    %8408 = vmatpush1.msra.mxu0 0.0
    %8409 = vmatprep.subr.mxu0 0.0
    %8410 = vmatpush1.msra.mxu0 0.0
    %8411 = vmatprep.subr.mxu0 0.0
    %8412 = vmatpush1.msra.mxu0 0.0
    %8413 = vmatprep.subr.mxu0 0.0
    %8414 = vmatpush1.msra.mxu0 0.0
    %8415 = vmatprep.subr.mxu0 0.0
    %8416 = vmatpush1.msra.mxu0 0.0
    %8417 = vmatprep.subr.mxu0 0.0
    %8418 = vmatpush1.msra.mxu0 0.0
    %8419 = vmatprep.subr.mxu0 0.0
    %8420 = vmatpush1.msra.mxu0 0.0
    %8421 = vmatprep.subr.mxu0 0.0
    %8422 = vmatpush1.msra.mxu0 0.0
    %8423 = vmatprep.subr.mxu0 0.0
    %8424 = vmatpush1.msra.mxu0 0.0
    %8425 = vmatprep.mubr.f32.mxu0 0.0
    %v8426 = vand.u32 %v4117, 4294901760
    %8427 = vmatmul.mubr.f32.gmra.mrb[0].mxu0 %v8426
    %v8428 = vpop.f32.mrb[0].mxu0
    %v8429 = vadd.f32 %v8318, %v8428
    %v8430 = vpop.f32.mrb[0].mxu0
    %8431 = vmatprep.mubr.f32.mxu0 0.0
    %v8432 = vand.u32 %v4120, 4294901760
    %8433 = vmatmul.mubr.f32.gmra.mrb[0].mxu0 %v8432
    %v8434 = vpop.f32.mrb[0].mxu0
    %v8435 = vadd.f32 %v8328, %v8434
    %v8436 = vpop.f32.mrb[0].mxu0
    %8437 = vmatprep.mubr.f32.mxu0 0.0
    %v8438 = vand.u32 %v4123, 4294901760
    %8439 = vmatmul.mubr.f32.gmra.mrb[0].mxu0 %v8438
    %v8440 = vpop.f32.mrb[0].mxu0
    %v8441 = vadd.f32 %v8338, %v8440
    %v8442 = vpop.f32.mrb[0].mxu0
    %8443 = vmatprep.mubr.f32.mxu0 0.0
    %v8444 = vand.u32 %v4126, 4294901760
    %8445 = vmatmul.mubr.f32.gmra.mrb[0].mxu0 %v8444
    %v8446 = vpop.f32.mrb[0].mxu0
    %v8447 = vadd.f32 %v8348, %v8446
    %v8448 = vpop.f32.mrb[0].mxu0
    %8449 = vdwg.mxu0
    %8450 = vmatprep.subr.mxu0 0.0
    %v8451 = vand.u32 %v4107, 4294901760
    %v8452 = vsub.f32 %v4107, %v8451
    %8453 = vmatpush1.msra.mxu0 %v8452
    %8454 = vmatprep.subr.mxu0 0.0
    %v8455 = vand.u32 %v4113, 4294901760
    %v8456 = vsub.f32 %v4113, %v8455
    %8457 = vmatpush1.msra.mxu0 %v8456
    %8458 = vmatprep.subr.mxu0 0.0
    %8459 = vmatpush1.msra.mxu0 0.0
    %8460 = vmatprep.subr.mxu0 0.0
    %8461 = vmatpush1.msra.mxu0 0.0
    %8462 = vmatprep.subr.mxu0 0.0
    %8463 = vmatpush1.msra.mxu0 0.0
    %8464 = vmatprep.subr.mxu0 0.0
    %8465 = vmatpush1.msra.mxu0 0.0
    %8466 = vmatprep.subr.mxu0 0.0
    %8467 = vmatpush1.msra.mxu0 0.0
    %8468 = vmatprep.subr.mxu0 0.0
    %8469 = vmatpush1.msra.mxu0 0.0
    %8470 = vmatprep.subr.mxu0 0.0
    %8471 = vmatpush1.msra.mxu0 0.0
    %8472 = vmatprep.subr.mxu0 0.0
    %8473 = vmatpush1.msra.mxu0 0.0
    %8474 = vmatprep.subr.mxu0 0.0
    %8475 = vmatpush1.msra.mxu0 0.0
    %8476 = vmatprep.subr.mxu0 0.0
    %8477 = vmatpush1.msra.mxu0 0.0
    %8478 = vmatprep.subr.mxu0 0.0
    %8479 = vmatpush1.msra.mxu0 0.0
    %8480 = vmatprep.subr.mxu0 0.0
    %8481 = vmatpush1.msra.mxu0 0.0
    %8482 = vmatprep.subr.mxu0 0.0
    %8483 = vmatpush1.msra.mxu0 0.0
    %8484 = vmatprep.subr.mxu0 0.0
    %8485 = vmatpush1.msra.mxu0 0.0
    %8486 = vmatprep.subr.mxu0 0.0
    %8487 = vmatpush1.msra.mxu0 0.0
    %8488 = vmatprep.subr.mxu0 0.0
    %8489 = vmatpush1.msra.mxu0 0.0
    %8490 = vmatprep.subr.mxu0 0.0
    %8491 = vmatpush1.msra.mxu0 0.0
    %8492 = vmatprep.subr.mxu0 0.0
    %8493 = vmatpush1.msra.mxu0 0.0
    %8494 = vmatprep.subr.mxu0 0.0
    %8495 = vmatpush1.msra.mxu0 0.0
    %8496 = vmatprep.subr.mxu0 0.0
    %8497 = vmatpush1.msra.mxu0 0.0
    %8498 = vmatprep.subr.mxu0 0.0
    %8499 = vmatpush1.msra.mxu0 0.0
    %8500 = vmatprep.subr.mxu0 0.0
    %8501 = vmatpush1.msra.mxu0 0.0
    %8502 = vmatprep.subr.mxu0 0.0
    %8503 = vmatpush1.msra.mxu0 0.0
    %8504 = vmatprep.subr.mxu0 0.0
    %8505 = vmatpush1.msra.mxu0 0.0
    %8506 = vmatprep.subr.mxu0 0.0
    %8507 = vmatpush1.msra.mxu0 0.0
    %8508 = vmatprep.subr.mxu0 0.0
    %8509 = vmatpush1.msra.mxu0 0.0
    %8510 = vmatprep.subr.mxu0 0.0
    %8511 = vmatpush1.msra.mxu0 0.0
    %8512 = vmatprep.subr.mxu0 0.0
    %8513 = vmatpush1.msra.mxu0 0.0
    %8514 = vmatprep.subr.mxu0 0.0
    %8515 = vmatpush1.msra.mxu0 0.0
    %8516 = vmatprep.subr.mxu0 0.0
    %8517 = vmatpush1.msra.mxu0 0.0
    %8518 = vmatprep.mubr.f32.mxu0 0.0
    %v8519 = vand.u32 %v4117, 4294901760
    %v8520 = vsub.f32 %v4117, %v8519
    %8521 = vmatmul.mubr.f32.gmra.mrb[0].mxu0 %v8520
    %v8522 = vpop.f32.mrb[0].mxu0
    %v8523 = vadd.f32 %v8429, %v8522
    %v8524 = vpop.f32.mrb[0].mxu0
    %8525 = vmatprep.mubr.f32.mxu0 0.0
    %v8526 = vand.u32 %v4120, 4294901760
    %v8527 = vsub.f32 %v4120, %v8526
    %8528 = vmatmul.mubr.f32.gmra.mrb[0].mxu0 %v8527
    %v8529 = vpop.f32.mrb[0].mxu0
    %v8530 = vadd.f32 %v8435, %v8529
    %v8531 = vpop.f32.mrb[0].mxu0
    %8532 = vmatprep.mubr.f32.mxu0 0.0
    %v8533 = vand.u32 %v4123, 4294901760
    %v8534 = vsub.f32 %v4123, %v8533
    %8535 = vmatmul.mubr.f32.gmra.mrb[0].mxu0 %v8534
    %v8536 = vpop.f32.mrb[0].mxu0
    %v8537 = vadd.f32 %v8441, %v8536
    %v8538 = vpop.f32.mrb[0].mxu0
    %8539 = vmatprep.mubr.f32.mxu0 0.0
    %v8540 = vand.u32 %v4126, 4294901760
    %v8541 = vsub.f32 %v4126, %v8540
    %8542 = vmatmul.mubr.f32.gmra.mrb[0].mxu0 %v8541
    %v8543 = vpop.f32.mrb[0].mxu0
    %v8544 = vadd.f32 %v8447, %v8543
    %v8545 = vpop.f32.mrb[0].mxu0
    %8546 = vdwg.mxu0
    %8547 = vmatprep.subr.mxu0 0.0
    %v8548 = vand.u32 %v4107, 4294901760
    %8549 = vmatpush1.msra.mxu0 %v8548
    %8550 = vmatprep.subr.mxu0 0.0
    %v8551 = vand.u32 %v4113, 4294901760
    %8552 = vmatpush1.msra.mxu0 %v8551
    %8553 = vmatprep.subr.mxu0 0.0
    %8554 = vmatpush1.msra.mxu0 0.0
    %8555 = vmatprep.subr.mxu0 0.0
    %8556 = vmatpush1.msra.mxu0 0.0
    %8557 = vmatprep.subr.mxu0 0.0
    %8558 = vmatpush1.msra.mxu0 0.0
    %8559 = vmatprep.subr.mxu0 0.0
    %8560 = vmatpush1.msra.mxu0 0.0
    %8561 = vmatprep.subr.mxu0 0.0
    %8562 = vmatpush1.msra.mxu0 0.0
    %8563 = vmatprep.subr.mxu0 0.0
    %8564 = vmatpush1.msra.mxu0 0.0
    %8565 = vmatprep.subr.mxu0 0.0
    %8566 = vmatpush1.msra.mxu0 0.0
    %8567 = vmatprep.subr.mxu0 0.0
    %8568 = vmatpush1.msra.mxu0 0.0
    %8569 = vmatprep.subr.mxu0 0.0
    %8570 = vmatpush1.msra.mxu0 0.0
    %8571 = vmatprep.subr.mxu0 0.0
    %8572 = vmatpush1.msra.mxu0 0.0
    %8573 = vmatprep.subr.mxu0 0.0
    %8574 = vmatpush1.msra.mxu0 0.0
    %8575 = vmatprep.subr.mxu0 0.0
    %8576 = vmatpush1.msra.mxu0 0.0
    %8577 = vmatprep.subr.mxu0 0.0
    %8578 = vmatpush1.msra.mxu0 0.0
    %8579 = vmatprep.subr.mxu0 0.0
    %8580 = vmatpush1.msra.mxu0 0.0
    %8581 = vmatprep.subr.mxu0 0.0
    %8582 = vmatpush1.msra.mxu0 0.0
    %8583 = vmatprep.subr.mxu0 0.0
    %8584 = vmatpush1.msra.mxu0 0.0
    %8585 = vmatprep.subr.mxu0 0.0
    %8586 = vmatpush1.msra.mxu0 0.0
    %8587 = vmatprep.subr.mxu0 0.0
    %8588 = vmatpush1.msra.mxu0 0.0
    %8589 = vmatprep.subr.mxu0 0.0
    %8590 = vmatpush1.msra.mxu0 0.0
    %8591 = vmatprep.subr.mxu0 0.0
    %8592 = vmatpush1.msra.mxu0 0.0
    %8593 = vmatprep.subr.mxu0 0.0
    %8594 = vmatpush1.msra.mxu0 0.0
    %8595 = vmatprep.subr.mxu0 0.0
    %8596 = vmatpush1.msra.mxu0 0.0
    %8597 = vmatprep.subr.mxu0 0.0
    %8598 = vmatpush1.msra.mxu0 0.0
    %8599 = vmatprep.subr.mxu0 0.0
    %8600 = vmatpush1.msra.mxu0 0.0
    %8601 = vmatprep.subr.mxu0 0.0
    %8602 = vmatpush1.msra.mxu0 0.0
    %8603 = vmatprep.subr.mxu0 0.0
    %8604 = vmatpush1.msra.mxu0 0.0
    %8605 = vmatprep.subr.mxu0 0.0
    %8606 = vmatpush1.msra.mxu0 0.0
    %8607 = vmatprep.subr.mxu0 0.0
    %8608 = vmatpush1.msra.mxu0 0.0
    %8609 = vmatprep.subr.mxu0 0.0
    %8610 = vmatpush1.msra.mxu0 0.0
    %8611 = vmatprep.subr.mxu0 0.0
    %8612 = vmatpush1.msra.mxu0 0.0
    %8613 = vmatprep.mubr.f32.mxu0 0.0
    %v8614 = vand.u32 %v4117, 4294901760
    %v8615 = vsub.f32 %v4117, %v8614
    %v8616 = vand.u32 %v8615, 4294901760
    %8617 = vmatmul.mubr.f32.gmra.mrb[0].mxu0 %v8616
    %v8618 = vpop.f32.mrb[0].mxu0
    %v8619 = vadd.f32 %v8523, %v8618
    %v8620 = vpop.f32.mrb[0].mxu0
    %8621 = vmatprep.mubr.f32.mxu0 0.0
    %v8622 = vand.u32 %v4120, 4294901760
    %v8623 = vsub.f32 %v4120, %v8622
    %v8624 = vand.u32 %v8623, 4294901760
    %8625 = vmatmul.mubr.f32.gmra.mrb[0].mxu0 %v8624
    %v8626 = vpop.f32.mrb[0].mxu0
    %v8627 = vadd.f32 %v8530, %v8626
    %v8628 = vpop.f32.mrb[0].mxu0
    %8629 = vmatprep.mubr.f32.mxu0 0.0
    %v8630 = vand.u32 %v4123, 4294901760
    %v8631 = vsub.f32 %v4123, %v8630
    %v8632 = vand.u32 %v8631, 4294901760
    %8633 = vmatmul.mubr.f32.gmra.mrb[0].mxu0 %v8632
    %v8634 = vpop.f32.mrb[0].mxu0
    %v8635 = vadd.f32 %v8537, %v8634
    %v8636 = vpop.f32.mrb[0].mxu0
    %8637 = vmatprep.mubr.f32.mxu0 0.0
    %v8638 = vand.u32 %v4126, 4294901760
    %v8639 = vsub.f32 %v4126, %v8638
    %v8640 = vand.u32 %v8639, 4294901760
    %8641 = vmatmul.mubr.f32.gmra.mrb[0].mxu0 %v8640
    %v8642 = vpop.f32.mrb[0].mxu0
    %v8643 = vadd.f32 %v8544, %v8642
    %v8644 = vpop.f32.mrb[0].mxu0
    %8645 = vdwg.mxu0
    %8646 = vmatprep.subr.mxu0 0.0
    %v8647 = vand.u32 %v4107, 4294901760
    %v8648 = vsub.f32 %v4107, %v8647
    %v8649 = vand.u32 %v8648, 4294901760
    %8650 = vmatpush1.msra.mxu0 %v8649
    %8651 = vmatprep.subr.mxu0 0.0
    %v8652 = vand.u32 %v4113, 4294901760
    %v8653 = vsub.f32 %v4113, %v8652
    %v8654 = vand.u32 %v8653, 4294901760
    %8655 = vmatpush1.msra.mxu0 %v8654
    %8656 = vmatprep.subr.mxu0 0.0
    %8657 = vmatpush1.msra.mxu0 0.0
    %8658 = vmatprep.subr.mxu0 0.0
    %8659 = vmatpush1.msra.mxu0 0.0
    %8660 = vmatprep.subr.mxu0 0.0
    %8661 = vmatpush1.msra.mxu0 0.0
    %8662 = vmatprep.subr.mxu0 0.0
    %8663 = vmatpush1.msra.mxu0 0.0
    %8664 = vmatprep.subr.mxu0 0.0
    %8665 = vmatpush1.msra.mxu0 0.0
    %8666 = vmatprep.subr.mxu0 0.0
    %8667 = vmatpush1.msra.mxu0 0.0
    %8668 = vmatprep.subr.mxu0 0.0
    %8669 = vmatpush1.msra.mxu0 0.0
    %8670 = vmatprep.subr.mxu0 0.0
    %8671 = vmatpush1.msra.mxu0 0.0
    %8672 = vmatprep.subr.mxu0 0.0
    %8673 = vmatpush1.msra.mxu0 0.0
    %8674 = vmatprep.subr.mxu0 0.0
    %8675 = vmatpush1.msra.mxu0 0.0
    %8676 = vmatprep.subr.mxu0 0.0
    %8677 = vmatpush1.msra.mxu0 0.0
    %8678 = vmatprep.subr.mxu0 0.0
    %8679 = vmatpush1.msra.mxu0 0.0
    %8680 = vmatprep.subr.mxu0 0.0
    %8681 = vmatpush1.msra.mxu0 0.0
    %8682 = vmatprep.subr.mxu0 0.0
    %8683 = vmatpush1.msra.mxu0 0.0
    %8684 = vmatprep.subr.mxu0 0.0
    %8685 = vmatpush1.msra.mxu0 0.0
    %8686 = vmatprep.subr.mxu0 0.0
    %8687 = vmatpush1.msra.mxu0 0.0
    %8688 = vmatprep.subr.mxu0 0.0
    %8689 = vmatpush1.msra.mxu0 0.0
    %8690 = vmatprep.subr.mxu0 0.0
    %8691 = vmatpush1.msra.mxu0 0.0
    %8692 = vmatprep.subr.mxu0 0.0
    %8693 = vmatpush1.msra.mxu0 0.0
    %8694 = vmatprep.subr.mxu0 0.0
    %8695 = vmatpush1.msra.mxu0 0.0
    %8696 = vmatprep.subr.mxu0 0.0
    %8697 = vmatpush1.msra.mxu0 0.0
    %8698 = vmatprep.subr.mxu0 0.0
    %8699 = vmatpush1.msra.mxu0 0.0
    %8700 = vmatprep.subr.mxu0 0.0
    %8701 = vmatpush1.msra.mxu0 0.0
    %8702 = vmatprep.subr.mxu0 0.0
    %8703 = vmatpush1.msra.mxu0 0.0
    %8704 = vmatprep.subr.mxu0 0.0
    %8705 = vmatpush1.msra.mxu0 0.0
    %8706 = vmatprep.subr.mxu0 0.0
    %8707 = vmatpush1.msra.mxu0 0.0
    %8708 = vmatprep.subr.mxu0 0.0
    %8709 = vmatpush1.msra.mxu0 0.0
    %8710 = vmatprep.subr.mxu0 0.0
    %8711 = vmatpush1.msra.mxu0 0.0
    %8712 = vmatprep.subr.mxu0 0.0
    %8713 = vmatpush1.msra.mxu0 0.0
    %8714 = vmatprep.subr.mxu0 0.0
    %8715 = vmatpush1.msra.mxu0 0.0
    %8716 = vmatprep.mubr.f32.mxu0 0.0
    %v8717 = vand.u32 %v4117, 4294901760
    %8718 = vmatmul.mubr.f32.gmra.mrb[0].mxu0 %v8717
    %v8719 = vpop.f32.mrb[0].mxu0
    %v8720 = vadd.f32 %v8619, %v8719
    %v8721 = vpop.f32.mrb[0].mxu0
    %8722 = vmatprep.mubr.f32.mxu0 0.0
    %v8723 = vand.u32 %v4120, 4294901760
    %8724 = vmatmul.mubr.f32.gmra.mrb[0].mxu0 %v8723
    %v8725 = vpop.f32.mrb[0].mxu0
    %v8726 = vadd.f32 %v8627, %v8725
    %v8727 = vpop.f32.mrb[0].mxu0
    %8728 = vmatprep.mubr.f32.mxu0 0.0
    %v8729 = vand.u32 %v4123, 4294901760
    %8730 = vmatmul.mubr.f32.gmra.mrb[0].mxu0 %v8729
    %v8731 = vpop.f32.mrb[0].mxu0
    %v8732 = vadd.f32 %v8635, %v8731
    %v8733 = vpop.f32.mrb[0].mxu0
    %8734 = vmatprep.mubr.f32.mxu0 0.0
    %v8735 = vand.u32 %v4126, 4294901760
    %8736 = vmatmul.mubr.f32.gmra.mrb[0].mxu0 %v8735
    %v8737 = vpop.f32.mrb[0].mxu0
    %v8738 = vadd.f32 %v8643, %v8737
    %v8739 = vpop.f32.mrb[0].mxu0
    %8740 = vdwg.mxu0
    %8741 = vmatprep.subr.mxu0 0.0
    %v8742 = vand.u32 %v4107, 4294901760
    %8743 = vmatpush1.msra.mxu0 %v8742
    %8744 = vmatprep.subr.mxu0 0.0
    %v8745 = vand.u32 %v4113, 4294901760
    %8746 = vmatpush1.msra.mxu0 %v8745
    %8747 = vmatprep.subr.mxu0 0.0
    %8748 = vmatpush1.msra.mxu0 0.0
    %8749 = vmatprep.subr.mxu0 0.0
    %8750 = vmatpush1.msra.mxu0 0.0
    %8751 = vmatprep.subr.mxu0 0.0
    %8752 = vmatpush1.msra.mxu0 0.0
    %8753 = vmatprep.subr.mxu0 0.0
    %8754 = vmatpush1.msra.mxu0 0.0
    %8755 = vmatprep.subr.mxu0 0.0
    %8756 = vmatpush1.msra.mxu0 0.0
    %8757 = vmatprep.subr.mxu0 0.0
    %8758 = vmatpush1.msra.mxu0 0.0
    %8759 = vmatprep.subr.mxu0 0.0
    %8760 = vmatpush1.msra.mxu0 0.0
    %8761 = vmatprep.subr.mxu0 0.0
    %8762 = vmatpush1.msra.mxu0 0.0
    %8763 = vmatprep.subr.mxu0 0.0
    %8764 = vmatpush1.msra.mxu0 0.0
    %8765 = vmatprep.subr.mxu0 0.0
    %8766 = vmatpush1.msra.mxu0 0.0
    %8767 = vmatprep.subr.mxu0 0.0
    %8768 = vmatpush1.msra.mxu0 0.0
    %8769 = vmatprep.subr.mxu0 0.0
    %8770 = vmatpush1.msra.mxu0 0.0
    %8771 = vmatprep.subr.mxu0 0.0
    %8772 = vmatpush1.msra.mxu0 0.0
    %8773 = vmatprep.subr.mxu0 0.0
    %8774 = vmatpush1.msra.mxu0 0.0
    %8775 = vmatprep.subr.mxu0 0.0
    %8776 = vmatpush1.msra.mxu0 0.0
    %8777 = vmatprep.subr.mxu0 0.0
    %8778 = vmatpush1.msra.mxu0 0.0
    %8779 = vmatprep.subr.mxu0 0.0
    %8780 = vmatpush1.msra.mxu0 0.0
    %8781 = vmatprep.subr.mxu0 0.0
    %8782 = vmatpush1.msra.mxu0 0.0
    %8783 = vmatprep.subr.mxu0 0.0
    %8784 = vmatpush1.msra.mxu0 0.0
    %8785 = vmatprep.subr.mxu0 0.0
    %8786 = vmatpush1.msra.mxu0 0.0
    %8787 = vmatprep.subr.mxu0 0.0
    %8788 = vmatpush1.msra.mxu0 0.0
    %8789 = vmatprep.subr.mxu0 0.0
    %8790 = vmatpush1.msra.mxu0 0.0
    %8791 = vmatprep.subr.mxu0 0.0
    %8792 = vmatpush1.msra.mxu0 0.0
    %8793 = vmatprep.subr.mxu0 0.0
    %8794 = vmatpush1.msra.mxu0 0.0
    %8795 = vmatprep.subr.mxu0 0.0
    %8796 = vmatpush1.msra.mxu0 0.0
    %8797 = vmatprep.subr.mxu0 0.0
    %8798 = vmatpush1.msra.mxu0 0.0
    %8799 = vmatprep.subr.mxu0 0.0
    %8800 = vmatpush1.msra.mxu0 0.0
    %8801 = vmatprep.subr.mxu0 0.0
    %8802 = vmatpush1.msra.mxu0 0.0
    %8803 = vmatprep.subr.mxu0 0.0
    %8804 = vmatpush1.msra.mxu0 0.0
    %8805 = vmatprep.subr.mxu0 0.0
    %8806 = vmatpush1.msra.mxu0 0.0
    %8807 = vmatprep.mubr.f32.mxu0 0.0
    %v8808 = vand.u32 %v4117, 4294901760
    %8809 = vmatmul.mubr.f32.gmra.mrb[0].mxu0 %v8808
    %v8810 = vpop.f32.mrb[0].mxu0
    %v8811 = vadd.f32 %v8720, %v8810
    %v8812 = vpop.f32.mrb[0].mxu0
    %8813 = vmatprep.mubr.f32.mxu0 0.0
    %v8814 = vand.u32 %v4120, 4294901760
    %8815 = vmatmul.mubr.f32.gmra.mrb[0].mxu0 %v8814
    %v8816 = vpop.f32.mrb[0].mxu0
    %v8817 = vadd.f32 %v8726, %v8816
    %v8818 = vpop.f32.mrb[0].mxu0
    %8819 = vmatprep.mubr.f32.mxu0 0.0
    %v8820 = vand.u32 %v4123, 4294901760
    %8821 = vmatmul.mubr.f32.gmra.mrb[0].mxu0 %v8820
    %v8822 = vpop.f32.mrb[0].mxu0
    %v8823 = vadd.f32 %v8732, %v8822
    %v8824 = vpop.f32.mrb[0].mxu0
    %8825 = vmatprep.mubr.f32.mxu0 0.0
    %v8826 = vand.u32 %v4126, 4294901760
    %8827 = vmatmul.mubr.f32.gmra.mrb[0].mxu0 %v8826
    %v8828 = vpop.f32.mrb[0].mxu0
    %v8829 = vadd.f32 %v8738, %v8828
    %v8830 = vpop.f32.mrb[0].mxu0
    %8831 = vdwg.mxu0
    %vm8832 = vcmask 261120
    %8833 = vst.msk [vmem:[#allocation5] sm:$0xff] %vm8832, %v4695
    %8834 = vst.msk [vmem:[#allocation5 + $0x8] sm:$0xff] %vm8832, %v4701
    %8835 = vst.msk [vmem:[#allocation5 + $0x10] sm:$0xff] %vm8832, %v4707
    %8836 = vst.msk [vmem:[#allocation5 + $0x18] sm:$0xff] %vm8832, %v4713
    %8837 = vst.msk [vmem:[#allocation5 + $0x20] sm:$0xff] %vm8832, %v5283
    %8838 = vst.msk [vmem:[#allocation5 + $0x28] sm:$0xff] %vm8832, %v5289
    %8839 = vst.msk [vmem:[#allocation5 + $0x30] sm:$0xff] %vm8832, %v5295
    %8840 = vst.msk [vmem:[#allocation5 + $0x38] sm:$0xff] %vm8832, %v5301
    %8841 = vst.msk [vmem:[#allocation5 + $0x40] sm:$0xff] %vm8832, %v5871
    %8842 = vst.msk [vmem:[#allocation5 + $0x48] sm:$0xff] %vm8832, %v5877
    %8843 = vst.msk [vmem:[#allocation5 + $0x50] sm:$0xff] %vm8832, %v5883
    %8844 = vst.msk [vmem:[#allocation5 + $0x58] sm:$0xff] %vm8832, %v5889
    %8845 = vst.msk [vmem:[#allocation5 + $0x60] sm:$0xff] %vm8832, %v6459
    %8846 = vst.msk [vmem:[#allocation5 + $0x68] sm:$0xff] %vm8832, %v6465
    %8847 = vst.msk [vmem:[#allocation5 + $0x70] sm:$0xff] %vm8832, %v6471
    %8848 = vst.msk [vmem:[#allocation5 + $0x78] sm:$0xff] %vm8832, %v6477
    %8849 = vst.msk [vmem:[#allocation5 + $0x80] sm:$0xff] %vm8832, %v7047
    %8850 = vst.msk [vmem:[#allocation5 + $0x88] sm:$0xff] %vm8832, %v7053
    %8851 = vst.msk [vmem:[#allocation5 + $0x90] sm:$0xff] %vm8832, %v7059
    %8852 = vst.msk [vmem:[#allocation5 + $0x98] sm:$0xff] %vm8832, %v7065
    %8853 = vst.msk [vmem:[#allocation5 + $0xa0] sm:$0xff] %vm8832, %v7635
    %8854 = vst.msk [vmem:[#allocation5 + $0xa8] sm:$0xff] %vm8832, %v7641
    %8855 = vst.msk [vmem:[#allocation5 + $0xb0] sm:$0xff] %vm8832, %v7647
    %8856 = vst.msk [vmem:[#allocation5 + $0xb8] sm:$0xff] %vm8832, %v7653
    %8857 = vst.msk [vmem:[#allocation5 + $0xc0] sm:$0xff] %vm8832, %v8223
    %8858 = vst.msk [vmem:[#allocation5 + $0xc8] sm:$0xff] %vm8832, %v8229
    %8859 = vst.msk [vmem:[#allocation5 + $0xd0] sm:$0xff] %vm8832, %v8235
    %8860 = vst.msk [vmem:[#allocation5 + $0xd8] sm:$0xff] %vm8832, %v8241
    %8861 = vst.msk [vmem:[#allocation5 + $0xe0] sm:$0xff] %vm8832, %v8811
    %8862 = vst.msk [vmem:[#allocation5 + $0xe8] sm:$0xff] %vm8832, %v8817
    %8863 = vst.msk [vmem:[#allocation5 + $0xf0] sm:$0xff] %vm8832, %v8823
    %8864 = vst.msk [vmem:[#allocation5 + $0xf8] sm:$0xff] %vm8832, %v8829
    // Predicated region
    $region18: #{tpu_custom_call.1} parent=1 // pred_check
      _
    $region19: #{tpu_custom_call.1} parent=1 // pred_check_branch
      %8866 = sbr.rel (0) target = $region21
    $region20: #{tpu_custom_call.1} parent=1 // pred_region
      %s8868 = ssub.s32 4096, 4096
      %8869 = vsyncadd [#allocation4], %s8868
      %s8870 = sshll.u32 [#allocation5], 4
      %s8871 = int_to_ptr.vmem [resolvable:$true] %s8870
      %8876 = dma.vmem_to_hbm [thread:$0]  %s8871, 4096, %s3, [#allocation4], 128, 128, 8
    $region21: #{tpu_custom_call.1} parent=1 // pred_fallthru
      _
    // Predicated region
    $region22: #{tpu_custom_call.1} parent=1 // pred_check
      _
    $region23: #{tpu_custom_call.1} parent=1 // pred_check_branch
      %8878 = sbr.rel (0) target = $region25
    $region24: #{tpu_custom_call.1} parent=1 // pred_region
      %8879 = dma.done [#allocation4], 4096
    $region25: #{tpu_custom_call.1} parent=1 // pred_fallthru
      _
    %8880 = vsyncpa [#allocation3], 1
    %8881 = vsyncpa [#allocation4], 1

</llo_original>
